<compile_context>
chip_gen: v6e
topology: v6e:2x2x1
jax: 0.10.0
libtpu: 0.0.40
codegen_flags: <defaults>
</compile_context>

<pallas_src>
import functools

import jax
import jax.numpy as jnp
from jax.experimental import pallas as pl
from jax.experimental.pallas import tpu as pltpu

NCLS_PAD = 128  # lane-dense logits store; wrapper slices back to num_classes


# ----------------------------------------------------------------------------
# Kernel 1: fused Conv3x3(pad=1) + folded-BN + ReLU + MaxPool2x2
# ----------------------------------------------------------------------------
def _conv_bn_relu_pool_kernel(x_ref, w_ref, scale_ref, shift_ref, o_ref, row_scr,
                              *, TB, H, W, Cin, Cout):
    # x_ref:     (TB, H+2, W+2, Cin) bf16  halo-padded NHWC tile, TB images per step
    # w_ref:     (9*Cin, Cout)       bf16  im2col conv weight, rows in (tap, cin) order
    # scale_ref: (1, Cout)           f32   folded BN scale
    # shift_ref: (1, Cout)           f32   folded BN shift (conv bias folded in)
    # o_ref:     (TB, Ho*Wo, Cout)   bf16  pooled output rows in (ho, wo) order
    # row_scr:   (TB*Ho*W, Cout)     f32   scratch for the stride-2 W-direction max
    Ho, Wo = H // 2, W // 2
    M = TB * H * W

    # In-kernel im2col: concatenate the 9 shifted windows on the channel axis and do a
    # single K = 9*Cin MXU dot for the whole image block (review: one K-dense dot).
    cols = []
    for ki in range(3):
        for kj in range(3):
            cols.append(x_ref[:, ki:ki + H, kj:kj + W, :].astype(jnp.float32))
    patches = jnp.concatenate(cols, axis=-1)                 # (TB, H, W, 9*Cin) f32
    a = patches.reshape(M, 9 * Cin).astype(jnp.bfloat16)     # bf16 MXU operand
    acc = jnp.dot(a, w_ref[...], preferred_element_type=jnp.float32)   # (M, Cout) f32

    # Folded BN + ReLU, kept in f32 on the VPU.
    y = jnp.maximum(acc * scale_ref[...] + shift_ref[...], 0.0)

    # 2x2/stride-2 max-pool as a pure VPU epilogue (no selection matmuls):
    #   H direction: split rows into (Ho, 2) pairs via a leading-dim reshape, take max.
    y = y.reshape(TB, Ho, 2, W, Cout)
    yh = jnp.maximum(y[:, :, 0, :, :], y[:, :, 1, :, :])     # (TB, Ho, W, Cout)
    #   W direction: stage rows in VMEM and read even/odd columns with stride-2 loads.
    row_scr[...] = yh.reshape(TB * Ho * W, Cout)
    half = TB * Ho * Wo
    even = row_scr[pl.ds(0, half, 2), :]
    odd = row_scr[pl.ds(1, half, 2), :]
    pooled = jnp.maximum(even, odd)                          # (TB*Ho*Wo, Cout) f32

    o_ref[...] = pooled.reshape(TB, Ho * Wo, Cout).astype(o_ref.dtype)


def conv_bn_relu_maxpool(x_nhwc, w_im2col, scale, shift, *, block_b=8):
    """x_nhwc: (N, H, W, Cin) -> (N, (H//2)*(W//2), Cout) bf16.

    Conv3x3(pad=1) + folded BatchNorm + ReLU + MaxPool2x2, TB images per grid step.
    """
    Nb, H, W, Cin = x_nhwc.shape
    Cout = w_im2col.shape[-1]
    assert H % 2 == 0 and W % 2 == 0
    Ho, Wo = H // 2, W // 2
    TB = min(block_b, Nb)

    # TODO(synk): in-kernel halo (masked border taps) would remove this pad copy.
    xpad = jnp.pad(x_nhwc.astype(jnp.bfloat16), ((0, 0), (1, 1), (1, 1), (0, 0)))

    out = pl.pallas_call(
        functools.partial(_conv_bn_relu_pool_kernel,
                          TB=TB, H=H, W=W, Cin=Cin, Cout=Cout),
        out_shape=jax.ShapeDtypeStruct((Nb, Ho * Wo, Cout), jnp.bfloat16),
        grid=(pl.cdiv(Nb, TB),),
        in_specs=[
            pl.BlockSpec((TB, H + 2, W + 2, Cin), lambda b: (b, 0, 0, 0)),
            pl.BlockSpec((9 * Cin, Cout), lambda b: (0, 0)),
            pl.BlockSpec((1, Cout), lambda b: (0, 0)),
            pl.BlockSpec((1, Cout), lambda b: (0, 0)),
        ],
        out_specs=pl.BlockSpec((TB, Ho * Wo, Cout), lambda b: (b, 0, 0)),
        scratch_shapes=[pltpu.VMEM((TB * Ho * W, Cout), jnp.float32)],
        compiler_params=pltpu.CompilerParams(
            dimension_semantics=("parallel",),       # v7x: shard batch over both TCs
            vmem_limit_bytes=48 * 1024 * 1024,       # v7x-safe (64 MiB/TC) headroom
        ),
    )(xpad, w_im2col, scale[None, :], shift[None, :])
    return out


# ----------------------------------------------------------------------------
# Kernel 2: fused AdaptiveAvgPool(4,4) + flatten + Linear + ReLU + Linear
# ----------------------------------------------------------------------------
def _head_kernel(x_ref, w1_ref, b1_ref, w2_ref, b2_ref, o_ref, *, TB, Hq, Wq, C):
    # x_ref:  (TB, Hq, Wq, C) bf16
    # w1_ref: (16*C, 256)     bf16  fc1, rows pre-permuted to (bin, channel) order
    # b1_ref: (1, 256)        f32
    # w2_ref: (256, NCLS_PAD) bf16  fc2 zero-padded to 128 lane-dense output columns
    # b2_ref: (1, NCLS_PAD)   f32
    # o_ref:  (TB, NCLS_PAD)  f32
    kh, kw = Hq // 4, Wq // 4
    inv = 1.0 / float(kh * kw)

    # AdaptiveAvgPool(4,4) (divisible case): 16 bin means, assembled into one
    # lane-dense (TB, 16*C) operand for a single K=1024 dot.
    feats = []
    for i in range(4):
        for j in range(4):
            win = x_ref[:, i * kh:(i + 1) * kh, j * kw:(j + 1) * kw, :]
            feats.append(jnp.sum(win.astype(jnp.float32), axis=(1, 2)) * inv)  # (TB, C)
    f = jnp.concatenate(feats, axis=-1).astype(jnp.bfloat16)                   # (TB, 16*C)

    h = jnp.dot(f, w1_ref[...], preferred_element_type=jnp.float32) + b1_ref[...]
    h = jnp.maximum(h, 0.0)                       # ReLU (f32)
    # Dropout(0.3) is identity under eval-mode semantics.
    logits = jnp.dot(h.astype(jnp.bfloat16), w2_ref[...],
                     preferred_element_type=jnp.float32) + b2_ref[...]
    o_ref[...] = logits.astype(o_ref.dtype)


def head_pool_mlp(y_nhwc, w1p, b1, w2p, b2p, num_classes, *, block_b=128):
    """y_nhwc: (N, Hq, Wq, C) bf16 -> logits (N, num_classes) f32."""
    Nb, Hq, Wq, C = y_nhwc.shape
    # TODO(synk): non-divisible AdaptiveAvgPool2d bin edges are not implemented.
    assert Hq % 4 == 0 and Wq % 4 == 0
    assert w1p.shape[0] == 16 * C
    TB = min(block_b, Nb)

    out = pl.pallas_call(
        functools.partial(_head_kernel, TB=TB, Hq=Hq, Wq=Wq, C=C),
        out_shape=jax.ShapeDtypeStruct((Nb, NCLS_PAD), jnp.float32),
        grid=(pl.cdiv(Nb, TB),),
        in_specs=[
            pl.BlockSpec((TB, Hq, Wq, C), lambda b: (b, 0, 0, 0)),
            pl.BlockSpec((16 * C, w1p.shape[1]), lambda b: (0, 0)),
            pl.BlockSpec((1, w1p.shape[1]), lambda b: (0, 0)),
            pl.BlockSpec((w1p.shape[1], NCLS_PAD), lambda b: (0, 0)),
            pl.BlockSpec((1, NCLS_PAD), lambda b: (0, 0)),
        ],
        out_specs=pl.BlockSpec((TB, NCLS_PAD), lambda b: (b, 0)),
        compiler_params=pltpu.CompilerParams(
            dimension_semantics=("parallel",),
            vmem_limit_bytes=48 * 1024 * 1024,
        ),
    )(y_nhwc, w1p, b1[None, :], w2p, b2p[None, :])
    return out[:, :num_classes]


# ----------------------------------------------------------------------------
# Parameters: raw module params + one-time preparation (outside the jitted path)
# ----------------------------------------------------------------------------
def init_params(key, num_classes=2):
    ks = jax.random.split(key, 10)
    p = {}
    # Conv2d(3, 32, 3, padding=1): weights stored as (kh, kw, Cin, Cout)
    p["conv1_w"] = jax.random.normal(ks[0], (3, 3, 3, 32), jnp.float32) * 0.1
    p["conv1_b"] = jax.random.normal(ks[1], (32,), jnp.float32) * 0.1
    # BatchNorm2d(32) (eval-mode running stats)
    p["bn1_gamma"] = 1.0 + 0.1 * jax.random.normal(ks[2], (32,), jnp.float32)
    p["bn1_beta"] = 0.1 * jax.random.normal(ks[3], (32,), jnp.float32)
    p["bn1_mean"] = 0.1 * jax.random.normal(ks[4], (32,), jnp.float32)
    p["bn1_var"] = jnp.abs(1.0 + 0.1 * jax.random.normal(ks[5], (32,), jnp.float32))
    # Conv2d(32, 64, 3, padding=1)
    p["conv2_w"] = jax.random.normal(ks[6], (3, 3, 32, 64), jnp.float32) * 0.05
    p["conv2_b"] = jax.random.normal(ks[7], (64,), jnp.float32) * 0.1
    # BatchNorm2d(64)
    kb = jax.random.split(ks[8], 4)
    p["bn2_gamma"] = 1.0 + 0.1 * jax.random.normal(kb[0], (64,), jnp.float32)
    p["bn2_beta"] = 0.1 * jax.random.normal(kb[1], (64,), jnp.float32)
    p["bn2_mean"] = 0.1 * jax.random.normal(kb[2], (64,), jnp.float32)
    p["bn2_var"] = jnp.abs(1.0 + 0.1 * jax.random.normal(kb[3], (64,), jnp.float32))
    # Classifier: Linear(1024, 256), Linear(256, num_classes), stored as (in, out)
    kc = jax.random.split(ks[9], 4)
    p["fc1_w"] = jax.random.normal(kc[0], (64 * 4 * 4, 256), jnp.float32) * 0.02
    p["fc1_b"] = jax.random.normal(kc[1], (256,), jnp.float32) * 0.1
    p["fc2_w"] = jax.random.normal(kc[2], (256, num_classes), jnp.float32) * 0.05
    p["fc2_b"] = jax.random.normal(kc[3], (num_classes,), jnp.float32) * 0.1
    return p


def prepare_params(params, eps=1e-5):
    """One-time weight prep (BN folding, im2col reshape, fc1 row permutation for the
    NCHW flatten, fc2 lane padding, bf16 casts) hoisted out of the jitted forward."""
    p = {}
    # Conv weights -> (9*Cin, Cout); row order (tap=ki*3+kj, cin) matches the kernel's
    # im2col column order.
    p["conv1_w"] = params["conv1_w"].reshape(9 * 3, 32).astype(jnp.bfloat16)
    p["conv2_w"] = params["conv2_w"].reshape(9 * 32, 64).astype(jnp.bfloat16)
    # Folded BN affine (eval-mode running stats); conv bias folded into the shift.
    s1 = params["bn1_gamma"] * jax.lax.rsqrt(params["bn1_var"] + eps)
    p["scale1"] = s1.astype(jnp.float32)
    p["shift1"] = (params["bn1_beta"]
                   + (params["conv1_b"] - params["bn1_mean"]) * s1).astype(jnp.float32)
    s2 = params["bn2_gamma"] * jax.lax.rsqrt(params["bn2_var"] + eps)
    p["scale2"] = s2.astype(jnp.float32)
    p["shift2"] = (params["bn2_beta"]
                   + (params["conv2_b"] - params["bn2_mean"]) * s2).astype(jnp.float32)
    # fc1: fold the PyTorch NCHW nn.Flatten (index = c*16 + bin) into a row permutation
    # so the head kernel can emit features in (bin, channel) order.
    C = 64
    perm = (jnp.arange(C)[None, :] * 16 + jnp.arange(16)[:, None]).reshape(-1)
    p["fc1_w"] = params["fc1_w"][perm, :].astype(jnp.bfloat16)
    p["fc1_b"] = params["fc1_b"].astype(jnp.float32)
    # fc2: zero-pad the class dim to 128 so the head store is lane-dense.
    ncls = params["fc2_w"].shape[1]
    w2p = jnp.zeros((params["fc2_w"].shape[0], NCLS_PAD), jnp.float32)
    w2p = w2p.at[:, :ncls].set(params["fc2_w"])
    b2p = jnp.zeros((NCLS_PAD,), jnp.float32).at[:ncls].set(params["fc2_b"])
    p["fc2_w"] = w2p.astype(jnp.bfloat16)
    p["fc2_b"] = b2p
    return p


# ----------------------------------------------------------------------------
# Forward (eval-mode semantics, matches the PyTorch module)
# ----------------------------------------------------------------------------
def thermal_classifier_forward(x_nchw, prep, num_classes=2):
    """x_nchw: (N, 3, H, W) float32 -> logits (N, num_classes)."""
    x = jnp.transpose(x_nchw, (0, 2, 3, 1))                                # NCHW -> NHWC
    Nb, H, W, _ = x.shape

    # Block 1: Conv(3->32) + BN + ReLU + MaxPool2x2 (one fused kernel).
    y = conv_bn_relu_maxpool(x, prep["conv1_w"], prep["scale1"], prep["shift1"])
    H1, W1 = H // 2, W // 2
    y = y.reshape(Nb, H1, W1, y.shape[-1])                                 # free reshape

    # Block 2: Conv(32->64) + BN + ReLU + MaxPool2x2 (one fused kernel).
    y = conv_bn_relu_maxpool(y, prep["conv2_w"], prep["scale2"], prep["shift2"])
    H2, W2 = H1 // 2, W1 // 2
    y = y.reshape(Nb, H2, W2, y.shape[-1])

    # Tail: AdaptiveAvgPool(4,4) + flatten + fc1 + ReLU + (Dropout=id) + fc2.
    logits = head_pool_mlp(y, prep["fc1_w"], prep["fc1_b"],
                           prep["fc2_w"], prep["fc2_b"], num_classes)
    return logits


if __name__ == "__main__":
    key = jax.random.PRNGKey(0)
    kx, kp = jax.random.split(key)
    # NCHW input consistent with the module: 3 channels, 16x16 spatial, batch 2.
    x = jax.random.normal(kx, (2, 3, 16, 16), jnp.float32)
    params = init_params(kp, num_classes=2)
    prep = prepare_params(params)           # weight prep once, outside the hot path

    fwd = jax.jit(thermal_classifier_forward)
    out = jax.block_until_ready(fwd(x, prep))

    assert out.shape == (2, 2), out.shape
    assert bool(jnp.all(jnp.isfinite(out)))
    print("KERNEL_OK")
</pallas_src>

<mosaic_0001>
module attributes {stable_mosaic.version = 11 : i64} {
  func.func @_conv_bn_relu_pool_kernel(%arg0: i32, %arg1: memref<2x18x18x3xbf16, #tpu.memory_space<vmem>>, %arg2: memref<27x32xbf16, #tpu.memory_space<vmem>>, %arg3: memref<1x32xf32, #tpu.memory_space<vmem>>, %arg4: memref<1x32xf32, #tpu.memory_space<vmem>>, %arg5: memref<2x64x32xbf16, #tpu.memory_space<vmem>>, %arg6: memref<256x32xf32, #tpu.memory_space<vmem>>) attributes {dimension_semantics = [#tpu.dimension_semantics<parallel>], iteration_bounds = array<i64: 1>, scalar_prefetch = 0 : i64, scratch_operands = 1 : i64, tpu.core_type = #tpu.core_type<tc>, window_params = [{transform_indices = @transform_0, window_bounds = array<i64: 2, 18, 18, 3>}, {pipeline_mode = #tpu.pipeline_mode<synchronous>, transform_indices = @transform_1, window_bounds = array<i64: 27, 32>}, {pipeline_mode = #tpu.pipeline_mode<synchronous>, transform_indices = @transform_2, window_bounds = array<i64: 1, 32>}, {pipeline_mode = #tpu.pipeline_mode<synchronous>, transform_indices = @transform_3, window_bounds = array<i64: 1, 32>}, {transform_indices = @transform_4, window_bounds = array<i64: 2, 64, 32>}]} {
    %c0 = arith.constant 0 : index
    %c0_0 = arith.constant 0 : index
    %c0_1 = arith.constant 0 : index
    %c0_2 = arith.constant 0 : index
    %0 = vector.load %arg1[%c0, %c0_0, %c0_1, %c0_2] : memref<2x18x18x3xbf16, #tpu.memory_space<vmem>>, vector<2x16x16x3xbf16>
    %1 = arith.extf %0 : vector<2x16x16x3xbf16> to vector<2x16x16x3xf32>
    %c0_3 = arith.constant 0 : index
    %c0_4 = arith.constant 0 : index
    %c1 = arith.constant 1 : index
    %c0_5 = arith.constant 0 : index
    %2 = vector.load %arg1[%c0_3, %c0_4, %c1, %c0_5] : memref<2x18x18x3xbf16, #tpu.memory_space<vmem>>, vector<2x16x16x3xbf16>
    %3 = arith.extf %2 : vector<2x16x16x3xbf16> to vector<2x16x16x3xf32>
    %c0_6 = arith.constant 0 : index
    %c0_7 = arith.constant 0 : index
    %c2 = arith.constant 2 : index
    %c0_8 = arith.constant 0 : index
    %4 = vector.load %arg1[%c0_6, %c0_7, %c2, %c0_8] : memref<2x18x18x3xbf16, #tpu.memory_space<vmem>>, vector<2x16x16x3xbf16>
    %5 = arith.extf %4 : vector<2x16x16x3xbf16> to vector<2x16x16x3xf32>
    %c0_9 = arith.constant 0 : index
    %c1_10 = arith.constant 1 : index
    %c0_11 = arith.constant 0 : index
    %c0_12 = arith.constant 0 : index
    %6 = vector.load %arg1[%c0_9, %c1_10, %c0_11, %c0_12] : memref<2x18x18x3xbf16, #tpu.memory_space<vmem>>, vector<2x16x16x3xbf16>
    %7 = arith.extf %6 : vector<2x16x16x3xbf16> to vector<2x16x16x3xf32>
    %c0_13 = arith.constant 0 : index
    %c1_14 = arith.constant 1 : index
    %c1_15 = arith.constant 1 : index
    %c0_16 = arith.constant 0 : index
    %8 = vector.load %arg1[%c0_13, %c1_14, %c1_15, %c0_16] : memref<2x18x18x3xbf16, #tpu.memory_space<vmem>>, vector<2x16x16x3xbf16>
    %9 = arith.extf %8 : vector<2x16x16x3xbf16> to vector<2x16x16x3xf32>
    %c0_17 = arith.constant 0 : index
    %c1_18 = arith.constant 1 : index
    %c2_19 = arith.constant 2 : index
    %c0_20 = arith.constant 0 : index
    %10 = vector.load %arg1[%c0_17, %c1_18, %c2_19, %c0_20] : memref<2x18x18x3xbf16, #tpu.memory_space<vmem>>, vector<2x16x16x3xbf16>
    %11 = arith.extf %10 : vector<2x16x16x3xbf16> to vector<2x16x16x3xf32>
    %c0_21 = arith.constant 0 : index
    %c2_22 = arith.constant 2 : index
    %c0_23 = arith.constant 0 : index
    %c0_24 = arith.constant 0 : index
    %12 = vector.load %arg1[%c0_21, %c2_22, %c0_23, %c0_24] : memref<2x18x18x3xbf16, #tpu.memory_space<vmem>>, vector<2x16x16x3xbf16>
    %13 = arith.extf %12 : vector<2x16x16x3xbf16> to vector<2x16x16x3xf32>
    %c0_25 = arith.constant 0 : index
    %c2_26 = arith.constant 2 : index
    %c1_27 = arith.constant 1 : index
    %c0_28 = arith.constant 0 : index
    %14 = vector.load %arg1[%c0_25, %c2_26, %c1_27, %c0_28] : memref<2x18x18x3xbf16, #tpu.memory_space<vmem>>, vector<2x16x16x3xbf16>
    %15 = arith.extf %14 : vector<2x16x16x3xbf16> to vector<2x16x16x3xf32>
    %c0_29 = arith.constant 0 : index
    %c2_30 = arith.constant 2 : index
    %c2_31 = arith.constant 2 : index
    %c0_32 = arith.constant 0 : index
    %16 = vector.load %arg1[%c0_29, %c2_30, %c2_31, %c0_32] : memref<2x18x18x3xbf16, #tpu.memory_space<vmem>>, vector<2x16x16x3xbf16>
    %17 = arith.extf %16 : vector<2x16x16x3xbf16> to vector<2x16x16x3xf32>
    %18 = tpu.concatenate %1, %3, %5, %7, %9, %11, %13, %15, %17 in 3 : vector<2x16x16x3xf32>, vector<2x16x16x3xf32>, vector<2x16x16x3xf32>, vector<2x16x16x3xf32>, vector<2x16x16x3xf32>, vector<2x16x16x3xf32>, vector<2x16x16x3xf32>, vector<2x16x16x3xf32>, vector<2x16x16x3xf32> -> vector<2x16x16x27xf32>
    %19 = vector.shape_cast %18 : vector<2x16x16x27xf32> to vector<512x27xf32>
    %20 = arith.truncf %19 : vector<512x27xf32> to vector<512x27xbf16>
    %c0_33 = arith.constant 0 : index
    %c0_34 = arith.constant 0 : index
    %21 = vector.load %arg2[%c0_33, %c0_34] : memref<27x32xbf16, #tpu.memory_space<vmem>>, vector<27x32xbf16>
    %cst = arith.constant dense<0.000000e+00> : vector<512x32xf32>
    %22 = tpu.matmul %20, %21, %cst {dimension_numbers = #tpu.dot_dimension_numbers<[1], [0], [0], [1], [0, 0, 1, 1], [], []>} : vector<512x27xbf16>, vector<27x32xbf16>, vector<512x32xf32> -> vector<512x32xf32>
    %c0_35 = arith.constant 0 : index
    %c0_36 = arith.constant 0 : index
    %23 = vector.load %arg3[%c0_35, %c0_36] : memref<1x32xf32, #tpu.memory_space<vmem>>, vector<1x32xf32>
    %24 = vector.broadcast %23 : vector<1x32xf32> to vector<512x32xf32>
    %25 = arith.mulf %22, %24 : vector<512x32xf32>
    %c0_37 = arith.constant 0 : index
    %c0_38 = arith.constant 0 : index
    %26 = vector.load %arg4[%c0_37, %c0_38] : memref<1x32xf32, #tpu.memory_space<vmem>>, vector<1x32xf32>
    %27 = vector.broadcast %26 : vector<1x32xf32> to vector<512x32xf32>
    %28 = arith.addf %25, %27 : vector<512x32xf32>
    %cst_39 = arith.constant 0.000000e+00 : f32
    %29 = vector.broadcast %cst_39 : f32 to vector<512x32xf32>
    %30 = arith.maximumf %28, %29 : vector<512x32xf32>
    %31 = vector.shape_cast %30 : vector<512x32xf32> to vector<2x8x2x16x32xf32>
    %32 = vector.extract_strided_slice %31 {offsets = [0, 0, 0, 0, 0], sizes = [2, 8, 1, 16, 32], strides = [1, 1, 1, 1, 1]} : vector<2x8x2x16x32xf32> to vector<2x8x1x16x32xf32>
    %33 = vector.shape_cast %32 : vector<2x8x1x16x32xf32> to vector<2x8x16x32xf32>
    %34 = vector.extract_strided_slice %31 {offsets = [0, 0, 1, 0, 0], sizes = [2, 8, 1, 16, 32], strides = [1, 1, 1, 1, 1]} : vector<2x8x2x16x32xf32> to vector<2x8x1x16x32xf32>
    %35 = vector.shape_cast %34 : vector<2x8x1x16x32xf32> to vector<2x8x16x32xf32>
    %36 = arith.maximumf %33, %35 : vector<2x8x16x32xf32>
    %37 = vector.shape_cast %36 : vector<2x8x16x32xf32> to vector<256x32xf32>
    %c0_40 = arith.constant 0 : index
    %c0_41 = arith.constant 0 : index
    %38 = vector.load %arg6[%c0_40, %c0_41] : memref<256x32xf32, #tpu.memory_space<vmem>>, vector<256x32xf32>
    tpu.vector_store %arg6[%c0_40, %c0_41], %37 {strides = array<i32>} : memref<256x32xf32, #tpu.memory_space<vmem>>, vector<256x32xf32>,
    %c0_42 = arith.constant 0 : index
    %c0_43 = arith.constant 0 : index
    %39 = tpu.strided_load %arg6[%c0_42, %c0_43] {strides = array<i32: 2, 1>} : memref<256x32xf32, #tpu.memory_space<vmem>>, vector<128x32xf32>
    %c1_44 = arith.constant 1 : index
    %c0_45 = arith.constant 0 : index
    %40 = tpu.strided_load %arg6[%c1_44, %c0_45] {strides = array<i32: 2, 1>} : memref<256x32xf32, #tpu.memory_space<vmem>>, vector<128x32xf32>
    %41 = arith.maximumf %39, %40 : vector<128x32xf32>
    %42 = vector.shape_cast %41 : vector<128x32xf32> to vector<2x64x32xf32>
    %43 = arith.truncf %42 : vector<2x64x32xf32> to vector<2x64x32xbf16>
    %c0_46 = arith.constant 0 : index
    %c0_47 = arith.constant 0 : index
    %c0_48 = arith.constant 0 : index
    %44 = vector.load %arg5[%c0_46, %c0_47, %c0_48] : memref<2x64x32xbf16, #tpu.memory_space<vmem>>, vector<2x64x32xbf16>
    tpu.vector_store %arg5[%c0_46, %c0_47, %c0_48], %43 {strides = array<i32>} : memref<2x64x32xbf16, #tpu.memory_space<vmem>>, vector<2x64x32xbf16>,
    return
  }
  func.func @transform_0(%arg0: i32) -> (i32, i32, i32, i32) {
    %c0_i32 = arith.constant 0 : i32
    %c0_i32_0 = arith.constant 0 : i32
    %c0_i32_1 = arith.constant 0 : i32
    %c0_i32_2 = arith.constant 0 : i32
    return %arg0, %c0_i32, %c0_i32_0, %c0_i32_1 : i32, i32, i32, i32
  }
  func.func @transform_1(%arg0: i32) -> (i32, i32) {
    %c0_i32 = arith.constant 0 : i32
    %c0_i32_0 = arith.constant 0 : i32
    %c0_i32_1 = arith.constant 0 : i32
    return %c0_i32, %c0_i32_0 : i32, i32
  }
  func.func @transform_2(%arg0: i32) -> (i32, i32) {
    %c0_i32 = arith.constant 0 : i32
    %c0_i32_0 = arith.constant 0 : i32
    %c0_i32_1 = arith.constant 0 : i32
    return %c0_i32, %c0_i32_0 : i32, i32
  }
  func.func @transform_3(%arg0: i32) -> (i32, i32) {
    %c0_i32 = arith.constant 0 : i32
    %c0_i32_0 = arith.constant 0 : i32
    %c0_i32_1 = arith.constant 0 : i32
    return %c0_i32, %c0_i32_0 : i32, i32
  }
  func.func @transform_4(%arg0: i32) -> (i32, i32, i32) {
    %c0_i32 = arith.constant 0 : i32
    %c0_i32_0 = arith.constant 0 : i32
    %c0_i32_1 = arith.constant 0 : i32
    return %arg0, %c0_i32, %c0_i32_0 : i32, i32, i32
  }
}

module attributes {stable_mosaic.version = 11 : i64} {
  func.func @_conv_bn_relu_pool_kernel(%arg0: i32, %arg1: memref<2x10x10x32xbf16, #tpu.memory_space<vmem>>, %arg2: memref<288x64xbf16, #tpu.memory_space<vmem>>, %arg3: memref<1x64xf32, #tpu.memory_space<vmem>>, %arg4: memref<1x64xf32, #tpu.memory_space<vmem>>, %arg5: memref<2x16x64xbf16, #tpu.memory_space<vmem>>, %arg6: memref<64x64xf32, #tpu.memory_space<vmem>>) attributes {dimension_semantics = [#tpu.dimension_semantics<parallel>], iteration_bounds = array<i64: 1>, scalar_prefetch = 0 : i64, scratch_operands = 1 : i64, tpu.core_type = #tpu.core_type<tc>, window_params = [{transform_indices = @transform_0, window_bounds = array<i64: 2, 10, 10, 32>}, {pipeline_mode = #tpu.pipeline_mode<synchronous>, transform_indices = @transform_1, window_bounds = array<i64: 288, 64>}, {pipeline_mode = #tpu.pipeline_mode<synchronous>, transform_indices = @transform_2, window_bounds = array<i64: 1, 64>}, {pipeline_mode = #tpu.pipeline_mode<synchronous>, transform_indices = @transform_3, window_bounds = array<i64: 1, 64>}, {transform_indices = @transform_4, window_bounds = array<i64: 2, 16, 64>}]} {
    %c0 = arith.constant 0 : index
    %c0_0 = arith.constant 0 : index
    %c0_1 = arith.constant 0 : index
    %c0_2 = arith.constant 0 : index
    %0 = vector.load %arg1[%c0, %c0_0, %c0_1, %c0_2] : memref<2x10x10x32xbf16, #tpu.memory_space<vmem>>, vector<2x8x8x32xbf16>
    %1 = arith.extf %0 : vector<2x8x8x32xbf16> to vector<2x8x8x32xf32>
    %c0_3 = arith.constant 0 : index
    %c0_4 = arith.constant 0 : index
    %c1 = arith.constant 1 : index
    %c0_5 = arith.constant 0 : index
    %2 = vector.load %arg1[%c0_3, %c0_4, %c1, %c0_5] : memref<2x10x10x32xbf16, #tpu.memory_space<vmem>>, vector<2x8x8x32xbf16>
    %3 = arith.extf %2 : vector<2x8x8x32xbf16> to vector<2x8x8x32xf32>
    %c0_6 = arith.constant 0 : index
    %c0_7 = arith.constant 0 : index
    %c2 = arith.constant 2 : index
    %c0_8 = arith.constant 0 : index
    %4 = vector.load %arg1[%c0_6, %c0_7, %c2, %c0_8] : memref<2x10x10x32xbf16, #tpu.memory_space<vmem>>, vector<2x8x8x32xbf16>
    %5 = arith.extf %4 : vector<2x8x8x32xbf16> to vector<2x8x8x32xf32>
    %c0_9 = arith.constant 0 : index
    %c1_10 = arith.constant 1 : index
    %c0_11 = arith.constant 0 : index
    %c0_12 = arith.constant 0 : index
    %6 = vector.load %arg1[%c0_9, %c1_10, %c0_11, %c0_12] : memref<2x10x10x32xbf16, #tpu.memory_space<vmem>>, vector<2x8x8x32xbf16>
    %7 = arith.extf %6 : vector<2x8x8x32xbf16> to vector<2x8x8x32xf32>
    %c0_13 = arith.constant 0 : index
    %c1_14 = arith.constant 1 : index
    %c1_15 = arith.constant 1 : index
    %c0_16 = arith.constant 0 : index
    %8 = vector.load %arg1[%c0_13, %c1_14, %c1_15, %c0_16] : memref<2x10x10x32xbf16, #tpu.memory_space<vmem>>, vector<2x8x8x32xbf16>
    %9 = arith.extf %8 : vector<2x8x8x32xbf16> to vector<2x8x8x32xf32>
    %c0_17 = arith.constant 0 : index
    %c1_18 = arith.constant 1 : index
    %c2_19 = arith.constant 2 : index
    %c0_20 = arith.constant 0 : index
    %10 = vector.load %arg1[%c0_17, %c1_18, %c2_19, %c0_20] : memref<2x10x10x32xbf16, #tpu.memory_space<vmem>>, vector<2x8x8x32xbf16>
    %11 = arith.extf %10 : vector<2x8x8x32xbf16> to vector<2x8x8x32xf32>
    %c0_21 = arith.constant 0 : index
    %c2_22 = arith.constant 2 : index
    %c0_23 = arith.constant 0 : index
    %c0_24 = arith.constant 0 : index
    %12 = vector.load %arg1[%c0_21, %c2_22, %c0_23, %c0_24] : memref<2x10x10x32xbf16, #tpu.memory_space<vmem>>, vector<2x8x8x32xbf16>
    %13 = arith.extf %12 : vector<2x8x8x32xbf16> to vector<2x8x8x32xf32>
    %c0_25 = arith.constant 0 : index
    %c2_26 = arith.constant 2 : index
    %c1_27 = arith.constant 1 : index
    %c0_28 = arith.constant 0 : index
    %14 = vector.load %arg1[%c0_25, %c2_26, %c1_27, %c0_28] : memref<2x10x10x32xbf16, #tpu.memory_space<vmem>>, vector<2x8x8x32xbf16>
    %15 = arith.extf %14 : vector<2x8x8x32xbf16> to vector<2x8x8x32xf32>
    %c0_29 = arith.constant 0 : index
    %c2_30 = arith.constant 2 : index
    %c2_31 = arith.constant 2 : index
    %c0_32 = arith.constant 0 : index
    %16 = vector.load %arg1[%c0_29, %c2_30, %c2_31, %c0_32] : memref<2x10x10x32xbf16, #tpu.memory_space<vmem>>, vector<2x8x8x32xbf16>
    %17 = arith.extf %16 : vector<2x8x8x32xbf16> to vector<2x8x8x32xf32>
    %18 = tpu.concatenate %1, %3, %5, %7, %9, %11, %13, %15, %17 in 3 : vector<2x8x8x32xf32>, vector<2x8x8x32xf32>, vector<2x8x8x32xf32>, vector<2x8x8x32xf32>, vector<2x8x8x32xf32>, vector<2x8x8x32xf32>, vector<2x8x8x32xf32>, vector<2x8x8x32xf32>, vector<2x8x8x32xf32> -> vector<2x8x8x288xf32>
    %19 = vector.shape_cast %18 : vector<2x8x8x288xf32> to vector<128x288xf32>
    %20 = arith.truncf %19 : vector<128x288xf32> to vector<128x288xbf16>
    %c0_33 = arith.constant 0 : index
    %c0_34 = arith.constant 0 : index
    %21 = vector.load %arg2[%c0_33, %c0_34] : memref<288x64xbf16, #tpu.memory_space<vmem>>, vector<288x64xbf16>
    %cst = arith.constant dense<0.000000e+00> : vector<128x64xf32>
    %22 = tpu.matmul %20, %21, %cst {dimension_numbers = #tpu.dot_dimension_numbers<[1], [0], [0], [1], [0, 0, 1, 1], [], []>} : vector<128x288xbf16>, vector<288x64xbf16>, vector<128x64xf32> -> vector<128x64xf32>
    %c0_35 = arith.constant 0 : index
    %c0_36 = arith.constant 0 : index
    %23 = vector.load %arg3[%c0_35, %c0_36] : memref<1x64xf32, #tpu.memory_space<vmem>>, vector<1x64xf32>
    %24 = vector.broadcast %23 : vector<1x64xf32> to vector<128x64xf32>
    %25 = arith.mulf %22, %24 : vector<128x64xf32>
    %c0_37 = arith.constant 0 : index
    %c0_38 = arith.constant 0 : index
    %26 = vector.load %arg4[%c0_37, %c0_38] : memref<1x64xf32, #tpu.memory_space<vmem>>, vector<1x64xf32>
    %27 = vector.broadcast %26 : vector<1x64xf32> to vector<128x64xf32>
    %28 = arith.addf %25, %27 : vector<128x64xf32>
    %cst_39 = arith.constant 0.000000e+00 : f32
    %29 = vector.broadcast %cst_39 : f32 to vector<128x64xf32>
    %30 = arith.maximumf %28, %29 : vector<128x64xf32>
    %31 = vector.shape_cast %30 : vector<128x64xf32> to vector<2x4x2x8x64xf32>
    %32 = vector.extract_strided_slice %31 {offsets = [0, 0, 0, 0, 0], sizes = [2, 4, 1, 8, 64], strides = [1, 1, 1, 1, 1]} : vector<2x4x2x8x64xf32> to vector<2x4x1x8x64xf32>
    %33 = vector.shape_cast %32 : vector<2x4x1x8x64xf32> to vector<2x4x8x64xf32>
    %34 = vector.extract_strided_slice %31 {offsets = [0, 0, 1, 0, 0], sizes = [2, 4, 1, 8, 64], strides = [1, 1, 1, 1, 1]} : vector<2x4x2x8x64xf32> to vector<2x4x1x8x64xf32>
    %35 = vector.shape_cast %34 : vector<2x4x1x8x64xf32> to vector<2x4x8x64xf32>
    %36 = arith.maximumf %33, %35 : vector<2x4x8x64xf32>
    %37 = vector.shape_cast %36 : vector<2x4x8x64xf32> to vector<64x64xf32>
    %c0_40 = arith.constant 0 : index
    %c0_41 = arith.constant 0 : index
    %38 = vector.load %arg6[%c0_40, %c0_41] : memref<64x64xf32, #tpu.memory_space<vmem>>, vector<64x64xf32>
    tpu.vector_store %arg6[%c0_40, %c0_41], %37 {strides = array<i32>} : memref<64x64xf32, #tpu.memory_space<vmem>>, vector<64x64xf32>,
    %c0_42 = arith.constant 0 : index
    %c0_43 = arith.constant 0 : index
    %39 = tpu.strided_load %arg6[%c0_42, %c0_43] {strides = array<i32: 2, 1>} : memref<64x64xf32, #tpu.memory_space<vmem>>, vector<32x64xf32>
    %c1_44 = arith.constant 1 : index
    %c0_45 = arith.constant 0 : index
    %40 = tpu.strided_load %arg6[%c1_44, %c0_45] {strides = array<i32: 2, 1>} : memref<64x64xf32, #tpu.memory_space<vmem>>, vector<32x64xf32>
    %41 = arith.maximumf %39, %40 : vector<32x64xf32>
    %42 = vector.shape_cast %41 : vector<32x64xf32> to vector<2x16x64xf32>
    %43 = arith.truncf %42 : vector<2x16x64xf32> to vector<2x16x64xbf16>
    %c0_46 = arith.constant 0 : index
    %c0_47 = arith.constant 0 : index
    %c0_48 = arith.constant 0 : index
    %44 = vector.load %arg5[%c0_46, %c0_47, %c0_48] : memref<2x16x64xbf16, #tpu.memory_space<vmem>>, vector<2x16x64xbf16>
    tpu.vector_store %arg5[%c0_46, %c0_47, %c0_48], %43 {strides = array<i32>} : memref<2x16x64xbf16, #tpu.memory_space<vmem>>, vector<2x16x64xbf16>,
    return
  }
  func.func @transform_0(%arg0: i32) -> (i32, i32, i32, i32) {
    %c0_i32 = arith.constant 0 : i32
    %c0_i32_0 = arith.constant 0 : i32
    %c0_i32_1 = arith.constant 0 : i32
    %c0_i32_2 = arith.constant 0 : i32
    return %arg0, %c0_i32, %c0_i32_0, %c0_i32_1 : i32, i32, i32, i32
  }
  func.func @transform_1(%arg0: i32) -> (i32, i32) {
    %c0_i32 = arith.constant 0 : i32
    %c0_i32_0 = arith.constant 0 : i32
    %c0_i32_1 = arith.constant 0 : i32
    return %c0_i32, %c0_i32_0 : i32, i32
  }
  func.func @transform_2(%arg0: i32) -> (i32, i32) {
    %c0_i32 = arith.constant 0 : i32
    %c0_i32_0 = arith.constant 0 : i32
    %c0_i32_1 = arith.constant 0 : i32
    return %c0_i32, %c0_i32_0 : i32, i32
  }
  func.func @transform_3(%arg0: i32) -> (i32, i32) {
    %c0_i32 = arith.constant 0 : i32
    %c0_i32_0 = arith.constant 0 : i32
    %c0_i32_1 = arith.constant 0 : i32
    return %c0_i32, %c0_i32_0 : i32, i32
  }
  func.func @transform_4(%arg0: i32) -> (i32, i32, i32) {
    %c0_i32 = arith.constant 0 : i32
    %c0_i32_0 = arith.constant 0 : i32
    %c0_i32_1 = arith.constant 0 : i32
    return %arg0, %c0_i32, %c0_i32_0 : i32, i32, i32
  }
}

module attributes {stable_mosaic.version = 11 : i64} {
  func.func @_head_kernel(%arg0: i32, %arg1: memref<2x4x4x64xbf16, #tpu.memory_space<vmem>>, %arg2: memref<1024x256xbf16, #tpu.memory_space<vmem>>, %arg3: memref<1x256xf32, #tpu.memory_space<vmem>>, %arg4: memref<256x128xbf16, #tpu.memory_space<vmem>>, %arg5: memref<1x128xf32, #tpu.memory_space<vmem>>, %arg6: memref<2x128xf32, #tpu.memory_space<vmem>>) attributes {dimension_semantics = [#tpu.dimension_semantics<parallel>], iteration_bounds = array<i64: 1>, scalar_prefetch = 0 : i64, scratch_operands = 0 : i64, tpu.core_type = #tpu.core_type<tc>, window_params = [{transform_indices = @transform_0, window_bounds = array<i64: 2, 4, 4, 64>}, {pipeline_mode = #tpu.pipeline_mode<synchronous>, transform_indices = @transform_1, window_bounds = array<i64: 1024, 256>}, {pipeline_mode = #tpu.pipeline_mode<synchronous>, transform_indices = @transform_2, window_bounds = array<i64: 1, 256>}, {pipeline_mode = #tpu.pipeline_mode<synchronous>, transform_indices = @transform_3, window_bounds = array<i64: 256, 128>}, {pipeline_mode = #tpu.pipeline_mode<synchronous>, transform_indices = @transform_4, window_bounds = array<i64: 1, 128>}, {transform_indices = @transform_5, window_bounds = array<i64: 2, 128>}]} {
    %c0 = arith.constant 0 : index
    %c0_0 = arith.constant 0 : index
    %c0_1 = arith.constant 0 : index
    %c0_2 = arith.constant 0 : index
    %0 = vector.load %arg1[%c0, %c0_0, %c0_1, %c0_2] : memref<2x4x4x64xbf16, #tpu.memory_space<vmem>>, vector<2x1x1x64xbf16>
    %1 = arith.extf %0 : vector<2x1x1x64xbf16> to vector<2x1x1x64xf32>
    %cst = arith.constant dense<0.000000e+00> : vector<2x64xf32>
    %2 = vector.multi_reduction <add>, %1, %cst [1, 2] : vector<2x1x1x64xf32> to vector<2x64xf32>
    %cst_3 = arith.constant 1.000000e+00 : f32
    %3 = vector.broadcast %cst_3 : f32 to vector<2x64xf32>
    %4 = arith.mulf %2, %3 : vector<2x64xf32>
    %c0_4 = arith.constant 0 : index
    %c0_5 = arith.constant 0 : index
    %c1 = arith.constant 1 : index
    %c0_6 = arith.constant 0 : index
    %5 = vector.load %arg1[%c0_4, %c0_5, %c1, %c0_6] : memref<2x4x4x64xbf16, #tpu.memory_space<vmem>>, vector<2x1x1x64xbf16>
    %6 = arith.extf %5 : vector<2x1x1x64xbf16> to vector<2x1x1x64xf32>
    %cst_7 = arith.constant dense<0.000000e+00> : vector<2x64xf32>
    %7 = vector.multi_reduction <add>, %6, %cst_7 [1, 2] : vector<2x1x1x64xf32> to vector<2x64xf32>
    %cst_8 = arith.constant 1.000000e+00 : f32
    %8 = vector.broadcast %cst_8 : f32 to vector<2x64xf32>
    %9 = arith.mulf %7, %8 : vector<2x64xf32>
    %c0_9 = arith.constant 0 : index
    %c0_10 = arith.constant 0 : index
    %c2 = arith.constant 2 : index
    %c0_11 = arith.constant 0 : index
    %10 = vector.load %arg1[%c0_9, %c0_10, %c2, %c0_11] : memref<2x4x4x64xbf16, #tpu.memory_space<vmem>>, vector<2x1x1x64xbf16>
    %11 = arith.extf %10 : vector<2x1x1x64xbf16> to vector<2x1x1x64xf32>
    %cst_12 = arith.constant dense<0.000000e+00> : vector<2x64xf32>
    %12 = vector.multi_reduction <add>, %11, %cst_12 [1, 2] : vector<2x1x1x64xf32> to vector<2x64xf32>
    %cst_13 = arith.constant 1.000000e+00 : f32
    %13 = vector.broadcast %cst_13 : f32 to vector<2x64xf32>
    %14 = arith.mulf %12, %13 : vector<2x64xf32>
    %c0_14 = arith.constant 0 : index
    %c0_15 = arith.constant 0 : index
    %c3 = arith.constant 3 : index
    %c0_16 = arith.constant 0 : index
    %15 = vector.load %arg1[%c0_14, %c0_15, %c3, %c0_16] : memref<2x4x4x64xbf16, #tpu.memory_space<vmem>>, vector<2x1x1x64xbf16>
    %16 = arith.extf %15 : vector<2x1x1x64xbf16> to vector<2x1x1x64xf32>
    %cst_17 = arith.constant dense<0.000000e+00> : vector<2x64xf32>
    %17 = vector.multi_reduction <add>, %16, %cst_17 [1, 2] : vector<2x1x1x64xf32> to vector<2x64xf32>
    %cst_18 = arith.constant 1.000000e+00 : f32
    %18 = vector.broadcast %cst_18 : f32 to vector<2x64xf32>
    %19 = arith.mulf %17, %18 : vector<2x64xf32>
    %c0_19 = arith.constant 0 : index
    %c1_20 = arith.constant 1 : index
    %c0_21 = arith.constant 0 : index
    %c0_22 = arith.constant 0 : index
    %20 = vector.load %arg1[%c0_19, %c1_20, %c0_21, %c0_22] : memref<2x4x4x64xbf16, #tpu.memory_space<vmem>>, vector<2x1x1x64xbf16>
    %21 = arith.extf %20 : vector<2x1x1x64xbf16> to vector<2x1x1x64xf32>
    %cst_23 = arith.constant dense<0.000000e+00> : vector<2x64xf32>
    %22 = vector.multi_reduction <add>, %21, %cst_23 [1, 2] : vector<2x1x1x64xf32> to vector<2x64xf32>
    %cst_24 = arith.constant 1.000000e+00 : f32
    %23 = vector.broadcast %cst_24 : f32 to vector<2x64xf32>
    %24 = arith.mulf %22, %23 : vector<2x64xf32>
    %c0_25 = arith.constant 0 : index
    %c1_26 = arith.constant 1 : index
    %c1_27 = arith.constant 1 : index
    %c0_28 = arith.constant 0 : index
    %25 = vector.load %arg1[%c0_25, %c1_26, %c1_27, %c0_28] : memref<2x4x4x64xbf16, #tpu.memory_space<vmem>>, vector<2x1x1x64xbf16>
    %26 = arith.extf %25 : vector<2x1x1x64xbf16> to vector<2x1x1x64xf32>
    %cst_29 = arith.constant dense<0.000000e+00> : vector<2x64xf32>
    %27 = vector.multi_reduction <add>, %26, %cst_29 [1, 2] : vector<2x1x1x64xf32> to vector<2x64xf32>
    %cst_30 = arith.constant 1.000000e+00 : f32
    %28 = vector.broadcast %cst_30 : f32 to vector<2x64xf32>
    %29 = arith.mulf %27, %28 : vector<2x64xf32>
    %c0_31 = arith.constant 0 : index
    %c1_32 = arith.constant 1 : index
    %c2_33 = arith.constant 2 : index
    %c0_34 = arith.constant 0 : index
    %30 = vector.load %arg1[%c0_31, %c1_32, %c2_33, %c0_34] : memref<2x4x4x64xbf16, #tpu.memory_space<vmem>>, vector<2x1x1x64xbf16>
    %31 = arith.extf %30 : vector<2x1x1x64xbf16> to vector<2x1x1x64xf32>
    %cst_35 = arith.constant dense<0.000000e+00> : vector<2x64xf32>
    %32 = vector.multi_reduction <add>, %31, %cst_35 [1, 2] : vector<2x1x1x64xf32> to vector<2x64xf32>
    %cst_36 = arith.constant 1.000000e+00 : f32
    %33 = vector.broadcast %cst_36 : f32 to vector<2x64xf32>
    %34 = arith.mulf %32, %33 : vector<2x64xf32>
    %c0_37 = arith.constant 0 : index
    %c1_38 = arith.constant 1 : index
    %c3_39 = arith.constant 3 : index
    %c0_40 = arith.constant 0 : index
    %35 = vector.load %arg1[%c0_37, %c1_38, %c3_39, %c0_40] : memref<2x4x4x64xbf16, #tpu.memory_space<vmem>>, vector<2x1x1x64xbf16>
    %36 = arith.extf %35 : vector<2x1x1x64xbf16> to vector<2x1x1x64xf32>
    %cst_41 = arith.constant dense<0.000000e+00> : vector<2x64xf32>
    %37 = vector.multi_reduction <add>, %36, %cst_41 [1, 2] : vector<2x1x1x64xf32> to vector<2x64xf32>
    %cst_42 = arith.constant 1.000000e+00 : f32
    %38 = vector.broadcast %cst_42 : f32 to vector<2x64xf32>
    %39 = arith.mulf %37, %38 : vector<2x64xf32>
    %c0_43 = arith.constant 0 : index
    %c2_44 = arith.constant 2 : index
    %c0_45 = arith.constant 0 : index
    %c0_46 = arith.constant 0 : index
    %40 = vector.load %arg1[%c0_43, %c2_44, %c0_45, %c0_46] : memref<2x4x4x64xbf16, #tpu.memory_space<vmem>>, vector<2x1x1x64xbf16>
    %41 = arith.extf %40 : vector<2x1x1x64xbf16> to vector<2x1x1x64xf32>
    %cst_47 = arith.constant dense<0.000000e+00> : vector<2x64xf32>
    %42 = vector.multi_reduction <add>, %41, %cst_47 [1, 2] : vector<2x1x1x64xf32> to vector<2x64xf32>
    %cst_48 = arith.constant 1.000000e+00 : f32
    %43 = vector.broadcast %cst_48 : f32 to vector<2x64xf32>
    %44 = arith.mulf %42, %43 : vector<2x64xf32>
    %c0_49 = arith.constant 0 : index
    %c2_50 = arith.constant 2 : index
    %c1_51 = arith.constant 1 : index
    %c0_52 = arith.constant 0 : index
    %45 = vector.load %arg1[%c0_49, %c2_50, %c1_51, %c0_52] : memref<2x4x4x64xbf16, #tpu.memory_space<vmem>>, vector<2x1x1x64xbf16>
    %46 = arith.extf %45 : vector<2x1x1x64xbf16> to vector<2x1x1x64xf32>
    %cst_53 = arith.constant dense<0.000000e+00> : vector<2x64xf32>
    %47 = vector.multi_reduction <add>, %46, %cst_53 [1, 2] : vector<2x1x1x64xf32> to vector<2x64xf32>
    %cst_54 = arith.constant 1.000000e+00 : f32
    %48 = vector.broadcast %cst_54 : f32 to vector<2x64xf32>
    %49 = arith.mulf %47, %48 : vector<2x64xf32>
    %c0_55 = arith.constant 0 : index
    %c2_56 = arith.constant 2 : index
    %c2_57 = arith.constant 2 : index
    %c0_58 = arith.constant 0 : index
    %50 = vector.load %arg1[%c0_55, %c2_56, %c2_57, %c0_58] : memref<2x4x4x64xbf16, #tpu.memory_space<vmem>>, vector<2x1x1x64xbf16>
    %51 = arith.extf %50 : vector<2x1x1x64xbf16> to vector<2x1x1x64xf32>
    %cst_59 = arith.constant dense<0.000000e+00> : vector<2x64xf32>
    %52 = vector.multi_reduction <add>, %51, %cst_59 [1, 2] : vector<2x1x1x64xf32> to vector<2x64xf32>
    %cst_60 = arith.constant 1.000000e+00 : f32
    %53 = vector.broadcast %cst_60 : f32 to vector<2x64xf32>
    %54 = arith.mulf %52, %53 : vector<2x64xf32>
    %c0_61 = arith.constant 0 : index
    %c2_62 = arith.constant 2 : index
    %c3_63 = arith.constant 3 : index
    %c0_64 = arith.constant 0 : index
    %55 = vector.load %arg1[%c0_61, %c2_62, %c3_63, %c0_64] : memref<2x4x4x64xbf16, #tpu.memory_space<vmem>>, vector<2x1x1x64xbf16>
    %56 = arith.extf %55 : vector<2x1x1x64xbf16> to vector<2x1x1x64xf32>
    %cst_65 = arith.constant dense<0.000000e+00> : vector<2x64xf32>
    %57 = vector.multi_reduction <add>, %56, %cst_65 [1, 2] : vector<2x1x1x64xf32> to vector<2x64xf32>
    %cst_66 = arith.constant 1.000000e+00 : f32
    %58 = vector.broadcast %cst_66 : f32 to vector<2x64xf32>
    %59 = arith.mulf %57, %58 : vector<2x64xf32>
    %c0_67 = arith.constant 0 : index
    %c3_68 = arith.constant 3 : index
    %c0_69 = arith.constant 0 : index
    %c0_70 = arith.constant 0 : index
    %60 = vector.load %arg1[%c0_67, %c3_68, %c0_69, %c0_70] : memref<2x4x4x64xbf16, #tpu.memory_space<vmem>>, vector<2x1x1x64xbf16>
    %61 = arith.extf %60 : vector<2x1x1x64xbf16> to vector<2x1x1x64xf32>
    %cst_71 = arith.constant dense<0.000000e+00> : vector<2x64xf32>
    %62 = vector.multi_reduction <add>, %61, %cst_71 [1, 2] : vector<2x1x1x64xf32> to vector<2x64xf32>
    %cst_72 = arith.constant 1.000000e+00 : f32
    %63 = vector.broadcast %cst_72 : f32 to vector<2x64xf32>
    %64 = arith.mulf %62, %63 : vector<2x64xf32>
    %c0_73 = arith.constant 0 : index
    %c3_74 = arith.constant 3 : index
    %c1_75 = arith.constant 1 : index
    %c0_76 = arith.constant 0 : index
    %65 = vector.load %arg1[%c0_73, %c3_74, %c1_75, %c0_76] : memref<2x4x4x64xbf16, #tpu.memory_space<vmem>>, vector<2x1x1x64xbf16>
    %66 = arith.extf %65 : vector<2x1x1x64xbf16> to vector<2x1x1x64xf32>
    %cst_77 = arith.constant dense<0.000000e+00> : vector<2x64xf32>
    %67 = vector.multi_reduction <add>, %66, %cst_77 [1, 2] : vector<2x1x1x64xf32> to vector<2x64xf32>
    %cst_78 = arith.constant 1.000000e+00 : f32
    %68 = vector.broadcast %cst_78 : f32 to vector<2x64xf32>
    %69 = arith.mulf %67, %68 : vector<2x64xf32>
    %c0_79 = arith.constant 0 : index
    %c3_80 = arith.constant 3 : index
    %c2_81 = arith.constant 2 : index
    %c0_82 = arith.constant 0 : index
    %70 = vector.load %arg1[%c0_79, %c3_80, %c2_81, %c0_82] : memref<2x4x4x64xbf16, #tpu.memory_space<vmem>>, vector<2x1x1x64xbf16>
    %71 = arith.extf %70 : vector<2x1x1x64xbf16> to vector<2x1x1x64xf32>
    %cst_83 = arith.constant dense<0.000000e+00> : vector<2x64xf32>
    %72 = vector.multi_reduction <add>, %71, %cst_83 [1, 2] : vector<2x1x1x64xf32> to vector<2x64xf32>
    %cst_84 = arith.constant 1.000000e+00 : f32
    %73 = vector.broadcast %cst_84 : f32 to vector<2x64xf32>
    %74 = arith.mulf %72, %73 : vector<2x64xf32>
    %c0_85 = arith.constant 0 : index
    %c3_86 = arith.constant 3 : index
    %c3_87 = arith.constant 3 : index
    %c0_88 = arith.constant 0 : index
    %75 = vector.load %arg1[%c0_85, %c3_86, %c3_87, %c0_88] : memref<2x4x4x64xbf16, #tpu.memory_space<vmem>>, vector<2x1x1x64xbf16>
    %76 = arith.extf %75 : vector<2x1x1x64xbf16> to vector<2x1x1x64xf32>
    %cst_89 = arith.constant dense<0.000000e+00> : vector<2x64xf32>
    %77 = vector.multi_reduction <add>, %76, %cst_89 [1, 2] : vector<2x1x1x64xf32> to vector<2x64xf32>
    %cst_90 = arith.constant 1.000000e+00 : f32
    %78 = vector.broadcast %cst_90 : f32 to vector<2x64xf32>
    %79 = arith.mulf %77, %78 : vector<2x64xf32>
    %80 = tpu.concatenate %4, %9, %14, %19, %24, %29, %34, %39, %44, %49, %54, %59, %64, %69, %74, %79 in 1 : vector<2x64xf32>, vector<2x64xf32>, vector<2x64xf32>, vector<2x64xf32>, vector<2x64xf32>, vector<2x64xf32>, vector<2x64xf32>, vector<2x64xf32>, vector<2x64xf32>, vector<2x64xf32>, vector<2x64xf32>, vector<2x64xf32>, vector<2x64xf32>, vector<2x64xf32>, vector<2x64xf32>, vector<2x64xf32> -> vector<2x1024xf32>
    %81 = arith.truncf %80 : vector<2x1024xf32> to vector<2x1024xbf16>
    %c0_91 = arith.constant 0 : index
    %c0_92 = arith.constant 0 : index
    %82 = vector.load %arg2[%c0_91, %c0_92] : memref<1024x256xbf16, #tpu.memory_space<vmem>>, vector<1024x256xbf16>
    %cst_93 = arith.constant dense<0.000000e+00> : vector<2x256xf32>
    %83 = tpu.matmul %81, %82, %cst_93 {dimension_numbers = #tpu.dot_dimension_numbers<[1], [0], [0], [1], [0, 0, 1, 1], [], []>} : vector<2x1024xbf16>, vector<1024x256xbf16>, vector<2x256xf32> -> vector<2x256xf32>
    %c0_94 = arith.constant 0 : index
    %c0_95 = arith.constant 0 : index
    %84 = vector.load %arg3[%c0_94, %c0_95] : memref<1x256xf32, #tpu.memory_space<vmem>>, vector<1x256xf32>
    %85 = vector.broadcast %84 : vector<1x256xf32> to vector<2x256xf32>
    %86 = arith.addf %83, %85 : vector<2x256xf32>
    %cst_96 = arith.constant 0.000000e+00 : f32
    %87 = vector.broadcast %cst_96 : f32 to vector<2x256xf32>
    %88 = arith.maximumf %86, %87 : vector<2x256xf32>
    %89 = arith.truncf %88 : vector<2x256xf32> to vector<2x256xbf16>
    %c0_97 = arith.constant 0 : index
    %c0_98 = arith.constant 0 : index
    %90 = vector.load %arg4[%c0_97, %c0_98] : memref<256x128xbf16, #tpu.memory_space<vmem>>, vector<256x128xbf16>
    %cst_99 = arith.constant dense<0.000000e+00> : vector<2x128xf32>
    %91 = tpu.matmul %89, %90, %cst_99 {dimension_numbers = #tpu.dot_dimension_numbers<[1], [0], [0], [1], [0, 0, 1, 1], [], []>} : vector<2x256xbf16>, vector<256x128xbf16>, vector<2x128xf32> -> vector<2x128xf32>
    %c0_100 = arith.constant 0 : index
    %c0_101 = arith.constant 0 : index
    %92 = vector.load %arg5[%c0_100, %c0_101] : memref<1x128xf32, #tpu.memory_space<vmem>>, vector<1x128xf32>
    %93 = vector.broadcast %92 : vector<1x128xf32> to vector<2x128xf32>
    %94 = arith.addf %91, %93 : vector<2x128xf32>
    %c0_102 = arith.constant 0 : index
    %c0_103 = arith.constant 0 : index
    %95 = vector.load %arg6[%c0_102, %c0_103] : memref<2x128xf32, #tpu.memory_space<vmem>>, vector<2x128xf32>
    tpu.vector_store %arg6[%c0_102, %c0_103], %94 {strides = array<i32>} : memref<2x128xf32, #tpu.memory_space<vmem>>, vector<2x128xf32>,
    return
  }
  func.func @transform_0(%arg0: i32) -> (i32, i32, i32, i32) {
    %c0_i32 = arith.constant 0 : i32
    %c0_i32_0 = arith.constant 0 : i32
    %c0_i32_1 = arith.constant 0 : i32
    %c0_i32_2 = arith.constant 0 : i32
    return %arg0, %c0_i32, %c0_i32_0, %c0_i32_1 : i32, i32, i32, i32
  }
  func.func @transform_1(%arg0: i32) -> (i32, i32) {
    %c0_i32 = arith.constant 0 : i32
    %c0_i32_0 = arith.constant 0 : i32
    %c0_i32_1 = arith.constant 0 : i32
    return %c0_i32, %c0_i32_0 : i32, i32
  }
  func.func @transform_2(%arg0: i32) -> (i32, i32) {
    %c0_i32 = arith.constant 0 : i32
    %c0_i32_0 = arith.constant 0 : i32
    %c0_i32_1 = arith.constant 0 : i32
    return %c0_i32, %c0_i32_0 : i32, i32
  }
  func.func @transform_3(%arg0: i32) -> (i32, i32) {
    %c0_i32 = arith.constant 0 : i32
    %c0_i32_0 = arith.constant 0 : i32
    %c0_i32_1 = arith.constant 0 : i32
    return %c0_i32, %c0_i32_0 : i32, i32
  }
  func.func @transform_4(%arg0: i32) -> (i32, i32) {
    %c0_i32 = arith.constant 0 : i32
    %c0_i32_0 = arith.constant 0 : i32
    %c0_i32_1 = arith.constant 0 : i32
    return %c0_i32, %c0_i32_0 : i32, i32
  }
  func.func @transform_5(%arg0: i32) -> (i32, i32) {
    %c0_i32 = arith.constant 0 : i32
    %c0_i32_0 = arith.constant 0 : i32
    return %arg0, %c0_i32 : i32, i32
  }
}

</mosaic_0001>

<llo_original>
// kernel: thermal_classifier_forward.5
$region0: #{thermal_classifier_forward.5}
  #allocation0 [shape = 'u32[]', space=smem, size = 0x4, offset = 0x4, fixed_abs, tag = 'smem constant byte address 0x4 - core index']
  #allocation1 [shape = 'u32[144,128]{1,0:T(1,128)}', space=vmem, size = 0x12000, scoped, tag = 'internal scratch']
  %s0 = inlined_call_operand.vmem [shape: bf16[2,4,4,64], index: 0, kind: input, shape index: {}]
  %s1 = inlined_call_operand.vmem [shape: bf16[1024,256], index: 1, kind: input, shape index: {}]
  %s2 = inlined_call_operand.vmem [shape: f32[1,256], index: 2, kind: input, shape index: {}]
  %s3 = inlined_call_operand.vmem [shape: bf16[256,128], index: 3, kind: input, shape index: {}]
  %s4 = inlined_call_operand.vmem [shape: f32[1,128], index: 4, kind: input, shape index: {}]
  %s5 = inlined_call_operand.hbm [shape: f32[2,128], index: 5, kind: output, shape index: {}]
  %s6 = sld [smem:[#allocation0]]
  $region30: #{thermal_classifier_forward.5} parent=0
    _
  %s8 = ssub.s32 1, %s6
  %s9 = scalar_select 0, %s8, %s6
  $region1: #{thermal_classifier_forward.5} parent=0
    #allocation2 [shape = 'u8[1024]{0}', space=vmem, size = 0x400, scoped, tag = 'output window, operand 0, single buffered']
    #allocation3 [shape = 's32[1]{0}', space=sflag, size = 0x4, scoped, tag = 'scoped memory for thermal_classifier_forward.5']
    %10 = vsyncpa [#allocation3], 0
    // Predicated region
    $region2: #{thermal_classifier_forward.5} parent=1 // pred_check
      _
    $region3: #{thermal_classifier_forward.5} parent=1 // pred_check_branch
      %12 = sbr.rel (0) target = $region5
    $region4: #{thermal_classifier_forward.5} parent=1 // pred_region
      _
    $region5: #{thermal_classifier_forward.5} parent=1 // pred_fallthru
      _
    // Predicated region
    $region6: #{thermal_classifier_forward.5} parent=1 // pred_check
      _
    $region7: #{thermal_classifier_forward.5} parent=1 // pred_check_branch
      %14 = sbr.rel (0) target = $region9
    $region8: #{thermal_classifier_forward.5} parent=1 // pred_region
      _
    $region9: #{thermal_classifier_forward.5} parent=1 // pred_fallthru
      _
    // Predicated region
    $region10: #{thermal_classifier_forward.5} parent=1 // pred_check
      _
    $region11: #{thermal_classifier_forward.5} parent=1 // pred_check_branch
      %16 = sbr.rel (0) target = $region13
    $region12: #{thermal_classifier_forward.5} parent=1 // pred_region
      _
    $region13: #{thermal_classifier_forward.5} parent=1 // pred_fallthru
      _
    // Predicated region
    $region14: #{thermal_classifier_forward.5} parent=1 // pred_check
      _
    $region15: #{thermal_classifier_forward.5} parent=1 // pred_check_branch
      %18 = sbr.rel (0) target = $region17
    $region16: #{thermal_classifier_forward.5} parent=1 // pred_region
      _
    $region17: #{thermal_classifier_forward.5} parent=1 // pred_fallthru
      _
    // Predicated region
    $region18: #{thermal_classifier_forward.5} parent=1 // pred_check
      _
    $region19: #{thermal_classifier_forward.5} parent=1 // pred_check_branch
      %20 = sbr.rel (0) target = $region21
    $region20: #{thermal_classifier_forward.5} parent=1 // pred_region
      _
    $region21: #{thermal_classifier_forward.5} parent=1 // pred_fallthru
      _
    %v22 = vld [vmem:[%s0] sm:$0x1]
    %v23 = vld [vmem:[%s0 + $0x8] sm:$0x1]
    %v24 = vunpack.c.l.bf16 %v22
    %v25 = vunpack.c.l.bf16 %v23
    %v26 = vadd.f32 %v24, 0.0
    %v27 = vadd.f32 %v25, 0.0
    %v28 = vld [vmem:[%s0] sm:$0x2]
    %v29 = vld [vmem:[%s0 + $0x8] sm:$0x2]
    %v30 = vunpack.c.l.bf16 %v28
    %v31 = vunpack.c.l.bf16 %v29
    %v32 = vadd.f32 %v30, 0.0
    %v33 = vadd.f32 %v31, 0.0
    %s34 = scalar_lea.vmem %s0, 2
    %v35 = vld [vmem:[%s34] sm:$0x1]
    %v36 = vld [vmem:[%s34 + $0x8] sm:$0x1]
    %v37 = vunpack.c.l.bf16 %v35
    %v38 = vunpack.c.l.bf16 %v36
    %v39 = vadd.f32 %v37, 0.0
    %v40 = vadd.f32 %v38, 0.0
    %v41 = vld [vmem:[%s34] sm:$0x2]
    %v42 = vld [vmem:[%s34 + $0x8] sm:$0x2]
    %v43 = vunpack.c.l.bf16 %v41
    %v44 = vunpack.c.l.bf16 %v42
    %v45 = vadd.f32 %v43, 0.0
    %v46 = vadd.f32 %v44, 0.0
    %s47 = scalar_lea.vmem %s0, 4
    %v48 = vld [vmem:[%s47] sm:$0x1]
    %v49 = vld [vmem:[%s47 + $0x8] sm:$0x1]
    %v50 = vunpack.c.l.bf16 %v48
    %v51 = vunpack.c.l.bf16 %v49
    %v52 = vadd.f32 %v50, 0.0
    %v53 = vadd.f32 %v51, 0.0
    %v54 = vld [vmem:[%s47] sm:$0x2]
    %v55 = vld [vmem:[%s47 + $0x8] sm:$0x2]
    %v56 = vunpack.c.l.bf16 %v54
    %v57 = vunpack.c.l.bf16 %v55
    %v58 = vadd.f32 %v56, 0.0
    %v59 = vadd.f32 %v57, 0.0
    %s60 = scalar_lea.vmem %s0, 6
    %v61 = vld [vmem:[%s60] sm:$0x1]
    %v62 = vld [vmem:[%s60 + $0x8] sm:$0x1]
    %v63 = vunpack.c.l.bf16 %v61
    %v64 = vunpack.c.l.bf16 %v62
    %v65 = vadd.f32 %v63, 0.0
    %v66 = vadd.f32 %v64, 0.0
    %v67 = vld [vmem:[%s60] sm:$0x2]
    %v68 = vld [vmem:[%s60 + $0x8] sm:$0x2]
    %v69 = vunpack.c.l.bf16 %v67
    %v70 = vunpack.c.l.bf16 %v68
    %v71 = vadd.f32 %v69, 0.0
    %v72 = vadd.f32 %v70, 0.0
    %v75 = vlaneseq
    %v76 = vshrl.u32 %v75, 7
    %v77 = vsub.s32 0, %v76
    %v78 = vrot.slane %v26, %v77
    %v79 = vlaneseq
    %v80 = vshrl.u32 %v79, 7
    %v81 = vsub.s32 0, %v80
    %v82 = vrot.slane %v27, %v81
    %vm83 = vcmask 1041409
    %v84 = vsel %vm83, %v82, %v78
    %v86 = vlaneseq
    %v87 = vshrl.u32 %v86, 7
    %v88 = vsub.s32 1, %v87
    %v89 = vrot.slane %v26, %v88
    %v90 = vlaneseq
    %v91 = vshrl.u32 %v90, 7
    %v92 = vsub.s32 1, %v91
    %v93 = vrot.slane %v27, %v92
    %v94 = vsel %vm83, %v93, %v89
    %95 = vrot.lane.b32.xlu0 %v94, 64
    %v96 = vpop.permute.xlu0 %95
    %v100 = vlaneseq
    %v101 = vshrl.u32 %v100, 7
    %v102 = vsub.s32 2, %v101
    %v103 = vrot.slane %v32, %v102
    %v104 = vlaneseq
    %v105 = vshrl.u32 %v104, 7
    %v106 = vsub.s32 2, %v105
    %v107 = vrot.slane %v33, %v106
    %v108 = vsel %vm83, %v107, %v103
    %v110 = vlaneseq
    %v111 = vshrl.u32 %v110, 7
    %v112 = vsub.s32 3, %v111
    %v113 = vrot.slane %v32, %v112
    %v114 = vlaneseq
    %v115 = vshrl.u32 %v114, 7
    %v116 = vsub.s32 3, %v115
    %v117 = vrot.slane %v33, %v116
    %v118 = vsel %vm83, %v117, %v113
    %119 = vrot.lane.b32.xlu0 %v118, 64
    %v120 = vpop.permute.xlu0 %119
    %v124 = vlaneseq
    %v125 = vshrl.u32 %v124, 7
    %v126 = vsub.s32 0, %v125
    %v127 = vrot.slane %v39, %v126
    %v128 = vlaneseq
    %v129 = vshrl.u32 %v128, 7
    %v130 = vsub.s32 0, %v129
    %v131 = vrot.slane %v40, %v130
    %v132 = vsel %vm83, %v131, %v127
    %v134 = vlaneseq
    %v135 = vshrl.u32 %v134, 7
    %v136 = vsub.s32 1, %v135
    %v137 = vrot.slane %v39, %v136
    %v138 = vlaneseq
    %v139 = vshrl.u32 %v138, 7
    %v140 = vsub.s32 1, %v139
    %v141 = vrot.slane %v40, %v140
    %v142 = vsel %vm83, %v141, %v137
    %143 = vrot.lane.b32.xlu0 %v142, 64
    %v144 = vpop.permute.xlu0 %143
    %v148 = vlaneseq
    %v149 = vshrl.u32 %v148, 7
    %v150 = vsub.s32 2, %v149
    %v151 = vrot.slane %v45, %v150
    %v152 = vlaneseq
    %v153 = vshrl.u32 %v152, 7
    %v154 = vsub.s32 2, %v153
    %v155 = vrot.slane %v46, %v154
    %v156 = vsel %vm83, %v155, %v151
    %v158 = vlaneseq
    %v159 = vshrl.u32 %v158, 7
    %v160 = vsub.s32 3, %v159
    %v161 = vrot.slane %v45, %v160
    %v162 = vlaneseq
    %v163 = vshrl.u32 %v162, 7
    %v164 = vsub.s32 3, %v163
    %v165 = vrot.slane %v46, %v164
    %v166 = vsel %vm83, %v165, %v161
    %167 = vrot.lane.b32.xlu0 %v166, 64
    %v168 = vpop.permute.xlu0 %167
    %v172 = vlaneseq
    %v173 = vshrl.u32 %v172, 7
    %v174 = vsub.s32 0, %v173
    %v175 = vrot.slane %v52, %v174
    %v176 = vlaneseq
    %v177 = vshrl.u32 %v176, 7
    %v178 = vsub.s32 0, %v177
    %v179 = vrot.slane %v53, %v178
    %v180 = vsel %vm83, %v179, %v175
    %v182 = vlaneseq
    %v183 = vshrl.u32 %v182, 7
    %v184 = vsub.s32 1, %v183
    %v185 = vrot.slane %v52, %v184
    %v186 = vlaneseq
    %v187 = vshrl.u32 %v186, 7
    %v188 = vsub.s32 1, %v187
    %v189 = vrot.slane %v53, %v188
    %v190 = vsel %vm83, %v189, %v185
    %191 = vrot.lane.b32.xlu0 %v190, 64
    %v192 = vpop.permute.xlu0 %191
    %v196 = vlaneseq
    %v197 = vshrl.u32 %v196, 7
    %v198 = vsub.s32 2, %v197
    %v199 = vrot.slane %v58, %v198
    %v200 = vlaneseq
    %v201 = vshrl.u32 %v200, 7
    %v202 = vsub.s32 2, %v201
    %v203 = vrot.slane %v59, %v202
    %v204 = vsel %vm83, %v203, %v199
    %v206 = vlaneseq
    %v207 = vshrl.u32 %v206, 7
    %v208 = vsub.s32 3, %v207
    %v209 = vrot.slane %v58, %v208
    %v210 = vlaneseq
    %v211 = vshrl.u32 %v210, 7
    %v212 = vsub.s32 3, %v211
    %v213 = vrot.slane %v59, %v212
    %v214 = vsel %vm83, %v213, %v209
    %215 = vrot.lane.b32.xlu0 %v214, 64
    %v216 = vpop.permute.xlu0 %215
    %v220 = vlaneseq
    %v221 = vshrl.u32 %v220, 7
    %v222 = vsub.s32 0, %v221
    %v223 = vrot.slane %v65, %v222
    %v224 = vlaneseq
    %v225 = vshrl.u32 %v224, 7
    %v226 = vsub.s32 0, %v225
    %v227 = vrot.slane %v66, %v226
    %v228 = vsel %vm83, %v227, %v223
    %v230 = vlaneseq
    %v231 = vshrl.u32 %v230, 7
    %v232 = vsub.s32 1, %v231
    %v233 = vrot.slane %v65, %v232
    %v234 = vlaneseq
    %v235 = vshrl.u32 %v234, 7
    %v236 = vsub.s32 1, %v235
    %v237 = vrot.slane %v66, %v236
    %v238 = vsel %vm83, %v237, %v233
    %239 = vrot.lane.b32.xlu0 %v238, 64
    %v240 = vpop.permute.xlu0 %239
    %v244 = vlaneseq
    %v245 = vshrl.u32 %v244, 7
    %v246 = vsub.s32 2, %v245
    %v247 = vrot.slane %v71, %v246
    %v248 = vlaneseq
    %v249 = vshrl.u32 %v248, 7
    %v250 = vsub.s32 2, %v249
    %v251 = vrot.slane %v72, %v250
    %v252 = vsel %vm83, %v251, %v247
    %v254 = vlaneseq
    %v255 = vshrl.u32 %v254, 7
    %v256 = vsub.s32 3, %v255
    %v257 = vrot.slane %v71, %v256
    %v258 = vlaneseq
    %v259 = vshrl.u32 %v258, 7
    %v260 = vsub.s32 3, %v259
    %v261 = vrot.slane %v72, %v260
    %v262 = vsel %vm83, %v261, %v257
    %263 = vrot.lane.b32.xlu0 %v262, 64
    %v264 = vpop.permute.xlu0 %263
    %vm266 = vcmask 523264
    %v267 = vsel %vm266, %v84, %v96
    %v268 = vsel %vm266, %v108, %v120
    %v269 = vsel %vm266, %v132, %v144
    %v270 = vsel %vm266, %v156, %v168
    %v271 = vsel %vm266, %v180, %v192
    %v272 = vsel %vm266, %v204, %v216
    %v273 = vsel %vm266, %v228, %v240
    %v274 = vsel %vm266, %v252, %v264
    %v275 = vpack.c.bf16 %v267, %v267
    %v276 = vpack.c.bf16 %v268, %v268
    %v277 = vpack.c.bf16 %v269, %v269
    %v278 = vpack.c.bf16 %v270, %v270
    %v279 = vpack.c.bf16 %v271, %v271
    %v280 = vpack.c.bf16 %v272, %v272
    %v281 = vpack.c.bf16 %v273, %v273
    %v282 = vpack.c.bf16 %v274, %v274
    %v283 = vld [vmem:[%s1] sm:$0xff]
    %v284 = vld [vmem:[%s1 + $0x8] sm:$0xff]
    %v285 = vld [vmem:[%s1 + $0x10] sm:$0xff]
    %v286 = vld [vmem:[%s1 + $0x18] sm:$0xff]
    %v287 = vld [vmem:[%s1 + $0x20] sm:$0xff]
    %v288 = vld [vmem:[%s1 + $0x28] sm:$0xff]
    %v289 = vld [vmem:[%s1 + $0x30] sm:$0xff]
    %v290 = vld [vmem:[%s1 + $0x38] sm:$0xff]
    %v291 = vld [vmem:[%s1 + $0x40] sm:$0xff]
    %v292 = vld [vmem:[%s1 + $0x48] sm:$0xff]
    %v293 = vld [vmem:[%s1 + $0x50] sm:$0xff]
    %v294 = vld [vmem:[%s1 + $0x58] sm:$0xff]
    %v295 = vld [vmem:[%s1 + $0x60] sm:$0xff]
    %v296 = vld [vmem:[%s1 + $0x68] sm:$0xff]
    %v297 = vld [vmem:[%s1 + $0x70] sm:$0xff]
    %v298 = vld [vmem:[%s1 + $0x78] sm:$0xff]
    %v299 = vld [vmem:[%s1 + $0x80] sm:$0xff]
    %v300 = vld [vmem:[%s1 + $0x88] sm:$0xff]
    %v301 = vld [vmem:[%s1 + $0x90] sm:$0xff]
    %v302 = vld [vmem:[%s1 + $0x98] sm:$0xff]
    %v303 = vld [vmem:[%s1 + $0xa0] sm:$0xff]
    %v304 = vld [vmem:[%s1 + $0xa8] sm:$0xff]
    %v305 = vld [vmem:[%s1 + $0xb0] sm:$0xff]
    %v306 = vld [vmem:[%s1 + $0xb8] sm:$0xff]
    %v307 = vld [vmem:[%s1 + $0xc0] sm:$0xff]
    %v308 = vld [vmem:[%s1 + $0xc8] sm:$0xff]
    %v309 = vld [vmem:[%s1 + $0xd0] sm:$0xff]
    %v310 = vld [vmem:[%s1 + $0xd8] sm:$0xff]
    %v311 = vld [vmem:[%s1 + $0xe0] sm:$0xff]
    %v312 = vld [vmem:[%s1 + $0xe8] sm:$0xff]
    %v313 = vld [vmem:[%s1 + $0xf0] sm:$0xff]
    %v314 = vld [vmem:[%s1 + $0xf8] sm:$0xff]
    %v315 = vld [vmem:[%s1 + $0x100] sm:$0xff]
    %v316 = vld [vmem:[%s1 + $0x108] sm:$0xff]
    %v317 = vld [vmem:[%s1 + $0x110] sm:$0xff]
    %v318 = vld [vmem:[%s1 + $0x118] sm:$0xff]
    %v319 = vld [vmem:[%s1 + $0x120] sm:$0xff]
    %v320 = vld [vmem:[%s1 + $0x128] sm:$0xff]
    %v321 = vld [vmem:[%s1 + $0x130] sm:$0xff]
    %v322 = vld [vmem:[%s1 + $0x138] sm:$0xff]
    %v323 = vld [vmem:[%s1 + $0x140] sm:$0xff]
    %v324 = vld [vmem:[%s1 + $0x148] sm:$0xff]
    %v325 = vld [vmem:[%s1 + $0x150] sm:$0xff]
    %v326 = vld [vmem:[%s1 + $0x158] sm:$0xff]
    %v327 = vld [vmem:[%s1 + $0x160] sm:$0xff]
    %v328 = vld [vmem:[%s1 + $0x168] sm:$0xff]
    %v329 = vld [vmem:[%s1 + $0x170] sm:$0xff]
    %v330 = vld [vmem:[%s1 + $0x178] sm:$0xff]
    %v331 = vld [vmem:[%s1 + $0x180] sm:$0xff]
    %v332 = vld [vmem:[%s1 + $0x188] sm:$0xff]
    %v333 = vld [vmem:[%s1 + $0x190] sm:$0xff]
    %v334 = vld [vmem:[%s1 + $0x198] sm:$0xff]
    %v335 = vld [vmem:[%s1 + $0x1a0] sm:$0xff]
    %v336 = vld [vmem:[%s1 + $0x1a8] sm:$0xff]
    %v337 = vld [vmem:[%s1 + $0x1b0] sm:$0xff]
    %v338 = vld [vmem:[%s1 + $0x1b8] sm:$0xff]
    %v339 = vld [vmem:[%s1 + $0x1c0] sm:$0xff]
    %v340 = vld [vmem:[%s1 + $0x1c8] sm:$0xff]
    %v341 = vld [vmem:[%s1 + $0x1d0] sm:$0xff]
    %v342 = vld [vmem:[%s1 + $0x1d8] sm:$0xff]
    %v343 = vld [vmem:[%s1 + $0x1e0] sm:$0xff]
    %v344 = vld [vmem:[%s1 + $0x1e8] sm:$0xff]
    %v345 = vld [vmem:[%s1 + $0x1f0] sm:$0xff]
    %v346 = vld [vmem:[%s1 + $0x1f8] sm:$0xff]
    %v347 = vld [vmem:[%s1 + $0x200] sm:$0xff]
    %v348 = vld [vmem:[%s1 + $0x208] sm:$0xff]
    %v349 = vld [vmem:[%s1 + $0x210] sm:$0xff]
    %v350 = vld [vmem:[%s1 + $0x218] sm:$0xff]
    %v351 = vld [vmem:[%s1 + $0x220] sm:$0xff]
    %v352 = vld [vmem:[%s1 + $0x228] sm:$0xff]
    %v353 = vld [vmem:[%s1 + $0x230] sm:$0xff]
    %v354 = vld [vmem:[%s1 + $0x238] sm:$0xff]
    %v355 = vld [vmem:[%s1 + $0x240] sm:$0xff]
    %v356 = vld [vmem:[%s1 + $0x248] sm:$0xff]
    %v357 = vld [vmem:[%s1 + $0x250] sm:$0xff]
    %v358 = vld [vmem:[%s1 + $0x258] sm:$0xff]
    %v359 = vld [vmem:[%s1 + $0x260] sm:$0xff]
    %v360 = vld [vmem:[%s1 + $0x268] sm:$0xff]
    %v361 = vld [vmem:[%s1 + $0x270] sm:$0xff]
    %v362 = vld [vmem:[%s1 + $0x278] sm:$0xff]
    %v363 = vld [vmem:[%s1 + $0x280] sm:$0xff]
    %v364 = vld [vmem:[%s1 + $0x288] sm:$0xff]
    %v365 = vld [vmem:[%s1 + $0x290] sm:$0xff]
    %v366 = vld [vmem:[%s1 + $0x298] sm:$0xff]
    %v367 = vld [vmem:[%s1 + $0x2a0] sm:$0xff]
    %v368 = vld [vmem:[%s1 + $0x2a8] sm:$0xff]
    %v369 = vld [vmem:[%s1 + $0x2b0] sm:$0xff]
    %v370 = vld [vmem:[%s1 + $0x2b8] sm:$0xff]
    %v371 = vld [vmem:[%s1 + $0x2c0] sm:$0xff]
    %v372 = vld [vmem:[%s1 + $0x2c8] sm:$0xff]
    %v373 = vld [vmem:[%s1 + $0x2d0] sm:$0xff]
    %v374 = vld [vmem:[%s1 + $0x2d8] sm:$0xff]
    %v375 = vld [vmem:[%s1 + $0x2e0] sm:$0xff]
    %v376 = vld [vmem:[%s1 + $0x2e8] sm:$0xff]
    %v377 = vld [vmem:[%s1 + $0x2f0] sm:$0xff]
    %v378 = vld [vmem:[%s1 + $0x2f8] sm:$0xff]
    %v379 = vld [vmem:[%s1 + $0x300] sm:$0xff]
    %v380 = vld [vmem:[%s1 + $0x308] sm:$0xff]
    %v381 = vld [vmem:[%s1 + $0x310] sm:$0xff]
    %v382 = vld [vmem:[%s1 + $0x318] sm:$0xff]
    %v383 = vld [vmem:[%s1 + $0x320] sm:$0xff]
    %v384 = vld [vmem:[%s1 + $0x328] sm:$0xff]
    %v385 = vld [vmem:[%s1 + $0x330] sm:$0xff]
    %v386 = vld [vmem:[%s1 + $0x338] sm:$0xff]
    %v387 = vld [vmem:[%s1 + $0x340] sm:$0xff]
    %v388 = vld [vmem:[%s1 + $0x348] sm:$0xff]
    %v389 = vld [vmem:[%s1 + $0x350] sm:$0xff]
    %v390 = vld [vmem:[%s1 + $0x358] sm:$0xff]
    %v391 = vld [vmem:[%s1 + $0x360] sm:$0xff]
    %v392 = vld [vmem:[%s1 + $0x368] sm:$0xff]
    %v393 = vld [vmem:[%s1 + $0x370] sm:$0xff]
    %v394 = vld [vmem:[%s1 + $0x378] sm:$0xff]
    %v395 = vld [vmem:[%s1 + $0x380] sm:$0xff]
    %v396 = vld [vmem:[%s1 + $0x388] sm:$0xff]
    %v397 = vld [vmem:[%s1 + $0x390] sm:$0xff]
    %v398 = vld [vmem:[%s1 + $0x398] sm:$0xff]
    %v399 = vld [vmem:[%s1 + $0x3a0] sm:$0xff]
    %v400 = vld [vmem:[%s1 + $0x3a8] sm:$0xff]
    %v401 = vld [vmem:[%s1 + $0x3b0] sm:$0xff]
    %v402 = vld [vmem:[%s1 + $0x3b8] sm:$0xff]
    %v403 = vld [vmem:[%s1 + $0x3c0] sm:$0xff]
    %v404 = vld [vmem:[%s1 + $0x3c8] sm:$0xff]
    %v405 = vld [vmem:[%s1 + $0x3d0] sm:$0xff]
    %v406 = vld [vmem:[%s1 + $0x3d8] sm:$0xff]
    %v407 = vld [vmem:[%s1 + $0x3e0] sm:$0xff]
    %v408 = vld [vmem:[%s1 + $0x3e8] sm:$0xff]
    %v409 = vld [vmem:[%s1 + $0x3f0] sm:$0xff]
    %v410 = vld [vmem:[%s1 + $0x3f8] sm:$0xff]
    %v411 = vld [vmem:[%s2] sm:$0x3]
    %v413 = vlaneseq
    %v414 = vshrl.u32 %v413, 7
    %v415 = vsub.s32 0, %v414
    %v416 = vrot.slane %v411, %v415
    %v417 = vlaneseq
    %v418 = vshrl.u32 %v417, 7
    %v419 = vsub.s32 1, %v418
    %v420 = vrot.slane %v411, %v419
    %v551 = vunpack.c.l.b16 %v283
    %v552 = vunpack.c.h.b16 %v283
    %v553 = vunpack.c.l.b16 %v284
    %v554 = vunpack.c.h.b16 %v284
    %v555 = vunpack.c.l.b16 %v285
    %v556 = vunpack.c.h.b16 %v285
    %v557 = vunpack.c.l.b16 %v286
    %v558 = vunpack.c.h.b16 %v286
    %v559 = vunpack.c.l.b16 %v287
    %v560 = vunpack.c.h.b16 %v287
    %v561 = vunpack.c.l.b16 %v288
    %v562 = vunpack.c.h.b16 %v288
    %v563 = vunpack.c.l.b16 %v289
    %v564 = vunpack.c.h.b16 %v289
    %v565 = vunpack.c.l.b16 %v290
    %v566 = vunpack.c.h.b16 %v290
    %v567 = vunpack.c.l.b16 %v291
    %v568 = vunpack.c.h.b16 %v291
    %v569 = vunpack.c.l.b16 %v292
    %v570 = vunpack.c.h.b16 %v292
    %v571 = vunpack.c.l.b16 %v293
    %v572 = vunpack.c.h.b16 %v293
    %v573 = vunpack.c.l.b16 %v294
    %v574 = vunpack.c.h.b16 %v294
    %v575 = vunpack.c.l.b16 %v295
    %v576 = vunpack.c.h.b16 %v295
    %v577 = vunpack.c.l.b16 %v296
    %v578 = vunpack.c.h.b16 %v296
    %v579 = vunpack.c.l.b16 %v297
    %v580 = vunpack.c.h.b16 %v297
    %v581 = vunpack.c.l.b16 %v298
    %v582 = vunpack.c.h.b16 %v298
    %v583 = vunpack.c.l.b16 %v299
    %v584 = vunpack.c.h.b16 %v299
    %v585 = vunpack.c.l.b16 %v300
    %v586 = vunpack.c.h.b16 %v300
    %v587 = vunpack.c.l.b16 %v301
    %v588 = vunpack.c.h.b16 %v301
    %v589 = vunpack.c.l.b16 %v302
    %v590 = vunpack.c.h.b16 %v302
    %v591 = vunpack.c.l.b16 %v303
    %v592 = vunpack.c.h.b16 %v303
    %v593 = vunpack.c.l.b16 %v304
    %v594 = vunpack.c.h.b16 %v304
    %v595 = vunpack.c.l.b16 %v305
    %v596 = vunpack.c.h.b16 %v305
    %v597 = vunpack.c.l.b16 %v306
    %v598 = vunpack.c.h.b16 %v306
    %v599 = vunpack.c.l.b16 %v307
    %v600 = vunpack.c.h.b16 %v307
    %v601 = vunpack.c.l.b16 %v308
    %v602 = vunpack.c.h.b16 %v308
    %v603 = vunpack.c.l.b16 %v309
    %v604 = vunpack.c.h.b16 %v309
    %v605 = vunpack.c.l.b16 %v310
    %v606 = vunpack.c.h.b16 %v310
    %v607 = vunpack.c.l.b16 %v311
    %v608 = vunpack.c.h.b16 %v311
    %v609 = vunpack.c.l.b16 %v312
    %v610 = vunpack.c.h.b16 %v312
    %v611 = vunpack.c.l.b16 %v313
    %v612 = vunpack.c.h.b16 %v313
    %v613 = vunpack.c.l.b16 %v314
    %v614 = vunpack.c.h.b16 %v314
    %v615 = vunpack.c.l.b16 %v315
    %v616 = vunpack.c.h.b16 %v315
    %v617 = vunpack.c.l.b16 %v316
    %v618 = vunpack.c.h.b16 %v316
    %v619 = vunpack.c.l.b16 %v317
    %v620 = vunpack.c.h.b16 %v317
    %v621 = vunpack.c.l.b16 %v318
    %v622 = vunpack.c.h.b16 %v318
    %v623 = vunpack.c.l.b16 %v319
    %v624 = vunpack.c.h.b16 %v319
    %v625 = vunpack.c.l.b16 %v320
    %v626 = vunpack.c.h.b16 %v320
    %v627 = vunpack.c.l.b16 %v321
    %v628 = vunpack.c.h.b16 %v321
    %v629 = vunpack.c.l.b16 %v322
    %v630 = vunpack.c.h.b16 %v322
    %v631 = vunpack.c.l.b16 %v323
    %v632 = vunpack.c.h.b16 %v323
    %v633 = vunpack.c.l.b16 %v324
    %v634 = vunpack.c.h.b16 %v324
    %v635 = vunpack.c.l.b16 %v325
    %v636 = vunpack.c.h.b16 %v325
    %v637 = vunpack.c.l.b16 %v326
    %v638 = vunpack.c.h.b16 %v326
    %v639 = vunpack.c.l.b16 %v327
    %v640 = vunpack.c.h.b16 %v327
    %v641 = vunpack.c.l.b16 %v328
    %v642 = vunpack.c.h.b16 %v328
    %v643 = vunpack.c.l.b16 %v329
    %v644 = vunpack.c.h.b16 %v329
    %v645 = vunpack.c.l.b16 %v330
    %v646 = vunpack.c.h.b16 %v330
    %v647 = vunpack.c.l.b16 %v331
    %v648 = vunpack.c.h.b16 %v331
    %v649 = vunpack.c.l.b16 %v332
    %v650 = vunpack.c.h.b16 %v332
    %v651 = vunpack.c.l.b16 %v333
    %v652 = vunpack.c.h.b16 %v333
    %v653 = vunpack.c.l.b16 %v334
    %v654 = vunpack.c.h.b16 %v334
    %v655 = vunpack.c.l.b16 %v335
    %v656 = vunpack.c.h.b16 %v335
    %v657 = vunpack.c.l.b16 %v336
    %v658 = vunpack.c.h.b16 %v336
    %v659 = vunpack.c.l.b16 %v337
    %v660 = vunpack.c.h.b16 %v337
    %v661 = vunpack.c.l.b16 %v338
    %v662 = vunpack.c.h.b16 %v338
    %v663 = vunpack.c.l.b16 %v339
    %v664 = vunpack.c.h.b16 %v339
    %v665 = vunpack.c.l.b16 %v340
    %v666 = vunpack.c.h.b16 %v340
    %v667 = vunpack.c.l.b16 %v341
    %v668 = vunpack.c.h.b16 %v341
    %v669 = vunpack.c.l.b16 %v342
    %v670 = vunpack.c.h.b16 %v342
    %v671 = vunpack.c.l.b16 %v343
    %v672 = vunpack.c.h.b16 %v343
    %v673 = vunpack.c.l.b16 %v344
    %v674 = vunpack.c.h.b16 %v344
    %v675 = vunpack.c.l.b16 %v345
    %v676 = vunpack.c.h.b16 %v345
    %v677 = vunpack.c.l.b16 %v346
    %v678 = vunpack.c.h.b16 %v346
    %v679 = vunpack.c.l.b16 %v347
    %v680 = vunpack.c.h.b16 %v347
    %v681 = vunpack.c.l.b16 %v348
    %v682 = vunpack.c.h.b16 %v348
    %v683 = vunpack.c.l.b16 %v349
    %v684 = vunpack.c.h.b16 %v349
    %v685 = vunpack.c.l.b16 %v350
    %v686 = vunpack.c.h.b16 %v350
    %v687 = vunpack.c.l.b16 %v351
    %v688 = vunpack.c.h.b16 %v351
    %v689 = vunpack.c.l.b16 %v352
    %v690 = vunpack.c.h.b16 %v352
    %v691 = vunpack.c.l.b16 %v353
    %v692 = vunpack.c.h.b16 %v353
    %v693 = vunpack.c.l.b16 %v354
    %v694 = vunpack.c.h.b16 %v354
    %v695 = vunpack.c.l.b16 %v355
    %v696 = vunpack.c.h.b16 %v355
    %v697 = vunpack.c.l.b16 %v356
    %v698 = vunpack.c.h.b16 %v356
    %v699 = vunpack.c.l.b16 %v357
    %v700 = vunpack.c.h.b16 %v357
    %v701 = vunpack.c.l.b16 %v358
    %v702 = vunpack.c.h.b16 %v358
    %v703 = vunpack.c.l.b16 %v359
    %v704 = vunpack.c.h.b16 %v359
    %v705 = vunpack.c.l.b16 %v360
    %v706 = vunpack.c.h.b16 %v360
    %v707 = vunpack.c.l.b16 %v361
    %v708 = vunpack.c.h.b16 %v361
    %v709 = vunpack.c.l.b16 %v362
    %v710 = vunpack.c.h.b16 %v362
    %v711 = vunpack.c.l.b16 %v363
    %v712 = vunpack.c.h.b16 %v363
    %v713 = vunpack.c.l.b16 %v364
    %v714 = vunpack.c.h.b16 %v364
    %v715 = vunpack.c.l.b16 %v365
    %v716 = vunpack.c.h.b16 %v365
    %v717 = vunpack.c.l.b16 %v366
    %v718 = vunpack.c.h.b16 %v366
    %v719 = vunpack.c.l.b16 %v367
    %v720 = vunpack.c.h.b16 %v367
    %v721 = vunpack.c.l.b16 %v368
    %v722 = vunpack.c.h.b16 %v368
    %v723 = vunpack.c.l.b16 %v369
    %v724 = vunpack.c.h.b16 %v369
    %v725 = vunpack.c.l.b16 %v370
    %v726 = vunpack.c.h.b16 %v370
    %v727 = vunpack.c.l.b16 %v371
    %v728 = vunpack.c.h.b16 %v371
    %v729 = vunpack.c.l.b16 %v372
    %v730 = vunpack.c.h.b16 %v372
    %v731 = vunpack.c.l.b16 %v373
    %v732 = vunpack.c.h.b16 %v373
    %v733 = vunpack.c.l.b16 %v374
    %v734 = vunpack.c.h.b16 %v374
    %v735 = vunpack.c.l.b16 %v375
    %v736 = vunpack.c.h.b16 %v375
    %v737 = vunpack.c.l.b16 %v376
    %v738 = vunpack.c.h.b16 %v376
    %v739 = vunpack.c.l.b16 %v377
    %v740 = vunpack.c.h.b16 %v377
    %v741 = vunpack.c.l.b16 %v378
    %v742 = vunpack.c.h.b16 %v378
    %v743 = vunpack.c.l.b16 %v379
    %v744 = vunpack.c.h.b16 %v379
    %v745 = vunpack.c.l.b16 %v380
    %v746 = vunpack.c.h.b16 %v380
    %v747 = vunpack.c.l.b16 %v381
    %v748 = vunpack.c.h.b16 %v381
    %v749 = vunpack.c.l.b16 %v382
    %v750 = vunpack.c.h.b16 %v382
    %v751 = vunpack.c.l.b16 %v383
    %v752 = vunpack.c.h.b16 %v383
    %v753 = vunpack.c.l.b16 %v384
    %v754 = vunpack.c.h.b16 %v384
    %v755 = vunpack.c.l.b16 %v385
    %v756 = vunpack.c.h.b16 %v385
    %v757 = vunpack.c.l.b16 %v386
    %v758 = vunpack.c.h.b16 %v386
    %v759 = vunpack.c.l.b16 %v387
    %v760 = vunpack.c.h.b16 %v387
    %v761 = vunpack.c.l.b16 %v388
    %v762 = vunpack.c.h.b16 %v388
    %v763 = vunpack.c.l.b16 %v389
    %v764 = vunpack.c.h.b16 %v389
    %v765 = vunpack.c.l.b16 %v390
    %v766 = vunpack.c.h.b16 %v390
    %v767 = vunpack.c.l.b16 %v391
    %v768 = vunpack.c.h.b16 %v391
    %v769 = vunpack.c.l.b16 %v392
    %v770 = vunpack.c.h.b16 %v392
    %v771 = vunpack.c.l.b16 %v393
    %v772 = vunpack.c.h.b16 %v393
    %v773 = vunpack.c.l.b16 %v394
    %v774 = vunpack.c.h.b16 %v394
    %v775 = vunpack.c.l.b16 %v395
    %v776 = vunpack.c.h.b16 %v395
    %v777 = vunpack.c.l.b16 %v396
    %v778 = vunpack.c.h.b16 %v396
    %v779 = vunpack.c.l.b16 %v397
    %v780 = vunpack.c.h.b16 %v397
    %v781 = vunpack.c.l.b16 %v398
    %v782 = vunpack.c.h.b16 %v398
    %v783 = vunpack.c.l.b16 %v399
    %v784 = vunpack.c.h.b16 %v399
    %v785 = vunpack.c.l.b16 %v400
    %v786 = vunpack.c.h.b16 %v400
    %v787 = vunpack.c.l.b16 %v401
    %v788 = vunpack.c.h.b16 %v401
    %v789 = vunpack.c.l.b16 %v402
    %v790 = vunpack.c.h.b16 %v402
    %v791 = vunpack.c.l.b16 %v403
    %v792 = vunpack.c.h.b16 %v403
    %v793 = vunpack.c.l.b16 %v404
    %v794 = vunpack.c.h.b16 %v404
    %v795 = vunpack.c.l.b16 %v405
    %v796 = vunpack.c.h.b16 %v405
    %v797 = vunpack.c.l.b16 %v406
    %v798 = vunpack.c.h.b16 %v406
    %v799 = vunpack.c.l.b16 %v407
    %v800 = vunpack.c.h.b16 %v407
    %v801 = vunpack.c.l.b16 %v408
    %v802 = vunpack.c.h.b16 %v408
    %v803 = vunpack.c.l.b16 %v409
    %v804 = vunpack.c.h.b16 %v409
    %v805 = vunpack.c.l.b16 %v410
    %v806 = vunpack.c.h.b16 %v410
    %v807 = vpack.c.b16 %v553, %v551
    %v808 = vpack.c.b16 %v554, %v552
    %v809 = vpack.c.b16 %v557, %v555
    %v810 = vpack.c.b16 %v558, %v556
    %v811 = vpack.c.b16 %v561, %v559
    %v812 = vpack.c.b16 %v562, %v560
    %v813 = vpack.c.b16 %v565, %v563
    %v814 = vpack.c.b16 %v566, %v564
    %v815 = vpack.c.b16 %v569, %v567
    %v816 = vpack.c.b16 %v570, %v568
    %v817 = vpack.c.b16 %v573, %v571
    %v818 = vpack.c.b16 %v574, %v572
    %v819 = vpack.c.b16 %v577, %v575
    %v820 = vpack.c.b16 %v578, %v576
    %v821 = vpack.c.b16 %v581, %v579
    %v822 = vpack.c.b16 %v582, %v580
    %v823 = vpack.c.b16 %v585, %v583
    %v824 = vpack.c.b16 %v586, %v584
    %v825 = vpack.c.b16 %v589, %v587
    %v826 = vpack.c.b16 %v590, %v588
    %v827 = vpack.c.b16 %v593, %v591
    %v828 = vpack.c.b16 %v594, %v592
    %v829 = vpack.c.b16 %v597, %v595
    %v830 = vpack.c.b16 %v598, %v596
    %v831 = vpack.c.b16 %v601, %v599
    %v832 = vpack.c.b16 %v602, %v600
    %v833 = vpack.c.b16 %v605, %v603
    %v834 = vpack.c.b16 %v606, %v604
    %v835 = vpack.c.b16 %v609, %v607
    %v836 = vpack.c.b16 %v610, %v608
    %v837 = vpack.c.b16 %v613, %v611
    %v838 = vpack.c.b16 %v614, %v612
    %v839 = vpack.c.b16 %v617, %v615
    %v840 = vpack.c.b16 %v618, %v616
    %v841 = vpack.c.b16 %v621, %v619
    %v842 = vpack.c.b16 %v622, %v620
    %v843 = vpack.c.b16 %v625, %v623
    %v844 = vpack.c.b16 %v626, %v624
    %v845 = vpack.c.b16 %v629, %v627
    %v846 = vpack.c.b16 %v630, %v628
    %v847 = vpack.c.b16 %v633, %v631
    %v848 = vpack.c.b16 %v634, %v632
    %v849 = vpack.c.b16 %v637, %v635
    %v850 = vpack.c.b16 %v638, %v636
    %v851 = vpack.c.b16 %v641, %v639
    %v852 = vpack.c.b16 %v642, %v640
    %v853 = vpack.c.b16 %v645, %v643
    %v854 = vpack.c.b16 %v646, %v644
    %v855 = vpack.c.b16 %v649, %v647
    %v856 = vpack.c.b16 %v650, %v648
    %v857 = vpack.c.b16 %v653, %v651
    %v858 = vpack.c.b16 %v654, %v652
    %v859 = vpack.c.b16 %v657, %v655
    %v860 = vpack.c.b16 %v658, %v656
    %v861 = vpack.c.b16 %v661, %v659
    %v862 = vpack.c.b16 %v662, %v660
    %v863 = vpack.c.b16 %v665, %v663
    %v864 = vpack.c.b16 %v666, %v664
    %v865 = vpack.c.b16 %v669, %v667
    %v866 = vpack.c.b16 %v670, %v668
    %v867 = vpack.c.b16 %v673, %v671
    %v868 = vpack.c.b16 %v674, %v672
    %v869 = vpack.c.b16 %v677, %v675
    %v870 = vpack.c.b16 %v678, %v676
    %v871 = vpack.c.b16 %v681, %v679
    %v872 = vpack.c.b16 %v682, %v680
    %v873 = vpack.c.b16 %v685, %v683
    %v874 = vpack.c.b16 %v686, %v684
    %v875 = vpack.c.b16 %v689, %v687
    %v876 = vpack.c.b16 %v690, %v688
    %v877 = vpack.c.b16 %v693, %v691
    %v878 = vpack.c.b16 %v694, %v692
    %v879 = vpack.c.b16 %v697, %v695
    %v880 = vpack.c.b16 %v698, %v696
    %v881 = vpack.c.b16 %v701, %v699
    %v882 = vpack.c.b16 %v702, %v700
    %v883 = vpack.c.b16 %v705, %v703
    %v884 = vpack.c.b16 %v706, %v704
    %v885 = vpack.c.b16 %v709, %v707
    %v886 = vpack.c.b16 %v710, %v708
    %v887 = vpack.c.b16 %v713, %v711
    %v888 = vpack.c.b16 %v714, %v712
    %v889 = vpack.c.b16 %v717, %v715
    %v890 = vpack.c.b16 %v718, %v716
    %v891 = vpack.c.b16 %v721, %v719
    %v892 = vpack.c.b16 %v722, %v720
    %v893 = vpack.c.b16 %v725, %v723
    %v894 = vpack.c.b16 %v726, %v724
    %v895 = vpack.c.b16 %v729, %v727
    %v896 = vpack.c.b16 %v730, %v728
    %v897 = vpack.c.b16 %v733, %v731
    %v898 = vpack.c.b16 %v734, %v732
    %v899 = vpack.c.b16 %v737, %v735
    %v900 = vpack.c.b16 %v738, %v736
    %v901 = vpack.c.b16 %v741, %v739
    %v902 = vpack.c.b16 %v742, %v740
    %v903 = vpack.c.b16 %v745, %v743
    %v904 = vpack.c.b16 %v746, %v744
    %v905 = vpack.c.b16 %v749, %v747
    %v906 = vpack.c.b16 %v750, %v748
    %v907 = vpack.c.b16 %v753, %v751
    %v908 = vpack.c.b16 %v754, %v752
    %v909 = vpack.c.b16 %v757, %v755
    %v910 = vpack.c.b16 %v758, %v756
    %v911 = vpack.c.b16 %v761, %v759
    %v912 = vpack.c.b16 %v762, %v760
    %v913 = vpack.c.b16 %v765, %v763
    %v914 = vpack.c.b16 %v766, %v764
    %v915 = vpack.c.b16 %v769, %v767
    %v916 = vpack.c.b16 %v770, %v768
    %v917 = vpack.c.b16 %v773, %v771
    %v918 = vpack.c.b16 %v774, %v772
    %v919 = vpack.c.b16 %v777, %v775
    %v920 = vpack.c.b16 %v778, %v776
    %v921 = vpack.c.b16 %v781, %v779
    %v922 = vpack.c.b16 %v782, %v780
    %v923 = vpack.c.b16 %v785, %v783
    %v924 = vpack.c.b16 %v786, %v784
    %v925 = vpack.c.b16 %v789, %v787
    %v926 = vpack.c.b16 %v790, %v788
    %v927 = vpack.c.b16 %v793, %v791
    %v928 = vpack.c.b16 %v794, %v792
    %v929 = vpack.c.b16 %v797, %v795
    %v930 = vpack.c.b16 %v798, %v796
    %v931 = vpack.c.b16 %v801, %v799
    %v932 = vpack.c.b16 %v802, %v800
    %v933 = vpack.c.b16 %v805, %v803
    %v934 = vpack.c.b16 %v806, %v804
    %1063 = vmatprep.subr.bf16.mxu0 %v822
    %1064 = vmatpush1.bf16.msra.mxu0 %v821
    %1065 = vmatprep.subr.bf16.mxu0 %v820
    %1066 = vmatpush1.bf16.msra.mxu0 %v819
    %1067 = vmatprep.subr.bf16.mxu0 %v818
    %1068 = vmatpush1.bf16.msra.mxu0 %v817
    %1069 = vmatprep.subr.bf16.mxu0 %v816
    %1070 = vmatpush1.bf16.msra.mxu0 %v815
    %1071 = vmatprep.subr.bf16.mxu0 %v814
    %1072 = vmatpush1.bf16.msra.mxu0 %v813
    %1073 = vmatprep.subr.bf16.mxu0 %v812
    %1074 = vmatpush1.bf16.msra.mxu0 %v811
    %1075 = vmatprep.subr.bf16.mxu0 %v810
    %1076 = vmatpush1.bf16.msra.mxu0 %v809
    %1077 = vmatprep.subr.bf16.mxu0 %v808
    %1078 = vmatpush1.bf16.msra.mxu0 %v807
    %1079 = vmatprep.subr.bf16.mxu0 %v838
    %1080 = vmatpush2.bf16.msra.mxu0 %v837
    %1081 = vmatprep.subr.bf16.mxu0 %v836
    %1082 = vmatpush2.bf16.msra.mxu0 %v835
    %1083 = vmatprep.subr.bf16.mxu0 %v834
    %1084 = vmatpush2.bf16.msra.mxu0 %v833
    %1085 = vmatprep.subr.bf16.mxu0 %v832
    %1086 = vmatpush2.bf16.msra.mxu0 %v831
    %1087 = vmatprep.subr.bf16.mxu0 %v830
    %1088 = vmatpush2.bf16.msra.mxu0 %v829
    %1089 = vmatprep.subr.bf16.mxu0 %v828
    %1090 = vmatpush2.bf16.msra.mxu0 %v827
    %1091 = vmatprep.subr.bf16.mxu0 %v826
    %1092 = vmatpush2.bf16.msra.mxu0 %v825
    %1093 = vmatprep.subr.bf16.mxu0 %v824
    %1094 = vmatpush2.bf16.msra.mxu0 %v823
    %1095 = vmatprep.mubr.bf16.mxu0 %v276
    %1096 = vmatmul.mubr.bf16.gmra.mxu0 %v275
    %v1097 = vpop.f32.mrf.mxu0
    %v1098 = vadd.f32 %v416, %v1097
    %v1099 = vpop.f32.mrf.mxu0
    %v1100 = vadd.f32 %v420, %v1099
    %v1101 = vpop.f32.mrf.mxu0
    %v1102 = vpop.f32.mrf.mxu0
    %1103 = vdwg.mxu0
    %1104 = vmatprep.subr.bf16.mxu0 %v854
    %1105 = vmatpush1.bf16.msra.mxu0 %v853
    %1106 = vmatprep.subr.bf16.mxu0 %v852
    %1107 = vmatpush1.bf16.msra.mxu0 %v851
    %1108 = vmatprep.subr.bf16.mxu0 %v850
    %1109 = vmatpush1.bf16.msra.mxu0 %v849
    %1110 = vmatprep.subr.bf16.mxu0 %v848
    %1111 = vmatpush1.bf16.msra.mxu0 %v847
    %1112 = vmatprep.subr.bf16.mxu0 %v846
    %1113 = vmatpush1.bf16.msra.mxu0 %v845
    %1114 = vmatprep.subr.bf16.mxu0 %v844
    %1115 = vmatpush1.bf16.msra.mxu0 %v843
    %1116 = vmatprep.subr.bf16.mxu0 %v842
    %1117 = vmatpush1.bf16.msra.mxu0 %v841
    %1118 = vmatprep.subr.bf16.mxu0 %v840
    %1119 = vmatpush1.bf16.msra.mxu0 %v839
    %1120 = vmatprep.subr.bf16.mxu0 %v870
    %1121 = vmatpush2.bf16.msra.mxu0 %v869
    %1122 = vmatprep.subr.bf16.mxu0 %v868
    %1123 = vmatpush2.bf16.msra.mxu0 %v867
    %1124 = vmatprep.subr.bf16.mxu0 %v866
    %1125 = vmatpush2.bf16.msra.mxu0 %v865
    %1126 = vmatprep.subr.bf16.mxu0 %v864
    %1127 = vmatpush2.bf16.msra.mxu0 %v863
    %1128 = vmatprep.subr.bf16.mxu0 %v862
    %1129 = vmatpush2.bf16.msra.mxu0 %v861
    %1130 = vmatprep.subr.bf16.mxu0 %v860
    %1131 = vmatpush2.bf16.msra.mxu0 %v859
    %1132 = vmatprep.subr.bf16.mxu0 %v858
    %1133 = vmatpush2.bf16.msra.mxu0 %v857
    %1134 = vmatprep.subr.bf16.mxu0 %v856
    %1135 = vmatpush2.bf16.msra.mxu0 %v855
    %1136 = vmatprep.mubr.bf16.mxu0 %v278
    %1137 = vmatmul.mubr.bf16.gmra.mxu0 %v277
    %v1138 = vpop.f32.mrf.mxu0
    %v1139 = vadd.f32 %v1098, %v1138
    %v1140 = vpop.f32.mrf.mxu0
    %v1141 = vadd.f32 %v1100, %v1140
    %v1142 = vpop.f32.mrf.mxu0
    %v1143 = vpop.f32.mrf.mxu0
    %1144 = vdwg.mxu0
    %1145 = vmatprep.subr.bf16.mxu0 %v886
    %1146 = vmatpush1.bf16.msra.mxu0 %v885
    %1147 = vmatprep.subr.bf16.mxu0 %v884
    %1148 = vmatpush1.bf16.msra.mxu0 %v883
    %1149 = vmatprep.subr.bf16.mxu0 %v882
    %1150 = vmatpush1.bf16.msra.mxu0 %v881
    %1151 = vmatprep.subr.bf16.mxu0 %v880
    %1152 = vmatpush1.bf16.msra.mxu0 %v879
    %1153 = vmatprep.subr.bf16.mxu0 %v878
    %1154 = vmatpush1.bf16.msra.mxu0 %v877
    %1155 = vmatprep.subr.bf16.mxu0 %v876
    %1156 = vmatpush1.bf16.msra.mxu0 %v875
    %1157 = vmatprep.subr.bf16.mxu0 %v874
    %1158 = vmatpush1.bf16.msra.mxu0 %v873
    %1159 = vmatprep.subr.bf16.mxu0 %v872
    %1160 = vmatpush1.bf16.msra.mxu0 %v871
    %1161 = vmatprep.subr.bf16.mxu0 %v902
    %1162 = vmatpush2.bf16.msra.mxu0 %v901
    %1163 = vmatprep.subr.bf16.mxu0 %v900
    %1164 = vmatpush2.bf16.msra.mxu0 %v899
    %1165 = vmatprep.subr.bf16.mxu0 %v898
    %1166 = vmatpush2.bf16.msra.mxu0 %v897
    %1167 = vmatprep.subr.bf16.mxu0 %v896
    %1168 = vmatpush2.bf16.msra.mxu0 %v895
    %1169 = vmatprep.subr.bf16.mxu0 %v894
    %1170 = vmatpush2.bf16.msra.mxu0 %v893
    %1171 = vmatprep.subr.bf16.mxu0 %v892
    %1172 = vmatpush2.bf16.msra.mxu0 %v891
    %1173 = vmatprep.subr.bf16.mxu0 %v890
    %1174 = vmatpush2.bf16.msra.mxu0 %v889
    %1175 = vmatprep.subr.bf16.mxu0 %v888
    %1176 = vmatpush2.bf16.msra.mxu0 %v887
    %1177 = vmatprep.mubr.bf16.mxu0 %v280
    %1178 = vmatmul.mubr.bf16.gmra.mxu0 %v279
    %v1179 = vpop.f32.mrf.mxu0
    %v1180 = vadd.f32 %v1139, %v1179
    %v1181 = vpop.f32.mrf.mxu0
    %v1182 = vadd.f32 %v1141, %v1181
    %v1183 = vpop.f32.mrf.mxu0
    %v1184 = vpop.f32.mrf.mxu0
    %1185 = vdwg.mxu0
    %1186 = vmatprep.subr.bf16.mxu0 %v918
    %1187 = vmatpush1.bf16.msra.mxu0 %v917
    %1188 = vmatprep.subr.bf16.mxu0 %v916
    %1189 = vmatpush1.bf16.msra.mxu0 %v915
    %1190 = vmatprep.subr.bf16.mxu0 %v914
    %1191 = vmatpush1.bf16.msra.mxu0 %v913
    %1192 = vmatprep.subr.bf16.mxu0 %v912
    %1193 = vmatpush1.bf16.msra.mxu0 %v911
    %1194 = vmatprep.subr.bf16.mxu0 %v910
    %1195 = vmatpush1.bf16.msra.mxu0 %v909
    %1196 = vmatprep.subr.bf16.mxu0 %v908
    %1197 = vmatpush1.bf16.msra.mxu0 %v907
    %1198 = vmatprep.subr.bf16.mxu0 %v906
    %1199 = vmatpush1.bf16.msra.mxu0 %v905
    %1200 = vmatprep.subr.bf16.mxu0 %v904
    %1201 = vmatpush1.bf16.msra.mxu0 %v903
    %1202 = vmatprep.subr.bf16.mxu0 %v934
    %1203 = vmatpush2.bf16.msra.mxu0 %v933
    %1204 = vmatprep.subr.bf16.mxu0 %v932
    %1205 = vmatpush2.bf16.msra.mxu0 %v931
    %1206 = vmatprep.subr.bf16.mxu0 %v930
    %1207 = vmatpush2.bf16.msra.mxu0 %v929
    %1208 = vmatprep.subr.bf16.mxu0 %v928
    %1209 = vmatpush2.bf16.msra.mxu0 %v927
    %1210 = vmatprep.subr.bf16.mxu0 %v926
    %1211 = vmatpush2.bf16.msra.mxu0 %v925
    %1212 = vmatprep.subr.bf16.mxu0 %v924
    %1213 = vmatpush2.bf16.msra.mxu0 %v923
    %1214 = vmatprep.subr.bf16.mxu0 %v922
    %1215 = vmatpush2.bf16.msra.mxu0 %v921
    %1216 = vmatprep.subr.bf16.mxu0 %v920
    %1217 = vmatpush2.bf16.msra.mxu0 %v919
    %1218 = vmatprep.mubr.bf16.mxu0 %v282
    %1219 = vmatmul.mubr.bf16.gmra.mxu0 %v281
    %v1220 = vpop.f32.mrf.mxu0
    %v1221 = vadd.f32 %v1180, %v1220
    %v1222 = vpop.f32.mrf.mxu0
    %v1223 = vadd.f32 %v1182, %v1222
    %v1224 = vpop.f32.mrf.mxu0
    %v1225 = vpop.f32.mrf.mxu0
    %1226 = vdwg.mxu0
    %v1227 = vmax.f32 %v1221, 0.0
    %v1228 = vmax.f32 %v1223, 0.0
    %v1229 = vpack.c.bf16 %v1227, %v1227
    %v1230 = vpack.c.bf16 %v1228, %v1228
    %v1231 = vld [vmem:[%s3] sm:$0xf]
    %v1232 = vld [vmem:[%s3 + $0x4] sm:$0xf]
    %v1233 = vld [vmem:[%s3 + $0x8] sm:$0xf]
    %v1234 = vld [vmem:[%s3 + $0xc] sm:$0xf]
    %v1235 = vld [vmem:[%s3 + $0x10] sm:$0xf]
    %v1236 = vld [vmem:[%s3 + $0x14] sm:$0xf]
    %v1237 = vld [vmem:[%s3 + $0x18] sm:$0xf]
    %v1238 = vld [vmem:[%s3 + $0x1c] sm:$0xf]
    %v1239 = vld [vmem:[%s3 + $0x20] sm:$0xf]
    %v1240 = vld [vmem:[%s3 + $0x24] sm:$0xf]
    %v1241 = vld [vmem:[%s3 + $0x28] sm:$0xf]
    %v1242 = vld [vmem:[%s3 + $0x2c] sm:$0xf]
    %v1243 = vld [vmem:[%s3 + $0x30] sm:$0xf]
    %v1244 = vld [vmem:[%s3 + $0x34] sm:$0xf]
    %v1245 = vld [vmem:[%s3 + $0x38] sm:$0xf]
    %v1246 = vld [vmem:[%s3 + $0x3c] sm:$0xf]
    %v1247 = vld [vmem:[%s3 + $0x40] sm:$0xf]
    %v1248 = vld [vmem:[%s3 + $0x44] sm:$0xf]
    %v1249 = vld [vmem:[%s3 + $0x48] sm:$0xf]
    %v1250 = vld [vmem:[%s3 + $0x4c] sm:$0xf]
    %v1251 = vld [vmem:[%s3 + $0x50] sm:$0xf]
    %v1252 = vld [vmem:[%s3 + $0x54] sm:$0xf]
    %v1253 = vld [vmem:[%s3 + $0x58] sm:$0xf]
    %v1254 = vld [vmem:[%s3 + $0x5c] sm:$0xf]
    %v1255 = vld [vmem:[%s3 + $0x60] sm:$0xf]
    %v1256 = vld [vmem:[%s3 + $0x64] sm:$0xf]
    %v1257 = vld [vmem:[%s3 + $0x68] sm:$0xf]
    %v1258 = vld [vmem:[%s3 + $0x6c] sm:$0xf]
    %v1259 = vld [vmem:[%s3 + $0x70] sm:$0xf]
    %v1260 = vld [vmem:[%s3 + $0x74] sm:$0xf]
    %v1261 = vld [vmem:[%s3 + $0x78] sm:$0xf]
    %v1262 = vld [vmem:[%s3 + $0x7c] sm:$0xf]
    %v1263 = vld [vmem:[%s4] sm:$0x1]
    %v1265 = vlaneseq
    %v1266 = vshrl.u32 %v1265, 7
    %v1267 = vsub.s32 0, %v1266
    %v1268 = vrot.slane %v1263, %v1267
    %v1302 = vunpack.c.l.b16 %v1231
    %v1303 = vunpack.c.l.b16 %v1232
    %v1304 = vunpack.c.l.b16 %v1233
    %v1305 = vunpack.c.l.b16 %v1234
    %v1306 = vunpack.c.l.b16 %v1235
    %v1307 = vunpack.c.l.b16 %v1236
    %v1308 = vunpack.c.l.b16 %v1237
    %v1309 = vunpack.c.l.b16 %v1238
    %v1310 = vunpack.c.l.b16 %v1239
    %v1311 = vunpack.c.l.b16 %v1240
    %v1312 = vunpack.c.l.b16 %v1241
    %v1313 = vunpack.c.l.b16 %v1242
    %v1314 = vunpack.c.l.b16 %v1243
    %v1315 = vunpack.c.l.b16 %v1244
    %v1316 = vunpack.c.l.b16 %v1245
    %v1317 = vunpack.c.l.b16 %v1246
    %v1318 = vunpack.c.l.b16 %v1247
    %v1319 = vunpack.c.l.b16 %v1248
    %v1320 = vunpack.c.l.b16 %v1249
    %v1321 = vunpack.c.l.b16 %v1250
    %v1322 = vunpack.c.l.b16 %v1251
    %v1323 = vunpack.c.l.b16 %v1252
    %v1324 = vunpack.c.l.b16 %v1253
    %v1325 = vunpack.c.l.b16 %v1254
    %v1326 = vunpack.c.l.b16 %v1255
    %v1327 = vunpack.c.l.b16 %v1256
    %v1328 = vunpack.c.l.b16 %v1257
    %v1329 = vunpack.c.l.b16 %v1258
    %v1330 = vunpack.c.l.b16 %v1259
    %v1331 = vunpack.c.l.b16 %v1260
    %v1332 = vunpack.c.l.b16 %v1261
    %v1333 = vunpack.c.l.b16 %v1262
    %v1334 = vpack.c.b16 %v1303, %v1302
    %v1335 = vpack.c.b16 %v1305, %v1304
    %v1336 = vpack.c.b16 %v1307, %v1306
    %v1337 = vpack.c.b16 %v1309, %v1308
    %v1338 = vpack.c.b16 %v1311, %v1310
    %v1339 = vpack.c.b16 %v1313, %v1312
    %v1340 = vpack.c.b16 %v1315, %v1314
    %v1341 = vpack.c.b16 %v1317, %v1316
    %v1342 = vpack.c.b16 %v1319, %v1318
    %v1343 = vpack.c.b16 %v1321, %v1320
    %v1344 = vpack.c.b16 %v1323, %v1322
    %v1345 = vpack.c.b16 %v1325, %v1324
    %v1346 = vpack.c.b16 %v1327, %v1326
    %v1347 = vpack.c.b16 %v1329, %v1328
    %v1348 = vpack.c.b16 %v1331, %v1330
    %v1349 = vpack.c.b16 %v1333, %v1332
    %1366 = vmatprep.subr.bf16.mxu0 0
    %1367 = vmatpush1.bf16.msra.mxu0 %v1341
    %1368 = vmatprep.subr.bf16.mxu0 0
    %1369 = vmatpush1.bf16.msra.mxu0 %v1340
    %1370 = vmatprep.subr.bf16.mxu0 0
    %1371 = vmatpush1.bf16.msra.mxu0 %v1339
    %1372 = vmatprep.subr.bf16.mxu0 0
    %1373 = vmatpush1.bf16.msra.mxu0 %v1338
    %1374 = vmatprep.subr.bf16.mxu0 0
    %1375 = vmatpush1.bf16.msra.mxu0 %v1337
    %1376 = vmatprep.subr.bf16.mxu0 0
    %1377 = vmatpush1.bf16.msra.mxu0 %v1336
    %1378 = vmatprep.subr.bf16.mxu0 0
    %1379 = vmatpush1.bf16.msra.mxu0 %v1335
    %1380 = vmatprep.subr.bf16.mxu0 0
    %1381 = vmatpush1.bf16.msra.mxu0 %v1334
    %1382 = vmatprep.subr.bf16.mxu0 0
    %1383 = vmatpush2.bf16.msra.mxu0 %v1349
    %1384 = vmatprep.subr.bf16.mxu0 0
    %1385 = vmatpush2.bf16.msra.mxu0 %v1348
    %1386 = vmatprep.subr.bf16.mxu0 0
    %1387 = vmatpush2.bf16.msra.mxu0 %v1347
    %1388 = vmatprep.subr.bf16.mxu0 0
    %1389 = vmatpush2.bf16.msra.mxu0 %v1346
    %1390 = vmatprep.subr.bf16.mxu0 0
    %1391 = vmatpush2.bf16.msra.mxu0 %v1345
    %1392 = vmatprep.subr.bf16.mxu0 0
    %1393 = vmatpush2.bf16.msra.mxu0 %v1344
    %1394 = vmatprep.subr.bf16.mxu0 0
    %1395 = vmatpush2.bf16.msra.mxu0 %v1343
    %1396 = vmatprep.subr.bf16.mxu0 0
    %1397 = vmatpush2.bf16.msra.mxu0 %v1342
    %1398 = vmatprep.mubr.bf16.mxu0 %v1230
    %1399 = vmatmul.mubr.bf16.gmra.mxu0 %v1229
    %v1400 = vpop.f32.mrf.mxu0
    %v1401 = vadd.f32 %v1268, %v1400
    %v1402 = vpop.f32.mrf.mxu0
    %v1403 = vpop.f32.mrf.mxu0
    %v1404 = vpop.f32.mrf.mxu0
    %1405 = vdwg.mxu0
    %1406 = vst [vmem:[#allocation2] sm:$0x3] %v1401
    // Predicated region
    $region22: #{thermal_classifier_forward.5} parent=1 // pred_check
      _
    $region23: #{thermal_classifier_forward.5} parent=1 // pred_check_branch
      %1408 = sbr.rel (0) target = $region25
    $region24: #{thermal_classifier_forward.5} parent=1 // pred_region
      %s1410 = ssub.s32 32, 32
      %1411 = vsyncadd [#allocation3], %s1410
      %s1413 = sshll.u32 [#allocation2], 4
      %s1414 = int_to_ptr.vmem [resolvable:$true] %s1413
      %1416 = dma.vmem_to_hbm [thread:$0]  %s1414, 32, %s5, [#allocation3]
    $region25: #{thermal_classifier_forward.5} parent=1 // pred_fallthru
      _
    // Predicated region
    $region26: #{thermal_classifier_forward.5} parent=1 // pred_check
      _
    $region27: #{thermal_classifier_forward.5} parent=1 // pred_check_branch
      %1418 = sbr.rel (0) target = $region29
    $region28: #{thermal_classifier_forward.5} parent=1 // pred_region
      %1419 = dma.done [#allocation3], 32
    $region29: #{thermal_classifier_forward.5} parent=1 // pred_fallthru
      _
    %1420 = vsyncpa [#allocation3], 1

// kernel: thermal_classifier_forward.4
$region0: #{thermal_classifier_forward.4}
  #allocation0 [shape = 'u32[]', space=smem, size = 0x4, offset = 0x4, fixed_abs, tag = 'smem constant byte address 0x4 - core index']
  #allocation1 [shape = 'u32[144,128]{1,0:T(1,128)}', space=vmem, size = 0x12000, scoped, tag = 'internal scratch']
  #allocation2 [shape = 'f32[64,64]{1,0:T(8,128)}', space=vmem, size = 0x8000, scoped, tag = 'scratch operand']
  %s0 = inlined_call_operand.vmem [shape: bf16[2,10,10,32], index: 0, kind: input, shape index: {}]
  %s1 = inlined_call_operand.vmem [shape: bf16[288,64], index: 1, kind: input, shape index: {}]
  %s2 = inlined_call_operand.vmem [shape: f32[1,64], index: 2, kind: input, shape index: {}]
  %s3 = inlined_call_operand.vmem [shape: f32[1,64], index: 3, kind: input, shape index: {}]
  %s4 = inlined_call_operand.vmem [shape: bf16[2,16,64], index: 4, kind: output, shape index: {}]
  %s5 = sld [smem:[#allocation0]]
  $region26: #{thermal_classifier_forward.4} parent=0
    _
  %s7 = ssub.s32 1, %s5
  %s8 = scalar_select 0, %s7, %s5
  // Predicated region
  $region2: #{thermal_classifier_forward.4} parent=0 // pred_check
    _
  $region3: #{thermal_classifier_forward.4} parent=0 // pred_check_branch
    %10 = sbr.rel (0) target = $region5
  $region4: #{thermal_classifier_forward.4} parent=0 // pred_region
    _
  $region5: #{thermal_classifier_forward.4} parent=0 // pred_fallthru
    _
  // Predicated region
  $region6: #{thermal_classifier_forward.4} parent=0 // pred_check
    _
  $region7: #{thermal_classifier_forward.4} parent=0 // pred_check_branch
    %12 = sbr.rel (0) target = $region9
  $region8: #{thermal_classifier_forward.4} parent=0 // pred_region
    _
  $region9: #{thermal_classifier_forward.4} parent=0 // pred_fallthru
    _
  // Predicated region
  $region10: #{thermal_classifier_forward.4} parent=0 // pred_check
    _
  $region11: #{thermal_classifier_forward.4} parent=0 // pred_check_branch
    %14 = sbr.rel (0) target = $region13
  $region12: #{thermal_classifier_forward.4} parent=0 // pred_region
    _
  $region13: #{thermal_classifier_forward.4} parent=0 // pred_fallthru
    _
  // Predicated region
  $region14: #{thermal_classifier_forward.4} parent=0 // pred_check
    _
  $region15: #{thermal_classifier_forward.4} parent=0 // pred_check_branch
    %16 = sbr.rel (0) target = $region17
  $region16: #{thermal_classifier_forward.4} parent=0 // pred_region
    _
  $region17: #{thermal_classifier_forward.4} parent=0 // pred_fallthru
    _
  %v18 = vld [vmem:[%s0] sm:$0xf]
  %v19 = vld [vmem:[%s0 + $0x8] sm:$0xf]
  %v20 = vld [vmem:[%s0 + $0x10] sm:$0xf]
  %v21 = vld [vmem:[%s0 + $0x18] sm:$0xf]
  %v22 = vld [vmem:[%s0 + $0x20] sm:$0xf]
  %v23 = vld [vmem:[%s0 + $0x28] sm:$0xf]
  %v24 = vld [vmem:[%s0 + $0x30] sm:$0xf]
  %v25 = vld [vmem:[%s0 + $0x38] sm:$0xf]
  %v26 = vld [vmem:[%s0 + $0x50] sm:$0xf]
  %v27 = vld [vmem:[%s0 + $0x58] sm:$0xf]
  %v28 = vld [vmem:[%s0 + $0x60] sm:$0xf]
  %v29 = vld [vmem:[%s0 + $0x68] sm:$0xf]
  %v30 = vld [vmem:[%s0 + $0x70] sm:$0xf]
  %v31 = vld [vmem:[%s0 + $0x78] sm:$0xf]
  %v32 = vld [vmem:[%s0 + $0x80] sm:$0xf]
  %v33 = vld [vmem:[%s0 + $0x88] sm:$0xf]
  %v34 = vunpack.c.l.bf16 %v18
  %v35 = vunpack.c.l.bf16 %v19
  %v36 = vunpack.c.l.bf16 %v20
  %v37 = vunpack.c.l.bf16 %v21
  %v38 = vunpack.c.l.bf16 %v22
  %v39 = vunpack.c.l.bf16 %v23
  %v40 = vunpack.c.l.bf16 %v24
  %v41 = vunpack.c.l.bf16 %v25
  %v42 = vunpack.c.l.bf16 %v26
  %v43 = vunpack.c.l.bf16 %v27
  %v44 = vunpack.c.l.bf16 %v28
  %v45 = vunpack.c.l.bf16 %v29
  %v46 = vunpack.c.l.bf16 %v30
  %v47 = vunpack.c.l.bf16 %v31
  %v48 = vunpack.c.l.bf16 %v32
  %v49 = vunpack.c.l.bf16 %v33
  %v50 = vld [vmem:[%s0 + $0x4] sm:$0x1]
  %v51 = vld [vmem:[%s0 + $0xc] sm:$0x1]
  %v52 = vld [vmem:[%s0 + $0x14] sm:$0x1]
  %v53 = vld [vmem:[%s0 + $0x1c] sm:$0x1]
  %v54 = vld [vmem:[%s0 + $0x24] sm:$0x1]
  %v55 = vld [vmem:[%s0 + $0x2c] sm:$0x1]
  %v56 = vld [vmem:[%s0 + $0x34] sm:$0x1]
  %v57 = vld [vmem:[%s0 + $0x3c] sm:$0x1]
  %v58 = vld [vmem:[%s0 + $0x54] sm:$0x1]
  %v59 = vld [vmem:[%s0 + $0x5c] sm:$0x1]
  %v60 = vld [vmem:[%s0 + $0x64] sm:$0x1]
  %v61 = vld [vmem:[%s0 + $0x6c] sm:$0x1]
  %v62 = vld [vmem:[%s0 + $0x74] sm:$0x1]
  %v63 = vld [vmem:[%s0 + $0x7c] sm:$0x1]
  %v64 = vld [vmem:[%s0 + $0x84] sm:$0x1]
  %v65 = vld [vmem:[%s0 + $0x8c] sm:$0x1]
  %v66 = vunpack.c.l.bf16 %v50
  %v67 = vunpack.c.l.bf16 %v51
  %v68 = vunpack.c.l.bf16 %v52
  %v69 = vunpack.c.l.bf16 %v53
  %v70 = vunpack.c.l.bf16 %v54
  %v71 = vunpack.c.l.bf16 %v55
  %v72 = vunpack.c.l.bf16 %v56
  %v73 = vunpack.c.l.bf16 %v57
  %v74 = vunpack.c.l.bf16 %v58
  %v75 = vunpack.c.l.bf16 %v59
  %v76 = vunpack.c.l.bf16 %v60
  %v77 = vunpack.c.l.bf16 %v61
  %v78 = vunpack.c.l.bf16 %v62
  %v79 = vunpack.c.l.bf16 %v63
  %v80 = vunpack.c.l.bf16 %v64
  %v81 = vunpack.c.l.bf16 %v65
  %v82 = vld [vmem:[%s0] sm:$0xe]
  %v83 = vld [vmem:[%s0 + $0x8] sm:$0xe]
  %v84 = vld [vmem:[%s0 + $0x10] sm:$0xe]
  %v85 = vld [vmem:[%s0 + $0x18] sm:$0xe]
  %v86 = vld [vmem:[%s0 + $0x20] sm:$0xe]
  %v87 = vld [vmem:[%s0 + $0x28] sm:$0xe]
  %v88 = vld [vmem:[%s0 + $0x30] sm:$0xe]
  %v89 = vld [vmem:[%s0 + $0x38] sm:$0xe]
  %v90 = vld [vmem:[%s0 + $0x50] sm:$0xe]
  %v91 = vld [vmem:[%s0 + $0x58] sm:$0xe]
  %v92 = vld [vmem:[%s0 + $0x60] sm:$0xe]
  %v93 = vld [vmem:[%s0 + $0x68] sm:$0xe]
  %v94 = vld [vmem:[%s0 + $0x70] sm:$0xe]
  %v95 = vld [vmem:[%s0 + $0x78] sm:$0xe]
  %v96 = vld [vmem:[%s0 + $0x80] sm:$0xe]
  %v97 = vld [vmem:[%s0 + $0x88] sm:$0xe]
  %v98 = vunpack.c.l.bf16 %v82
  %v99 = vunpack.c.l.bf16 %v83
  %v100 = vunpack.c.l.bf16 %v84
  %v101 = vunpack.c.l.bf16 %v85
  %v102 = vunpack.c.l.bf16 %v86
  %v103 = vunpack.c.l.bf16 %v87
  %v104 = vunpack.c.l.bf16 %v88
  %v105 = vunpack.c.l.bf16 %v89
  %v106 = vunpack.c.l.bf16 %v90
  %v107 = vunpack.c.l.bf16 %v91
  %v108 = vunpack.c.l.bf16 %v92
  %v109 = vunpack.c.l.bf16 %v93
  %v110 = vunpack.c.l.bf16 %v94
  %v111 = vunpack.c.l.bf16 %v95
  %v112 = vunpack.c.l.bf16 %v96
  %v113 = vunpack.c.l.bf16 %v97
  %s114 = scalar_lea.vmem %s0, 8
  %v115 = vld [vmem:[%s114] sm:$0xf]
  %v116 = vld [vmem:[%s114 + $0x8] sm:$0xf]
  %v117 = vld [vmem:[%s114 + $0x10] sm:$0xf]
  %v118 = vld [vmem:[%s114 + $0x18] sm:$0xf]
  %v119 = vld [vmem:[%s114 + $0x20] sm:$0xf]
  %v120 = vld [vmem:[%s114 + $0x28] sm:$0xf]
  %v121 = vld [vmem:[%s114 + $0x30] sm:$0xf]
  %v122 = vld [vmem:[%s114 + $0x38] sm:$0xf]
  %v123 = vld [vmem:[%s114 + $0x50] sm:$0xf]
  %v124 = vld [vmem:[%s114 + $0x58] sm:$0xf]
  %v125 = vld [vmem:[%s114 + $0x60] sm:$0xf]
  %v126 = vld [vmem:[%s114 + $0x68] sm:$0xf]
  %v127 = vld [vmem:[%s114 + $0x70] sm:$0xf]
  %v128 = vld [vmem:[%s114 + $0x78] sm:$0xf]
  %v129 = vld [vmem:[%s114 + $0x80] sm:$0xf]
  %v130 = vld [vmem:[%s114 + $0x88] sm:$0xf]
  %v131 = vunpack.c.l.bf16 %v115
  %v132 = vunpack.c.l.bf16 %v116
  %v133 = vunpack.c.l.bf16 %v117
  %v134 = vunpack.c.l.bf16 %v118
  %v135 = vunpack.c.l.bf16 %v119
  %v136 = vunpack.c.l.bf16 %v120
  %v137 = vunpack.c.l.bf16 %v121
  %v138 = vunpack.c.l.bf16 %v122
  %v139 = vunpack.c.l.bf16 %v123
  %v140 = vunpack.c.l.bf16 %v124
  %v141 = vunpack.c.l.bf16 %v125
  %v142 = vunpack.c.l.bf16 %v126
  %v143 = vunpack.c.l.bf16 %v127
  %v144 = vunpack.c.l.bf16 %v128
  %v145 = vunpack.c.l.bf16 %v129
  %v146 = vunpack.c.l.bf16 %v130
  %v147 = vld [vmem:[%s114 + $0x4] sm:$0x1]
  %v148 = vld [vmem:[%s114 + $0xc] sm:$0x1]
  %v149 = vld [vmem:[%s114 + $0x14] sm:$0x1]
  %v150 = vld [vmem:[%s114 + $0x1c] sm:$0x1]
  %v151 = vld [vmem:[%s114 + $0x24] sm:$0x1]
  %v152 = vld [vmem:[%s114 + $0x2c] sm:$0x1]
  %v153 = vld [vmem:[%s114 + $0x34] sm:$0x1]
  %v154 = vld [vmem:[%s114 + $0x3c] sm:$0x1]
  %v155 = vld [vmem:[%s114 + $0x54] sm:$0x1]
  %v156 = vld [vmem:[%s114 + $0x5c] sm:$0x1]
  %v157 = vld [vmem:[%s114 + $0x64] sm:$0x1]
  %v158 = vld [vmem:[%s114 + $0x6c] sm:$0x1]
  %v159 = vld [vmem:[%s114 + $0x74] sm:$0x1]
  %v160 = vld [vmem:[%s114 + $0x7c] sm:$0x1]
  %v161 = vld [vmem:[%s114 + $0x84] sm:$0x1]
  %v162 = vld [vmem:[%s114 + $0x8c] sm:$0x1]
  %v163 = vunpack.c.l.bf16 %v147
  %v164 = vunpack.c.l.bf16 %v148
  %v165 = vunpack.c.l.bf16 %v149
  %v166 = vunpack.c.l.bf16 %v150
  %v167 = vunpack.c.l.bf16 %v151
  %v168 = vunpack.c.l.bf16 %v152
  %v169 = vunpack.c.l.bf16 %v153
  %v170 = vunpack.c.l.bf16 %v154
  %v171 = vunpack.c.l.bf16 %v155
  %v172 = vunpack.c.l.bf16 %v156
  %v173 = vunpack.c.l.bf16 %v157
  %v174 = vunpack.c.l.bf16 %v158
  %v175 = vunpack.c.l.bf16 %v159
  %v176 = vunpack.c.l.bf16 %v160
  %v177 = vunpack.c.l.bf16 %v161
  %v178 = vunpack.c.l.bf16 %v162
  %v179 = vld [vmem:[%s114] sm:$0xe]
  %v180 = vld [vmem:[%s114 + $0x8] sm:$0xe]
  %v181 = vld [vmem:[%s114 + $0x10] sm:$0xe]
  %v182 = vld [vmem:[%s114 + $0x18] sm:$0xe]
  %v183 = vld [vmem:[%s114 + $0x20] sm:$0xe]
  %v184 = vld [vmem:[%s114 + $0x28] sm:$0xe]
  %v185 = vld [vmem:[%s114 + $0x30] sm:$0xe]
  %v186 = vld [vmem:[%s114 + $0x38] sm:$0xe]
  %v187 = vld [vmem:[%s114 + $0x50] sm:$0xe]
  %v188 = vld [vmem:[%s114 + $0x58] sm:$0xe]
  %v189 = vld [vmem:[%s114 + $0x60] sm:$0xe]
  %v190 = vld [vmem:[%s114 + $0x68] sm:$0xe]
  %v191 = vld [vmem:[%s114 + $0x70] sm:$0xe]
  %v192 = vld [vmem:[%s114 + $0x78] sm:$0xe]
  %v193 = vld [vmem:[%s114 + $0x80] sm:$0xe]
  %v194 = vld [vmem:[%s114 + $0x88] sm:$0xe]
  %v195 = vunpack.c.l.bf16 %v179
  %v196 = vunpack.c.l.bf16 %v180
  %v197 = vunpack.c.l.bf16 %v181
  %v198 = vunpack.c.l.bf16 %v182
  %v199 = vunpack.c.l.bf16 %v183
  %v200 = vunpack.c.l.bf16 %v184
  %v201 = vunpack.c.l.bf16 %v185
  %v202 = vunpack.c.l.bf16 %v186
  %v203 = vunpack.c.l.bf16 %v187
  %v204 = vunpack.c.l.bf16 %v188
  %v205 = vunpack.c.l.bf16 %v189
  %v206 = vunpack.c.l.bf16 %v190
  %v207 = vunpack.c.l.bf16 %v191
  %v208 = vunpack.c.l.bf16 %v192
  %v209 = vunpack.c.l.bf16 %v193
  %v210 = vunpack.c.l.bf16 %v194
  %s211 = scalar_lea.vmem %s0, 16
  %v212 = vld [vmem:[%s211] sm:$0xf]
  %v213 = vld [vmem:[%s211 + $0x8] sm:$0xf]
  %v214 = vld [vmem:[%s211 + $0x10] sm:$0xf]
  %v215 = vld [vmem:[%s211 + $0x18] sm:$0xf]
  %v216 = vld [vmem:[%s211 + $0x20] sm:$0xf]
  %v217 = vld [vmem:[%s211 + $0x28] sm:$0xf]
  %v218 = vld [vmem:[%s211 + $0x30] sm:$0xf]
  %v219 = vld [vmem:[%s211 + $0x38] sm:$0xf]
  %v220 = vld [vmem:[%s211 + $0x50] sm:$0xf]
  %v221 = vld [vmem:[%s211 + $0x58] sm:$0xf]
  %v222 = vld [vmem:[%s211 + $0x60] sm:$0xf]
  %v223 = vld [vmem:[%s211 + $0x68] sm:$0xf]
  %v224 = vld [vmem:[%s211 + $0x70] sm:$0xf]
  %v225 = vld [vmem:[%s211 + $0x78] sm:$0xf]
  %v226 = vld [vmem:[%s211 + $0x80] sm:$0xf]
  %v227 = vld [vmem:[%s211 + $0x88] sm:$0xf]
  %v228 = vunpack.c.l.bf16 %v212
  %v229 = vunpack.c.l.bf16 %v213
  %v230 = vunpack.c.l.bf16 %v214
  %v231 = vunpack.c.l.bf16 %v215
  %v232 = vunpack.c.l.bf16 %v216
  %v233 = vunpack.c.l.bf16 %v217
  %v234 = vunpack.c.l.bf16 %v218
  %v235 = vunpack.c.l.bf16 %v219
  %v236 = vunpack.c.l.bf16 %v220
  %v237 = vunpack.c.l.bf16 %v221
  %v238 = vunpack.c.l.bf16 %v222
  %v239 = vunpack.c.l.bf16 %v223
  %v240 = vunpack.c.l.bf16 %v224
  %v241 = vunpack.c.l.bf16 %v225
  %v242 = vunpack.c.l.bf16 %v226
  %v243 = vunpack.c.l.bf16 %v227
  %v244 = vld [vmem:[%s211 + $0x4] sm:$0x1]
  %v245 = vld [vmem:[%s211 + $0xc] sm:$0x1]
  %v246 = vld [vmem:[%s211 + $0x14] sm:$0x1]
  %v247 = vld [vmem:[%s211 + $0x1c] sm:$0x1]
  %v248 = vld [vmem:[%s211 + $0x24] sm:$0x1]
  %v249 = vld [vmem:[%s211 + $0x2c] sm:$0x1]
  %v250 = vld [vmem:[%s211 + $0x34] sm:$0x1]
  %v251 = vld [vmem:[%s211 + $0x3c] sm:$0x1]
  %v252 = vld [vmem:[%s211 + $0x54] sm:$0x1]
  %v253 = vld [vmem:[%s211 + $0x5c] sm:$0x1]
  %v254 = vld [vmem:[%s211 + $0x64] sm:$0x1]
  %v255 = vld [vmem:[%s211 + $0x6c] sm:$0x1]
  %v256 = vld [vmem:[%s211 + $0x74] sm:$0x1]
  %v257 = vld [vmem:[%s211 + $0x7c] sm:$0x1]
  %v258 = vld [vmem:[%s211 + $0x84] sm:$0x1]
  %v259 = vld [vmem:[%s211 + $0x8c] sm:$0x1]
  %v260 = vunpack.c.l.bf16 %v244
  %v261 = vunpack.c.l.bf16 %v245
  %v262 = vunpack.c.l.bf16 %v246
  %v263 = vunpack.c.l.bf16 %v247
  %v264 = vunpack.c.l.bf16 %v248
  %v265 = vunpack.c.l.bf16 %v249
  %v266 = vunpack.c.l.bf16 %v250
  %v267 = vunpack.c.l.bf16 %v251
  %v268 = vunpack.c.l.bf16 %v252
  %v269 = vunpack.c.l.bf16 %v253
  %v270 = vunpack.c.l.bf16 %v254
  %v271 = vunpack.c.l.bf16 %v255
  %v272 = vunpack.c.l.bf16 %v256
  %v273 = vunpack.c.l.bf16 %v257
  %v274 = vunpack.c.l.bf16 %v258
  %v275 = vunpack.c.l.bf16 %v259
  %v276 = vld [vmem:[%s211] sm:$0xe]
  %v277 = vld [vmem:[%s211 + $0x8] sm:$0xe]
  %v278 = vld [vmem:[%s211 + $0x10] sm:$0xe]
  %v279 = vld [vmem:[%s211 + $0x18] sm:$0xe]
  %v280 = vld [vmem:[%s211 + $0x20] sm:$0xe]
  %v281 = vld [vmem:[%s211 + $0x28] sm:$0xe]
  %v282 = vld [vmem:[%s211 + $0x30] sm:$0xe]
  %v283 = vld [vmem:[%s211 + $0x38] sm:$0xe]
  %v284 = vld [vmem:[%s211 + $0x50] sm:$0xe]
  %v285 = vld [vmem:[%s211 + $0x58] sm:$0xe]
  %v286 = vld [vmem:[%s211 + $0x60] sm:$0xe]
  %v287 = vld [vmem:[%s211 + $0x68] sm:$0xe]
  %v288 = vld [vmem:[%s211 + $0x70] sm:$0xe]
  %v289 = vld [vmem:[%s211 + $0x78] sm:$0xe]
  %v290 = vld [vmem:[%s211 + $0x80] sm:$0xe]
  %v291 = vld [vmem:[%s211 + $0x88] sm:$0xe]
  %v292 = vunpack.c.l.bf16 %v276
  %v293 = vunpack.c.l.bf16 %v277
  %v294 = vunpack.c.l.bf16 %v278
  %v295 = vunpack.c.l.bf16 %v279
  %v296 = vunpack.c.l.bf16 %v280
  %v297 = vunpack.c.l.bf16 %v281
  %v298 = vunpack.c.l.bf16 %v282
  %v299 = vunpack.c.l.bf16 %v283
  %v300 = vunpack.c.l.bf16 %v284
  %v301 = vunpack.c.l.bf16 %v285
  %v302 = vunpack.c.l.bf16 %v286
  %v303 = vunpack.c.l.bf16 %v287
  %v304 = vunpack.c.l.bf16 %v288
  %v305 = vunpack.c.l.bf16 %v289
  %v306 = vunpack.c.l.bf16 %v290
  %v307 = vunpack.c.l.bf16 %v291
  %vm340 = vcmask 1046528
  %v341 = vrot.slane %v34, 1
  %v342 = vrot.slane %v66, 1
  %v343 = vsel %vm340, %v341, %v342
  %v344 = vrot.slane %v35, 1
  %v345 = vrot.slane %v67, 1
  %v346 = vsel %vm340, %v344, %v345
  %v347 = vrot.slane %v36, 1
  %v348 = vrot.slane %v68, 1
  %v349 = vsel %vm340, %v347, %v348
  %v350 = vrot.slane %v37, 1
  %v351 = vrot.slane %v69, 1
  %v352 = vsel %vm340, %v350, %v351
  %v353 = vrot.slane %v38, 1
  %v354 = vrot.slane %v70, 1
  %v355 = vsel %vm340, %v353, %v354
  %v356 = vrot.slane %v39, 1
  %v357 = vrot.slane %v71, 1
  %v358 = vsel %vm340, %v356, %v357
  %v359 = vrot.slane %v40, 1
  %v360 = vrot.slane %v72, 1
  %v361 = vsel %vm340, %v359, %v360
  %v362 = vrot.slane %v41, 1
  %v363 = vrot.slane %v73, 1
  %v364 = vsel %vm340, %v362, %v363
  %v365 = vrot.slane %v42, 1
  %v366 = vrot.slane %v74, 1
  %v367 = vsel %vm340, %v365, %v366
  %v368 = vrot.slane %v43, 1
  %v369 = vrot.slane %v75, 1
  %v370 = vsel %vm340, %v368, %v369
  %v371 = vrot.slane %v44, 1
  %v372 = vrot.slane %v76, 1
  %v373 = vsel %vm340, %v371, %v372
  %v374 = vrot.slane %v45, 1
  %v375 = vrot.slane %v77, 1
  %v376 = vsel %vm340, %v374, %v375
  %v377 = vrot.slane %v46, 1
  %v378 = vrot.slane %v78, 1
  %v379 = vsel %vm340, %v377, %v378
  %v380 = vrot.slane %v47, 1
  %v381 = vrot.slane %v79, 1
  %v382 = vsel %vm340, %v380, %v381
  %v383 = vrot.slane %v48, 1
  %v384 = vrot.slane %v80, 1
  %v385 = vsel %vm340, %v383, %v384
  %v386 = vrot.slane %v49, 1
  %v387 = vrot.slane %v81, 1
  %v388 = vsel %vm340, %v386, %v387
  %389 = vrot.lane.b32.xlu0 %v343, 32
  %v390 = vpop.permute.xlu0 %389
  %391 = vrot.lane.b32.xlu0 %v346, 32
  %v392 = vpop.permute.xlu0 %391
  %393 = vrot.lane.b32.xlu0 %v349, 32
  %v394 = vpop.permute.xlu0 %393
  %395 = vrot.lane.b32.xlu0 %v352, 32
  %v396 = vpop.permute.xlu0 %395
  %397 = vrot.lane.b32.xlu0 %v355, 32
  %v398 = vpop.permute.xlu0 %397
  %399 = vrot.lane.b32.xlu0 %v358, 32
  %v400 = vpop.permute.xlu0 %399
  %401 = vrot.lane.b32.xlu0 %v361, 32
  %v402 = vpop.permute.xlu0 %401
  %403 = vrot.lane.b32.xlu0 %v364, 32
  %v404 = vpop.permute.xlu0 %403
  %405 = vrot.lane.b32.xlu0 %v367, 32
  %v406 = vpop.permute.xlu0 %405
  %407 = vrot.lane.b32.xlu0 %v370, 32
  %v408 = vpop.permute.xlu0 %407
  %409 = vrot.lane.b32.xlu0 %v373, 32
  %v410 = vpop.permute.xlu0 %409
  %411 = vrot.lane.b32.xlu0 %v376, 32
  %v412 = vpop.permute.xlu0 %411
  %413 = vrot.lane.b32.xlu0 %v379, 32
  %v414 = vpop.permute.xlu0 %413
  %415 = vrot.lane.b32.xlu0 %v382, 32
  %v416 = vpop.permute.xlu0 %415
  %417 = vrot.lane.b32.xlu0 %v385, 32
  %v418 = vpop.permute.xlu0 %417
  %419 = vrot.lane.b32.xlu0 %v388, 32
  %v420 = vpop.permute.xlu0 %419
  %vm453 = vcmask 1045504
  %v454 = vrot.slane %v98, 2
  %v455 = vrot.slane %v66, 2
  %v456 = vsel %vm453, %v454, %v455
  %v457 = vrot.slane %v99, 2
  %v458 = vrot.slane %v67, 2
  %v459 = vsel %vm453, %v457, %v458
  %v460 = vrot.slane %v100, 2
  %v461 = vrot.slane %v68, 2
  %v462 = vsel %vm453, %v460, %v461
  %v463 = vrot.slane %v101, 2
  %v464 = vrot.slane %v69, 2
  %v465 = vsel %vm453, %v463, %v464
  %v466 = vrot.slane %v102, 2
  %v467 = vrot.slane %v70, 2
  %v468 = vsel %vm453, %v466, %v467
  %v469 = vrot.slane %v103, 2
  %v470 = vrot.slane %v71, 2
  %v471 = vsel %vm453, %v469, %v470
  %v472 = vrot.slane %v104, 2
  %v473 = vrot.slane %v72, 2
  %v474 = vsel %vm453, %v472, %v473
  %v475 = vrot.slane %v105, 2
  %v476 = vrot.slane %v73, 2
  %v477 = vsel %vm453, %v475, %v476
  %v478 = vrot.slane %v106, 2
  %v479 = vrot.slane %v74, 2
  %v480 = vsel %vm453, %v478, %v479
  %v481 = vrot.slane %v107, 2
  %v482 = vrot.slane %v75, 2
  %v483 = vsel %vm453, %v481, %v482
  %v484 = vrot.slane %v108, 2
  %v485 = vrot.slane %v76, 2
  %v486 = vsel %vm453, %v484, %v485
  %v487 = vrot.slane %v109, 2
  %v488 = vrot.slane %v77, 2
  %v489 = vsel %vm453, %v487, %v488
  %v490 = vrot.slane %v110, 2
  %v491 = vrot.slane %v78, 2
  %v492 = vsel %vm453, %v490, %v491
  %v493 = vrot.slane %v111, 2
  %v494 = vrot.slane %v79, 2
  %v495 = vsel %vm453, %v493, %v494
  %v496 = vrot.slane %v112, 2
  %v497 = vrot.slane %v80, 2
  %v498 = vsel %vm453, %v496, %v497
  %v499 = vrot.slane %v113, 2
  %v500 = vrot.slane %v81, 2
  %v501 = vsel %vm453, %v499, %v500
  %502 = vrot.lane.b32.xlu0 %v456, 64
  %v503 = vpop.permute.xlu0 %502
  %504 = vrot.lane.b32.xlu0 %v459, 64
  %v505 = vpop.permute.xlu0 %504
  %506 = vrot.lane.b32.xlu0 %v462, 64
  %v507 = vpop.permute.xlu0 %506
  %508 = vrot.lane.b32.xlu0 %v465, 64
  %v509 = vpop.permute.xlu0 %508
  %510 = vrot.lane.b32.xlu0 %v468, 64
  %v511 = vpop.permute.xlu0 %510
  %512 = vrot.lane.b32.xlu0 %v471, 64
  %v513 = vpop.permute.xlu0 %512
  %514 = vrot.lane.b32.xlu0 %v474, 64
  %v515 = vpop.permute.xlu0 %514
  %516 = vrot.lane.b32.xlu0 %v477, 64
  %v517 = vpop.permute.xlu0 %516
  %518 = vrot.lane.b32.xlu0 %v480, 64
  %v519 = vpop.permute.xlu0 %518
  %520 = vrot.lane.b32.xlu0 %v483, 64
  %v521 = vpop.permute.xlu0 %520
  %522 = vrot.lane.b32.xlu0 %v486, 64
  %v523 = vpop.permute.xlu0 %522
  %524 = vrot.lane.b32.xlu0 %v489, 64
  %v525 = vpop.permute.xlu0 %524
  %526 = vrot.lane.b32.xlu0 %v492, 64
  %v527 = vpop.permute.xlu0 %526
  %528 = vrot.lane.b32.xlu0 %v495, 64
  %v529 = vpop.permute.xlu0 %528
  %530 = vrot.lane.b32.xlu0 %v498, 64
  %v531 = vpop.permute.xlu0 %530
  %532 = vrot.lane.b32.xlu0 %v501, 64
  %v533 = vpop.permute.xlu0 %532
  %566 = vrot.lane.b32.xlu0 %v131, 96
  %v567 = vpop.permute.xlu0 %566
  %568 = vrot.lane.b32.xlu0 %v132, 96
  %v569 = vpop.permute.xlu0 %568
  %570 = vrot.lane.b32.xlu0 %v133, 96
  %v571 = vpop.permute.xlu0 %570
  %572 = vrot.lane.b32.xlu0 %v134, 96
  %v573 = vpop.permute.xlu0 %572
  %574 = vrot.lane.b32.xlu0 %v135, 96
  %v575 = vpop.permute.xlu0 %574
  %576 = vrot.lane.b32.xlu0 %v136, 96
  %v577 = vpop.permute.xlu0 %576
  %578 = vrot.lane.b32.xlu0 %v137, 96
  %v579 = vpop.permute.xlu0 %578
  %580 = vrot.lane.b32.xlu0 %v138, 96
  %v581 = vpop.permute.xlu0 %580
  %582 = vrot.lane.b32.xlu0 %v139, 96
  %v583 = vpop.permute.xlu0 %582
  %584 = vrot.lane.b32.xlu0 %v140, 96
  %v585 = vpop.permute.xlu0 %584
  %586 = vrot.lane.b32.xlu0 %v141, 96
  %v587 = vpop.permute.xlu0 %586
  %588 = vrot.lane.b32.xlu0 %v142, 96
  %v589 = vpop.permute.xlu0 %588
  %590 = vrot.lane.b32.xlu0 %v143, 96
  %v591 = vpop.permute.xlu0 %590
  %592 = vrot.lane.b32.xlu0 %v144, 96
  %v593 = vpop.permute.xlu0 %592
  %594 = vrot.lane.b32.xlu0 %v145, 96
  %v595 = vpop.permute.xlu0 %594
  %596 = vrot.lane.b32.xlu0 %v146, 96
  %v597 = vpop.permute.xlu0 %596
  %v630 = vrot.slane %v131, 1
  %v631 = vrot.slane %v163, 1
  %v632 = vsel %vm340, %v630, %v631
  %v633 = vrot.slane %v132, 1
  %v634 = vrot.slane %v164, 1
  %v635 = vsel %vm340, %v633, %v634
  %v636 = vrot.slane %v133, 1
  %v637 = vrot.slane %v165, 1
  %v638 = vsel %vm340, %v636, %v637
  %v639 = vrot.slane %v134, 1
  %v640 = vrot.slane %v166, 1
  %v641 = vsel %vm340, %v639, %v640
  %v642 = vrot.slane %v135, 1
  %v643 = vrot.slane %v167, 1
  %v644 = vsel %vm340, %v642, %v643
  %v645 = vrot.slane %v136, 1
  %v646 = vrot.slane %v168, 1
  %v647 = vsel %vm340, %v645, %v646
  %v648 = vrot.slane %v137, 1
  %v649 = vrot.slane %v169, 1
  %v650 = vsel %vm340, %v648, %v649
  %v651 = vrot.slane %v138, 1
  %v652 = vrot.slane %v170, 1
  %v653 = vsel %vm340, %v651, %v652
  %v654 = vrot.slane %v139, 1
  %v655 = vrot.slane %v171, 1
  %v656 = vsel %vm340, %v654, %v655
  %v657 = vrot.slane %v140, 1
  %v658 = vrot.slane %v172, 1
  %v659 = vsel %vm340, %v657, %v658
  %v660 = vrot.slane %v141, 1
  %v661 = vrot.slane %v173, 1
  %v662 = vsel %vm340, %v660, %v661
  %v663 = vrot.slane %v142, 1
  %v664 = vrot.slane %v174, 1
  %v665 = vsel %vm340, %v663, %v664
  %v666 = vrot.slane %v143, 1
  %v667 = vrot.slane %v175, 1
  %v668 = vsel %vm340, %v666, %v667
  %v669 = vrot.slane %v144, 1
  %v670 = vrot.slane %v176, 1
  %v671 = vsel %vm340, %v669, %v670
  %v672 = vrot.slane %v145, 1
  %v673 = vrot.slane %v177, 1
  %v674 = vsel %vm340, %v672, %v673
  %v675 = vrot.slane %v146, 1
  %v676 = vrot.slane %v178, 1
  %v677 = vsel %vm340, %v675, %v676
  %v710 = vrot.slane %v195, 2
  %v711 = vrot.slane %v163, 2
  %v712 = vsel %vm453, %v710, %v711
  %v713 = vrot.slane %v196, 2
  %v714 = vrot.slane %v164, 2
  %v715 = vsel %vm453, %v713, %v714
  %v716 = vrot.slane %v197, 2
  %v717 = vrot.slane %v165, 2
  %v718 = vsel %vm453, %v716, %v717
  %v719 = vrot.slane %v198, 2
  %v720 = vrot.slane %v166, 2
  %v721 = vsel %vm453, %v719, %v720
  %v722 = vrot.slane %v199, 2
  %v723 = vrot.slane %v167, 2
  %v724 = vsel %vm453, %v722, %v723
  %v725 = vrot.slane %v200, 2
  %v726 = vrot.slane %v168, 2
  %v727 = vsel %vm453, %v725, %v726
  %v728 = vrot.slane %v201, 2
  %v729 = vrot.slane %v169, 2
  %v730 = vsel %vm453, %v728, %v729
  %v731 = vrot.slane %v202, 2
  %v732 = vrot.slane %v170, 2
  %v733 = vsel %vm453, %v731, %v732
  %v734 = vrot.slane %v203, 2
  %v735 = vrot.slane %v171, 2
  %v736 = vsel %vm453, %v734, %v735
  %v737 = vrot.slane %v204, 2
  %v738 = vrot.slane %v172, 2
  %v739 = vsel %vm453, %v737, %v738
  %v740 = vrot.slane %v205, 2
  %v741 = vrot.slane %v173, 2
  %v742 = vsel %vm453, %v740, %v741
  %v743 = vrot.slane %v206, 2
  %v744 = vrot.slane %v174, 2
  %v745 = vsel %vm453, %v743, %v744
  %v746 = vrot.slane %v207, 2
  %v747 = vrot.slane %v175, 2
  %v748 = vsel %vm453, %v746, %v747
  %v749 = vrot.slane %v208, 2
  %v750 = vrot.slane %v176, 2
  %v751 = vsel %vm453, %v749, %v750
  %v752 = vrot.slane %v209, 2
  %v753 = vrot.slane %v177, 2
  %v754 = vsel %vm453, %v752, %v753
  %v755 = vrot.slane %v210, 2
  %v756 = vrot.slane %v178, 2
  %v757 = vsel %vm453, %v755, %v756
  %758 = vrot.lane.b32.xlu0 %v712, 32
  %v759 = vpop.permute.xlu0 %758
  %760 = vrot.lane.b32.xlu0 %v715, 32
  %v761 = vpop.permute.xlu0 %760
  %762 = vrot.lane.b32.xlu0 %v718, 32
  %v763 = vpop.permute.xlu0 %762
  %764 = vrot.lane.b32.xlu0 %v721, 32
  %v765 = vpop.permute.xlu0 %764
  %766 = vrot.lane.b32.xlu0 %v724, 32
  %v767 = vpop.permute.xlu0 %766
  %768 = vrot.lane.b32.xlu0 %v727, 32
  %v769 = vpop.permute.xlu0 %768
  %770 = vrot.lane.b32.xlu0 %v730, 32
  %v771 = vpop.permute.xlu0 %770
  %772 = vrot.lane.b32.xlu0 %v733, 32
  %v773 = vpop.permute.xlu0 %772
  %774 = vrot.lane.b32.xlu0 %v736, 32
  %v775 = vpop.permute.xlu0 %774
  %776 = vrot.lane.b32.xlu0 %v739, 32
  %v777 = vpop.permute.xlu0 %776
  %778 = vrot.lane.b32.xlu0 %v742, 32
  %v779 = vpop.permute.xlu0 %778
  %780 = vrot.lane.b32.xlu0 %v745, 32
  %v781 = vpop.permute.xlu0 %780
  %782 = vrot.lane.b32.xlu0 %v748, 32
  %v783 = vpop.permute.xlu0 %782
  %784 = vrot.lane.b32.xlu0 %v751, 32
  %v785 = vpop.permute.xlu0 %784
  %786 = vrot.lane.b32.xlu0 %v754, 32
  %v787 = vpop.permute.xlu0 %786
  %788 = vrot.lane.b32.xlu0 %v757, 32
  %v789 = vpop.permute.xlu0 %788
  %822 = vrot.lane.b32.xlu0 %v228, 64
  %v823 = vpop.permute.xlu0 %822
  %824 = vrot.lane.b32.xlu0 %v229, 64
  %v825 = vpop.permute.xlu0 %824
  %826 = vrot.lane.b32.xlu0 %v230, 64
  %v827 = vpop.permute.xlu0 %826
  %828 = vrot.lane.b32.xlu0 %v231, 64
  %v829 = vpop.permute.xlu0 %828
  %830 = vrot.lane.b32.xlu0 %v232, 64
  %v831 = vpop.permute.xlu0 %830
  %832 = vrot.lane.b32.xlu0 %v233, 64
  %v833 = vpop.permute.xlu0 %832
  %834 = vrot.lane.b32.xlu0 %v234, 64
  %v835 = vpop.permute.xlu0 %834
  %836 = vrot.lane.b32.xlu0 %v235, 64
  %v837 = vpop.permute.xlu0 %836
  %838 = vrot.lane.b32.xlu0 %v236, 64
  %v839 = vpop.permute.xlu0 %838
  %840 = vrot.lane.b32.xlu0 %v237, 64
  %v841 = vpop.permute.xlu0 %840
  %842 = vrot.lane.b32.xlu0 %v238, 64
  %v843 = vpop.permute.xlu0 %842
  %844 = vrot.lane.b32.xlu0 %v239, 64
  %v845 = vpop.permute.xlu0 %844
  %846 = vrot.lane.b32.xlu0 %v240, 64
  %v847 = vpop.permute.xlu0 %846
  %848 = vrot.lane.b32.xlu0 %v241, 64
  %v849 = vpop.permute.xlu0 %848
  %850 = vrot.lane.b32.xlu0 %v242, 64
  %v851 = vpop.permute.xlu0 %850
  %852 = vrot.lane.b32.xlu0 %v243, 64
  %v853 = vpop.permute.xlu0 %852
  %v886 = vrot.slane %v228, 1
  %v887 = vrot.slane %v260, 1
  %v888 = vsel %vm340, %v886, %v887
  %v889 = vrot.slane %v229, 1
  %v890 = vrot.slane %v261, 1
  %v891 = vsel %vm340, %v889, %v890
  %v892 = vrot.slane %v230, 1
  %v893 = vrot.slane %v262, 1
  %v894 = vsel %vm340, %v892, %v893
  %v895 = vrot.slane %v231, 1
  %v896 = vrot.slane %v263, 1
  %v897 = vsel %vm340, %v895, %v896
  %v898 = vrot.slane %v232, 1
  %v899 = vrot.slane %v264, 1
  %v900 = vsel %vm340, %v898, %v899
  %v901 = vrot.slane %v233, 1
  %v902 = vrot.slane %v265, 1
  %v903 = vsel %vm340, %v901, %v902
  %v904 = vrot.slane %v234, 1
  %v905 = vrot.slane %v266, 1
  %v906 = vsel %vm340, %v904, %v905
  %v907 = vrot.slane %v235, 1
  %v908 = vrot.slane %v267, 1
  %v909 = vsel %vm340, %v907, %v908
  %v910 = vrot.slane %v236, 1
  %v911 = vrot.slane %v268, 1
  %v912 = vsel %vm340, %v910, %v911
  %v913 = vrot.slane %v237, 1
  %v914 = vrot.slane %v269, 1
  %v915 = vsel %vm340, %v913, %v914
  %v916 = vrot.slane %v238, 1
  %v917 = vrot.slane %v270, 1
  %v918 = vsel %vm340, %v916, %v917
  %v919 = vrot.slane %v239, 1
  %v920 = vrot.slane %v271, 1
  %v921 = vsel %vm340, %v919, %v920
  %v922 = vrot.slane %v240, 1
  %v923 = vrot.slane %v272, 1
  %v924 = vsel %vm340, %v922, %v923
  %v925 = vrot.slane %v241, 1
  %v926 = vrot.slane %v273, 1
  %v927 = vsel %vm340, %v925, %v926
  %v928 = vrot.slane %v242, 1
  %v929 = vrot.slane %v274, 1
  %v930 = vsel %vm340, %v928, %v929
  %v931 = vrot.slane %v243, 1
  %v932 = vrot.slane %v275, 1
  %v933 = vsel %vm340, %v931, %v932
  %934 = vrot.lane.b32.xlu0 %v888, 96
  %v935 = vpop.permute.xlu0 %934
  %936 = vrot.lane.b32.xlu0 %v891, 96
  %v937 = vpop.permute.xlu0 %936
  %938 = vrot.lane.b32.xlu0 %v894, 96
  %v939 = vpop.permute.xlu0 %938
  %940 = vrot.lane.b32.xlu0 %v897, 96
  %v941 = vpop.permute.xlu0 %940
  %942 = vrot.lane.b32.xlu0 %v900, 96
  %v943 = vpop.permute.xlu0 %942
  %944 = vrot.lane.b32.xlu0 %v903, 96
  %v945 = vpop.permute.xlu0 %944
  %946 = vrot.lane.b32.xlu0 %v906, 96
  %v947 = vpop.permute.xlu0 %946
  %948 = vrot.lane.b32.xlu0 %v909, 96
  %v949 = vpop.permute.xlu0 %948
  %950 = vrot.lane.b32.xlu0 %v912, 96
  %v951 = vpop.permute.xlu0 %950
  %952 = vrot.lane.b32.xlu0 %v915, 96
  %v953 = vpop.permute.xlu0 %952
  %954 = vrot.lane.b32.xlu0 %v918, 96
  %v955 = vpop.permute.xlu0 %954
  %956 = vrot.lane.b32.xlu0 %v921, 96
  %v957 = vpop.permute.xlu0 %956
  %958 = vrot.lane.b32.xlu0 %v924, 96
  %v959 = vpop.permute.xlu0 %958
  %960 = vrot.lane.b32.xlu0 %v927, 96
  %v961 = vpop.permute.xlu0 %960
  %962 = vrot.lane.b32.xlu0 %v930, 96
  %v963 = vpop.permute.xlu0 %962
  %964 = vrot.lane.b32.xlu0 %v933, 96
  %v965 = vpop.permute.xlu0 %964
  %v998 = vrot.slane %v292, 2
  %v999 = vrot.slane %v260, 2
  %v1000 = vsel %vm453, %v998, %v999
  %v1001 = vrot.slane %v293, 2
  %v1002 = vrot.slane %v261, 2
  %v1003 = vsel %vm453, %v1001, %v1002
  %v1004 = vrot.slane %v294, 2
  %v1005 = vrot.slane %v262, 2
  %v1006 = vsel %vm453, %v1004, %v1005
  %v1007 = vrot.slane %v295, 2
  %v1008 = vrot.slane %v263, 2
  %v1009 = vsel %vm453, %v1007, %v1008
  %v1010 = vrot.slane %v296, 2
  %v1011 = vrot.slane %v264, 2
  %v1012 = vsel %vm453, %v1010, %v1011
  %v1013 = vrot.slane %v297, 2
  %v1014 = vrot.slane %v265, 2
  %v1015 = vsel %vm453, %v1013, %v1014
  %v1016 = vrot.slane %v298, 2
  %v1017 = vrot.slane %v266, 2
  %v1018 = vsel %vm453, %v1016, %v1017
  %v1019 = vrot.slane %v299, 2
  %v1020 = vrot.slane %v267, 2
  %v1021 = vsel %vm453, %v1019, %v1020
  %v1022 = vrot.slane %v300, 2
  %v1023 = vrot.slane %v268, 2
  %v1024 = vsel %vm453, %v1022, %v1023
  %v1025 = vrot.slane %v301, 2
  %v1026 = vrot.slane %v269, 2
  %v1027 = vsel %vm453, %v1025, %v1026
  %v1028 = vrot.slane %v302, 2
  %v1029 = vrot.slane %v270, 2
  %v1030 = vsel %vm453, %v1028, %v1029
  %v1031 = vrot.slane %v303, 2
  %v1032 = vrot.slane %v271, 2
  %v1033 = vsel %vm453, %v1031, %v1032
  %v1034 = vrot.slane %v304, 2
  %v1035 = vrot.slane %v272, 2
  %v1036 = vsel %vm453, %v1034, %v1035
  %v1037 = vrot.slane %v305, 2
  %v1038 = vrot.slane %v273, 2
  %v1039 = vsel %vm453, %v1037, %v1038
  %v1040 = vrot.slane %v306, 2
  %v1041 = vrot.slane %v274, 2
  %v1042 = vsel %vm453, %v1040, %v1041
  %v1043 = vrot.slane %v307, 2
  %v1044 = vrot.slane %v275, 2
  %v1045 = vsel %vm453, %v1043, %v1044
  %vm1062 = vcmask 261120
  %v1063 = vsel %vm1062, %v34, %v390
  %v1064 = vsel %vm1062, %v35, %v392
  %v1065 = vsel %vm1062, %v36, %v394
  %v1066 = vsel %vm1062, %v37, %v396
  %v1067 = vsel %vm1062, %v38, %v398
  %v1068 = vsel %vm1062, %v39, %v400
  %v1069 = vsel %vm1062, %v40, %v402
  %v1070 = vsel %vm1062, %v41, %v404
  %v1071 = vsel %vm1062, %v42, %v406
  %v1072 = vsel %vm1062, %v43, %v408
  %v1073 = vsel %vm1062, %v44, %v410
  %v1074 = vsel %vm1062, %v45, %v412
  %v1075 = vsel %vm1062, %v46, %v414
  %v1076 = vsel %vm1062, %v47, %v416
  %v1077 = vsel %vm1062, %v48, %v418
  %v1078 = vsel %vm1062, %v49, %v420
  %vm1079 = vcmask 523264
  %v1080 = vsel %vm1079, %v1063, %v503
  %v1081 = vsel %vm1079, %v1064, %v505
  %v1082 = vsel %vm1079, %v1065, %v507
  %v1083 = vsel %vm1079, %v1066, %v509
  %v1084 = vsel %vm1079, %v1067, %v511
  %v1085 = vsel %vm1079, %v1068, %v513
  %v1086 = vsel %vm1079, %v1069, %v515
  %v1087 = vsel %vm1079, %v1070, %v517
  %v1088 = vsel %vm1079, %v1071, %v519
  %v1089 = vsel %vm1079, %v1072, %v521
  %v1090 = vsel %vm1079, %v1073, %v523
  %v1091 = vsel %vm1079, %v1074, %v525
  %v1092 = vsel %vm1079, %v1075, %v527
  %v1093 = vsel %vm1079, %v1076, %v529
  %v1094 = vsel %vm1079, %v1077, %v531
  %v1095 = vsel %vm1079, %v1078, %v533
  %vm1096 = vcmask 785408
  %v1097 = vsel %vm1096, %v1080, %v567
  %v1098 = vsel %vm1096, %v1081, %v569
  %v1099 = vsel %vm1096, %v1082, %v571
  %v1100 = vsel %vm1096, %v1083, %v573
  %v1101 = vsel %vm1096, %v1084, %v575
  %v1102 = vsel %vm1096, %v1085, %v577
  %v1103 = vsel %vm1096, %v1086, %v579
  %v1104 = vsel %vm1096, %v1087, %v581
  %v1105 = vsel %vm1096, %v1088, %v583
  %v1106 = vsel %vm1096, %v1089, %v585
  %v1107 = vsel %vm1096, %v1090, %v587
  %v1108 = vsel %vm1096, %v1091, %v589
  %v1109 = vsel %vm1096, %v1092, %v591
  %v1110 = vsel %vm1096, %v1093, %v593
  %v1111 = vsel %vm1096, %v1094, %v595
  %v1112 = vsel %vm1096, %v1095, %v597
  %v1113 = vsel %vm1062, %v632, %v759
  %v1114 = vsel %vm1062, %v635, %v761
  %v1115 = vsel %vm1062, %v638, %v763
  %v1116 = vsel %vm1062, %v641, %v765
  %v1117 = vsel %vm1062, %v644, %v767
  %v1118 = vsel %vm1062, %v647, %v769
  %v1119 = vsel %vm1062, %v650, %v771
  %v1120 = vsel %vm1062, %v653, %v773
  %v1121 = vsel %vm1062, %v656, %v775
  %v1122 = vsel %vm1062, %v659, %v777
  %v1123 = vsel %vm1062, %v662, %v779
  %v1124 = vsel %vm1062, %v665, %v781
  %v1125 = vsel %vm1062, %v668, %v783
  %v1126 = vsel %vm1062, %v671, %v785
  %v1127 = vsel %vm1062, %v674, %v787
  %v1128 = vsel %vm1062, %v677, %v789
  %v1129 = vsel %vm1079, %v1113, %v823
  %v1130 = vsel %vm1079, %v1114, %v825
  %v1131 = vsel %vm1079, %v1115, %v827
  %v1132 = vsel %vm1079, %v1116, %v829
  %v1133 = vsel %vm1079, %v1117, %v831
  %v1134 = vsel %vm1079, %v1118, %v833
  %v1135 = vsel %vm1079, %v1119, %v835
  %v1136 = vsel %vm1079, %v1120, %v837
  %v1137 = vsel %vm1079, %v1121, %v839
  %v1138 = vsel %vm1079, %v1122, %v841
  %v1139 = vsel %vm1079, %v1123, %v843
  %v1140 = vsel %vm1079, %v1124, %v845
  %v1141 = vsel %vm1079, %v1125, %v847
  %v1142 = vsel %vm1079, %v1126, %v849
  %v1143 = vsel %vm1079, %v1127, %v851
  %v1144 = vsel %vm1079, %v1128, %v853
  %v1145 = vsel %vm1096, %v1129, %v935
  %v1146 = vsel %vm1096, %v1130, %v937
  %v1147 = vsel %vm1096, %v1131, %v939
  %v1148 = vsel %vm1096, %v1132, %v941
  %v1149 = vsel %vm1096, %v1133, %v943
  %v1150 = vsel %vm1096, %v1134, %v945
  %v1151 = vsel %vm1096, %v1135, %v947
  %v1152 = vsel %vm1096, %v1136, %v949
  %v1153 = vsel %vm1096, %v1137, %v951
  %v1154 = vsel %vm1096, %v1138, %v953
  %v1155 = vsel %vm1096, %v1139, %v955
  %v1156 = vsel %vm1096, %v1140, %v957
  %v1157 = vsel %vm1096, %v1141, %v959
  %v1158 = vsel %vm1096, %v1142, %v961
  %v1159 = vsel %vm1096, %v1143, %v963
  %v1160 = vsel %vm1096, %v1144, %v965
  %v1161 = vpack.c.bf16 %v1098, %v1097
  %v1162 = vpack.c.bf16 %v1146, %v1145
  %v1163 = vpack.c.bf16 %v1003, %v1000
  %v1164 = vpack.c.bf16 %v1100, %v1099
  %v1165 = vpack.c.bf16 %v1148, %v1147
  %v1166 = vpack.c.bf16 %v1009, %v1006
  %v1167 = vpack.c.bf16 %v1102, %v1101
  %v1168 = vpack.c.bf16 %v1150, %v1149
  %v1169 = vpack.c.bf16 %v1015, %v1012
  %v1170 = vpack.c.bf16 %v1104, %v1103
  %v1171 = vpack.c.bf16 %v1152, %v1151
  %v1172 = vpack.c.bf16 %v1021, %v1018
  %v1173 = vpack.c.bf16 %v1106, %v1105
  %v1174 = vpack.c.bf16 %v1154, %v1153
  %v1175 = vpack.c.bf16 %v1027, %v1024
  %v1176 = vpack.c.bf16 %v1108, %v1107
  %v1177 = vpack.c.bf16 %v1156, %v1155
  %v1178 = vpack.c.bf16 %v1033, %v1030
  %v1179 = vpack.c.bf16 %v1110, %v1109
  %v1180 = vpack.c.bf16 %v1158, %v1157
  %v1181 = vpack.c.bf16 %v1039, %v1036
  %v1182 = vpack.c.bf16 %v1112, %v1111
  %v1183 = vpack.c.bf16 %v1160, %v1159
  %v1184 = vpack.c.bf16 %v1045, %v1042
  %v1185 = vld [vmem:[%s1] sm:$0xf]
  %v1186 = vld [vmem:[%s1 + $0x4] sm:$0xf]
  %v1187 = vld [vmem:[%s1 + $0x8] sm:$0xf]
  %v1188 = vld [vmem:[%s1 + $0xc] sm:$0xf]
  %v1189 = vld [vmem:[%s1 + $0x10] sm:$0xf]
  %v1190 = vld [vmem:[%s1 + $0x14] sm:$0xf]
  %v1191 = vld [vmem:[%s1 + $0x18] sm:$0xf]
  %v1192 = vld [vmem:[%s1 + $0x1c] sm:$0xf]
  %v1193 = vld [vmem:[%s1 + $0x20] sm:$0xf]
  %v1194 = vld [vmem:[%s1 + $0x24] sm:$0xf]
  %v1195 = vld [vmem:[%s1 + $0x28] sm:$0xf]
  %v1196 = vld [vmem:[%s1 + $0x2c] sm:$0xf]
  %v1197 = vld [vmem:[%s1 + $0x30] sm:$0xf]
  %v1198 = vld [vmem:[%s1 + $0x34] sm:$0xf]
  %v1199 = vld [vmem:[%s1 + $0x38] sm:$0xf]
  %v1200 = vld [vmem:[%s1 + $0x3c] sm:$0xf]
  %v1201 = vld [vmem:[%s1 + $0x40] sm:$0xf]
  %v1202 = vld [vmem:[%s1 + $0x44] sm:$0xf]
  %v1203 = vld [vmem:[%s1 + $0x48] sm:$0xf]
  %v1204 = vld [vmem:[%s1 + $0x4c] sm:$0xf]
  %v1205 = vld [vmem:[%s1 + $0x50] sm:$0xf]
  %v1206 = vld [vmem:[%s1 + $0x54] sm:$0xf]
  %v1207 = vld [vmem:[%s1 + $0x58] sm:$0xf]
  %v1208 = vld [vmem:[%s1 + $0x5c] sm:$0xf]
  %v1209 = vld [vmem:[%s1 + $0x60] sm:$0xf]
  %v1210 = vld [vmem:[%s1 + $0x64] sm:$0xf]
  %v1211 = vld [vmem:[%s1 + $0x68] sm:$0xf]
  %v1212 = vld [vmem:[%s1 + $0x6c] sm:$0xf]
  %v1213 = vld [vmem:[%s1 + $0x70] sm:$0xf]
  %v1214 = vld [vmem:[%s1 + $0x74] sm:$0xf]
  %v1215 = vld [vmem:[%s1 + $0x78] sm:$0xf]
  %v1216 = vld [vmem:[%s1 + $0x7c] sm:$0xf]
  %v1217 = vld [vmem:[%s1 + $0x80] sm:$0xf]
  %v1218 = vld [vmem:[%s1 + $0x84] sm:$0xf]
  %v1219 = vld [vmem:[%s1 + $0x88] sm:$0xf]
  %v1220 = vld [vmem:[%s1 + $0x8c] sm:$0xf]
  %v1257 = vunpack.c.l.b16 %v1185
  %v1258 = vunpack.c.l.b16 %v1186
  %v1259 = vunpack.c.l.b16 %v1187
  %v1260 = vunpack.c.l.b16 %v1188
  %v1261 = vunpack.c.l.b16 %v1189
  %v1262 = vunpack.c.l.b16 %v1190
  %v1263 = vunpack.c.l.b16 %v1191
  %v1264 = vunpack.c.l.b16 %v1192
  %v1265 = vunpack.c.l.b16 %v1193
  %v1266 = vunpack.c.l.b16 %v1194
  %v1267 = vunpack.c.l.b16 %v1195
  %v1268 = vunpack.c.l.b16 %v1196
  %v1269 = vunpack.c.l.b16 %v1197
  %v1270 = vunpack.c.l.b16 %v1198
  %v1271 = vunpack.c.l.b16 %v1199
  %v1272 = vunpack.c.l.b16 %v1200
  %v1273 = vunpack.c.l.b16 %v1201
  %v1274 = vunpack.c.l.b16 %v1202
  %v1275 = vunpack.c.l.b16 %v1203
  %v1276 = vunpack.c.l.b16 %v1204
  %v1277 = vunpack.c.l.b16 %v1205
  %v1278 = vunpack.c.l.b16 %v1206
  %v1279 = vunpack.c.l.b16 %v1207
  %v1280 = vunpack.c.l.b16 %v1208
  %v1281 = vunpack.c.l.b16 %v1209
  %v1282 = vunpack.c.l.b16 %v1210
  %v1283 = vunpack.c.l.b16 %v1211
  %v1284 = vunpack.c.l.b16 %v1212
  %v1285 = vunpack.c.l.b16 %v1213
  %v1286 = vunpack.c.l.b16 %v1214
  %v1287 = vunpack.c.l.b16 %v1215
  %v1288 = vunpack.c.l.b16 %v1216
  %v1289 = vunpack.c.l.b16 %v1217
  %v1290 = vunpack.c.l.b16 %v1218
  %v1291 = vunpack.c.l.b16 %v1219
  %v1292 = vunpack.c.l.b16 %v1220
  %v1293 = vpack.c.b16 %v1258, %v1257
  %v1294 = vpack.c.b16 %v1260, %v1259
  %v1295 = vpack.c.b16 %v1262, %v1261
  %v1296 = vpack.c.b16 %v1264, %v1263
  %v1297 = vpack.c.b16 %v1266, %v1265
  %v1298 = vpack.c.b16 %v1268, %v1267
  %v1299 = vpack.c.b16 %v1270, %v1269
  %v1300 = vpack.c.b16 %v1272, %v1271
  %v1301 = vpack.c.b16 %v1274, %v1273
  %v1302 = vpack.c.b16 %v1276, %v1275
  %v1303 = vpack.c.b16 %v1278, %v1277
  %v1304 = vpack.c.b16 %v1280, %v1279
  %v1305 = vpack.c.b16 %v1282, %v1281
  %v1306 = vpack.c.b16 %v1284, %v1283
  %v1307 = vpack.c.b16 %v1286, %v1285
  %v1308 = vpack.c.b16 %v1288, %v1287
  %v1309 = vpack.c.b16 %v1290, %v1289
  %v1310 = vpack.c.b16 %v1292, %v1291
  %v1330 = vsel %vm1062, %v1163, 0
  %v1333 = vsel %vm1062, %v1166, 0
  %v1336 = vsel %vm1062, %v1169, 0
  %v1339 = vsel %vm1062, %v1172, 0
  %v1342 = vsel %vm1062, %v1175, 0
  %v1345 = vsel %vm1062, %v1178, 0
  %v1348 = vsel %vm1062, %v1181, 0
  %v1351 = vsel %vm1062, %v1184, 0
  %1353 = vmatprep.subr.bf16.mxu0 0
  %1354 = vmatpush1.bf16.msra.mxu0 %v1300
  %1355 = vmatprep.subr.bf16.mxu0 0
  %1356 = vmatpush1.bf16.msra.mxu0 %v1299
  %1357 = vmatprep.subr.bf16.mxu0 0
  %1358 = vmatpush1.bf16.msra.mxu0 %v1298
  %1359 = vmatprep.subr.bf16.mxu0 0
  %1360 = vmatpush1.bf16.msra.mxu0 %v1297
  %1361 = vmatprep.subr.bf16.mxu0 0
  %1362 = vmatpush1.bf16.msra.mxu0 %v1296
  %1363 = vmatprep.subr.bf16.mxu0 0
  %1364 = vmatpush1.bf16.msra.mxu0 %v1295
  %1365 = vmatprep.subr.bf16.mxu0 0
  %1366 = vmatpush1.bf16.msra.mxu0 %v1294
  %1367 = vmatprep.subr.bf16.mxu0 0
  %1368 = vmatpush1.bf16.msra.mxu0 %v1293
  %1369 = vmatprep.subr.bf16.mxu0 0
  %1370 = vmatpush2.bf16.msra.mxu0 %v1308
  %1371 = vmatprep.subr.bf16.mxu0 0
  %1372 = vmatpush2.bf16.msra.mxu0 %v1307
  %1373 = vmatprep.subr.bf16.mxu0 0
  %1374 = vmatpush2.bf16.msra.mxu0 %v1306
  %1375 = vmatprep.subr.bf16.mxu0 0
  %1376 = vmatpush2.bf16.msra.mxu0 %v1305
  %1377 = vmatprep.subr.bf16.mxu0 0
  %1378 = vmatpush2.bf16.msra.mxu0 %v1304
  %1379 = vmatprep.subr.bf16.mxu0 0
  %1380 = vmatpush2.bf16.msra.mxu0 %v1303
  %1381 = vmatprep.subr.bf16.mxu0 0
  %1382 = vmatpush2.bf16.msra.mxu0 %v1302
  %1383 = vmatprep.subr.bf16.mxu0 0
  %1384 = vmatpush2.bf16.msra.mxu0 %v1301
  %1385 = vmatprep.mubr.bf16.mxu0 %v1162
  %1386 = vmatmul.mubr.bf16.gmra.mxu0 %v1161
  %v1387 = vpop.f32.mrf.mxu0
  %v1388 = vadd.f32 0.0, %v1387
  %v1389 = vpop.f32.mrf.mxu0
  %v1390 = vpop.f32.mrf.mxu0
  %v1391 = vadd.f32 0.0, %v1390
  %v1392 = vpop.f32.mrf.mxu0
  %1393 = vmatprep.mubr.bf16.mxu0 %v1165
  %1394 = vmatmul.mubr.bf16.gmra.mxu0 %v1164
  %v1395 = vpop.f32.mrf.mxu0
  %v1396 = vadd.f32 0.0, %v1395
  %v1397 = vpop.f32.mrf.mxu0
  %v1398 = vpop.f32.mrf.mxu0
  %v1399 = vadd.f32 0.0, %v1398
  %v1400 = vpop.f32.mrf.mxu0
  %1401 = vmatprep.mubr.bf16.mxu0 %v1168
  %1402 = vmatmul.mubr.bf16.gmra.mxu0 %v1167
  %v1403 = vpop.f32.mrf.mxu0
  %v1404 = vadd.f32 0.0, %v1403
  %v1405 = vpop.f32.mrf.mxu0
  %v1406 = vpop.f32.mrf.mxu0
  %v1407 = vadd.f32 0.0, %v1406
  %v1408 = vpop.f32.mrf.mxu0
  %1409 = vmatprep.mubr.bf16.mxu0 %v1171
  %1410 = vmatmul.mubr.bf16.gmra.mxu0 %v1170
  %v1411 = vpop.f32.mrf.mxu0
  %v1412 = vadd.f32 0.0, %v1411
  %v1413 = vpop.f32.mrf.mxu0
  %v1414 = vpop.f32.mrf.mxu0
  %v1415 = vadd.f32 0.0, %v1414
  %v1416 = vpop.f32.mrf.mxu0
  %1417 = vmatprep.mubr.bf16.mxu0 %v1174
  %1418 = vmatmul.mubr.bf16.gmra.mxu0 %v1173
  %v1419 = vpop.f32.mrf.mxu0
  %v1420 = vadd.f32 0.0, %v1419
  %v1421 = vpop.f32.mrf.mxu0
  %v1422 = vpop.f32.mrf.mxu0
  %v1423 = vadd.f32 0.0, %v1422
  %v1424 = vpop.f32.mrf.mxu0
  %1425 = vmatprep.mubr.bf16.mxu0 %v1177
  %1426 = vmatmul.mubr.bf16.gmra.mxu0 %v1176
  %v1427 = vpop.f32.mrf.mxu0
  %v1428 = vadd.f32 0.0, %v1427
  %v1429 = vpop.f32.mrf.mxu0
  %v1430 = vpop.f32.mrf.mxu0
  %v1431 = vadd.f32 0.0, %v1430
  %v1432 = vpop.f32.mrf.mxu0
  %1433 = vmatprep.mubr.bf16.mxu0 %v1180
  %1434 = vmatmul.mubr.bf16.gmra.mxu0 %v1179
  %v1435 = vpop.f32.mrf.mxu0
  %v1436 = vadd.f32 0.0, %v1435
  %v1437 = vpop.f32.mrf.mxu0
  %v1438 = vpop.f32.mrf.mxu0
  %v1439 = vadd.f32 0.0, %v1438
  %v1440 = vpop.f32.mrf.mxu0
  %1441 = vmatprep.mubr.bf16.mxu0 %v1183
  %1442 = vmatmul.mubr.bf16.gmra.mxu0 %v1182
  %v1443 = vpop.f32.mrf.mxu0
  %v1444 = vadd.f32 0.0, %v1443
  %v1445 = vpop.f32.mrf.mxu0
  %v1446 = vpop.f32.mrf.mxu0
  %v1447 = vadd.f32 0.0, %v1446
  %v1448 = vpop.f32.mrf.mxu0
  %1449 = vdwg.mxu0
  %1450 = vmatprep.subr.bf16.mxu0 0
  %1451 = vmatpush1.bf16.msra.mxu0 0
  %1452 = vmatprep.subr.bf16.mxu0 0
  %1453 = vmatpush1.bf16.msra.mxu0 0
  %1454 = vmatprep.subr.bf16.mxu0 0
  %1455 = vmatpush1.bf16.msra.mxu0 0
  %1456 = vmatprep.subr.bf16.mxu0 0
  %1457 = vmatpush1.bf16.msra.mxu0 0
  %1458 = vmatprep.subr.bf16.mxu0 0
  %1459 = vmatpush1.bf16.msra.mxu0 0
  %1460 = vmatprep.subr.bf16.mxu0 0
  %1461 = vmatpush1.bf16.msra.mxu0 0
  %1462 = vmatprep.subr.bf16.mxu0 0
  %1463 = vmatpush1.bf16.msra.mxu0 %v1310
  %1464 = vmatprep.subr.bf16.mxu0 0
  %1465 = vmatpush1.bf16.msra.mxu0 %v1309
  %1466 = vmatprep.subr.bf16.mxu0 0
  %1467 = vmatpush2.bf16.msra.mxu0 0
  %1468 = vmatprep.subr.bf16.mxu0 0
  %1469 = vmatpush2.bf16.msra.mxu0 0
  %1470 = vmatprep.subr.bf16.mxu0 0
  %1471 = vmatpush2.bf16.msra.mxu0 0
  %1472 = vmatprep.subr.bf16.mxu0 0
  %1473 = vmatpush2.bf16.msra.mxu0 0
  %1474 = vmatprep.subr.bf16.mxu0 0
  %1475 = vmatpush2.bf16.msra.mxu0 0
  %1476 = vmatprep.subr.bf16.mxu0 0
  %1477 = vmatpush2.bf16.msra.mxu0 0
  %1478 = vmatprep.subr.bf16.mxu0 0
  %1479 = vmatpush2.bf16.msra.mxu0 0
  %1480 = vmatprep.subr.bf16.mxu0 0
  %1481 = vmatpush2.bf16.msra.mxu0 0
  %1482 = vmatprep.mubr.bf16.mxu0 0
  %1483 = vmatmul.mubr.bf16.gmra.mxu0 %v1330
  %v1484 = vpop.f32.mrf.mxu0
  %v1485 = vadd.f32 %v1388, %v1484
  %v1486 = vpop.f32.mrf.mxu0
  %v1487 = vpop.f32.mrf.mxu0
  %v1488 = vadd.f32 %v1391, %v1487
  %v1489 = vpop.f32.mrf.mxu0
  %1490 = vmatprep.mubr.bf16.mxu0 0
  %1491 = vmatmul.mubr.bf16.gmra.mxu0 %v1333
  %v1492 = vpop.f32.mrf.mxu0
  %v1493 = vadd.f32 %v1396, %v1492
  %v1494 = vpop.f32.mrf.mxu0
  %v1495 = vpop.f32.mrf.mxu0
  %v1496 = vadd.f32 %v1399, %v1495
  %v1497 = vpop.f32.mrf.mxu0
  %1498 = vmatprep.mubr.bf16.mxu0 0
  %1499 = vmatmul.mubr.bf16.gmra.mxu0 %v1336
  %v1500 = vpop.f32.mrf.mxu0
  %v1501 = vadd.f32 %v1404, %v1500
  %v1502 = vpop.f32.mrf.mxu0
  %v1503 = vpop.f32.mrf.mxu0
  %v1504 = vadd.f32 %v1407, %v1503
  %v1505 = vpop.f32.mrf.mxu0
  %1506 = vmatprep.mubr.bf16.mxu0 0
  %1507 = vmatmul.mubr.bf16.gmra.mxu0 %v1339
  %v1508 = vpop.f32.mrf.mxu0
  %v1509 = vadd.f32 %v1412, %v1508
  %v1510 = vpop.f32.mrf.mxu0
  %v1511 = vpop.f32.mrf.mxu0
  %v1512 = vadd.f32 %v1415, %v1511
  %v1513 = vpop.f32.mrf.mxu0
  %1514 = vmatprep.mubr.bf16.mxu0 0
  %1515 = vmatmul.mubr.bf16.gmra.mxu0 %v1342
  %v1516 = vpop.f32.mrf.mxu0
  %v1517 = vadd.f32 %v1420, %v1516
  %v1518 = vpop.f32.mrf.mxu0
  %v1519 = vpop.f32.mrf.mxu0
  %v1520 = vadd.f32 %v1423, %v1519
  %v1521 = vpop.f32.mrf.mxu0
  %1522 = vmatprep.mubr.bf16.mxu0 0
  %1523 = vmatmul.mubr.bf16.gmra.mxu0 %v1345
  %v1524 = vpop.f32.mrf.mxu0
  %v1525 = vadd.f32 %v1428, %v1524
  %v1526 = vpop.f32.mrf.mxu0
  %v1527 = vpop.f32.mrf.mxu0
  %v1528 = vadd.f32 %v1431, %v1527
  %v1529 = vpop.f32.mrf.mxu0
  %1530 = vmatprep.mubr.bf16.mxu0 0
  %1531 = vmatmul.mubr.bf16.gmra.mxu0 %v1348
  %v1532 = vpop.f32.mrf.mxu0
  %v1533 = vadd.f32 %v1436, %v1532
  %v1534 = vpop.f32.mrf.mxu0
  %v1535 = vpop.f32.mrf.mxu0
  %v1536 = vadd.f32 %v1439, %v1535
  %v1537 = vpop.f32.mrf.mxu0
  %1538 = vmatprep.mubr.bf16.mxu0 0
  %1539 = vmatmul.mubr.bf16.gmra.mxu0 %v1351
  %v1540 = vpop.f32.mrf.mxu0
  %v1541 = vadd.f32 %v1444, %v1540
  %v1542 = vpop.f32.mrf.mxu0
  %v1543 = vpop.f32.mrf.mxu0
  %v1544 = vadd.f32 %v1447, %v1543
  %v1545 = vpop.f32.mrf.mxu0
  %1546 = vdwg.mxu0
  %v1547 = vld [vmem:[%s2] sm:$0x1]
  %v1549 = vlaneseq
  %v1550 = vshrl.u32 %v1549, 7
  %v1551 = vsub.s32 0, %v1550
  %v1552 = vrot.slane %v1547, %v1551
  %v1554 = vmul.f32 %v1485, %v1552
  %v1555 = vmul.f32 %v1488, %v1552
  %v1556 = vmul.f32 %v1493, %v1552
  %v1557 = vmul.f32 %v1496, %v1552
  %v1558 = vmul.f32 %v1501, %v1552
  %v1559 = vmul.f32 %v1504, %v1552
  %v1560 = vmul.f32 %v1509, %v1552
  %v1561 = vmul.f32 %v1512, %v1552
  %v1562 = vmul.f32 %v1517, %v1552
  %v1563 = vmul.f32 %v1520, %v1552
  %v1564 = vmul.f32 %v1525, %v1552
  %v1565 = vmul.f32 %v1528, %v1552
  %v1566 = vmul.f32 %v1533, %v1552
  %v1567 = vmul.f32 %v1536, %v1552
  %v1568 = vmul.f32 %v1541, %v1552
  %v1569 = vmul.f32 %v1544, %v1552
  %v1570 = vld [vmem:[%s3] sm:$0x1]
  %v1572 = vlaneseq
  %v1573 = vshrl.u32 %v1572, 7
  %v1574 = vsub.s32 0, %v1573
  %v1575 = vrot.slane %v1570, %v1574
  %v1577 = vadd.f32 %v1554, %v1575
  %v1578 = vadd.f32 %v1555, %v1575
  %v1579 = vadd.f32 %v1556, %v1575
  %v1580 = vadd.f32 %v1557, %v1575
  %v1581 = vadd.f32 %v1558, %v1575
  %v1582 = vadd.f32 %v1559, %v1575
  %v1583 = vadd.f32 %v1560, %v1575
  %v1584 = vadd.f32 %v1561, %v1575
  %v1585 = vadd.f32 %v1562, %v1575
  %v1586 = vadd.f32 %v1563, %v1575
  %v1587 = vadd.f32 %v1564, %v1575
  %v1588 = vadd.f32 %v1565, %v1575
  %v1589 = vadd.f32 %v1566, %v1575
  %v1590 = vadd.f32 %v1567, %v1575
  %v1591 = vadd.f32 %v1568, %v1575
  %v1592 = vadd.f32 %v1569, %v1575
  %v1593 = vmax.f32 %v1577, 0.0
  %v1594 = vmax.f32 %v1578, 0.0
  %v1595 = vmax.f32 %v1579, 0.0
  %v1596 = vmax.f32 %v1580, 0.0
  %v1597 = vmax.f32 %v1581, 0.0
  %v1598 = vmax.f32 %v1582, 0.0
  %v1599 = vmax.f32 %v1583, 0.0
  %v1600 = vmax.f32 %v1584, 0.0
  %v1601 = vmax.f32 %v1585, 0.0
  %v1602 = vmax.f32 %v1586, 0.0
  %v1603 = vmax.f32 %v1587, 0.0
  %v1604 = vmax.f32 %v1588, 0.0
  %v1605 = vmax.f32 %v1589, 0.0
  %v1606 = vmax.f32 %v1590, 0.0
  %v1607 = vmax.f32 %v1591, 0.0
  %v1608 = vmax.f32 %v1592, 0.0
  %v1609 = vmax.f32 %v1593, %v1594
  %v1610 = vmax.f32 %v1595, %v1596
  %v1611 = vmax.f32 %v1597, %v1598
  %v1612 = vmax.f32 %v1599, %v1600
  %v1613 = vmax.f32 %v1601, %v1602
  %v1614 = vmax.f32 %v1603, %v1604
  %v1615 = vmax.f32 %v1605, %v1606
  %v1616 = vmax.f32 %v1607, %v1608
  %1617 = vst.msk [vmem:[#allocation2] sm:$0xff] %vm1079, %v1609
  %1618 = vst.msk [vmem:[#allocation2 + $0x8] sm:$0xff] %vm1079, %v1610
  %1619 = vst.msk [vmem:[#allocation2 + $0x10] sm:$0xff] %vm1079, %v1611
  %1620 = vst.msk [vmem:[#allocation2 + $0x18] sm:$0xff] %vm1079, %v1612
  %1621 = vst.msk [vmem:[#allocation2 + $0x20] sm:$0xff] %vm1079, %v1613
  %1622 = vst.msk [vmem:[#allocation2 + $0x28] sm:$0xff] %vm1079, %v1614
  %1623 = vst.msk [vmem:[#allocation2 + $0x30] sm:$0xff] %vm1079, %v1615
  %1624 = vst.msk [vmem:[#allocation2 + $0x38] sm:$0xff] %vm1079, %v1616
  %v1625 = vld [vmem:[#allocation2] ss:$2 sm:$0xff]
  %s1626 = scalar_lea.vmem [#allocation2], 16
  %v1627 = vld [vmem:[%s1626] ss:$2 sm:$0xff]
  %s1628 = scalar_lea.vmem [#allocation2], 32
  %v1629 = vld [vmem:[%s1628] ss:$2 sm:$0xff]
  %s1630 = scalar_lea.vmem [#allocation2], 48
  %v1631 = vld [vmem:[%s1630] ss:$2 sm:$0xff]
  %s1632 = scalar_lea.vmem [#allocation2], 1
  %v1633 = vld [vmem:[%s1632] ss:$2 sm:$0xff]
  %s1634 = scalar_lea.vmem [#allocation2], 17
  %v1635 = vld [vmem:[%s1634] ss:$2 sm:$0xff]
  %s1636 = scalar_lea.vmem [#allocation2], 33
  %v1637 = vld [vmem:[%s1636] ss:$2 sm:$0xff]
  %s1638 = scalar_lea.vmem [#allocation2], 49
  %v1639 = vld [vmem:[%s1638] ss:$2 sm:$0xff]
  %v1640 = vmax.f32 %v1625, %v1633
  %v1641 = vmax.f32 %v1627, %v1635
  %v1642 = vmax.f32 %v1629, %v1637
  %v1643 = vmax.f32 %v1631, %v1639
  %v1644 = vpack.c.bf16 %v1641, %v1640
  %v1645 = vpack.c.bf16 %v1643, %v1642
  %v1648 = vunpack.c.l.b16 %v1644
  %v1649 = vunpack.c.h.b16 %v1644
  %v1650 = vunpack.c.l.b16 %v1645
  %v1651 = vunpack.c.h.b16 %v1645
  %v1652 = vpack.c.b16 %v1648, %v1648
  %v1653 = vpack.c.b16 %v1649, %v1649
  %v1654 = vpack.c.b16 %v1650, %v1650
  %v1655 = vpack.c.b16 %v1651, %v1651
  %vm1660 = vcmask 519168
  %1661 = vst.msk [vmem:[%s4] sm:$0xf] %vm1660, %v1652
  %1662 = vst.msk [vmem:[%s4 + $0x4] sm:$0xf] %vm1660, %v1653
  %1663 = vst.msk [vmem:[%s4 + $0x8] sm:$0xf] %vm1660, %v1654
  %1664 = vst.msk [vmem:[%s4 + $0xc] sm:$0xf] %vm1660, %v1655
  // Predicated region
  $region18: #{thermal_classifier_forward.4} parent=0 // pred_check
    _
  $region19: #{thermal_classifier_forward.4} parent=0 // pred_check_branch
    %1666 = sbr.rel (0) target = $region21
  $region20: #{thermal_classifier_forward.4} parent=0 // pred_region
    _
  $region21: #{thermal_classifier_forward.4} parent=0 // pred_fallthru
    _
  // Predicated region
  $region22: #{thermal_classifier_forward.4} parent=0 // pred_check
    _
  $region23: #{thermal_classifier_forward.4} parent=0 // pred_check_branch
    %1668 = sbr.rel (0) target = $region25
  $region24: #{thermal_classifier_forward.4} parent=0 // pred_region
    _
  $region25: #{thermal_classifier_forward.4} parent=0 // pred_fallthru
    _

// kernel: thermal_classifier_forward.3
$region0: #{thermal_classifier_forward.3}
  #allocation0 [shape = 'u32[]', space=smem, size = 0x4, offset = 0x4, fixed_abs, tag = 'smem constant byte address 0x4 - core index']
  #allocation1 [shape = 'u32[144,128]{1,0:T(1,128)}', space=vmem, size = 0x12000, scoped, tag = 'internal scratch']
  #allocation2 [shape = 'f32[256,32]{1,0:T(8,128)}', space=vmem, size = 0x20000, scoped, tag = 'scratch operand']
  %s0 = inlined_call_operand.vmem [shape: bf16[2,18,18,3], index: 0, kind: input, shape index: {}]
  %s1 = inlined_call_operand.vmem [shape: bf16[27,32], index: 1, kind: input, shape index: {}]
  %s2 = inlined_call_operand.vmem [shape: f32[1,32], index: 2, kind: input, shape index: {}]
  %s3 = inlined_call_operand.vmem [shape: f32[1,32], index: 3, kind: input, shape index: {}]
  %s4 = inlined_call_operand.vmem [shape: bf16[2,64,32], index: 4, kind: output, shape index: {}]
  %s5 = sld [smem:[#allocation0]]
  $region26: #{thermal_classifier_forward.3} parent=0
    _
  %s7 = ssub.s32 1, %s5
  %s8 = scalar_select 0, %s7, %s5
  // Predicated region
  $region2: #{thermal_classifier_forward.3} parent=0 // pred_check
    _
  $region3: #{thermal_classifier_forward.3} parent=0 // pred_check_branch
    %10 = sbr.rel (0) target = $region5
  $region4: #{thermal_classifier_forward.3} parent=0 // pred_region
    _
  $region5: #{thermal_classifier_forward.3} parent=0 // pred_fallthru
    _
  // Predicated region
  $region6: #{thermal_classifier_forward.3} parent=0 // pred_check
    _
  $region7: #{thermal_classifier_forward.3} parent=0 // pred_check_branch
    %12 = sbr.rel (0) target = $region9
  $region8: #{thermal_classifier_forward.3} parent=0 // pred_region
    _
  $region9: #{thermal_classifier_forward.3} parent=0 // pred_fallthru
    _
  // Predicated region
  $region10: #{thermal_classifier_forward.3} parent=0 // pred_check
    _
  $region11: #{thermal_classifier_forward.3} parent=0 // pred_check_branch
    %14 = sbr.rel (0) target = $region13
  $region12: #{thermal_classifier_forward.3} parent=0 // pred_region
    _
  $region13: #{thermal_classifier_forward.3} parent=0 // pred_fallthru
    _
  // Predicated region
  $region14: #{thermal_classifier_forward.3} parent=0 // pred_check
    _
  $region15: #{thermal_classifier_forward.3} parent=0 // pred_check_branch
    %16 = sbr.rel (0) target = $region17
  $region16: #{thermal_classifier_forward.3} parent=0 // pred_region
    _
  $region17: #{thermal_classifier_forward.3} parent=0 // pred_fallthru
    _
  %v18 = vld [vmem:[%s0] sm:$0xf]
  %v19 = vld [vmem:[%s0 + $0x4] sm:$0xf]
  %v20 = vld [vmem:[%s0 + $0xc] sm:$0xf]
  %v21 = vld [vmem:[%s0 + $0x10] sm:$0xf]
  %v22 = vld [vmem:[%s0 + $0x18] sm:$0xf]
  %v23 = vld [vmem:[%s0 + $0x1c] sm:$0xf]
  %v24 = vld [vmem:[%s0 + $0x24] sm:$0xf]
  %v25 = vld [vmem:[%s0 + $0x28] sm:$0xf]
  %v26 = vld [vmem:[%s0 + $0x30] sm:$0xf]
  %v27 = vld [vmem:[%s0 + $0x34] sm:$0xf]
  %v28 = vld [vmem:[%s0 + $0x3c] sm:$0xf]
  %v29 = vld [vmem:[%s0 + $0x40] sm:$0xf]
  %v30 = vld [vmem:[%s0 + $0x48] sm:$0xf]
  %v31 = vld [vmem:[%s0 + $0x4c] sm:$0xf]
  %v32 = vld [vmem:[%s0 + $0x54] sm:$0xf]
  %v33 = vld [vmem:[%s0 + $0x58] sm:$0xf]
  %v34 = vld [vmem:[%s0 + $0x60] sm:$0xf]
  %v35 = vld [vmem:[%s0 + $0x64] sm:$0xf]
  %v36 = vld [vmem:[%s0 + $0x6c] sm:$0xf]
  %v37 = vld [vmem:[%s0 + $0x70] sm:$0xf]
  %v38 = vld [vmem:[%s0 + $0x78] sm:$0xf]
  %v39 = vld [vmem:[%s0 + $0x7c] sm:$0xf]
  %v40 = vld [vmem:[%s0 + $0x84] sm:$0xf]
  %v41 = vld [vmem:[%s0 + $0x88] sm:$0xf]
  %v42 = vld [vmem:[%s0 + $0x90] sm:$0xf]
  %v43 = vld [vmem:[%s0 + $0x94] sm:$0xf]
  %v44 = vld [vmem:[%s0 + $0x9c] sm:$0xf]
  %v45 = vld [vmem:[%s0 + $0xa0] sm:$0xf]
  %v46 = vld [vmem:[%s0 + $0xa8] sm:$0xf]
  %v47 = vld [vmem:[%s0 + $0xac] sm:$0xf]
  %v48 = vld [vmem:[%s0 + $0xb4] sm:$0xf]
  %v49 = vld [vmem:[%s0 + $0xb8] sm:$0xf]
  %v50 = vld [vmem:[%s0 + $0xd8] sm:$0xf]
  %v51 = vld [vmem:[%s0 + $0xdc] sm:$0xf]
  %v52 = vld [vmem:[%s0 + $0xe4] sm:$0xf]
  %v53 = vld [vmem:[%s0 + $0xe8] sm:$0xf]
  %v54 = vld [vmem:[%s0 + $0xf0] sm:$0xf]
  %v55 = vld [vmem:[%s0 + $0xf4] sm:$0xf]
  %v56 = vld [vmem:[%s0 + $0xfc] sm:$0xf]
  %v57 = vld [vmem:[%s0 + $0x100] sm:$0xf]
  %v58 = vld [vmem:[%s0 + $0x108] sm:$0xf]
  %v59 = vld [vmem:[%s0 + $0x10c] sm:$0xf]
  %v60 = vld [vmem:[%s0 + $0x114] sm:$0xf]
  %v61 = vld [vmem:[%s0 + $0x118] sm:$0xf]
  %v62 = vld [vmem:[%s0 + $0x120] sm:$0xf]
  %v63 = vld [vmem:[%s0 + $0x124] sm:$0xf]
  %v64 = vld [vmem:[%s0 + $0x12c] sm:$0xf]
  %v65 = vld [vmem:[%s0 + $0x130] sm:$0xf]
  %v66 = vld [vmem:[%s0 + $0x138] sm:$0xf]
  %v67 = vld [vmem:[%s0 + $0x13c] sm:$0xf]
  %v68 = vld [vmem:[%s0 + $0x144] sm:$0xf]
  %v69 = vld [vmem:[%s0 + $0x148] sm:$0xf]
  %v70 = vld [vmem:[%s0 + $0x150] sm:$0xf]
  %v71 = vld [vmem:[%s0 + $0x154] sm:$0xf]
  %v72 = vld [vmem:[%s0 + $0x15c] sm:$0xf]
  %v73 = vld [vmem:[%s0 + $0x160] sm:$0xf]
  %v74 = vld [vmem:[%s0 + $0x168] sm:$0xf]
  %v75 = vld [vmem:[%s0 + $0x16c] sm:$0xf]
  %v76 = vld [vmem:[%s0 + $0x174] sm:$0xf]
  %v77 = vld [vmem:[%s0 + $0x178] sm:$0xf]
  %v78 = vld [vmem:[%s0 + $0x180] sm:$0xf]
  %v79 = vld [vmem:[%s0 + $0x184] sm:$0xf]
  %v80 = vld [vmem:[%s0 + $0x18c] sm:$0xf]
  %v81 = vld [vmem:[%s0 + $0x190] sm:$0xf]
  %v82 = vunpack.c.l.bf16 %v18
  %v83 = vunpack.c.l.bf16 %v19
  %v84 = vunpack.c.l.bf16 %v20
  %v85 = vunpack.c.l.bf16 %v21
  %v86 = vunpack.c.l.bf16 %v22
  %v87 = vunpack.c.l.bf16 %v23
  %v88 = vunpack.c.l.bf16 %v24
  %v89 = vunpack.c.l.bf16 %v25
  %v90 = vunpack.c.l.bf16 %v26
  %v91 = vunpack.c.l.bf16 %v27
  %v92 = vunpack.c.l.bf16 %v28
  %v93 = vunpack.c.l.bf16 %v29
  %v94 = vunpack.c.l.bf16 %v30
  %v95 = vunpack.c.l.bf16 %v31
  %v96 = vunpack.c.l.bf16 %v32
  %v97 = vunpack.c.l.bf16 %v33
  %v98 = vunpack.c.l.bf16 %v34
  %v99 = vunpack.c.l.bf16 %v35
  %v100 = vunpack.c.l.bf16 %v36
  %v101 = vunpack.c.l.bf16 %v37
  %v102 = vunpack.c.l.bf16 %v38
  %v103 = vunpack.c.l.bf16 %v39
  %v104 = vunpack.c.l.bf16 %v40
  %v105 = vunpack.c.l.bf16 %v41
  %v106 = vunpack.c.l.bf16 %v42
  %v107 = vunpack.c.l.bf16 %v43
  %v108 = vunpack.c.l.bf16 %v44
  %v109 = vunpack.c.l.bf16 %v45
  %v110 = vunpack.c.l.bf16 %v46
  %v111 = vunpack.c.l.bf16 %v47
  %v112 = vunpack.c.l.bf16 %v48
  %v113 = vunpack.c.l.bf16 %v49
  %v114 = vunpack.c.l.bf16 %v50
  %v115 = vunpack.c.l.bf16 %v51
  %v116 = vunpack.c.l.bf16 %v52
  %v117 = vunpack.c.l.bf16 %v53
  %v118 = vunpack.c.l.bf16 %v54
  %v119 = vunpack.c.l.bf16 %v55
  %v120 = vunpack.c.l.bf16 %v56
  %v121 = vunpack.c.l.bf16 %v57
  %v122 = vunpack.c.l.bf16 %v58
  %v123 = vunpack.c.l.bf16 %v59
  %v124 = vunpack.c.l.bf16 %v60
  %v125 = vunpack.c.l.bf16 %v61
  %v126 = vunpack.c.l.bf16 %v62
  %v127 = vunpack.c.l.bf16 %v63
  %v128 = vunpack.c.l.bf16 %v64
  %v129 = vunpack.c.l.bf16 %v65
  %v130 = vunpack.c.l.bf16 %v66
  %v131 = vunpack.c.l.bf16 %v67
  %v132 = vunpack.c.l.bf16 %v68
  %v133 = vunpack.c.l.bf16 %v69
  %v134 = vunpack.c.l.bf16 %v70
  %v135 = vunpack.c.l.bf16 %v71
  %v136 = vunpack.c.l.bf16 %v72
  %v137 = vunpack.c.l.bf16 %v73
  %v138 = vunpack.c.l.bf16 %v74
  %v139 = vunpack.c.l.bf16 %v75
  %v140 = vunpack.c.l.bf16 %v76
  %v141 = vunpack.c.l.bf16 %v77
  %v142 = vunpack.c.l.bf16 %v78
  %v143 = vunpack.c.l.bf16 %v79
  %v144 = vunpack.c.l.bf16 %v80
  %v145 = vunpack.c.l.bf16 %v81
  %v146 = vld [vmem:[%s0 + $0x8] sm:$0x1]
  %v147 = vld [vmem:[%s0 + $0x14] sm:$0x1]
  %v148 = vld [vmem:[%s0 + $0x20] sm:$0x1]
  %v149 = vld [vmem:[%s0 + $0x2c] sm:$0x1]
  %v150 = vld [vmem:[%s0 + $0x38] sm:$0x1]
  %v151 = vld [vmem:[%s0 + $0x44] sm:$0x1]
  %v152 = vld [vmem:[%s0 + $0x50] sm:$0x1]
  %v153 = vld [vmem:[%s0 + $0x5c] sm:$0x1]
  %v154 = vld [vmem:[%s0 + $0x68] sm:$0x1]
  %v155 = vld [vmem:[%s0 + $0x74] sm:$0x1]
  %v156 = vld [vmem:[%s0 + $0x80] sm:$0x1]
  %v157 = vld [vmem:[%s0 + $0x8c] sm:$0x1]
  %v158 = vld [vmem:[%s0 + $0x98] sm:$0x1]
  %v159 = vld [vmem:[%s0 + $0xa4] sm:$0x1]
  %v160 = vld [vmem:[%s0 + $0xb0] sm:$0x1]
  %v161 = vld [vmem:[%s0 + $0xbc] sm:$0x1]
  %v162 = vld [vmem:[%s0 + $0xe0] sm:$0x1]
  %v163 = vld [vmem:[%s0 + $0xec] sm:$0x1]
  %v164 = vld [vmem:[%s0 + $0xf8] sm:$0x1]
  %v165 = vld [vmem:[%s0 + $0x104] sm:$0x1]
  %v166 = vld [vmem:[%s0 + $0x110] sm:$0x1]
  %v167 = vld [vmem:[%s0 + $0x11c] sm:$0x1]
  %v168 = vld [vmem:[%s0 + $0x128] sm:$0x1]
  %v169 = vld [vmem:[%s0 + $0x134] sm:$0x1]
  %v170 = vld [vmem:[%s0 + $0x140] sm:$0x1]
  %v171 = vld [vmem:[%s0 + $0x14c] sm:$0x1]
  %v172 = vld [vmem:[%s0 + $0x158] sm:$0x1]
  %v173 = vld [vmem:[%s0 + $0x164] sm:$0x1]
  %v174 = vld [vmem:[%s0 + $0x170] sm:$0x1]
  %v175 = vld [vmem:[%s0 + $0x17c] sm:$0x1]
  %v176 = vld [vmem:[%s0 + $0x188] sm:$0x1]
  %v177 = vld [vmem:[%s0 + $0x194] sm:$0x1]
  %v178 = vunpack.c.l.bf16 %v146
  %v179 = vunpack.c.l.bf16 %v147
  %v180 = vunpack.c.l.bf16 %v148
  %v181 = vunpack.c.l.bf16 %v149
  %v182 = vunpack.c.l.bf16 %v150
  %v183 = vunpack.c.l.bf16 %v151
  %v184 = vunpack.c.l.bf16 %v152
  %v185 = vunpack.c.l.bf16 %v153
  %v186 = vunpack.c.l.bf16 %v154
  %v187 = vunpack.c.l.bf16 %v155
  %v188 = vunpack.c.l.bf16 %v156
  %v189 = vunpack.c.l.bf16 %v157
  %v190 = vunpack.c.l.bf16 %v158
  %v191 = vunpack.c.l.bf16 %v159
  %v192 = vunpack.c.l.bf16 %v160
  %v193 = vunpack.c.l.bf16 %v161
  %v194 = vunpack.c.l.bf16 %v162
  %v195 = vunpack.c.l.bf16 %v163
  %v196 = vunpack.c.l.bf16 %v164
  %v197 = vunpack.c.l.bf16 %v165
  %v198 = vunpack.c.l.bf16 %v166
  %v199 = vunpack.c.l.bf16 %v167
  %v200 = vunpack.c.l.bf16 %v168
  %v201 = vunpack.c.l.bf16 %v169
  %v202 = vunpack.c.l.bf16 %v170
  %v203 = vunpack.c.l.bf16 %v171
  %v204 = vunpack.c.l.bf16 %v172
  %v205 = vunpack.c.l.bf16 %v173
  %v206 = vunpack.c.l.bf16 %v174
  %v207 = vunpack.c.l.bf16 %v175
  %v208 = vunpack.c.l.bf16 %v176
  %v209 = vunpack.c.l.bf16 %v177
  %v210 = vld [vmem:[%s0] sm:$0xe]
  %v211 = vld [vmem:[%s0 + $0xc] sm:$0xe]
  %v212 = vld [vmem:[%s0 + $0x18] sm:$0xe]
  %v213 = vld [vmem:[%s0 + $0x24] sm:$0xe]
  %v214 = vld [vmem:[%s0 + $0x30] sm:$0xe]
  %v215 = vld [vmem:[%s0 + $0x3c] sm:$0xe]
  %v216 = vld [vmem:[%s0 + $0x48] sm:$0xe]
  %v217 = vld [vmem:[%s0 + $0x54] sm:$0xe]
  %v218 = vld [vmem:[%s0 + $0x60] sm:$0xe]
  %v219 = vld [vmem:[%s0 + $0x6c] sm:$0xe]
  %v220 = vld [vmem:[%s0 + $0x78] sm:$0xe]
  %v221 = vld [vmem:[%s0 + $0x84] sm:$0xe]
  %v222 = vld [vmem:[%s0 + $0x90] sm:$0xe]
  %v223 = vld [vmem:[%s0 + $0x9c] sm:$0xe]
  %v224 = vld [vmem:[%s0 + $0xa8] sm:$0xe]
  %v225 = vld [vmem:[%s0 + $0xb4] sm:$0xe]
  %v226 = vld [vmem:[%s0 + $0xd8] sm:$0xe]
  %v227 = vld [vmem:[%s0 + $0xe4] sm:$0xe]
  %v228 = vld [vmem:[%s0 + $0xf0] sm:$0xe]
  %v229 = vld [vmem:[%s0 + $0xfc] sm:$0xe]
  %v230 = vld [vmem:[%s0 + $0x108] sm:$0xe]
  %v231 = vld [vmem:[%s0 + $0x114] sm:$0xe]
  %v232 = vld [vmem:[%s0 + $0x120] sm:$0xe]
  %v233 = vld [vmem:[%s0 + $0x12c] sm:$0xe]
  %v234 = vld [vmem:[%s0 + $0x138] sm:$0xe]
  %v235 = vld [vmem:[%s0 + $0x144] sm:$0xe]
  %v236 = vld [vmem:[%s0 + $0x150] sm:$0xe]
  %v237 = vld [vmem:[%s0 + $0x15c] sm:$0xe]
  %v238 = vld [vmem:[%s0 + $0x168] sm:$0xe]
  %v239 = vld [vmem:[%s0 + $0x174] sm:$0xe]
  %v240 = vld [vmem:[%s0 + $0x180] sm:$0xe]
  %v241 = vld [vmem:[%s0 + $0x18c] sm:$0xe]
  %v242 = vunpack.c.l.bf16 %v210
  %v243 = vunpack.c.l.bf16 %v211
  %v244 = vunpack.c.l.bf16 %v212
  %v245 = vunpack.c.l.bf16 %v213
  %v246 = vunpack.c.l.bf16 %v214
  %v247 = vunpack.c.l.bf16 %v215
  %v248 = vunpack.c.l.bf16 %v216
  %v249 = vunpack.c.l.bf16 %v217
  %v250 = vunpack.c.l.bf16 %v218
  %v251 = vunpack.c.l.bf16 %v219
  %v252 = vunpack.c.l.bf16 %v220
  %v253 = vunpack.c.l.bf16 %v221
  %v254 = vunpack.c.l.bf16 %v222
  %v255 = vunpack.c.l.bf16 %v223
  %v256 = vunpack.c.l.bf16 %v224
  %v257 = vunpack.c.l.bf16 %v225
  %v258 = vunpack.c.l.bf16 %v226
  %v259 = vunpack.c.l.bf16 %v227
  %v260 = vunpack.c.l.bf16 %v228
  %v261 = vunpack.c.l.bf16 %v229
  %v262 = vunpack.c.l.bf16 %v230
  %v263 = vunpack.c.l.bf16 %v231
  %v264 = vunpack.c.l.bf16 %v232
  %v265 = vunpack.c.l.bf16 %v233
  %v266 = vunpack.c.l.bf16 %v234
  %v267 = vunpack.c.l.bf16 %v235
  %v268 = vunpack.c.l.bf16 %v236
  %v269 = vunpack.c.l.bf16 %v237
  %v270 = vunpack.c.l.bf16 %v238
  %v271 = vunpack.c.l.bf16 %v239
  %v272 = vunpack.c.l.bf16 %v240
  %v273 = vunpack.c.l.bf16 %v241
  %s274 = scalar_lea.vmem %s0, 12
  %v275 = vld [vmem:[%s274] sm:$0xf]
  %v276 = vld [vmem:[%s274 + $0x4] sm:$0xf]
  %v277 = vld [vmem:[%s274 + $0xc] sm:$0xf]
  %v278 = vld [vmem:[%s274 + $0x10] sm:$0xf]
  %v279 = vld [vmem:[%s274 + $0x18] sm:$0xf]
  %v280 = vld [vmem:[%s274 + $0x1c] sm:$0xf]
  %v281 = vld [vmem:[%s274 + $0x24] sm:$0xf]
  %v282 = vld [vmem:[%s274 + $0x28] sm:$0xf]
  %v283 = vld [vmem:[%s274 + $0x30] sm:$0xf]
  %v284 = vld [vmem:[%s274 + $0x34] sm:$0xf]
  %v285 = vld [vmem:[%s274 + $0x3c] sm:$0xf]
  %v286 = vld [vmem:[%s274 + $0x40] sm:$0xf]
  %v287 = vld [vmem:[%s274 + $0x48] sm:$0xf]
  %v288 = vld [vmem:[%s274 + $0x4c] sm:$0xf]
  %v289 = vld [vmem:[%s274 + $0x54] sm:$0xf]
  %v290 = vld [vmem:[%s274 + $0x58] sm:$0xf]
  %v291 = vld [vmem:[%s274 + $0x60] sm:$0xf]
  %v292 = vld [vmem:[%s274 + $0x64] sm:$0xf]
  %v293 = vld [vmem:[%s274 + $0x6c] sm:$0xf]
  %v294 = vld [vmem:[%s274 + $0x70] sm:$0xf]
  %v295 = vld [vmem:[%s274 + $0x78] sm:$0xf]
  %v296 = vld [vmem:[%s274 + $0x7c] sm:$0xf]
  %v297 = vld [vmem:[%s274 + $0x84] sm:$0xf]
  %v298 = vld [vmem:[%s274 + $0x88] sm:$0xf]
  %v299 = vld [vmem:[%s274 + $0x90] sm:$0xf]
  %v300 = vld [vmem:[%s274 + $0x94] sm:$0xf]
  %v301 = vld [vmem:[%s274 + $0x9c] sm:$0xf]
  %v302 = vld [vmem:[%s274 + $0xa0] sm:$0xf]
  %v303 = vld [vmem:[%s274 + $0xa8] sm:$0xf]
  %v304 = vld [vmem:[%s274 + $0xac] sm:$0xf]
  %v305 = vld [vmem:[%s274 + $0xb4] sm:$0xf]
  %v306 = vld [vmem:[%s274 + $0xb8] sm:$0xf]
  %v307 = vld [vmem:[%s274 + $0xd8] sm:$0xf]
  %v308 = vld [vmem:[%s274 + $0xdc] sm:$0xf]
  %v309 = vld [vmem:[%s274 + $0xe4] sm:$0xf]
  %v310 = vld [vmem:[%s274 + $0xe8] sm:$0xf]
  %v311 = vld [vmem:[%s274 + $0xf0] sm:$0xf]
  %v312 = vld [vmem:[%s274 + $0xf4] sm:$0xf]
  %v313 = vld [vmem:[%s274 + $0xfc] sm:$0xf]
  %v314 = vld [vmem:[%s274 + $0x100] sm:$0xf]
  %v315 = vld [vmem:[%s274 + $0x108] sm:$0xf]
  %v316 = vld [vmem:[%s274 + $0x10c] sm:$0xf]
  %v317 = vld [vmem:[%s274 + $0x114] sm:$0xf]
  %v318 = vld [vmem:[%s274 + $0x118] sm:$0xf]
  %v319 = vld [vmem:[%s274 + $0x120] sm:$0xf]
  %v320 = vld [vmem:[%s274 + $0x124] sm:$0xf]
  %v321 = vld [vmem:[%s274 + $0x12c] sm:$0xf]
  %v322 = vld [vmem:[%s274 + $0x130] sm:$0xf]
  %v323 = vld [vmem:[%s274 + $0x138] sm:$0xf]
  %v324 = vld [vmem:[%s274 + $0x13c] sm:$0xf]
  %v325 = vld [vmem:[%s274 + $0x144] sm:$0xf]
  %v326 = vld [vmem:[%s274 + $0x148] sm:$0xf]
  %v327 = vld [vmem:[%s274 + $0x150] sm:$0xf]
  %v328 = vld [vmem:[%s274 + $0x154] sm:$0xf]
  %v329 = vld [vmem:[%s274 + $0x15c] sm:$0xf]
  %v330 = vld [vmem:[%s274 + $0x160] sm:$0xf]
  %v331 = vld [vmem:[%s274 + $0x168] sm:$0xf]
  %v332 = vld [vmem:[%s274 + $0x16c] sm:$0xf]
  %v333 = vld [vmem:[%s274 + $0x174] sm:$0xf]
  %v334 = vld [vmem:[%s274 + $0x178] sm:$0xf]
  %v335 = vld [vmem:[%s274 + $0x180] sm:$0xf]
  %v336 = vld [vmem:[%s274 + $0x184] sm:$0xf]
  %v337 = vld [vmem:[%s274 + $0x18c] sm:$0xf]
  %v338 = vld [vmem:[%s274 + $0x190] sm:$0xf]
  %v339 = vunpack.c.l.bf16 %v275
  %v340 = vunpack.c.l.bf16 %v276
  %v341 = vunpack.c.l.bf16 %v277
  %v342 = vunpack.c.l.bf16 %v278
  %v343 = vunpack.c.l.bf16 %v279
  %v344 = vunpack.c.l.bf16 %v280
  %v345 = vunpack.c.l.bf16 %v281
  %v346 = vunpack.c.l.bf16 %v282
  %v347 = vunpack.c.l.bf16 %v283
  %v348 = vunpack.c.l.bf16 %v284
  %v349 = vunpack.c.l.bf16 %v285
  %v350 = vunpack.c.l.bf16 %v286
  %v351 = vunpack.c.l.bf16 %v287
  %v352 = vunpack.c.l.bf16 %v288
  %v353 = vunpack.c.l.bf16 %v289
  %v354 = vunpack.c.l.bf16 %v290
  %v355 = vunpack.c.l.bf16 %v291
  %v356 = vunpack.c.l.bf16 %v292
  %v357 = vunpack.c.l.bf16 %v293
  %v358 = vunpack.c.l.bf16 %v294
  %v359 = vunpack.c.l.bf16 %v295
  %v360 = vunpack.c.l.bf16 %v296
  %v361 = vunpack.c.l.bf16 %v297
  %v362 = vunpack.c.l.bf16 %v298
  %v363 = vunpack.c.l.bf16 %v299
  %v364 = vunpack.c.l.bf16 %v300
  %v365 = vunpack.c.l.bf16 %v301
  %v366 = vunpack.c.l.bf16 %v302
  %v367 = vunpack.c.l.bf16 %v303
  %v368 = vunpack.c.l.bf16 %v304
  %v369 = vunpack.c.l.bf16 %v305
  %v370 = vunpack.c.l.bf16 %v306
  %v371 = vunpack.c.l.bf16 %v307
  %v372 = vunpack.c.l.bf16 %v308
  %v373 = vunpack.c.l.bf16 %v309
  %v374 = vunpack.c.l.bf16 %v310
  %v375 = vunpack.c.l.bf16 %v311
  %v376 = vunpack.c.l.bf16 %v312
  %v377 = vunpack.c.l.bf16 %v313
  %v378 = vunpack.c.l.bf16 %v314
  %v379 = vunpack.c.l.bf16 %v315
  %v380 = vunpack.c.l.bf16 %v316
  %v381 = vunpack.c.l.bf16 %v317
  %v382 = vunpack.c.l.bf16 %v318
  %v383 = vunpack.c.l.bf16 %v319
  %v384 = vunpack.c.l.bf16 %v320
  %v385 = vunpack.c.l.bf16 %v321
  %v386 = vunpack.c.l.bf16 %v322
  %v387 = vunpack.c.l.bf16 %v323
  %v388 = vunpack.c.l.bf16 %v324
  %v389 = vunpack.c.l.bf16 %v325
  %v390 = vunpack.c.l.bf16 %v326
  %v391 = vunpack.c.l.bf16 %v327
  %v392 = vunpack.c.l.bf16 %v328
  %v393 = vunpack.c.l.bf16 %v329
  %v394 = vunpack.c.l.bf16 %v330
  %v395 = vunpack.c.l.bf16 %v331
  %v396 = vunpack.c.l.bf16 %v332
  %v397 = vunpack.c.l.bf16 %v333
  %v398 = vunpack.c.l.bf16 %v334
  %v399 = vunpack.c.l.bf16 %v335
  %v400 = vunpack.c.l.bf16 %v336
  %v401 = vunpack.c.l.bf16 %v337
  %v402 = vunpack.c.l.bf16 %v338
  %v403 = vld [vmem:[%s274 + $0x8] sm:$0x1]
  %v404 = vld [vmem:[%s274 + $0x14] sm:$0x1]
  %v405 = vld [vmem:[%s274 + $0x20] sm:$0x1]
  %v406 = vld [vmem:[%s274 + $0x2c] sm:$0x1]
  %v407 = vld [vmem:[%s274 + $0x38] sm:$0x1]
  %v408 = vld [vmem:[%s274 + $0x44] sm:$0x1]
  %v409 = vld [vmem:[%s274 + $0x50] sm:$0x1]
  %v410 = vld [vmem:[%s274 + $0x5c] sm:$0x1]
  %v411 = vld [vmem:[%s274 + $0x68] sm:$0x1]
  %v412 = vld [vmem:[%s274 + $0x74] sm:$0x1]
  %v413 = vld [vmem:[%s274 + $0x80] sm:$0x1]
  %v414 = vld [vmem:[%s274 + $0x8c] sm:$0x1]
  %v415 = vld [vmem:[%s274 + $0x98] sm:$0x1]
  %v416 = vld [vmem:[%s274 + $0xa4] sm:$0x1]
  %v417 = vld [vmem:[%s274 + $0xb0] sm:$0x1]
  %v418 = vld [vmem:[%s274 + $0xbc] sm:$0x1]
  %v419 = vld [vmem:[%s274 + $0xe0] sm:$0x1]
  %v420 = vld [vmem:[%s274 + $0xec] sm:$0x1]
  %v421 = vld [vmem:[%s274 + $0xf8] sm:$0x1]
  %v422 = vld [vmem:[%s274 + $0x104] sm:$0x1]
  %v423 = vld [vmem:[%s274 + $0x110] sm:$0x1]
  %v424 = vld [vmem:[%s274 + $0x11c] sm:$0x1]
  %v425 = vld [vmem:[%s274 + $0x128] sm:$0x1]
  %v426 = vld [vmem:[%s274 + $0x134] sm:$0x1]
  %v427 = vld [vmem:[%s274 + $0x140] sm:$0x1]
  %v428 = vld [vmem:[%s274 + $0x14c] sm:$0x1]
  %v429 = vld [vmem:[%s274 + $0x158] sm:$0x1]
  %v430 = vld [vmem:[%s274 + $0x164] sm:$0x1]
  %v431 = vld [vmem:[%s274 + $0x170] sm:$0x1]
  %v432 = vld [vmem:[%s274 + $0x17c] sm:$0x1]
  %v433 = vld [vmem:[%s274 + $0x188] sm:$0x1]
  %v434 = vld [vmem:[%s274 + $0x194] sm:$0x1]
  %v435 = vunpack.c.l.bf16 %v403
  %v436 = vunpack.c.l.bf16 %v404
  %v437 = vunpack.c.l.bf16 %v405
  %v438 = vunpack.c.l.bf16 %v406
  %v439 = vunpack.c.l.bf16 %v407
  %v440 = vunpack.c.l.bf16 %v408
  %v441 = vunpack.c.l.bf16 %v409
  %v442 = vunpack.c.l.bf16 %v410
  %v443 = vunpack.c.l.bf16 %v411
  %v444 = vunpack.c.l.bf16 %v412
  %v445 = vunpack.c.l.bf16 %v413
  %v446 = vunpack.c.l.bf16 %v414
  %v447 = vunpack.c.l.bf16 %v415
  %v448 = vunpack.c.l.bf16 %v416
  %v449 = vunpack.c.l.bf16 %v417
  %v450 = vunpack.c.l.bf16 %v418
  %v451 = vunpack.c.l.bf16 %v419
  %v452 = vunpack.c.l.bf16 %v420
  %v453 = vunpack.c.l.bf16 %v421
  %v454 = vunpack.c.l.bf16 %v422
  %v455 = vunpack.c.l.bf16 %v423
  %v456 = vunpack.c.l.bf16 %v424
  %v457 = vunpack.c.l.bf16 %v425
  %v458 = vunpack.c.l.bf16 %v426
  %v459 = vunpack.c.l.bf16 %v427
  %v460 = vunpack.c.l.bf16 %v428
  %v461 = vunpack.c.l.bf16 %v429
  %v462 = vunpack.c.l.bf16 %v430
  %v463 = vunpack.c.l.bf16 %v431
  %v464 = vunpack.c.l.bf16 %v432
  %v465 = vunpack.c.l.bf16 %v433
  %v466 = vunpack.c.l.bf16 %v434
  %v467 = vld [vmem:[%s274] sm:$0xe]
  %v468 = vld [vmem:[%s274 + $0xc] sm:$0xe]
  %v469 = vld [vmem:[%s274 + $0x18] sm:$0xe]
  %v470 = vld [vmem:[%s274 + $0x24] sm:$0xe]
  %v471 = vld [vmem:[%s274 + $0x30] sm:$0xe]
  %v472 = vld [vmem:[%s274 + $0x3c] sm:$0xe]
  %v473 = vld [vmem:[%s274 + $0x48] sm:$0xe]
  %v474 = vld [vmem:[%s274 + $0x54] sm:$0xe]
  %v475 = vld [vmem:[%s274 + $0x60] sm:$0xe]
  %v476 = vld [vmem:[%s274 + $0x6c] sm:$0xe]
  %v477 = vld [vmem:[%s274 + $0x78] sm:$0xe]
  %v478 = vld [vmem:[%s274 + $0x84] sm:$0xe]
  %v479 = vld [vmem:[%s274 + $0x90] sm:$0xe]
  %v480 = vld [vmem:[%s274 + $0x9c] sm:$0xe]
  %v481 = vld [vmem:[%s274 + $0xa8] sm:$0xe]
  %v482 = vld [vmem:[%s274 + $0xb4] sm:$0xe]
  %v483 = vld [vmem:[%s274 + $0xd8] sm:$0xe]
  %v484 = vld [vmem:[%s274 + $0xe4] sm:$0xe]
  %v485 = vld [vmem:[%s274 + $0xf0] sm:$0xe]
  %v486 = vld [vmem:[%s274 + $0xfc] sm:$0xe]
  %v487 = vld [vmem:[%s274 + $0x108] sm:$0xe]
  %v488 = vld [vmem:[%s274 + $0x114] sm:$0xe]
  %v489 = vld [vmem:[%s274 + $0x120] sm:$0xe]
  %v490 = vld [vmem:[%s274 + $0x12c] sm:$0xe]
  %v491 = vld [vmem:[%s274 + $0x138] sm:$0xe]
  %v492 = vld [vmem:[%s274 + $0x144] sm:$0xe]
  %v493 = vld [vmem:[%s274 + $0x150] sm:$0xe]
  %v494 = vld [vmem:[%s274 + $0x15c] sm:$0xe]
  %v495 = vld [vmem:[%s274 + $0x168] sm:$0xe]
  %v496 = vld [vmem:[%s274 + $0x174] sm:$0xe]
  %v497 = vld [vmem:[%s274 + $0x180] sm:$0xe]
  %v498 = vld [vmem:[%s274 + $0x18c] sm:$0xe]
  %v499 = vunpack.c.l.bf16 %v467
  %v500 = vunpack.c.l.bf16 %v468
  %v501 = vunpack.c.l.bf16 %v469
  %v502 = vunpack.c.l.bf16 %v470
  %v503 = vunpack.c.l.bf16 %v471
  %v504 = vunpack.c.l.bf16 %v472
  %v505 = vunpack.c.l.bf16 %v473
  %v506 = vunpack.c.l.bf16 %v474
  %v507 = vunpack.c.l.bf16 %v475
  %v508 = vunpack.c.l.bf16 %v476
  %v509 = vunpack.c.l.bf16 %v477
  %v510 = vunpack.c.l.bf16 %v478
  %v511 = vunpack.c.l.bf16 %v479
  %v512 = vunpack.c.l.bf16 %v480
  %v513 = vunpack.c.l.bf16 %v481
  %v514 = vunpack.c.l.bf16 %v482
  %v515 = vunpack.c.l.bf16 %v483
  %v516 = vunpack.c.l.bf16 %v484
  %v517 = vunpack.c.l.bf16 %v485
  %v518 = vunpack.c.l.bf16 %v486
  %v519 = vunpack.c.l.bf16 %v487
  %v520 = vunpack.c.l.bf16 %v488
  %v521 = vunpack.c.l.bf16 %v489
  %v522 = vunpack.c.l.bf16 %v490
  %v523 = vunpack.c.l.bf16 %v491
  %v524 = vunpack.c.l.bf16 %v492
  %v525 = vunpack.c.l.bf16 %v493
  %v526 = vunpack.c.l.bf16 %v494
  %v527 = vunpack.c.l.bf16 %v495
  %v528 = vunpack.c.l.bf16 %v496
  %v529 = vunpack.c.l.bf16 %v497
  %v530 = vunpack.c.l.bf16 %v498
  %s531 = scalar_lea.vmem %s0, 24
  %v532 = vld [vmem:[%s531] sm:$0xf]
  %v533 = vld [vmem:[%s531 + $0x4] sm:$0xf]
  %v534 = vld [vmem:[%s531 + $0xc] sm:$0xf]
  %v535 = vld [vmem:[%s531 + $0x10] sm:$0xf]
  %v536 = vld [vmem:[%s531 + $0x18] sm:$0xf]
  %v537 = vld [vmem:[%s531 + $0x1c] sm:$0xf]
  %v538 = vld [vmem:[%s531 + $0x24] sm:$0xf]
  %v539 = vld [vmem:[%s531 + $0x28] sm:$0xf]
  %v540 = vld [vmem:[%s531 + $0x30] sm:$0xf]
  %v541 = vld [vmem:[%s531 + $0x34] sm:$0xf]
  %v542 = vld [vmem:[%s531 + $0x3c] sm:$0xf]
  %v543 = vld [vmem:[%s531 + $0x40] sm:$0xf]
  %v544 = vld [vmem:[%s531 + $0x48] sm:$0xf]
  %v545 = vld [vmem:[%s531 + $0x4c] sm:$0xf]
  %v546 = vld [vmem:[%s531 + $0x54] sm:$0xf]
  %v547 = vld [vmem:[%s531 + $0x58] sm:$0xf]
  %v548 = vld [vmem:[%s531 + $0x60] sm:$0xf]
  %v549 = vld [vmem:[%s531 + $0x64] sm:$0xf]
  %v550 = vld [vmem:[%s531 + $0x6c] sm:$0xf]
  %v551 = vld [vmem:[%s531 + $0x70] sm:$0xf]
  %v552 = vld [vmem:[%s531 + $0x78] sm:$0xf]
  %v553 = vld [vmem:[%s531 + $0x7c] sm:$0xf]
  %v554 = vld [vmem:[%s531 + $0x84] sm:$0xf]
  %v555 = vld [vmem:[%s531 + $0x88] sm:$0xf]
  %v556 = vld [vmem:[%s531 + $0x90] sm:$0xf]
  %v557 = vld [vmem:[%s531 + $0x94] sm:$0xf]
  %v558 = vld [vmem:[%s531 + $0x9c] sm:$0xf]
  %v559 = vld [vmem:[%s531 + $0xa0] sm:$0xf]
  %v560 = vld [vmem:[%s531 + $0xa8] sm:$0xf]
  %v561 = vld [vmem:[%s531 + $0xac] sm:$0xf]
  %v562 = vld [vmem:[%s531 + $0xb4] sm:$0xf]
  %v563 = vld [vmem:[%s531 + $0xb8] sm:$0xf]
  %v564 = vld [vmem:[%s531 + $0xd8] sm:$0xf]
  %v565 = vld [vmem:[%s531 + $0xdc] sm:$0xf]
  %v566 = vld [vmem:[%s531 + $0xe4] sm:$0xf]
  %v567 = vld [vmem:[%s531 + $0xe8] sm:$0xf]
  %v568 = vld [vmem:[%s531 + $0xf0] sm:$0xf]
  %v569 = vld [vmem:[%s531 + $0xf4] sm:$0xf]
  %v570 = vld [vmem:[%s531 + $0xfc] sm:$0xf]
  %v571 = vld [vmem:[%s531 + $0x100] sm:$0xf]
  %v572 = vld [vmem:[%s531 + $0x108] sm:$0xf]
  %v573 = vld [vmem:[%s531 + $0x10c] sm:$0xf]
  %v574 = vld [vmem:[%s531 + $0x114] sm:$0xf]
  %v575 = vld [vmem:[%s531 + $0x118] sm:$0xf]
  %v576 = vld [vmem:[%s531 + $0x120] sm:$0xf]
  %v577 = vld [vmem:[%s531 + $0x124] sm:$0xf]
  %v578 = vld [vmem:[%s531 + $0x12c] sm:$0xf]
  %v579 = vld [vmem:[%s531 + $0x130] sm:$0xf]
  %v580 = vld [vmem:[%s531 + $0x138] sm:$0xf]
  %v581 = vld [vmem:[%s531 + $0x13c] sm:$0xf]
  %v582 = vld [vmem:[%s531 + $0x144] sm:$0xf]
  %v583 = vld [vmem:[%s531 + $0x148] sm:$0xf]
  %v584 = vld [vmem:[%s531 + $0x150] sm:$0xf]
  %v585 = vld [vmem:[%s531 + $0x154] sm:$0xf]
  %v586 = vld [vmem:[%s531 + $0x15c] sm:$0xf]
  %v587 = vld [vmem:[%s531 + $0x160] sm:$0xf]
  %v588 = vld [vmem:[%s531 + $0x168] sm:$0xf]
  %v589 = vld [vmem:[%s531 + $0x16c] sm:$0xf]
  %v590 = vld [vmem:[%s531 + $0x174] sm:$0xf]
  %v591 = vld [vmem:[%s531 + $0x178] sm:$0xf]
  %v592 = vld [vmem:[%s531 + $0x180] sm:$0xf]
  %v593 = vld [vmem:[%s531 + $0x184] sm:$0xf]
  %v594 = vld [vmem:[%s531 + $0x18c] sm:$0xf]
  %v595 = vld [vmem:[%s531 + $0x190] sm:$0xf]
  %v596 = vunpack.c.l.bf16 %v532
  %v597 = vunpack.c.l.bf16 %v533
  %v598 = vunpack.c.l.bf16 %v534
  %v599 = vunpack.c.l.bf16 %v535
  %v600 = vunpack.c.l.bf16 %v536
  %v601 = vunpack.c.l.bf16 %v537
  %v602 = vunpack.c.l.bf16 %v538
  %v603 = vunpack.c.l.bf16 %v539
  %v604 = vunpack.c.l.bf16 %v540
  %v605 = vunpack.c.l.bf16 %v541
  %v606 = vunpack.c.l.bf16 %v542
  %v607 = vunpack.c.l.bf16 %v543
  %v608 = vunpack.c.l.bf16 %v544
  %v609 = vunpack.c.l.bf16 %v545
  %v610 = vunpack.c.l.bf16 %v546
  %v611 = vunpack.c.l.bf16 %v547
  %v612 = vunpack.c.l.bf16 %v548
  %v613 = vunpack.c.l.bf16 %v549
  %v614 = vunpack.c.l.bf16 %v550
  %v615 = vunpack.c.l.bf16 %v551
  %v616 = vunpack.c.l.bf16 %v552
  %v617 = vunpack.c.l.bf16 %v553
  %v618 = vunpack.c.l.bf16 %v554
  %v619 = vunpack.c.l.bf16 %v555
  %v620 = vunpack.c.l.bf16 %v556
  %v621 = vunpack.c.l.bf16 %v557
  %v622 = vunpack.c.l.bf16 %v558
  %v623 = vunpack.c.l.bf16 %v559
  %v624 = vunpack.c.l.bf16 %v560
  %v625 = vunpack.c.l.bf16 %v561
  %v626 = vunpack.c.l.bf16 %v562
  %v627 = vunpack.c.l.bf16 %v563
  %v628 = vunpack.c.l.bf16 %v564
  %v629 = vunpack.c.l.bf16 %v565
  %v630 = vunpack.c.l.bf16 %v566
  %v631 = vunpack.c.l.bf16 %v567
  %v632 = vunpack.c.l.bf16 %v568
  %v633 = vunpack.c.l.bf16 %v569
  %v634 = vunpack.c.l.bf16 %v570
  %v635 = vunpack.c.l.bf16 %v571
  %v636 = vunpack.c.l.bf16 %v572
  %v637 = vunpack.c.l.bf16 %v573
  %v638 = vunpack.c.l.bf16 %v574
  %v639 = vunpack.c.l.bf16 %v575
  %v640 = vunpack.c.l.bf16 %v576
  %v641 = vunpack.c.l.bf16 %v577
  %v642 = vunpack.c.l.bf16 %v578
  %v643 = vunpack.c.l.bf16 %v579
  %v644 = vunpack.c.l.bf16 %v580
  %v645 = vunpack.c.l.bf16 %v581
  %v646 = vunpack.c.l.bf16 %v582
  %v647 = vunpack.c.l.bf16 %v583
  %v648 = vunpack.c.l.bf16 %v584
  %v649 = vunpack.c.l.bf16 %v585
  %v650 = vunpack.c.l.bf16 %v586
  %v651 = vunpack.c.l.bf16 %v587
  %v652 = vunpack.c.l.bf16 %v588
  %v653 = vunpack.c.l.bf16 %v589
  %v654 = vunpack.c.l.bf16 %v590
  %v655 = vunpack.c.l.bf16 %v591
  %v656 = vunpack.c.l.bf16 %v592
  %v657 = vunpack.c.l.bf16 %v593
  %v658 = vunpack.c.l.bf16 %v594
  %v659 = vunpack.c.l.bf16 %v595
  %v660 = vld [vmem:[%s531 + $0x8] sm:$0x1]
  %v661 = vld [vmem:[%s531 + $0x14] sm:$0x1]
  %v662 = vld [vmem:[%s531 + $0x20] sm:$0x1]
  %v663 = vld [vmem:[%s531 + $0x2c] sm:$0x1]
  %v664 = vld [vmem:[%s531 + $0x38] sm:$0x1]
  %v665 = vld [vmem:[%s531 + $0x44] sm:$0x1]
  %v666 = vld [vmem:[%s531 + $0x50] sm:$0x1]
  %v667 = vld [vmem:[%s531 + $0x5c] sm:$0x1]
  %v668 = vld [vmem:[%s531 + $0x68] sm:$0x1]
  %v669 = vld [vmem:[%s531 + $0x74] sm:$0x1]
  %v670 = vld [vmem:[%s531 + $0x80] sm:$0x1]
  %v671 = vld [vmem:[%s531 + $0x8c] sm:$0x1]
  %v672 = vld [vmem:[%s531 + $0x98] sm:$0x1]
  %v673 = vld [vmem:[%s531 + $0xa4] sm:$0x1]
  %v674 = vld [vmem:[%s531 + $0xb0] sm:$0x1]
  %v675 = vld [vmem:[%s531 + $0xbc] sm:$0x1]
  %v676 = vld [vmem:[%s531 + $0xe0] sm:$0x1]
  %v677 = vld [vmem:[%s531 + $0xec] sm:$0x1]
  %v678 = vld [vmem:[%s531 + $0xf8] sm:$0x1]
  %v679 = vld [vmem:[%s531 + $0x104] sm:$0x1]
  %v680 = vld [vmem:[%s531 + $0x110] sm:$0x1]
  %v681 = vld [vmem:[%s531 + $0x11c] sm:$0x1]
  %v682 = vld [vmem:[%s531 + $0x128] sm:$0x1]
  %v683 = vld [vmem:[%s531 + $0x134] sm:$0x1]
  %v684 = vld [vmem:[%s531 + $0x140] sm:$0x1]
  %v685 = vld [vmem:[%s531 + $0x14c] sm:$0x1]
  %v686 = vld [vmem:[%s531 + $0x158] sm:$0x1]
  %v687 = vld [vmem:[%s531 + $0x164] sm:$0x1]
  %v688 = vld [vmem:[%s531 + $0x170] sm:$0x1]
  %v689 = vld [vmem:[%s531 + $0x17c] sm:$0x1]
  %v690 = vld [vmem:[%s531 + $0x188] sm:$0x1]
  %v691 = vld [vmem:[%s531 + $0x194] sm:$0x1]
  %v692 = vunpack.c.l.bf16 %v660
  %v693 = vunpack.c.l.bf16 %v661
  %v694 = vunpack.c.l.bf16 %v662
  %v695 = vunpack.c.l.bf16 %v663
  %v696 = vunpack.c.l.bf16 %v664
  %v697 = vunpack.c.l.bf16 %v665
  %v698 = vunpack.c.l.bf16 %v666
  %v699 = vunpack.c.l.bf16 %v667
  %v700 = vunpack.c.l.bf16 %v668
  %v701 = vunpack.c.l.bf16 %v669
  %v702 = vunpack.c.l.bf16 %v670
  %v703 = vunpack.c.l.bf16 %v671
  %v704 = vunpack.c.l.bf16 %v672
  %v705 = vunpack.c.l.bf16 %v673
  %v706 = vunpack.c.l.bf16 %v674
  %v707 = vunpack.c.l.bf16 %v675
  %v708 = vunpack.c.l.bf16 %v676
  %v709 = vunpack.c.l.bf16 %v677
  %v710 = vunpack.c.l.bf16 %v678
  %v711 = vunpack.c.l.bf16 %v679
  %v712 = vunpack.c.l.bf16 %v680
  %v713 = vunpack.c.l.bf16 %v681
  %v714 = vunpack.c.l.bf16 %v682
  %v715 = vunpack.c.l.bf16 %v683
  %v716 = vunpack.c.l.bf16 %v684
  %v717 = vunpack.c.l.bf16 %v685
  %v718 = vunpack.c.l.bf16 %v686
  %v719 = vunpack.c.l.bf16 %v687
  %v720 = vunpack.c.l.bf16 %v688
  %v721 = vunpack.c.l.bf16 %v689
  %v722 = vunpack.c.l.bf16 %v690
  %v723 = vunpack.c.l.bf16 %v691
  %v724 = vld [vmem:[%s531] sm:$0xe]
  %v725 = vld [vmem:[%s531 + $0xc] sm:$0xe]
  %v726 = vld [vmem:[%s531 + $0x18] sm:$0xe]
  %v727 = vld [vmem:[%s531 + $0x24] sm:$0xe]
  %v728 = vld [vmem:[%s531 + $0x30] sm:$0xe]
  %v729 = vld [vmem:[%s531 + $0x3c] sm:$0xe]
  %v730 = vld [vmem:[%s531 + $0x48] sm:$0xe]
  %v731 = vld [vmem:[%s531 + $0x54] sm:$0xe]
  %v732 = vld [vmem:[%s531 + $0x60] sm:$0xe]
  %v733 = vld [vmem:[%s531 + $0x6c] sm:$0xe]
  %v734 = vld [vmem:[%s531 + $0x78] sm:$0xe]
  %v735 = vld [vmem:[%s531 + $0x84] sm:$0xe]
  %v736 = vld [vmem:[%s531 + $0x90] sm:$0xe]
  %v737 = vld [vmem:[%s531 + $0x9c] sm:$0xe]
  %v738 = vld [vmem:[%s531 + $0xa8] sm:$0xe]
  %v739 = vld [vmem:[%s531 + $0xb4] sm:$0xe]
  %v740 = vld [vmem:[%s531 + $0xd8] sm:$0xe]
  %v741 = vld [vmem:[%s531 + $0xe4] sm:$0xe]
  %v742 = vld [vmem:[%s531 + $0xf0] sm:$0xe]
  %v743 = vld [vmem:[%s531 + $0xfc] sm:$0xe]
  %v744 = vld [vmem:[%s531 + $0x108] sm:$0xe]
  %v745 = vld [vmem:[%s531 + $0x114] sm:$0xe]
  %v746 = vld [vmem:[%s531 + $0x120] sm:$0xe]
  %v747 = vld [vmem:[%s531 + $0x12c] sm:$0xe]
  %v748 = vld [vmem:[%s531 + $0x138] sm:$0xe]
  %v749 = vld [vmem:[%s531 + $0x144] sm:$0xe]
  %v750 = vld [vmem:[%s531 + $0x150] sm:$0xe]
  %v751 = vld [vmem:[%s531 + $0x15c] sm:$0xe]
  %v752 = vld [vmem:[%s531 + $0x168] sm:$0xe]
  %v753 = vld [vmem:[%s531 + $0x174] sm:$0xe]
  %v754 = vld [vmem:[%s531 + $0x180] sm:$0xe]
  %v755 = vld [vmem:[%s531 + $0x18c] sm:$0xe]
  %v756 = vunpack.c.l.bf16 %v724
  %v757 = vunpack.c.l.bf16 %v725
  %v758 = vunpack.c.l.bf16 %v726
  %v759 = vunpack.c.l.bf16 %v727
  %v760 = vunpack.c.l.bf16 %v728
  %v761 = vunpack.c.l.bf16 %v729
  %v762 = vunpack.c.l.bf16 %v730
  %v763 = vunpack.c.l.bf16 %v731
  %v764 = vunpack.c.l.bf16 %v732
  %v765 = vunpack.c.l.bf16 %v733
  %v766 = vunpack.c.l.bf16 %v734
  %v767 = vunpack.c.l.bf16 %v735
  %v768 = vunpack.c.l.bf16 %v736
  %v769 = vunpack.c.l.bf16 %v737
  %v770 = vunpack.c.l.bf16 %v738
  %v771 = vunpack.c.l.bf16 %v739
  %v772 = vunpack.c.l.bf16 %v740
  %v773 = vunpack.c.l.bf16 %v741
  %v774 = vunpack.c.l.bf16 %v742
  %v775 = vunpack.c.l.bf16 %v743
  %v776 = vunpack.c.l.bf16 %v744
  %v777 = vunpack.c.l.bf16 %v745
  %v778 = vunpack.c.l.bf16 %v746
  %v779 = vunpack.c.l.bf16 %v747
  %v780 = vunpack.c.l.bf16 %v748
  %v781 = vunpack.c.l.bf16 %v749
  %v782 = vunpack.c.l.bf16 %v750
  %v783 = vunpack.c.l.bf16 %v751
  %v784 = vunpack.c.l.bf16 %v752
  %v785 = vunpack.c.l.bf16 %v753
  %v786 = vunpack.c.l.bf16 %v754
  %v787 = vunpack.c.l.bf16 %v755
  %vm884 = vcmask 1046528
  %v885 = vrot.slane %v82, 1
  %v886 = vrot.slane %v83, 1
  %v887 = vsel %vm884, %v885, %v886
  %v888 = vrot.slane %v178, 1
  %v889 = vsel %vm884, %v886, %v888
  %v890 = vrot.slane %v84, 1
  %v891 = vrot.slane %v85, 1
  %v892 = vsel %vm884, %v890, %v891
  %v893 = vrot.slane %v179, 1
  %v894 = vsel %vm884, %v891, %v893
  %v895 = vrot.slane %v86, 1
  %v896 = vrot.slane %v87, 1
  %v897 = vsel %vm884, %v895, %v896
  %v898 = vrot.slane %v180, 1
  %v899 = vsel %vm884, %v896, %v898
  %v900 = vrot.slane %v88, 1
  %v901 = vrot.slane %v89, 1
  %v902 = vsel %vm884, %v900, %v901
  %v903 = vrot.slane %v181, 1
  %v904 = vsel %vm884, %v901, %v903
  %v905 = vrot.slane %v90, 1
  %v906 = vrot.slane %v91, 1
  %v907 = vsel %vm884, %v905, %v906
  %v908 = vrot.slane %v182, 1
  %v909 = vsel %vm884, %v906, %v908
  %v910 = vrot.slane %v92, 1
  %v911 = vrot.slane %v93, 1
  %v912 = vsel %vm884, %v910, %v911
  %v913 = vrot.slane %v183, 1
  %v914 = vsel %vm884, %v911, %v913
  %v915 = vrot.slane %v94, 1
  %v916 = vrot.slane %v95, 1
  %v917 = vsel %vm884, %v915, %v916
  %v918 = vrot.slane %v184, 1
  %v919 = vsel %vm884, %v916, %v918
  %v920 = vrot.slane %v96, 1
  %v921 = vrot.slane %v97, 1
  %v922 = vsel %vm884, %v920, %v921
  %v923 = vrot.slane %v185, 1
  %v924 = vsel %vm884, %v921, %v923
  %v925 = vrot.slane %v98, 1
  %v926 = vrot.slane %v99, 1
  %v927 = vsel %vm884, %v925, %v926
  %v928 = vrot.slane %v186, 1
  %v929 = vsel %vm884, %v926, %v928
  %v930 = vrot.slane %v100, 1
  %v931 = vrot.slane %v101, 1
  %v932 = vsel %vm884, %v930, %v931
  %v933 = vrot.slane %v187, 1
  %v934 = vsel %vm884, %v931, %v933
  %v935 = vrot.slane %v102, 1
  %v936 = vrot.slane %v103, 1
  %v937 = vsel %vm884, %v935, %v936
  %v938 = vrot.slane %v188, 1
  %v939 = vsel %vm884, %v936, %v938
  %v940 = vrot.slane %v104, 1
  %v941 = vrot.slane %v105, 1
  %v942 = vsel %vm884, %v940, %v941
  %v943 = vrot.slane %v189, 1
  %v944 = vsel %vm884, %v941, %v943
  %v945 = vrot.slane %v106, 1
  %v946 = vrot.slane %v107, 1
  %v947 = vsel %vm884, %v945, %v946
  %v948 = vrot.slane %v190, 1
  %v949 = vsel %vm884, %v946, %v948
  %v950 = vrot.slane %v108, 1
  %v951 = vrot.slane %v109, 1
  %v952 = vsel %vm884, %v950, %v951
  %v953 = vrot.slane %v191, 1
  %v954 = vsel %vm884, %v951, %v953
  %v955 = vrot.slane %v110, 1
  %v956 = vrot.slane %v111, 1
  %v957 = vsel %vm884, %v955, %v956
  %v958 = vrot.slane %v192, 1
  %v959 = vsel %vm884, %v956, %v958
  %v960 = vrot.slane %v112, 1
  %v961 = vrot.slane %v113, 1
  %v962 = vsel %vm884, %v960, %v961
  %v963 = vrot.slane %v193, 1
  %v964 = vsel %vm884, %v961, %v963
  %v965 = vrot.slane %v114, 1
  %v966 = vrot.slane %v115, 1
  %v967 = vsel %vm884, %v965, %v966
  %v968 = vrot.slane %v194, 1
  %v969 = vsel %vm884, %v966, %v968
  %v970 = vrot.slane %v116, 1
  %v971 = vrot.slane %v117, 1
  %v972 = vsel %vm884, %v970, %v971
  %v973 = vrot.slane %v195, 1
  %v974 = vsel %vm884, %v971, %v973
  %v975 = vrot.slane %v118, 1
  %v976 = vrot.slane %v119, 1
  %v977 = vsel %vm884, %v975, %v976
  %v978 = vrot.slane %v196, 1
  %v979 = vsel %vm884, %v976, %v978
  %v980 = vrot.slane %v120, 1
  %v981 = vrot.slane %v121, 1
  %v982 = vsel %vm884, %v980, %v981
  %v983 = vrot.slane %v197, 1
  %v984 = vsel %vm884, %v981, %v983
  %v985 = vrot.slane %v122, 1
  %v986 = vrot.slane %v123, 1
  %v987 = vsel %vm884, %v985, %v986
  %v988 = vrot.slane %v198, 1
  %v989 = vsel %vm884, %v986, %v988
  %v990 = vrot.slane %v124, 1
  %v991 = vrot.slane %v125, 1
  %v992 = vsel %vm884, %v990, %v991
  %v993 = vrot.slane %v199, 1
  %v994 = vsel %vm884, %v991, %v993
  %v995 = vrot.slane %v126, 1
  %v996 = vrot.slane %v127, 1
  %v997 = vsel %vm884, %v995, %v996
  %v998 = vrot.slane %v200, 1
  %v999 = vsel %vm884, %v996, %v998
  %v1000 = vrot.slane %v128, 1
  %v1001 = vrot.slane %v129, 1
  %v1002 = vsel %vm884, %v1000, %v1001
  %v1003 = vrot.slane %v201, 1
  %v1004 = vsel %vm884, %v1001, %v1003
  %v1005 = vrot.slane %v130, 1
  %v1006 = vrot.slane %v131, 1
  %v1007 = vsel %vm884, %v1005, %v1006
  %v1008 = vrot.slane %v202, 1
  %v1009 = vsel %vm884, %v1006, %v1008
  %v1010 = vrot.slane %v132, 1
  %v1011 = vrot.slane %v133, 1
  %v1012 = vsel %vm884, %v1010, %v1011
  %v1013 = vrot.slane %v203, 1
  %v1014 = vsel %vm884, %v1011, %v1013
  %v1015 = vrot.slane %v134, 1
  %v1016 = vrot.slane %v135, 1
  %v1017 = vsel %vm884, %v1015, %v1016
  %v1018 = vrot.slane %v204, 1
  %v1019 = vsel %vm884, %v1016, %v1018
  %v1020 = vrot.slane %v136, 1
  %v1021 = vrot.slane %v137, 1
  %v1022 = vsel %vm884, %v1020, %v1021
  %v1023 = vrot.slane %v205, 1
  %v1024 = vsel %vm884, %v1021, %v1023
  %v1025 = vrot.slane %v138, 1
  %v1026 = vrot.slane %v139, 1
  %v1027 = vsel %vm884, %v1025, %v1026
  %v1028 = vrot.slane %v206, 1
  %v1029 = vsel %vm884, %v1026, %v1028
  %v1030 = vrot.slane %v140, 1
  %v1031 = vrot.slane %v141, 1
  %v1032 = vsel %vm884, %v1030, %v1031
  %v1033 = vrot.slane %v207, 1
  %v1034 = vsel %vm884, %v1031, %v1033
  %v1035 = vrot.slane %v142, 1
  %v1036 = vrot.slane %v143, 1
  %v1037 = vsel %vm884, %v1035, %v1036
  %v1038 = vrot.slane %v208, 1
  %v1039 = vsel %vm884, %v1036, %v1038
  %v1040 = vrot.slane %v144, 1
  %v1041 = vrot.slane %v145, 1
  %v1042 = vsel %vm884, %v1040, %v1041
  %v1043 = vrot.slane %v209, 1
  %v1044 = vsel %vm884, %v1041, %v1043
  %1045 = vrot.lane.b32.xlu0 %v887, 3
  %v1046 = vpop.permute.xlu0 %1045
  %1047 = vrot.lane.b32.xlu0 %v889, 3
  %v1048 = vpop.permute.xlu0 %1047
  %1049 = vrot.lane.b32.xlu0 %v892, 3
  %v1050 = vpop.permute.xlu0 %1049
  %1051 = vrot.lane.b32.xlu0 %v894, 3
  %v1052 = vpop.permute.xlu0 %1051
  %1053 = vrot.lane.b32.xlu0 %v897, 3
  %v1054 = vpop.permute.xlu0 %1053
  %1055 = vrot.lane.b32.xlu0 %v899, 3
  %v1056 = vpop.permute.xlu0 %1055
  %1057 = vrot.lane.b32.xlu0 %v902, 3
  %v1058 = vpop.permute.xlu0 %1057
  %1059 = vrot.lane.b32.xlu0 %v904, 3
  %v1060 = vpop.permute.xlu0 %1059
  %1061 = vrot.lane.b32.xlu0 %v907, 3
  %v1062 = vpop.permute.xlu0 %1061
  %1063 = vrot.lane.b32.xlu0 %v909, 3
  %v1064 = vpop.permute.xlu0 %1063
  %1065 = vrot.lane.b32.xlu0 %v912, 3
  %v1066 = vpop.permute.xlu0 %1065
  %1067 = vrot.lane.b32.xlu0 %v914, 3
  %v1068 = vpop.permute.xlu0 %1067
  %1069 = vrot.lane.b32.xlu0 %v917, 3
  %v1070 = vpop.permute.xlu0 %1069
  %1071 = vrot.lane.b32.xlu0 %v919, 3
  %v1072 = vpop.permute.xlu0 %1071
  %1073 = vrot.lane.b32.xlu0 %v922, 3
  %v1074 = vpop.permute.xlu0 %1073
  %1075 = vrot.lane.b32.xlu0 %v924, 3
  %v1076 = vpop.permute.xlu0 %1075
  %1077 = vrot.lane.b32.xlu0 %v927, 3
  %v1078 = vpop.permute.xlu0 %1077
  %1079 = vrot.lane.b32.xlu0 %v929, 3
  %v1080 = vpop.permute.xlu0 %1079
  %1081 = vrot.lane.b32.xlu0 %v932, 3
  %v1082 = vpop.permute.xlu0 %1081
  %1083 = vrot.lane.b32.xlu0 %v934, 3
  %v1084 = vpop.permute.xlu0 %1083
  %1085 = vrot.lane.b32.xlu0 %v937, 3
  %v1086 = vpop.permute.xlu0 %1085
  %1087 = vrot.lane.b32.xlu0 %v939, 3
  %v1088 = vpop.permute.xlu0 %1087
  %1089 = vrot.lane.b32.xlu0 %v942, 3
  %v1090 = vpop.permute.xlu0 %1089
  %1091 = vrot.lane.b32.xlu0 %v944, 3
  %v1092 = vpop.permute.xlu0 %1091
  %1093 = vrot.lane.b32.xlu0 %v947, 3
  %v1094 = vpop.permute.xlu0 %1093
  %1095 = vrot.lane.b32.xlu0 %v949, 3
  %v1096 = vpop.permute.xlu0 %1095
  %1097 = vrot.lane.b32.xlu0 %v952, 3
  %v1098 = vpop.permute.xlu0 %1097
  %1099 = vrot.lane.b32.xlu0 %v954, 3
  %v1100 = vpop.permute.xlu0 %1099
  %1101 = vrot.lane.b32.xlu0 %v957, 3
  %v1102 = vpop.permute.xlu0 %1101
  %1103 = vrot.lane.b32.xlu0 %v959, 3
  %v1104 = vpop.permute.xlu0 %1103
  %1105 = vrot.lane.b32.xlu0 %v962, 3
  %v1106 = vpop.permute.xlu0 %1105
  %1107 = vrot.lane.b32.xlu0 %v964, 3
  %v1108 = vpop.permute.xlu0 %1107
  %1109 = vrot.lane.b32.xlu0 %v967, 3
  %v1110 = vpop.permute.xlu0 %1109
  %1111 = vrot.lane.b32.xlu0 %v969, 3
  %v1112 = vpop.permute.xlu0 %1111
  %1113 = vrot.lane.b32.xlu0 %v972, 3
  %v1114 = vpop.permute.xlu0 %1113
  %1115 = vrot.lane.b32.xlu0 %v974, 3
  %v1116 = vpop.permute.xlu0 %1115
  %1117 = vrot.lane.b32.xlu0 %v977, 3
  %v1118 = vpop.permute.xlu0 %1117
  %1119 = vrot.lane.b32.xlu0 %v979, 3
  %v1120 = vpop.permute.xlu0 %1119
  %1121 = vrot.lane.b32.xlu0 %v982, 3
  %v1122 = vpop.permute.xlu0 %1121
  %1123 = vrot.lane.b32.xlu0 %v984, 3
  %v1124 = vpop.permute.xlu0 %1123
  %1125 = vrot.lane.b32.xlu0 %v987, 3
  %v1126 = vpop.permute.xlu0 %1125
  %1127 = vrot.lane.b32.xlu0 %v989, 3
  %v1128 = vpop.permute.xlu0 %1127
  %1129 = vrot.lane.b32.xlu0 %v992, 3
  %v1130 = vpop.permute.xlu0 %1129
  %1131 = vrot.lane.b32.xlu0 %v994, 3
  %v1132 = vpop.permute.xlu0 %1131
  %1133 = vrot.lane.b32.xlu0 %v997, 3
  %v1134 = vpop.permute.xlu0 %1133
  %1135 = vrot.lane.b32.xlu0 %v999, 3
  %v1136 = vpop.permute.xlu0 %1135
  %1137 = vrot.lane.b32.xlu0 %v1002, 3
  %v1138 = vpop.permute.xlu0 %1137
  %1139 = vrot.lane.b32.xlu0 %v1004, 3
  %v1140 = vpop.permute.xlu0 %1139
  %1141 = vrot.lane.b32.xlu0 %v1007, 3
  %v1142 = vpop.permute.xlu0 %1141
  %1143 = vrot.lane.b32.xlu0 %v1009, 3
  %v1144 = vpop.permute.xlu0 %1143
  %1145 = vrot.lane.b32.xlu0 %v1012, 3
  %v1146 = vpop.permute.xlu0 %1145
  %1147 = vrot.lane.b32.xlu0 %v1014, 3
  %v1148 = vpop.permute.xlu0 %1147
  %1149 = vrot.lane.b32.xlu0 %v1017, 3
  %v1150 = vpop.permute.xlu0 %1149
  %1151 = vrot.lane.b32.xlu0 %v1019, 3
  %v1152 = vpop.permute.xlu0 %1151
  %1153 = vrot.lane.b32.xlu0 %v1022, 3
  %v1154 = vpop.permute.xlu0 %1153
  %1155 = vrot.lane.b32.xlu0 %v1024, 3
  %v1156 = vpop.permute.xlu0 %1155
  %1157 = vrot.lane.b32.xlu0 %v1027, 3
  %v1158 = vpop.permute.xlu0 %1157
  %1159 = vrot.lane.b32.xlu0 %v1029, 3
  %v1160 = vpop.permute.xlu0 %1159
  %1161 = vrot.lane.b32.xlu0 %v1032, 3
  %v1162 = vpop.permute.xlu0 %1161
  %1163 = vrot.lane.b32.xlu0 %v1034, 3
  %v1164 = vpop.permute.xlu0 %1163
  %1165 = vrot.lane.b32.xlu0 %v1037, 3
  %v1166 = vpop.permute.xlu0 %1165
  %1167 = vrot.lane.b32.xlu0 %v1039, 3
  %v1168 = vpop.permute.xlu0 %1167
  %1169 = vrot.lane.b32.xlu0 %v1042, 3
  %v1170 = vpop.permute.xlu0 %1169
  %1171 = vrot.lane.b32.xlu0 %v1044, 3
  %v1172 = vpop.permute.xlu0 %1171
  %vm1269 = vcmask 1045504
  %v1270 = vrot.slane %v242, 2
  %v1271 = vrot.slane %v83, 2
  %v1272 = vsel %vm1269, %v1270, %v1271
  %v1273 = vrot.slane %v178, 2
  %v1274 = vsel %vm1269, %v1271, %v1273
  %v1275 = vrot.slane %v243, 2
  %v1276 = vrot.slane %v85, 2
  %v1277 = vsel %vm1269, %v1275, %v1276
  %v1278 = vrot.slane %v179, 2
  %v1279 = vsel %vm1269, %v1276, %v1278
  %v1280 = vrot.slane %v244, 2
  %v1281 = vrot.slane %v87, 2
  %v1282 = vsel %vm1269, %v1280, %v1281
  %v1283 = vrot.slane %v180, 2
  %v1284 = vsel %vm1269, %v1281, %v1283
  %v1285 = vrot.slane %v245, 2
  %v1286 = vrot.slane %v89, 2
  %v1287 = vsel %vm1269, %v1285, %v1286
  %v1288 = vrot.slane %v181, 2
  %v1289 = vsel %vm1269, %v1286, %v1288
  %v1290 = vrot.slane %v246, 2
  %v1291 = vrot.slane %v91, 2
  %v1292 = vsel %vm1269, %v1290, %v1291
  %v1293 = vrot.slane %v182, 2
  %v1294 = vsel %vm1269, %v1291, %v1293
  %v1295 = vrot.slane %v247, 2
  %v1296 = vrot.slane %v93, 2
  %v1297 = vsel %vm1269, %v1295, %v1296
  %v1298 = vrot.slane %v183, 2
  %v1299 = vsel %vm1269, %v1296, %v1298
  %v1300 = vrot.slane %v248, 2
  %v1301 = vrot.slane %v95, 2
  %v1302 = vsel %vm1269, %v1300, %v1301
  %v1303 = vrot.slane %v184, 2
  %v1304 = vsel %vm1269, %v1301, %v1303
  %v1305 = vrot.slane %v249, 2
  %v1306 = vrot.slane %v97, 2
  %v1307 = vsel %vm1269, %v1305, %v1306
  %v1308 = vrot.slane %v185, 2
  %v1309 = vsel %vm1269, %v1306, %v1308
  %v1310 = vrot.slane %v250, 2
  %v1311 = vrot.slane %v99, 2
  %v1312 = vsel %vm1269, %v1310, %v1311
  %v1313 = vrot.slane %v186, 2
  %v1314 = vsel %vm1269, %v1311, %v1313
  %v1315 = vrot.slane %v251, 2
  %v1316 = vrot.slane %v101, 2
  %v1317 = vsel %vm1269, %v1315, %v1316
  %v1318 = vrot.slane %v187, 2
  %v1319 = vsel %vm1269, %v1316, %v1318
  %v1320 = vrot.slane %v252, 2
  %v1321 = vrot.slane %v103, 2
  %v1322 = vsel %vm1269, %v1320, %v1321
  %v1323 = vrot.slane %v188, 2
  %v1324 = vsel %vm1269, %v1321, %v1323
  %v1325 = vrot.slane %v253, 2
  %v1326 = vrot.slane %v105, 2
  %v1327 = vsel %vm1269, %v1325, %v1326
  %v1328 = vrot.slane %v189, 2
  %v1329 = vsel %vm1269, %v1326, %v1328
  %v1330 = vrot.slane %v254, 2
  %v1331 = vrot.slane %v107, 2
  %v1332 = vsel %vm1269, %v1330, %v1331
  %v1333 = vrot.slane %v190, 2
  %v1334 = vsel %vm1269, %v1331, %v1333
  %v1335 = vrot.slane %v255, 2
  %v1336 = vrot.slane %v109, 2
  %v1337 = vsel %vm1269, %v1335, %v1336
  %v1338 = vrot.slane %v191, 2
  %v1339 = vsel %vm1269, %v1336, %v1338
  %v1340 = vrot.slane %v256, 2
  %v1341 = vrot.slane %v111, 2
  %v1342 = vsel %vm1269, %v1340, %v1341
  %v1343 = vrot.slane %v192, 2
  %v1344 = vsel %vm1269, %v1341, %v1343
  %v1345 = vrot.slane %v257, 2
  %v1346 = vrot.slane %v113, 2
  %v1347 = vsel %vm1269, %v1345, %v1346
  %v1348 = vrot.slane %v193, 2
  %v1349 = vsel %vm1269, %v1346, %v1348
  %v1350 = vrot.slane %v258, 2
  %v1351 = vrot.slane %v115, 2
  %v1352 = vsel %vm1269, %v1350, %v1351
  %v1353 = vrot.slane %v194, 2
  %v1354 = vsel %vm1269, %v1351, %v1353
  %v1355 = vrot.slane %v259, 2
  %v1356 = vrot.slane %v117, 2
  %v1357 = vsel %vm1269, %v1355, %v1356
  %v1358 = vrot.slane %v195, 2
  %v1359 = vsel %vm1269, %v1356, %v1358
  %v1360 = vrot.slane %v260, 2
  %v1361 = vrot.slane %v119, 2
  %v1362 = vsel %vm1269, %v1360, %v1361
  %v1363 = vrot.slane %v196, 2
  %v1364 = vsel %vm1269, %v1361, %v1363
  %v1365 = vrot.slane %v261, 2
  %v1366 = vrot.slane %v121, 2
  %v1367 = vsel %vm1269, %v1365, %v1366
  %v1368 = vrot.slane %v197, 2
  %v1369 = vsel %vm1269, %v1366, %v1368
  %v1370 = vrot.slane %v262, 2
  %v1371 = vrot.slane %v123, 2
  %v1372 = vsel %vm1269, %v1370, %v1371
  %v1373 = vrot.slane %v198, 2
  %v1374 = vsel %vm1269, %v1371, %v1373
  %v1375 = vrot.slane %v263, 2
  %v1376 = vrot.slane %v125, 2
  %v1377 = vsel %vm1269, %v1375, %v1376
  %v1378 = vrot.slane %v199, 2
  %v1379 = vsel %vm1269, %v1376, %v1378
  %v1380 = vrot.slane %v264, 2
  %v1381 = vrot.slane %v127, 2
  %v1382 = vsel %vm1269, %v1380, %v1381
  %v1383 = vrot.slane %v200, 2
  %v1384 = vsel %vm1269, %v1381, %v1383
  %v1385 = vrot.slane %v265, 2
  %v1386 = vrot.slane %v129, 2
  %v1387 = vsel %vm1269, %v1385, %v1386
  %v1388 = vrot.slane %v201, 2
  %v1389 = vsel %vm1269, %v1386, %v1388
  %v1390 = vrot.slane %v266, 2
  %v1391 = vrot.slane %v131, 2
  %v1392 = vsel %vm1269, %v1390, %v1391
  %v1393 = vrot.slane %v202, 2
  %v1394 = vsel %vm1269, %v1391, %v1393
  %v1395 = vrot.slane %v267, 2
  %v1396 = vrot.slane %v133, 2
  %v1397 = vsel %vm1269, %v1395, %v1396
  %v1398 = vrot.slane %v203, 2
  %v1399 = vsel %vm1269, %v1396, %v1398
  %v1400 = vrot.slane %v268, 2
  %v1401 = vrot.slane %v135, 2
  %v1402 = vsel %vm1269, %v1400, %v1401
  %v1403 = vrot.slane %v204, 2
  %v1404 = vsel %vm1269, %v1401, %v1403
  %v1405 = vrot.slane %v269, 2
  %v1406 = vrot.slane %v137, 2
  %v1407 = vsel %vm1269, %v1405, %v1406
  %v1408 = vrot.slane %v205, 2
  %v1409 = vsel %vm1269, %v1406, %v1408
  %v1410 = vrot.slane %v270, 2
  %v1411 = vrot.slane %v139, 2
  %v1412 = vsel %vm1269, %v1410, %v1411
  %v1413 = vrot.slane %v206, 2
  %v1414 = vsel %vm1269, %v1411, %v1413
  %v1415 = vrot.slane %v271, 2
  %v1416 = vrot.slane %v141, 2
  %v1417 = vsel %vm1269, %v1415, %v1416
  %v1418 = vrot.slane %v207, 2
  %v1419 = vsel %vm1269, %v1416, %v1418
  %v1420 = vrot.slane %v272, 2
  %v1421 = vrot.slane %v143, 2
  %v1422 = vsel %vm1269, %v1420, %v1421
  %v1423 = vrot.slane %v208, 2
  %v1424 = vsel %vm1269, %v1421, %v1423
  %v1425 = vrot.slane %v273, 2
  %v1426 = vrot.slane %v145, 2
  %v1427 = vsel %vm1269, %v1425, %v1426
  %v1428 = vrot.slane %v209, 2
  %v1429 = vsel %vm1269, %v1426, %v1428
  %1430 = vrot.lane.b32.xlu0 %v1272, 6
  %v1431 = vpop.permute.xlu0 %1430
  %1432 = vrot.lane.b32.xlu0 %v1274, 6
  %v1433 = vpop.permute.xlu0 %1432
  %1434 = vrot.lane.b32.xlu0 %v1277, 6
  %v1435 = vpop.permute.xlu0 %1434
  %1436 = vrot.lane.b32.xlu0 %v1279, 6
  %v1437 = vpop.permute.xlu0 %1436
  %1438 = vrot.lane.b32.xlu0 %v1282, 6
  %v1439 = vpop.permute.xlu0 %1438
  %1440 = vrot.lane.b32.xlu0 %v1284, 6
  %v1441 = vpop.permute.xlu0 %1440
  %1442 = vrot.lane.b32.xlu0 %v1287, 6
  %v1443 = vpop.permute.xlu0 %1442
  %1444 = vrot.lane.b32.xlu0 %v1289, 6
  %v1445 = vpop.permute.xlu0 %1444
  %1446 = vrot.lane.b32.xlu0 %v1292, 6
  %v1447 = vpop.permute.xlu0 %1446
  %1448 = vrot.lane.b32.xlu0 %v1294, 6
  %v1449 = vpop.permute.xlu0 %1448
  %1450 = vrot.lane.b32.xlu0 %v1297, 6
  %v1451 = vpop.permute.xlu0 %1450
  %1452 = vrot.lane.b32.xlu0 %v1299, 6
  %v1453 = vpop.permute.xlu0 %1452
  %1454 = vrot.lane.b32.xlu0 %v1302, 6
  %v1455 = vpop.permute.xlu0 %1454
  %1456 = vrot.lane.b32.xlu0 %v1304, 6
  %v1457 = vpop.permute.xlu0 %1456
  %1458 = vrot.lane.b32.xlu0 %v1307, 6
  %v1459 = vpop.permute.xlu0 %1458
  %1460 = vrot.lane.b32.xlu0 %v1309, 6
  %v1461 = vpop.permute.xlu0 %1460
  %1462 = vrot.lane.b32.xlu0 %v1312, 6
  %v1463 = vpop.permute.xlu0 %1462
  %1464 = vrot.lane.b32.xlu0 %v1314, 6
  %v1465 = vpop.permute.xlu0 %1464
  %1466 = vrot.lane.b32.xlu0 %v1317, 6
  %v1467 = vpop.permute.xlu0 %1466
  %1468 = vrot.lane.b32.xlu0 %v1319, 6
  %v1469 = vpop.permute.xlu0 %1468
  %1470 = vrot.lane.b32.xlu0 %v1322, 6
  %v1471 = vpop.permute.xlu0 %1470
  %1472 = vrot.lane.b32.xlu0 %v1324, 6
  %v1473 = vpop.permute.xlu0 %1472
  %1474 = vrot.lane.b32.xlu0 %v1327, 6
  %v1475 = vpop.permute.xlu0 %1474
  %1476 = vrot.lane.b32.xlu0 %v1329, 6
  %v1477 = vpop.permute.xlu0 %1476
  %1478 = vrot.lane.b32.xlu0 %v1332, 6
  %v1479 = vpop.permute.xlu0 %1478
  %1480 = vrot.lane.b32.xlu0 %v1334, 6
  %v1481 = vpop.permute.xlu0 %1480
  %1482 = vrot.lane.b32.xlu0 %v1337, 6
  %v1483 = vpop.permute.xlu0 %1482
  %1484 = vrot.lane.b32.xlu0 %v1339, 6
  %v1485 = vpop.permute.xlu0 %1484
  %1486 = vrot.lane.b32.xlu0 %v1342, 6
  %v1487 = vpop.permute.xlu0 %1486
  %1488 = vrot.lane.b32.xlu0 %v1344, 6
  %v1489 = vpop.permute.xlu0 %1488
  %1490 = vrot.lane.b32.xlu0 %v1347, 6
  %v1491 = vpop.permute.xlu0 %1490
  %1492 = vrot.lane.b32.xlu0 %v1349, 6
  %v1493 = vpop.permute.xlu0 %1492
  %1494 = vrot.lane.b32.xlu0 %v1352, 6
  %v1495 = vpop.permute.xlu0 %1494
  %1496 = vrot.lane.b32.xlu0 %v1354, 6
  %v1497 = vpop.permute.xlu0 %1496
  %1498 = vrot.lane.b32.xlu0 %v1357, 6
  %v1499 = vpop.permute.xlu0 %1498
  %1500 = vrot.lane.b32.xlu0 %v1359, 6
  %v1501 = vpop.permute.xlu0 %1500
  %1502 = vrot.lane.b32.xlu0 %v1362, 6
  %v1503 = vpop.permute.xlu0 %1502
  %1504 = vrot.lane.b32.xlu0 %v1364, 6
  %v1505 = vpop.permute.xlu0 %1504
  %1506 = vrot.lane.b32.xlu0 %v1367, 6
  %v1507 = vpop.permute.xlu0 %1506
  %1508 = vrot.lane.b32.xlu0 %v1369, 6
  %v1509 = vpop.permute.xlu0 %1508
  %1510 = vrot.lane.b32.xlu0 %v1372, 6
  %v1511 = vpop.permute.xlu0 %1510
  %1512 = vrot.lane.b32.xlu0 %v1374, 6
  %v1513 = vpop.permute.xlu0 %1512
  %1514 = vrot.lane.b32.xlu0 %v1377, 6
  %v1515 = vpop.permute.xlu0 %1514
  %1516 = vrot.lane.b32.xlu0 %v1379, 6
  %v1517 = vpop.permute.xlu0 %1516
  %1518 = vrot.lane.b32.xlu0 %v1382, 6
  %v1519 = vpop.permute.xlu0 %1518
  %1520 = vrot.lane.b32.xlu0 %v1384, 6
  %v1521 = vpop.permute.xlu0 %1520
  %1522 = vrot.lane.b32.xlu0 %v1387, 6
  %v1523 = vpop.permute.xlu0 %1522
  %1524 = vrot.lane.b32.xlu0 %v1389, 6
  %v1525 = vpop.permute.xlu0 %1524
  %1526 = vrot.lane.b32.xlu0 %v1392, 6
  %v1527 = vpop.permute.xlu0 %1526
  %1528 = vrot.lane.b32.xlu0 %v1394, 6
  %v1529 = vpop.permute.xlu0 %1528
  %1530 = vrot.lane.b32.xlu0 %v1397, 6
  %v1531 = vpop.permute.xlu0 %1530
  %1532 = vrot.lane.b32.xlu0 %v1399, 6
  %v1533 = vpop.permute.xlu0 %1532
  %1534 = vrot.lane.b32.xlu0 %v1402, 6
  %v1535 = vpop.permute.xlu0 %1534
  %1536 = vrot.lane.b32.xlu0 %v1404, 6
  %v1537 = vpop.permute.xlu0 %1536
  %1538 = vrot.lane.b32.xlu0 %v1407, 6
  %v1539 = vpop.permute.xlu0 %1538
  %1540 = vrot.lane.b32.xlu0 %v1409, 6
  %v1541 = vpop.permute.xlu0 %1540
  %1542 = vrot.lane.b32.xlu0 %v1412, 6
  %v1543 = vpop.permute.xlu0 %1542
  %1544 = vrot.lane.b32.xlu0 %v1414, 6
  %v1545 = vpop.permute.xlu0 %1544
  %1546 = vrot.lane.b32.xlu0 %v1417, 6
  %v1547 = vpop.permute.xlu0 %1546
  %1548 = vrot.lane.b32.xlu0 %v1419, 6
  %v1549 = vpop.permute.xlu0 %1548
  %1550 = vrot.lane.b32.xlu0 %v1422, 6
  %v1551 = vpop.permute.xlu0 %1550
  %1552 = vrot.lane.b32.xlu0 %v1424, 6
  %v1553 = vpop.permute.xlu0 %1552
  %1554 = vrot.lane.b32.xlu0 %v1427, 6
  %v1555 = vpop.permute.xlu0 %1554
  %1556 = vrot.lane.b32.xlu0 %v1429, 6
  %v1557 = vpop.permute.xlu0 %1556
  %1686 = vrot.lane.b32.xlu0 %v339, 9
  %v1687 = vpop.permute.xlu0 %1686
  %1688 = vrot.lane.b32.xlu0 %v340, 9
  %v1689 = vpop.permute.xlu0 %1688
  %1690 = vrot.lane.b32.xlu0 %v341, 9
  %v1691 = vpop.permute.xlu0 %1690
  %1692 = vrot.lane.b32.xlu0 %v342, 9
  %v1693 = vpop.permute.xlu0 %1692
  %1694 = vrot.lane.b32.xlu0 %v343, 9
  %v1695 = vpop.permute.xlu0 %1694
  %1696 = vrot.lane.b32.xlu0 %v344, 9
  %v1697 = vpop.permute.xlu0 %1696
  %1698 = vrot.lane.b32.xlu0 %v345, 9
  %v1699 = vpop.permute.xlu0 %1698
  %1700 = vrot.lane.b32.xlu0 %v346, 9
  %v1701 = vpop.permute.xlu0 %1700
  %1702 = vrot.lane.b32.xlu0 %v347, 9
  %v1703 = vpop.permute.xlu0 %1702
  %1704 = vrot.lane.b32.xlu0 %v348, 9
  %v1705 = vpop.permute.xlu0 %1704
  %1706 = vrot.lane.b32.xlu0 %v349, 9
  %v1707 = vpop.permute.xlu0 %1706
  %1708 = vrot.lane.b32.xlu0 %v350, 9
  %v1709 = vpop.permute.xlu0 %1708
  %1710 = vrot.lane.b32.xlu0 %v351, 9
  %v1711 = vpop.permute.xlu0 %1710
  %1712 = vrot.lane.b32.xlu0 %v352, 9
  %v1713 = vpop.permute.xlu0 %1712
  %1714 = vrot.lane.b32.xlu0 %v353, 9
  %v1715 = vpop.permute.xlu0 %1714
  %1716 = vrot.lane.b32.xlu0 %v354, 9
  %v1717 = vpop.permute.xlu0 %1716
  %1718 = vrot.lane.b32.xlu0 %v355, 9
  %v1719 = vpop.permute.xlu0 %1718
  %1720 = vrot.lane.b32.xlu0 %v356, 9
  %v1721 = vpop.permute.xlu0 %1720
  %1722 = vrot.lane.b32.xlu0 %v357, 9
  %v1723 = vpop.permute.xlu0 %1722
  %1724 = vrot.lane.b32.xlu0 %v358, 9
  %v1725 = vpop.permute.xlu0 %1724
  %1726 = vrot.lane.b32.xlu0 %v359, 9
  %v1727 = vpop.permute.xlu0 %1726
  %1728 = vrot.lane.b32.xlu0 %v360, 9
  %v1729 = vpop.permute.xlu0 %1728
  %1730 = vrot.lane.b32.xlu0 %v361, 9
  %v1731 = vpop.permute.xlu0 %1730
  %1732 = vrot.lane.b32.xlu0 %v362, 9
  %v1733 = vpop.permute.xlu0 %1732
  %1734 = vrot.lane.b32.xlu0 %v363, 9
  %v1735 = vpop.permute.xlu0 %1734
  %1736 = vrot.lane.b32.xlu0 %v364, 9
  %v1737 = vpop.permute.xlu0 %1736
  %1738 = vrot.lane.b32.xlu0 %v365, 9
  %v1739 = vpop.permute.xlu0 %1738
  %1740 = vrot.lane.b32.xlu0 %v366, 9
  %v1741 = vpop.permute.xlu0 %1740
  %1742 = vrot.lane.b32.xlu0 %v367, 9
  %v1743 = vpop.permute.xlu0 %1742
  %1744 = vrot.lane.b32.xlu0 %v368, 9
  %v1745 = vpop.permute.xlu0 %1744
  %1746 = vrot.lane.b32.xlu0 %v369, 9
  %v1747 = vpop.permute.xlu0 %1746
  %1748 = vrot.lane.b32.xlu0 %v370, 9
  %v1749 = vpop.permute.xlu0 %1748
  %1750 = vrot.lane.b32.xlu0 %v371, 9
  %v1751 = vpop.permute.xlu0 %1750
  %1752 = vrot.lane.b32.xlu0 %v372, 9
  %v1753 = vpop.permute.xlu0 %1752
  %1754 = vrot.lane.b32.xlu0 %v373, 9
  %v1755 = vpop.permute.xlu0 %1754
  %1756 = vrot.lane.b32.xlu0 %v374, 9
  %v1757 = vpop.permute.xlu0 %1756
  %1758 = vrot.lane.b32.xlu0 %v375, 9
  %v1759 = vpop.permute.xlu0 %1758
  %1760 = vrot.lane.b32.xlu0 %v376, 9
  %v1761 = vpop.permute.xlu0 %1760
  %1762 = vrot.lane.b32.xlu0 %v377, 9
  %v1763 = vpop.permute.xlu0 %1762
  %1764 = vrot.lane.b32.xlu0 %v378, 9
  %v1765 = vpop.permute.xlu0 %1764
  %1766 = vrot.lane.b32.xlu0 %v379, 9
  %v1767 = vpop.permute.xlu0 %1766
  %1768 = vrot.lane.b32.xlu0 %v380, 9
  %v1769 = vpop.permute.xlu0 %1768
  %1770 = vrot.lane.b32.xlu0 %v381, 9
  %v1771 = vpop.permute.xlu0 %1770
  %1772 = vrot.lane.b32.xlu0 %v382, 9
  %v1773 = vpop.permute.xlu0 %1772
  %1774 = vrot.lane.b32.xlu0 %v383, 9
  %v1775 = vpop.permute.xlu0 %1774
  %1776 = vrot.lane.b32.xlu0 %v384, 9
  %v1777 = vpop.permute.xlu0 %1776
  %1778 = vrot.lane.b32.xlu0 %v385, 9
  %v1779 = vpop.permute.xlu0 %1778
  %1780 = vrot.lane.b32.xlu0 %v386, 9
  %v1781 = vpop.permute.xlu0 %1780
  %1782 = vrot.lane.b32.xlu0 %v387, 9
  %v1783 = vpop.permute.xlu0 %1782
  %1784 = vrot.lane.b32.xlu0 %v388, 9
  %v1785 = vpop.permute.xlu0 %1784
  %1786 = vrot.lane.b32.xlu0 %v389, 9
  %v1787 = vpop.permute.xlu0 %1786
  %1788 = vrot.lane.b32.xlu0 %v390, 9
  %v1789 = vpop.permute.xlu0 %1788
  %1790 = vrot.lane.b32.xlu0 %v391, 9
  %v1791 = vpop.permute.xlu0 %1790
  %1792 = vrot.lane.b32.xlu0 %v392, 9
  %v1793 = vpop.permute.xlu0 %1792
  %1794 = vrot.lane.b32.xlu0 %v393, 9
  %v1795 = vpop.permute.xlu0 %1794
  %1796 = vrot.lane.b32.xlu0 %v394, 9
  %v1797 = vpop.permute.xlu0 %1796
  %1798 = vrot.lane.b32.xlu0 %v395, 9
  %v1799 = vpop.permute.xlu0 %1798
  %1800 = vrot.lane.b32.xlu0 %v396, 9
  %v1801 = vpop.permute.xlu0 %1800
  %1802 = vrot.lane.b32.xlu0 %v397, 9
  %v1803 = vpop.permute.xlu0 %1802
  %1804 = vrot.lane.b32.xlu0 %v398, 9
  %v1805 = vpop.permute.xlu0 %1804
  %1806 = vrot.lane.b32.xlu0 %v399, 9
  %v1807 = vpop.permute.xlu0 %1806
  %1808 = vrot.lane.b32.xlu0 %v400, 9
  %v1809 = vpop.permute.xlu0 %1808
  %1810 = vrot.lane.b32.xlu0 %v401, 9
  %v1811 = vpop.permute.xlu0 %1810
  %1812 = vrot.lane.b32.xlu0 %v402, 9
  %v1813 = vpop.permute.xlu0 %1812
  %v1910 = vrot.slane %v339, 1
  %v1911 = vrot.slane %v340, 1
  %v1912 = vsel %vm884, %v1910, %v1911
  %v1913 = vrot.slane %v435, 1
  %v1914 = vsel %vm884, %v1911, %v1913
  %v1915 = vrot.slane %v341, 1
  %v1916 = vrot.slane %v342, 1
  %v1917 = vsel %vm884, %v1915, %v1916
  %v1918 = vrot.slane %v436, 1
  %v1919 = vsel %vm884, %v1916, %v1918
  %v1920 = vrot.slane %v343, 1
  %v1921 = vrot.slane %v344, 1
  %v1922 = vsel %vm884, %v1920, %v1921
  %v1923 = vrot.slane %v437, 1
  %v1924 = vsel %vm884, %v1921, %v1923
  %v1925 = vrot.slane %v345, 1
  %v1926 = vrot.slane %v346, 1
  %v1927 = vsel %vm884, %v1925, %v1926
  %v1928 = vrot.slane %v438, 1
  %v1929 = vsel %vm884, %v1926, %v1928
  %v1930 = vrot.slane %v347, 1
  %v1931 = vrot.slane %v348, 1
  %v1932 = vsel %vm884, %v1930, %v1931
  %v1933 = vrot.slane %v439, 1
  %v1934 = vsel %vm884, %v1931, %v1933
  %v1935 = vrot.slane %v349, 1
  %v1936 = vrot.slane %v350, 1
  %v1937 = vsel %vm884, %v1935, %v1936
  %v1938 = vrot.slane %v440, 1
  %v1939 = vsel %vm884, %v1936, %v1938
  %v1940 = vrot.slane %v351, 1
  %v1941 = vrot.slane %v352, 1
  %v1942 = vsel %vm884, %v1940, %v1941
  %v1943 = vrot.slane %v441, 1
  %v1944 = vsel %vm884, %v1941, %v1943
  %v1945 = vrot.slane %v353, 1
  %v1946 = vrot.slane %v354, 1
  %v1947 = vsel %vm884, %v1945, %v1946
  %v1948 = vrot.slane %v442, 1
  %v1949 = vsel %vm884, %v1946, %v1948
  %v1950 = vrot.slane %v355, 1
  %v1951 = vrot.slane %v356, 1
  %v1952 = vsel %vm884, %v1950, %v1951
  %v1953 = vrot.slane %v443, 1
  %v1954 = vsel %vm884, %v1951, %v1953
  %v1955 = vrot.slane %v357, 1
  %v1956 = vrot.slane %v358, 1
  %v1957 = vsel %vm884, %v1955, %v1956
  %v1958 = vrot.slane %v444, 1
  %v1959 = vsel %vm884, %v1956, %v1958
  %v1960 = vrot.slane %v359, 1
  %v1961 = vrot.slane %v360, 1
  %v1962 = vsel %vm884, %v1960, %v1961
  %v1963 = vrot.slane %v445, 1
  %v1964 = vsel %vm884, %v1961, %v1963
  %v1965 = vrot.slane %v361, 1
  %v1966 = vrot.slane %v362, 1
  %v1967 = vsel %vm884, %v1965, %v1966
  %v1968 = vrot.slane %v446, 1
  %v1969 = vsel %vm884, %v1966, %v1968
  %v1970 = vrot.slane %v363, 1
  %v1971 = vrot.slane %v364, 1
  %v1972 = vsel %vm884, %v1970, %v1971
  %v1973 = vrot.slane %v447, 1
  %v1974 = vsel %vm884, %v1971, %v1973
  %v1975 = vrot.slane %v365, 1
  %v1976 = vrot.slane %v366, 1
  %v1977 = vsel %vm884, %v1975, %v1976
  %v1978 = vrot.slane %v448, 1
  %v1979 = vsel %vm884, %v1976, %v1978
  %v1980 = vrot.slane %v367, 1
  %v1981 = vrot.slane %v368, 1
  %v1982 = vsel %vm884, %v1980, %v1981
  %v1983 = vrot.slane %v449, 1
  %v1984 = vsel %vm884, %v1981, %v1983
  %v1985 = vrot.slane %v369, 1
  %v1986 = vrot.slane %v370, 1
  %v1987 = vsel %vm884, %v1985, %v1986
  %v1988 = vrot.slane %v450, 1
  %v1989 = vsel %vm884, %v1986, %v1988
  %v1990 = vrot.slane %v371, 1
  %v1991 = vrot.slane %v372, 1
  %v1992 = vsel %vm884, %v1990, %v1991
  %v1993 = vrot.slane %v451, 1
  %v1994 = vsel %vm884, %v1991, %v1993
  %v1995 = vrot.slane %v373, 1
  %v1996 = vrot.slane %v374, 1
  %v1997 = vsel %vm884, %v1995, %v1996
  %v1998 = vrot.slane %v452, 1
  %v1999 = vsel %vm884, %v1996, %v1998
  %v2000 = vrot.slane %v375, 1
  %v2001 = vrot.slane %v376, 1
  %v2002 = vsel %vm884, %v2000, %v2001
  %v2003 = vrot.slane %v453, 1
  %v2004 = vsel %vm884, %v2001, %v2003
  %v2005 = vrot.slane %v377, 1
  %v2006 = vrot.slane %v378, 1
  %v2007 = vsel %vm884, %v2005, %v2006
  %v2008 = vrot.slane %v454, 1
  %v2009 = vsel %vm884, %v2006, %v2008
  %v2010 = vrot.slane %v379, 1
  %v2011 = vrot.slane %v380, 1
  %v2012 = vsel %vm884, %v2010, %v2011
  %v2013 = vrot.slane %v455, 1
  %v2014 = vsel %vm884, %v2011, %v2013
  %v2015 = vrot.slane %v381, 1
  %v2016 = vrot.slane %v382, 1
  %v2017 = vsel %vm884, %v2015, %v2016
  %v2018 = vrot.slane %v456, 1
  %v2019 = vsel %vm884, %v2016, %v2018
  %v2020 = vrot.slane %v383, 1
  %v2021 = vrot.slane %v384, 1
  %v2022 = vsel %vm884, %v2020, %v2021
  %v2023 = vrot.slane %v457, 1
  %v2024 = vsel %vm884, %v2021, %v2023
  %v2025 = vrot.slane %v385, 1
  %v2026 = vrot.slane %v386, 1
  %v2027 = vsel %vm884, %v2025, %v2026
  %v2028 = vrot.slane %v458, 1
  %v2029 = vsel %vm884, %v2026, %v2028
  %v2030 = vrot.slane %v387, 1
  %v2031 = vrot.slane %v388, 1
  %v2032 = vsel %vm884, %v2030, %v2031
  %v2033 = vrot.slane %v459, 1
  %v2034 = vsel %vm884, %v2031, %v2033
  %v2035 = vrot.slane %v389, 1
  %v2036 = vrot.slane %v390, 1
  %v2037 = vsel %vm884, %v2035, %v2036
  %v2038 = vrot.slane %v460, 1
  %v2039 = vsel %vm884, %v2036, %v2038
  %v2040 = vrot.slane %v391, 1
  %v2041 = vrot.slane %v392, 1
  %v2042 = vsel %vm884, %v2040, %v2041
  %v2043 = vrot.slane %v461, 1
  %v2044 = vsel %vm884, %v2041, %v2043
  %v2045 = vrot.slane %v393, 1
  %v2046 = vrot.slane %v394, 1
  %v2047 = vsel %vm884, %v2045, %v2046
  %v2048 = vrot.slane %v462, 1
  %v2049 = vsel %vm884, %v2046, %v2048
  %v2050 = vrot.slane %v395, 1
  %v2051 = vrot.slane %v396, 1
  %v2052 = vsel %vm884, %v2050, %v2051
  %v2053 = vrot.slane %v463, 1
  %v2054 = vsel %vm884, %v2051, %v2053
  %v2055 = vrot.slane %v397, 1
  %v2056 = vrot.slane %v398, 1
  %v2057 = vsel %vm884, %v2055, %v2056
  %v2058 = vrot.slane %v464, 1
  %v2059 = vsel %vm884, %v2056, %v2058
  %v2060 = vrot.slane %v399, 1
  %v2061 = vrot.slane %v400, 1
  %v2062 = vsel %vm884, %v2060, %v2061
  %v2063 = vrot.slane %v465, 1
  %v2064 = vsel %vm884, %v2061, %v2063
  %v2065 = vrot.slane %v401, 1
  %v2066 = vrot.slane %v402, 1
  %v2067 = vsel %vm884, %v2065, %v2066
  %v2068 = vrot.slane %v466, 1
  %v2069 = vsel %vm884, %v2066, %v2068
  %2070 = vrot.lane.b32.xlu0 %v1912, 12
  %v2071 = vpop.permute.xlu0 %2070
  %2072 = vrot.lane.b32.xlu0 %v1914, 12
  %v2073 = vpop.permute.xlu0 %2072
  %2074 = vrot.lane.b32.xlu0 %v1917, 12
  %v2075 = vpop.permute.xlu0 %2074
  %2076 = vrot.lane.b32.xlu0 %v1919, 12
  %v2077 = vpop.permute.xlu0 %2076
  %2078 = vrot.lane.b32.xlu0 %v1922, 12
  %v2079 = vpop.permute.xlu0 %2078
  %2080 = vrot.lane.b32.xlu0 %v1924, 12
  %v2081 = vpop.permute.xlu0 %2080
  %2082 = vrot.lane.b32.xlu0 %v1927, 12
  %v2083 = vpop.permute.xlu0 %2082
  %2084 = vrot.lane.b32.xlu0 %v1929, 12
  %v2085 = vpop.permute.xlu0 %2084
  %2086 = vrot.lane.b32.xlu0 %v1932, 12
  %v2087 = vpop.permute.xlu0 %2086
  %2088 = vrot.lane.b32.xlu0 %v1934, 12
  %v2089 = vpop.permute.xlu0 %2088
  %2090 = vrot.lane.b32.xlu0 %v1937, 12
  %v2091 = vpop.permute.xlu0 %2090
  %2092 = vrot.lane.b32.xlu0 %v1939, 12
  %v2093 = vpop.permute.xlu0 %2092
  %2094 = vrot.lane.b32.xlu0 %v1942, 12
  %v2095 = vpop.permute.xlu0 %2094
  %2096 = vrot.lane.b32.xlu0 %v1944, 12
  %v2097 = vpop.permute.xlu0 %2096
  %2098 = vrot.lane.b32.xlu0 %v1947, 12
  %v2099 = vpop.permute.xlu0 %2098
  %2100 = vrot.lane.b32.xlu0 %v1949, 12
  %v2101 = vpop.permute.xlu0 %2100
  %2102 = vrot.lane.b32.xlu0 %v1952, 12
  %v2103 = vpop.permute.xlu0 %2102
  %2104 = vrot.lane.b32.xlu0 %v1954, 12
  %v2105 = vpop.permute.xlu0 %2104
  %2106 = vrot.lane.b32.xlu0 %v1957, 12
  %v2107 = vpop.permute.xlu0 %2106
  %2108 = vrot.lane.b32.xlu0 %v1959, 12
  %v2109 = vpop.permute.xlu0 %2108
  %2110 = vrot.lane.b32.xlu0 %v1962, 12
  %v2111 = vpop.permute.xlu0 %2110
  %2112 = vrot.lane.b32.xlu0 %v1964, 12
  %v2113 = vpop.permute.xlu0 %2112
  %2114 = vrot.lane.b32.xlu0 %v1967, 12
  %v2115 = vpop.permute.xlu0 %2114
  %2116 = vrot.lane.b32.xlu0 %v1969, 12
  %v2117 = vpop.permute.xlu0 %2116
  %2118 = vrot.lane.b32.xlu0 %v1972, 12
  %v2119 = vpop.permute.xlu0 %2118
  %2120 = vrot.lane.b32.xlu0 %v1974, 12
  %v2121 = vpop.permute.xlu0 %2120
  %2122 = vrot.lane.b32.xlu0 %v1977, 12
  %v2123 = vpop.permute.xlu0 %2122
  %2124 = vrot.lane.b32.xlu0 %v1979, 12
  %v2125 = vpop.permute.xlu0 %2124
  %2126 = vrot.lane.b32.xlu0 %v1982, 12
  %v2127 = vpop.permute.xlu0 %2126
  %2128 = vrot.lane.b32.xlu0 %v1984, 12
  %v2129 = vpop.permute.xlu0 %2128
  %2130 = vrot.lane.b32.xlu0 %v1987, 12
  %v2131 = vpop.permute.xlu0 %2130
  %2132 = vrot.lane.b32.xlu0 %v1989, 12
  %v2133 = vpop.permute.xlu0 %2132
  %2134 = vrot.lane.b32.xlu0 %v1992, 12
  %v2135 = vpop.permute.xlu0 %2134
  %2136 = vrot.lane.b32.xlu0 %v1994, 12
  %v2137 = vpop.permute.xlu0 %2136
  %2138 = vrot.lane.b32.xlu0 %v1997, 12
  %v2139 = vpop.permute.xlu0 %2138
  %2140 = vrot.lane.b32.xlu0 %v1999, 12
  %v2141 = vpop.permute.xlu0 %2140
  %2142 = vrot.lane.b32.xlu0 %v2002, 12
  %v2143 = vpop.permute.xlu0 %2142
  %2144 = vrot.lane.b32.xlu0 %v2004, 12
  %v2145 = vpop.permute.xlu0 %2144
  %2146 = vrot.lane.b32.xlu0 %v2007, 12
  %v2147 = vpop.permute.xlu0 %2146
  %2148 = vrot.lane.b32.xlu0 %v2009, 12
  %v2149 = vpop.permute.xlu0 %2148
  %2150 = vrot.lane.b32.xlu0 %v2012, 12
  %v2151 = vpop.permute.xlu0 %2150
  %2152 = vrot.lane.b32.xlu0 %v2014, 12
  %v2153 = vpop.permute.xlu0 %2152
  %2154 = vrot.lane.b32.xlu0 %v2017, 12
  %v2155 = vpop.permute.xlu0 %2154
  %2156 = vrot.lane.b32.xlu0 %v2019, 12
  %v2157 = vpop.permute.xlu0 %2156
  %2158 = vrot.lane.b32.xlu0 %v2022, 12
  %v2159 = vpop.permute.xlu0 %2158
  %2160 = vrot.lane.b32.xlu0 %v2024, 12
  %v2161 = vpop.permute.xlu0 %2160
  %2162 = vrot.lane.b32.xlu0 %v2027, 12
  %v2163 = vpop.permute.xlu0 %2162
  %2164 = vrot.lane.b32.xlu0 %v2029, 12
  %v2165 = vpop.permute.xlu0 %2164
  %2166 = vrot.lane.b32.xlu0 %v2032, 12
  %v2167 = vpop.permute.xlu0 %2166
  %2168 = vrot.lane.b32.xlu0 %v2034, 12
  %v2169 = vpop.permute.xlu0 %2168
  %2170 = vrot.lane.b32.xlu0 %v2037, 12
  %v2171 = vpop.permute.xlu0 %2170
  %2172 = vrot.lane.b32.xlu0 %v2039, 12
  %v2173 = vpop.permute.xlu0 %2172
  %2174 = vrot.lane.b32.xlu0 %v2042, 12
  %v2175 = vpop.permute.xlu0 %2174
  %2176 = vrot.lane.b32.xlu0 %v2044, 12
  %v2177 = vpop.permute.xlu0 %2176
  %2178 = vrot.lane.b32.xlu0 %v2047, 12
  %v2179 = vpop.permute.xlu0 %2178
  %2180 = vrot.lane.b32.xlu0 %v2049, 12
  %v2181 = vpop.permute.xlu0 %2180
  %2182 = vrot.lane.b32.xlu0 %v2052, 12
  %v2183 = vpop.permute.xlu0 %2182
  %2184 = vrot.lane.b32.xlu0 %v2054, 12
  %v2185 = vpop.permute.xlu0 %2184
  %2186 = vrot.lane.b32.xlu0 %v2057, 12
  %v2187 = vpop.permute.xlu0 %2186
  %2188 = vrot.lane.b32.xlu0 %v2059, 12
  %v2189 = vpop.permute.xlu0 %2188
  %2190 = vrot.lane.b32.xlu0 %v2062, 12
  %v2191 = vpop.permute.xlu0 %2190
  %2192 = vrot.lane.b32.xlu0 %v2064, 12
  %v2193 = vpop.permute.xlu0 %2192
  %2194 = vrot.lane.b32.xlu0 %v2067, 12
  %v2195 = vpop.permute.xlu0 %2194
  %2196 = vrot.lane.b32.xlu0 %v2069, 12
  %v2197 = vpop.permute.xlu0 %2196
  %v2294 = vrot.slane %v499, 2
  %v2295 = vrot.slane %v340, 2
  %v2296 = vsel %vm1269, %v2294, %v2295
  %v2297 = vrot.slane %v435, 2
  %v2298 = vsel %vm1269, %v2295, %v2297
  %v2299 = vrot.slane %v500, 2
  %v2300 = vrot.slane %v342, 2
  %v2301 = vsel %vm1269, %v2299, %v2300
  %v2302 = vrot.slane %v436, 2
  %v2303 = vsel %vm1269, %v2300, %v2302
  %v2304 = vrot.slane %v501, 2
  %v2305 = vrot.slane %v344, 2
  %v2306 = vsel %vm1269, %v2304, %v2305
  %v2307 = vrot.slane %v437, 2
  %v2308 = vsel %vm1269, %v2305, %v2307
  %v2309 = vrot.slane %v502, 2
  %v2310 = vrot.slane %v346, 2
  %v2311 = vsel %vm1269, %v2309, %v2310
  %v2312 = vrot.slane %v438, 2
  %v2313 = vsel %vm1269, %v2310, %v2312
  %v2314 = vrot.slane %v503, 2
  %v2315 = vrot.slane %v348, 2
  %v2316 = vsel %vm1269, %v2314, %v2315
  %v2317 = vrot.slane %v439, 2
  %v2318 = vsel %vm1269, %v2315, %v2317
  %v2319 = vrot.slane %v504, 2
  %v2320 = vrot.slane %v350, 2
  %v2321 = vsel %vm1269, %v2319, %v2320
  %v2322 = vrot.slane %v440, 2
  %v2323 = vsel %vm1269, %v2320, %v2322
  %v2324 = vrot.slane %v505, 2
  %v2325 = vrot.slane %v352, 2
  %v2326 = vsel %vm1269, %v2324, %v2325
  %v2327 = vrot.slane %v441, 2
  %v2328 = vsel %vm1269, %v2325, %v2327
  %v2329 = vrot.slane %v506, 2
  %v2330 = vrot.slane %v354, 2
  %v2331 = vsel %vm1269, %v2329, %v2330
  %v2332 = vrot.slane %v442, 2
  %v2333 = vsel %vm1269, %v2330, %v2332
  %v2334 = vrot.slane %v507, 2
  %v2335 = vrot.slane %v356, 2
  %v2336 = vsel %vm1269, %v2334, %v2335
  %v2337 = vrot.slane %v443, 2
  %v2338 = vsel %vm1269, %v2335, %v2337
  %v2339 = vrot.slane %v508, 2
  %v2340 = vrot.slane %v358, 2
  %v2341 = vsel %vm1269, %v2339, %v2340
  %v2342 = vrot.slane %v444, 2
  %v2343 = vsel %vm1269, %v2340, %v2342
  %v2344 = vrot.slane %v509, 2
  %v2345 = vrot.slane %v360, 2
  %v2346 = vsel %vm1269, %v2344, %v2345
  %v2347 = vrot.slane %v445, 2
  %v2348 = vsel %vm1269, %v2345, %v2347
  %v2349 = vrot.slane %v510, 2
  %v2350 = vrot.slane %v362, 2
  %v2351 = vsel %vm1269, %v2349, %v2350
  %v2352 = vrot.slane %v446, 2
  %v2353 = vsel %vm1269, %v2350, %v2352
  %v2354 = vrot.slane %v511, 2
  %v2355 = vrot.slane %v364, 2
  %v2356 = vsel %vm1269, %v2354, %v2355
  %v2357 = vrot.slane %v447, 2
  %v2358 = vsel %vm1269, %v2355, %v2357
  %v2359 = vrot.slane %v512, 2
  %v2360 = vrot.slane %v366, 2
  %v2361 = vsel %vm1269, %v2359, %v2360
  %v2362 = vrot.slane %v448, 2
  %v2363 = vsel %vm1269, %v2360, %v2362
  %v2364 = vrot.slane %v513, 2
  %v2365 = vrot.slane %v368, 2
  %v2366 = vsel %vm1269, %v2364, %v2365
  %v2367 = vrot.slane %v449, 2
  %v2368 = vsel %vm1269, %v2365, %v2367
  %v2369 = vrot.slane %v514, 2
  %v2370 = vrot.slane %v370, 2
  %v2371 = vsel %vm1269, %v2369, %v2370
  %v2372 = vrot.slane %v450, 2
  %v2373 = vsel %vm1269, %v2370, %v2372
  %v2374 = vrot.slane %v515, 2
  %v2375 = vrot.slane %v372, 2
  %v2376 = vsel %vm1269, %v2374, %v2375
  %v2377 = vrot.slane %v451, 2
  %v2378 = vsel %vm1269, %v2375, %v2377
  %v2379 = vrot.slane %v516, 2
  %v2380 = vrot.slane %v374, 2
  %v2381 = vsel %vm1269, %v2379, %v2380
  %v2382 = vrot.slane %v452, 2
  %v2383 = vsel %vm1269, %v2380, %v2382
  %v2384 = vrot.slane %v517, 2
  %v2385 = vrot.slane %v376, 2
  %v2386 = vsel %vm1269, %v2384, %v2385
  %v2387 = vrot.slane %v453, 2
  %v2388 = vsel %vm1269, %v2385, %v2387
  %v2389 = vrot.slane %v518, 2
  %v2390 = vrot.slane %v378, 2
  %v2391 = vsel %vm1269, %v2389, %v2390
  %v2392 = vrot.slane %v454, 2
  %v2393 = vsel %vm1269, %v2390, %v2392
  %v2394 = vrot.slane %v519, 2
  %v2395 = vrot.slane %v380, 2
  %v2396 = vsel %vm1269, %v2394, %v2395
  %v2397 = vrot.slane %v455, 2
  %v2398 = vsel %vm1269, %v2395, %v2397
  %v2399 = vrot.slane %v520, 2
  %v2400 = vrot.slane %v382, 2
  %v2401 = vsel %vm1269, %v2399, %v2400
  %v2402 = vrot.slane %v456, 2
  %v2403 = vsel %vm1269, %v2400, %v2402
  %v2404 = vrot.slane %v521, 2
  %v2405 = vrot.slane %v384, 2
  %v2406 = vsel %vm1269, %v2404, %v2405
  %v2407 = vrot.slane %v457, 2
  %v2408 = vsel %vm1269, %v2405, %v2407
  %v2409 = vrot.slane %v522, 2
  %v2410 = vrot.slane %v386, 2
  %v2411 = vsel %vm1269, %v2409, %v2410
  %v2412 = vrot.slane %v458, 2
  %v2413 = vsel %vm1269, %v2410, %v2412
  %v2414 = vrot.slane %v523, 2
  %v2415 = vrot.slane %v388, 2
  %v2416 = vsel %vm1269, %v2414, %v2415
  %v2417 = vrot.slane %v459, 2
  %v2418 = vsel %vm1269, %v2415, %v2417
  %v2419 = vrot.slane %v524, 2
  %v2420 = vrot.slane %v390, 2
  %v2421 = vsel %vm1269, %v2419, %v2420
  %v2422 = vrot.slane %v460, 2
  %v2423 = vsel %vm1269, %v2420, %v2422
  %v2424 = vrot.slane %v525, 2
  %v2425 = vrot.slane %v392, 2
  %v2426 = vsel %vm1269, %v2424, %v2425
  %v2427 = vrot.slane %v461, 2
  %v2428 = vsel %vm1269, %v2425, %v2427
  %v2429 = vrot.slane %v526, 2
  %v2430 = vrot.slane %v394, 2
  %v2431 = vsel %vm1269, %v2429, %v2430
  %v2432 = vrot.slane %v462, 2
  %v2433 = vsel %vm1269, %v2430, %v2432
  %v2434 = vrot.slane %v527, 2
  %v2435 = vrot.slane %v396, 2
  %v2436 = vsel %vm1269, %v2434, %v2435
  %v2437 = vrot.slane %v463, 2
  %v2438 = vsel %vm1269, %v2435, %v2437
  %v2439 = vrot.slane %v528, 2
  %v2440 = vrot.slane %v398, 2
  %v2441 = vsel %vm1269, %v2439, %v2440
  %v2442 = vrot.slane %v464, 2
  %v2443 = vsel %vm1269, %v2440, %v2442
  %v2444 = vrot.slane %v529, 2
  %v2445 = vrot.slane %v400, 2
  %v2446 = vsel %vm1269, %v2444, %v2445
  %v2447 = vrot.slane %v465, 2
  %v2448 = vsel %vm1269, %v2445, %v2447
  %v2449 = vrot.slane %v530, 2
  %v2450 = vrot.slane %v402, 2
  %v2451 = vsel %vm1269, %v2449, %v2450
  %v2452 = vrot.slane %v466, 2
  %v2453 = vsel %vm1269, %v2450, %v2452
  %2454 = vrot.lane.b32.xlu0 %v2296, 15
  %v2455 = vpop.permute.xlu0 %2454
  %2456 = vrot.lane.b32.xlu0 %v2298, 15
  %v2457 = vpop.permute.xlu0 %2456
  %2458 = vrot.lane.b32.xlu0 %v2301, 15
  %v2459 = vpop.permute.xlu0 %2458
  %2460 = vrot.lane.b32.xlu0 %v2303, 15
  %v2461 = vpop.permute.xlu0 %2460
  %2462 = vrot.lane.b32.xlu0 %v2306, 15
  %v2463 = vpop.permute.xlu0 %2462
  %2464 = vrot.lane.b32.xlu0 %v2308, 15
  %v2465 = vpop.permute.xlu0 %2464
  %2466 = vrot.lane.b32.xlu0 %v2311, 15
  %v2467 = vpop.permute.xlu0 %2466
  %2468 = vrot.lane.b32.xlu0 %v2313, 15
  %v2469 = vpop.permute.xlu0 %2468
  %2470 = vrot.lane.b32.xlu0 %v2316, 15
  %v2471 = vpop.permute.xlu0 %2470
  %2472 = vrot.lane.b32.xlu0 %v2318, 15
  %v2473 = vpop.permute.xlu0 %2472
  %2474 = vrot.lane.b32.xlu0 %v2321, 15
  %v2475 = vpop.permute.xlu0 %2474
  %2476 = vrot.lane.b32.xlu0 %v2323, 15
  %v2477 = vpop.permute.xlu0 %2476
  %2478 = vrot.lane.b32.xlu0 %v2326, 15
  %v2479 = vpop.permute.xlu0 %2478
  %2480 = vrot.lane.b32.xlu0 %v2328, 15
  %v2481 = vpop.permute.xlu0 %2480
  %2482 = vrot.lane.b32.xlu0 %v2331, 15
  %v2483 = vpop.permute.xlu0 %2482
  %2484 = vrot.lane.b32.xlu0 %v2333, 15
  %v2485 = vpop.permute.xlu0 %2484
  %2486 = vrot.lane.b32.xlu0 %v2336, 15
  %v2487 = vpop.permute.xlu0 %2486
  %2488 = vrot.lane.b32.xlu0 %v2338, 15
  %v2489 = vpop.permute.xlu0 %2488
  %2490 = vrot.lane.b32.xlu0 %v2341, 15
  %v2491 = vpop.permute.xlu0 %2490
  %2492 = vrot.lane.b32.xlu0 %v2343, 15
  %v2493 = vpop.permute.xlu0 %2492
  %2494 = vrot.lane.b32.xlu0 %v2346, 15
  %v2495 = vpop.permute.xlu0 %2494
  %2496 = vrot.lane.b32.xlu0 %v2348, 15
  %v2497 = vpop.permute.xlu0 %2496
  %2498 = vrot.lane.b32.xlu0 %v2351, 15
  %v2499 = vpop.permute.xlu0 %2498
  %2500 = vrot.lane.b32.xlu0 %v2353, 15
  %v2501 = vpop.permute.xlu0 %2500
  %2502 = vrot.lane.b32.xlu0 %v2356, 15
  %v2503 = vpop.permute.xlu0 %2502
  %2504 = vrot.lane.b32.xlu0 %v2358, 15
  %v2505 = vpop.permute.xlu0 %2504
  %2506 = vrot.lane.b32.xlu0 %v2361, 15
  %v2507 = vpop.permute.xlu0 %2506
  %2508 = vrot.lane.b32.xlu0 %v2363, 15
  %v2509 = vpop.permute.xlu0 %2508
  %2510 = vrot.lane.b32.xlu0 %v2366, 15
  %v2511 = vpop.permute.xlu0 %2510
  %2512 = vrot.lane.b32.xlu0 %v2368, 15
  %v2513 = vpop.permute.xlu0 %2512
  %2514 = vrot.lane.b32.xlu0 %v2371, 15
  %v2515 = vpop.permute.xlu0 %2514
  %2516 = vrot.lane.b32.xlu0 %v2373, 15
  %v2517 = vpop.permute.xlu0 %2516
  %2518 = vrot.lane.b32.xlu0 %v2376, 15
  %v2519 = vpop.permute.xlu0 %2518
  %2520 = vrot.lane.b32.xlu0 %v2378, 15
  %v2521 = vpop.permute.xlu0 %2520
  %2522 = vrot.lane.b32.xlu0 %v2381, 15
  %v2523 = vpop.permute.xlu0 %2522
  %2524 = vrot.lane.b32.xlu0 %v2383, 15
  %v2525 = vpop.permute.xlu0 %2524
  %2526 = vrot.lane.b32.xlu0 %v2386, 15
  %v2527 = vpop.permute.xlu0 %2526
  %2528 = vrot.lane.b32.xlu0 %v2388, 15
  %v2529 = vpop.permute.xlu0 %2528
  %2530 = vrot.lane.b32.xlu0 %v2391, 15
  %v2531 = vpop.permute.xlu0 %2530
  %2532 = vrot.lane.b32.xlu0 %v2393, 15
  %v2533 = vpop.permute.xlu0 %2532
  %2534 = vrot.lane.b32.xlu0 %v2396, 15
  %v2535 = vpop.permute.xlu0 %2534
  %2536 = vrot.lane.b32.xlu0 %v2398, 15
  %v2537 = vpop.permute.xlu0 %2536
  %2538 = vrot.lane.b32.xlu0 %v2401, 15
  %v2539 = vpop.permute.xlu0 %2538
  %2540 = vrot.lane.b32.xlu0 %v2403, 15
  %v2541 = vpop.permute.xlu0 %2540
  %2542 = vrot.lane.b32.xlu0 %v2406, 15
  %v2543 = vpop.permute.xlu0 %2542
  %2544 = vrot.lane.b32.xlu0 %v2408, 15
  %v2545 = vpop.permute.xlu0 %2544
  %2546 = vrot.lane.b32.xlu0 %v2411, 15
  %v2547 = vpop.permute.xlu0 %2546
  %2548 = vrot.lane.b32.xlu0 %v2413, 15
  %v2549 = vpop.permute.xlu0 %2548
  %2550 = vrot.lane.b32.xlu0 %v2416, 15
  %v2551 = vpop.permute.xlu0 %2550
  %2552 = vrot.lane.b32.xlu0 %v2418, 15
  %v2553 = vpop.permute.xlu0 %2552
  %2554 = vrot.lane.b32.xlu0 %v2421, 15
  %v2555 = vpop.permute.xlu0 %2554
  %2556 = vrot.lane.b32.xlu0 %v2423, 15
  %v2557 = vpop.permute.xlu0 %2556
  %2558 = vrot.lane.b32.xlu0 %v2426, 15
  %v2559 = vpop.permute.xlu0 %2558
  %2560 = vrot.lane.b32.xlu0 %v2428, 15
  %v2561 = vpop.permute.xlu0 %2560
  %2562 = vrot.lane.b32.xlu0 %v2431, 15
  %v2563 = vpop.permute.xlu0 %2562
  %2564 = vrot.lane.b32.xlu0 %v2433, 15
  %v2565 = vpop.permute.xlu0 %2564
  %2566 = vrot.lane.b32.xlu0 %v2436, 15
  %v2567 = vpop.permute.xlu0 %2566
  %2568 = vrot.lane.b32.xlu0 %v2438, 15
  %v2569 = vpop.permute.xlu0 %2568
  %2570 = vrot.lane.b32.xlu0 %v2441, 15
  %v2571 = vpop.permute.xlu0 %2570
  %2572 = vrot.lane.b32.xlu0 %v2443, 15
  %v2573 = vpop.permute.xlu0 %2572
  %2574 = vrot.lane.b32.xlu0 %v2446, 15
  %v2575 = vpop.permute.xlu0 %2574
  %2576 = vrot.lane.b32.xlu0 %v2448, 15
  %v2577 = vpop.permute.xlu0 %2576
  %2578 = vrot.lane.b32.xlu0 %v2451, 15
  %v2579 = vpop.permute.xlu0 %2578
  %2580 = vrot.lane.b32.xlu0 %v2453, 15
  %v2581 = vpop.permute.xlu0 %2580
  %2710 = vrot.lane.b32.xlu0 %v596, 18
  %v2711 = vpop.permute.xlu0 %2710
  %2712 = vrot.lane.b32.xlu0 %v597, 18
  %v2713 = vpop.permute.xlu0 %2712
  %2714 = vrot.lane.b32.xlu0 %v598, 18
  %v2715 = vpop.permute.xlu0 %2714
  %2716 = vrot.lane.b32.xlu0 %v599, 18
  %v2717 = vpop.permute.xlu0 %2716
  %2718 = vrot.lane.b32.xlu0 %v600, 18
  %v2719 = vpop.permute.xlu0 %2718
  %2720 = vrot.lane.b32.xlu0 %v601, 18
  %v2721 = vpop.permute.xlu0 %2720
  %2722 = vrot.lane.b32.xlu0 %v602, 18
  %v2723 = vpop.permute.xlu0 %2722
  %2724 = vrot.lane.b32.xlu0 %v603, 18
  %v2725 = vpop.permute.xlu0 %2724
  %2726 = vrot.lane.b32.xlu0 %v604, 18
  %v2727 = vpop.permute.xlu0 %2726
  %2728 = vrot.lane.b32.xlu0 %v605, 18
  %v2729 = vpop.permute.xlu0 %2728
  %2730 = vrot.lane.b32.xlu0 %v606, 18
  %v2731 = vpop.permute.xlu0 %2730
  %2732 = vrot.lane.b32.xlu0 %v607, 18
  %v2733 = vpop.permute.xlu0 %2732
  %2734 = vrot.lane.b32.xlu0 %v608, 18
  %v2735 = vpop.permute.xlu0 %2734
  %2736 = vrot.lane.b32.xlu0 %v609, 18
  %v2737 = vpop.permute.xlu0 %2736
  %2738 = vrot.lane.b32.xlu0 %v610, 18
  %v2739 = vpop.permute.xlu0 %2738
  %2740 = vrot.lane.b32.xlu0 %v611, 18
  %v2741 = vpop.permute.xlu0 %2740
  %2742 = vrot.lane.b32.xlu0 %v612, 18
  %v2743 = vpop.permute.xlu0 %2742
  %2744 = vrot.lane.b32.xlu0 %v613, 18
  %v2745 = vpop.permute.xlu0 %2744
  %2746 = vrot.lane.b32.xlu0 %v614, 18
  %v2747 = vpop.permute.xlu0 %2746
  %2748 = vrot.lane.b32.xlu0 %v615, 18
  %v2749 = vpop.permute.xlu0 %2748
  %2750 = vrot.lane.b32.xlu0 %v616, 18
  %v2751 = vpop.permute.xlu0 %2750
  %2752 = vrot.lane.b32.xlu0 %v617, 18
  %v2753 = vpop.permute.xlu0 %2752
  %2754 = vrot.lane.b32.xlu0 %v618, 18
  %v2755 = vpop.permute.xlu0 %2754
  %2756 = vrot.lane.b32.xlu0 %v619, 18
  %v2757 = vpop.permute.xlu0 %2756
  %2758 = vrot.lane.b32.xlu0 %v620, 18
  %v2759 = vpop.permute.xlu0 %2758
  %2760 = vrot.lane.b32.xlu0 %v621, 18
  %v2761 = vpop.permute.xlu0 %2760
  %2762 = vrot.lane.b32.xlu0 %v622, 18
  %v2763 = vpop.permute.xlu0 %2762
  %2764 = vrot.lane.b32.xlu0 %v623, 18
  %v2765 = vpop.permute.xlu0 %2764
  %2766 = vrot.lane.b32.xlu0 %v624, 18
  %v2767 = vpop.permute.xlu0 %2766
  %2768 = vrot.lane.b32.xlu0 %v625, 18
  %v2769 = vpop.permute.xlu0 %2768
  %2770 = vrot.lane.b32.xlu0 %v626, 18
  %v2771 = vpop.permute.xlu0 %2770
  %2772 = vrot.lane.b32.xlu0 %v627, 18
  %v2773 = vpop.permute.xlu0 %2772
  %2774 = vrot.lane.b32.xlu0 %v628, 18
  %v2775 = vpop.permute.xlu0 %2774
  %2776 = vrot.lane.b32.xlu0 %v629, 18
  %v2777 = vpop.permute.xlu0 %2776
  %2778 = vrot.lane.b32.xlu0 %v630, 18
  %v2779 = vpop.permute.xlu0 %2778
  %2780 = vrot.lane.b32.xlu0 %v631, 18
  %v2781 = vpop.permute.xlu0 %2780
  %2782 = vrot.lane.b32.xlu0 %v632, 18
  %v2783 = vpop.permute.xlu0 %2782
  %2784 = vrot.lane.b32.xlu0 %v633, 18
  %v2785 = vpop.permute.xlu0 %2784
  %2786 = vrot.lane.b32.xlu0 %v634, 18
  %v2787 = vpop.permute.xlu0 %2786
  %2788 = vrot.lane.b32.xlu0 %v635, 18
  %v2789 = vpop.permute.xlu0 %2788
  %2790 = vrot.lane.b32.xlu0 %v636, 18
  %v2791 = vpop.permute.xlu0 %2790
  %2792 = vrot.lane.b32.xlu0 %v637, 18
  %v2793 = vpop.permute.xlu0 %2792
  %2794 = vrot.lane.b32.xlu0 %v638, 18
  %v2795 = vpop.permute.xlu0 %2794
  %2796 = vrot.lane.b32.xlu0 %v639, 18
  %v2797 = vpop.permute.xlu0 %2796
  %2798 = vrot.lane.b32.xlu0 %v640, 18
  %v2799 = vpop.permute.xlu0 %2798
  %2800 = vrot.lane.b32.xlu0 %v641, 18
  %v2801 = vpop.permute.xlu0 %2800
  %2802 = vrot.lane.b32.xlu0 %v642, 18
  %v2803 = vpop.permute.xlu0 %2802
  %2804 = vrot.lane.b32.xlu0 %v643, 18
  %v2805 = vpop.permute.xlu0 %2804
  %2806 = vrot.lane.b32.xlu0 %v644, 18
  %v2807 = vpop.permute.xlu0 %2806
  %2808 = vrot.lane.b32.xlu0 %v645, 18
  %v2809 = vpop.permute.xlu0 %2808
  %2810 = vrot.lane.b32.xlu0 %v646, 18
  %v2811 = vpop.permute.xlu0 %2810
  %2812 = vrot.lane.b32.xlu0 %v647, 18
  %v2813 = vpop.permute.xlu0 %2812
  %2814 = vrot.lane.b32.xlu0 %v648, 18
  %v2815 = vpop.permute.xlu0 %2814
  %2816 = vrot.lane.b32.xlu0 %v649, 18
  %v2817 = vpop.permute.xlu0 %2816
  %2818 = vrot.lane.b32.xlu0 %v650, 18
  %v2819 = vpop.permute.xlu0 %2818
  %2820 = vrot.lane.b32.xlu0 %v651, 18
  %v2821 = vpop.permute.xlu0 %2820
  %2822 = vrot.lane.b32.xlu0 %v652, 18
  %v2823 = vpop.permute.xlu0 %2822
  %2824 = vrot.lane.b32.xlu0 %v653, 18
  %v2825 = vpop.permute.xlu0 %2824
  %2826 = vrot.lane.b32.xlu0 %v654, 18
  %v2827 = vpop.permute.xlu0 %2826
  %2828 = vrot.lane.b32.xlu0 %v655, 18
  %v2829 = vpop.permute.xlu0 %2828
  %2830 = vrot.lane.b32.xlu0 %v656, 18
  %v2831 = vpop.permute.xlu0 %2830
  %2832 = vrot.lane.b32.xlu0 %v657, 18
  %v2833 = vpop.permute.xlu0 %2832
  %2834 = vrot.lane.b32.xlu0 %v658, 18
  %v2835 = vpop.permute.xlu0 %2834
  %2836 = vrot.lane.b32.xlu0 %v659, 18
  %v2837 = vpop.permute.xlu0 %2836
  %v2934 = vrot.slane %v596, 1
  %v2935 = vrot.slane %v597, 1
  %v2936 = vsel %vm884, %v2934, %v2935
  %v2937 = vrot.slane %v692, 1
  %v2938 = vsel %vm884, %v2935, %v2937
  %v2939 = vrot.slane %v598, 1
  %v2940 = vrot.slane %v599, 1
  %v2941 = vsel %vm884, %v2939, %v2940
  %v2942 = vrot.slane %v693, 1
  %v2943 = vsel %vm884, %v2940, %v2942
  %v2944 = vrot.slane %v600, 1
  %v2945 = vrot.slane %v601, 1
  %v2946 = vsel %vm884, %v2944, %v2945
  %v2947 = vrot.slane %v694, 1
  %v2948 = vsel %vm884, %v2945, %v2947
  %v2949 = vrot.slane %v602, 1
  %v2950 = vrot.slane %v603, 1
  %v2951 = vsel %vm884, %v2949, %v2950
  %v2952 = vrot.slane %v695, 1
  %v2953 = vsel %vm884, %v2950, %v2952
  %v2954 = vrot.slane %v604, 1
  %v2955 = vrot.slane %v605, 1
  %v2956 = vsel %vm884, %v2954, %v2955
  %v2957 = vrot.slane %v696, 1
  %v2958 = vsel %vm884, %v2955, %v2957
  %v2959 = vrot.slane %v606, 1
  %v2960 = vrot.slane %v607, 1
  %v2961 = vsel %vm884, %v2959, %v2960
  %v2962 = vrot.slane %v697, 1
  %v2963 = vsel %vm884, %v2960, %v2962
  %v2964 = vrot.slane %v608, 1
  %v2965 = vrot.slane %v609, 1
  %v2966 = vsel %vm884, %v2964, %v2965
  %v2967 = vrot.slane %v698, 1
  %v2968 = vsel %vm884, %v2965, %v2967
  %v2969 = vrot.slane %v610, 1
  %v2970 = vrot.slane %v611, 1
  %v2971 = vsel %vm884, %v2969, %v2970
  %v2972 = vrot.slane %v699, 1
  %v2973 = vsel %vm884, %v2970, %v2972
  %v2974 = vrot.slane %v612, 1
  %v2975 = vrot.slane %v613, 1
  %v2976 = vsel %vm884, %v2974, %v2975
  %v2977 = vrot.slane %v700, 1
  %v2978 = vsel %vm884, %v2975, %v2977
  %v2979 = vrot.slane %v614, 1
  %v2980 = vrot.slane %v615, 1
  %v2981 = vsel %vm884, %v2979, %v2980
  %v2982 = vrot.slane %v701, 1
  %v2983 = vsel %vm884, %v2980, %v2982
  %v2984 = vrot.slane %v616, 1
  %v2985 = vrot.slane %v617, 1
  %v2986 = vsel %vm884, %v2984, %v2985
  %v2987 = vrot.slane %v702, 1
  %v2988 = vsel %vm884, %v2985, %v2987
  %v2989 = vrot.slane %v618, 1
  %v2990 = vrot.slane %v619, 1
  %v2991 = vsel %vm884, %v2989, %v2990
  %v2992 = vrot.slane %v703, 1
  %v2993 = vsel %vm884, %v2990, %v2992
  %v2994 = vrot.slane %v620, 1
  %v2995 = vrot.slane %v621, 1
  %v2996 = vsel %vm884, %v2994, %v2995
  %v2997 = vrot.slane %v704, 1
  %v2998 = vsel %vm884, %v2995, %v2997
  %v2999 = vrot.slane %v622, 1
  %v3000 = vrot.slane %v623, 1
  %v3001 = vsel %vm884, %v2999, %v3000
  %v3002 = vrot.slane %v705, 1
  %v3003 = vsel %vm884, %v3000, %v3002
  %v3004 = vrot.slane %v624, 1
  %v3005 = vrot.slane %v625, 1
  %v3006 = vsel %vm884, %v3004, %v3005
  %v3007 = vrot.slane %v706, 1
  %v3008 = vsel %vm884, %v3005, %v3007
  %v3009 = vrot.slane %v626, 1
  %v3010 = vrot.slane %v627, 1
  %v3011 = vsel %vm884, %v3009, %v3010
  %v3012 = vrot.slane %v707, 1
  %v3013 = vsel %vm884, %v3010, %v3012
  %v3014 = vrot.slane %v628, 1
  %v3015 = vrot.slane %v629, 1
  %v3016 = vsel %vm884, %v3014, %v3015
  %v3017 = vrot.slane %v708, 1
  %v3018 = vsel %vm884, %v3015, %v3017
  %v3019 = vrot.slane %v630, 1
  %v3020 = vrot.slane %v631, 1
  %v3021 = vsel %vm884, %v3019, %v3020
  %v3022 = vrot.slane %v709, 1
  %v3023 = vsel %vm884, %v3020, %v3022
  %v3024 = vrot.slane %v632, 1
  %v3025 = vrot.slane %v633, 1
  %v3026 = vsel %vm884, %v3024, %v3025
  %v3027 = vrot.slane %v710, 1
  %v3028 = vsel %vm884, %v3025, %v3027
  %v3029 = vrot.slane %v634, 1
  %v3030 = vrot.slane %v635, 1
  %v3031 = vsel %vm884, %v3029, %v3030
  %v3032 = vrot.slane %v711, 1
  %v3033 = vsel %vm884, %v3030, %v3032
  %v3034 = vrot.slane %v636, 1
  %v3035 = vrot.slane %v637, 1
  %v3036 = vsel %vm884, %v3034, %v3035
  %v3037 = vrot.slane %v712, 1
  %v3038 = vsel %vm884, %v3035, %v3037
  %v3039 = vrot.slane %v638, 1
  %v3040 = vrot.slane %v639, 1
  %v3041 = vsel %vm884, %v3039, %v3040
  %v3042 = vrot.slane %v713, 1
  %v3043 = vsel %vm884, %v3040, %v3042
  %v3044 = vrot.slane %v640, 1
  %v3045 = vrot.slane %v641, 1
  %v3046 = vsel %vm884, %v3044, %v3045
  %v3047 = vrot.slane %v714, 1
  %v3048 = vsel %vm884, %v3045, %v3047
  %v3049 = vrot.slane %v642, 1
  %v3050 = vrot.slane %v643, 1
  %v3051 = vsel %vm884, %v3049, %v3050
  %v3052 = vrot.slane %v715, 1
  %v3053 = vsel %vm884, %v3050, %v3052
  %v3054 = vrot.slane %v644, 1
  %v3055 = vrot.slane %v645, 1
  %v3056 = vsel %vm884, %v3054, %v3055
  %v3057 = vrot.slane %v716, 1
  %v3058 = vsel %vm884, %v3055, %v3057
  %v3059 = vrot.slane %v646, 1
  %v3060 = vrot.slane %v647, 1
  %v3061 = vsel %vm884, %v3059, %v3060
  %v3062 = vrot.slane %v717, 1
  %v3063 = vsel %vm884, %v3060, %v3062
  %v3064 = vrot.slane %v648, 1
  %v3065 = vrot.slane %v649, 1
  %v3066 = vsel %vm884, %v3064, %v3065
  %v3067 = vrot.slane %v718, 1
  %v3068 = vsel %vm884, %v3065, %v3067
  %v3069 = vrot.slane %v650, 1
  %v3070 = vrot.slane %v651, 1
  %v3071 = vsel %vm884, %v3069, %v3070
  %v3072 = vrot.slane %v719, 1
  %v3073 = vsel %vm884, %v3070, %v3072
  %v3074 = vrot.slane %v652, 1
  %v3075 = vrot.slane %v653, 1
  %v3076 = vsel %vm884, %v3074, %v3075
  %v3077 = vrot.slane %v720, 1
  %v3078 = vsel %vm884, %v3075, %v3077
  %v3079 = vrot.slane %v654, 1
  %v3080 = vrot.slane %v655, 1
  %v3081 = vsel %vm884, %v3079, %v3080
  %v3082 = vrot.slane %v721, 1
  %v3083 = vsel %vm884, %v3080, %v3082
  %v3084 = vrot.slane %v656, 1
  %v3085 = vrot.slane %v657, 1
  %v3086 = vsel %vm884, %v3084, %v3085
  %v3087 = vrot.slane %v722, 1
  %v3088 = vsel %vm884, %v3085, %v3087
  %v3089 = vrot.slane %v658, 1
  %v3090 = vrot.slane %v659, 1
  %v3091 = vsel %vm884, %v3089, %v3090
  %v3092 = vrot.slane %v723, 1
  %v3093 = vsel %vm884, %v3090, %v3092
  %3094 = vrot.lane.b32.xlu0 %v2936, 21
  %v3095 = vpop.permute.xlu0 %3094
  %3096 = vrot.lane.b32.xlu0 %v2938, 21
  %v3097 = vpop.permute.xlu0 %3096
  %3098 = vrot.lane.b32.xlu0 %v2941, 21
  %v3099 = vpop.permute.xlu0 %3098
  %3100 = vrot.lane.b32.xlu0 %v2943, 21
  %v3101 = vpop.permute.xlu0 %3100
  %3102 = vrot.lane.b32.xlu0 %v2946, 21
  %v3103 = vpop.permute.xlu0 %3102
  %3104 = vrot.lane.b32.xlu0 %v2948, 21
  %v3105 = vpop.permute.xlu0 %3104
  %3106 = vrot.lane.b32.xlu0 %v2951, 21
  %v3107 = vpop.permute.xlu0 %3106
  %3108 = vrot.lane.b32.xlu0 %v2953, 21
  %v3109 = vpop.permute.xlu0 %3108
  %3110 = vrot.lane.b32.xlu0 %v2956, 21
  %v3111 = vpop.permute.xlu0 %3110
  %3112 = vrot.lane.b32.xlu0 %v2958, 21
  %v3113 = vpop.permute.xlu0 %3112
  %3114 = vrot.lane.b32.xlu0 %v2961, 21
  %v3115 = vpop.permute.xlu0 %3114
  %3116 = vrot.lane.b32.xlu0 %v2963, 21
  %v3117 = vpop.permute.xlu0 %3116
  %3118 = vrot.lane.b32.xlu0 %v2966, 21
  %v3119 = vpop.permute.xlu0 %3118
  %3120 = vrot.lane.b32.xlu0 %v2968, 21
  %v3121 = vpop.permute.xlu0 %3120
  %3122 = vrot.lane.b32.xlu0 %v2971, 21
  %v3123 = vpop.permute.xlu0 %3122
  %3124 = vrot.lane.b32.xlu0 %v2973, 21
  %v3125 = vpop.permute.xlu0 %3124
  %3126 = vrot.lane.b32.xlu0 %v2976, 21
  %v3127 = vpop.permute.xlu0 %3126
  %3128 = vrot.lane.b32.xlu0 %v2978, 21
  %v3129 = vpop.permute.xlu0 %3128
  %3130 = vrot.lane.b32.xlu0 %v2981, 21
  %v3131 = vpop.permute.xlu0 %3130
  %3132 = vrot.lane.b32.xlu0 %v2983, 21
  %v3133 = vpop.permute.xlu0 %3132
  %3134 = vrot.lane.b32.xlu0 %v2986, 21
  %v3135 = vpop.permute.xlu0 %3134
  %3136 = vrot.lane.b32.xlu0 %v2988, 21
  %v3137 = vpop.permute.xlu0 %3136
  %3138 = vrot.lane.b32.xlu0 %v2991, 21
  %v3139 = vpop.permute.xlu0 %3138
  %3140 = vrot.lane.b32.xlu0 %v2993, 21
  %v3141 = vpop.permute.xlu0 %3140
  %3142 = vrot.lane.b32.xlu0 %v2996, 21
  %v3143 = vpop.permute.xlu0 %3142
  %3144 = vrot.lane.b32.xlu0 %v2998, 21
  %v3145 = vpop.permute.xlu0 %3144
  %3146 = vrot.lane.b32.xlu0 %v3001, 21
  %v3147 = vpop.permute.xlu0 %3146
  %3148 = vrot.lane.b32.xlu0 %v3003, 21
  %v3149 = vpop.permute.xlu0 %3148
  %3150 = vrot.lane.b32.xlu0 %v3006, 21
  %v3151 = vpop.permute.xlu0 %3150
  %3152 = vrot.lane.b32.xlu0 %v3008, 21
  %v3153 = vpop.permute.xlu0 %3152
  %3154 = vrot.lane.b32.xlu0 %v3011, 21
  %v3155 = vpop.permute.xlu0 %3154
  %3156 = vrot.lane.b32.xlu0 %v3013, 21
  %v3157 = vpop.permute.xlu0 %3156
  %3158 = vrot.lane.b32.xlu0 %v3016, 21
  %v3159 = vpop.permute.xlu0 %3158
  %3160 = vrot.lane.b32.xlu0 %v3018, 21
  %v3161 = vpop.permute.xlu0 %3160
  %3162 = vrot.lane.b32.xlu0 %v3021, 21
  %v3163 = vpop.permute.xlu0 %3162
  %3164 = vrot.lane.b32.xlu0 %v3023, 21
  %v3165 = vpop.permute.xlu0 %3164
  %3166 = vrot.lane.b32.xlu0 %v3026, 21
  %v3167 = vpop.permute.xlu0 %3166
  %3168 = vrot.lane.b32.xlu0 %v3028, 21
  %v3169 = vpop.permute.xlu0 %3168
  %3170 = vrot.lane.b32.xlu0 %v3031, 21
  %v3171 = vpop.permute.xlu0 %3170
  %3172 = vrot.lane.b32.xlu0 %v3033, 21
  %v3173 = vpop.permute.xlu0 %3172
  %3174 = vrot.lane.b32.xlu0 %v3036, 21
  %v3175 = vpop.permute.xlu0 %3174
  %3176 = vrot.lane.b32.xlu0 %v3038, 21
  %v3177 = vpop.permute.xlu0 %3176
  %3178 = vrot.lane.b32.xlu0 %v3041, 21
  %v3179 = vpop.permute.xlu0 %3178
  %3180 = vrot.lane.b32.xlu0 %v3043, 21
  %v3181 = vpop.permute.xlu0 %3180
  %3182 = vrot.lane.b32.xlu0 %v3046, 21
  %v3183 = vpop.permute.xlu0 %3182
  %3184 = vrot.lane.b32.xlu0 %v3048, 21
  %v3185 = vpop.permute.xlu0 %3184
  %3186 = vrot.lane.b32.xlu0 %v3051, 21
  %v3187 = vpop.permute.xlu0 %3186
  %3188 = vrot.lane.b32.xlu0 %v3053, 21
  %v3189 = vpop.permute.xlu0 %3188
  %3190 = vrot.lane.b32.xlu0 %v3056, 21
  %v3191 = vpop.permute.xlu0 %3190
  %3192 = vrot.lane.b32.xlu0 %v3058, 21
  %v3193 = vpop.permute.xlu0 %3192
  %3194 = vrot.lane.b32.xlu0 %v3061, 21
  %v3195 = vpop.permute.xlu0 %3194
  %3196 = vrot.lane.b32.xlu0 %v3063, 21
  %v3197 = vpop.permute.xlu0 %3196
  %3198 = vrot.lane.b32.xlu0 %v3066, 21
  %v3199 = vpop.permute.xlu0 %3198
  %3200 = vrot.lane.b32.xlu0 %v3068, 21
  %v3201 = vpop.permute.xlu0 %3200
  %3202 = vrot.lane.b32.xlu0 %v3071, 21
  %v3203 = vpop.permute.xlu0 %3202
  %3204 = vrot.lane.b32.xlu0 %v3073, 21
  %v3205 = vpop.permute.xlu0 %3204
  %3206 = vrot.lane.b32.xlu0 %v3076, 21
  %v3207 = vpop.permute.xlu0 %3206
  %3208 = vrot.lane.b32.xlu0 %v3078, 21
  %v3209 = vpop.permute.xlu0 %3208
  %3210 = vrot.lane.b32.xlu0 %v3081, 21
  %v3211 = vpop.permute.xlu0 %3210
  %3212 = vrot.lane.b32.xlu0 %v3083, 21
  %v3213 = vpop.permute.xlu0 %3212
  %3214 = vrot.lane.b32.xlu0 %v3086, 21
  %v3215 = vpop.permute.xlu0 %3214
  %3216 = vrot.lane.b32.xlu0 %v3088, 21
  %v3217 = vpop.permute.xlu0 %3216
  %3218 = vrot.lane.b32.xlu0 %v3091, 21
  %v3219 = vpop.permute.xlu0 %3218
  %3220 = vrot.lane.b32.xlu0 %v3093, 21
  %v3221 = vpop.permute.xlu0 %3220
  %v3318 = vrot.slane %v756, 2
  %v3319 = vrot.slane %v597, 2
  %v3320 = vsel %vm1269, %v3318, %v3319
  %v3321 = vrot.slane %v692, 2
  %v3322 = vsel %vm1269, %v3319, %v3321
  %v3323 = vrot.slane %v757, 2
  %v3324 = vrot.slane %v599, 2
  %v3325 = vsel %vm1269, %v3323, %v3324
  %v3326 = vrot.slane %v693, 2
  %v3327 = vsel %vm1269, %v3324, %v3326
  %v3328 = vrot.slane %v758, 2
  %v3329 = vrot.slane %v601, 2
  %v3330 = vsel %vm1269, %v3328, %v3329
  %v3331 = vrot.slane %v694, 2
  %v3332 = vsel %vm1269, %v3329, %v3331
  %v3333 = vrot.slane %v759, 2
  %v3334 = vrot.slane %v603, 2
  %v3335 = vsel %vm1269, %v3333, %v3334
  %v3336 = vrot.slane %v695, 2
  %v3337 = vsel %vm1269, %v3334, %v3336
  %v3338 = vrot.slane %v760, 2
  %v3339 = vrot.slane %v605, 2
  %v3340 = vsel %vm1269, %v3338, %v3339
  %v3341 = vrot.slane %v696, 2
  %v3342 = vsel %vm1269, %v3339, %v3341
  %v3343 = vrot.slane %v761, 2
  %v3344 = vrot.slane %v607, 2
  %v3345 = vsel %vm1269, %v3343, %v3344
  %v3346 = vrot.slane %v697, 2
  %v3347 = vsel %vm1269, %v3344, %v3346
  %v3348 = vrot.slane %v762, 2
  %v3349 = vrot.slane %v609, 2
  %v3350 = vsel %vm1269, %v3348, %v3349
  %v3351 = vrot.slane %v698, 2
  %v3352 = vsel %vm1269, %v3349, %v3351
  %v3353 = vrot.slane %v763, 2
  %v3354 = vrot.slane %v611, 2
  %v3355 = vsel %vm1269, %v3353, %v3354
  %v3356 = vrot.slane %v699, 2
  %v3357 = vsel %vm1269, %v3354, %v3356
  %v3358 = vrot.slane %v764, 2
  %v3359 = vrot.slane %v613, 2
  %v3360 = vsel %vm1269, %v3358, %v3359
  %v3361 = vrot.slane %v700, 2
  %v3362 = vsel %vm1269, %v3359, %v3361
  %v3363 = vrot.slane %v765, 2
  %v3364 = vrot.slane %v615, 2
  %v3365 = vsel %vm1269, %v3363, %v3364
  %v3366 = vrot.slane %v701, 2
  %v3367 = vsel %vm1269, %v3364, %v3366
  %v3368 = vrot.slane %v766, 2
  %v3369 = vrot.slane %v617, 2
  %v3370 = vsel %vm1269, %v3368, %v3369
  %v3371 = vrot.slane %v702, 2
  %v3372 = vsel %vm1269, %v3369, %v3371
  %v3373 = vrot.slane %v767, 2
  %v3374 = vrot.slane %v619, 2
  %v3375 = vsel %vm1269, %v3373, %v3374
  %v3376 = vrot.slane %v703, 2
  %v3377 = vsel %vm1269, %v3374, %v3376
  %v3378 = vrot.slane %v768, 2
  %v3379 = vrot.slane %v621, 2
  %v3380 = vsel %vm1269, %v3378, %v3379
  %v3381 = vrot.slane %v704, 2
  %v3382 = vsel %vm1269, %v3379, %v3381
  %v3383 = vrot.slane %v769, 2
  %v3384 = vrot.slane %v623, 2
  %v3385 = vsel %vm1269, %v3383, %v3384
  %v3386 = vrot.slane %v705, 2
  %v3387 = vsel %vm1269, %v3384, %v3386
  %v3388 = vrot.slane %v770, 2
  %v3389 = vrot.slane %v625, 2
  %v3390 = vsel %vm1269, %v3388, %v3389
  %v3391 = vrot.slane %v706, 2
  %v3392 = vsel %vm1269, %v3389, %v3391
  %v3393 = vrot.slane %v771, 2
  %v3394 = vrot.slane %v627, 2
  %v3395 = vsel %vm1269, %v3393, %v3394
  %v3396 = vrot.slane %v707, 2
  %v3397 = vsel %vm1269, %v3394, %v3396
  %v3398 = vrot.slane %v772, 2
  %v3399 = vrot.slane %v629, 2
  %v3400 = vsel %vm1269, %v3398, %v3399
  %v3401 = vrot.slane %v708, 2
  %v3402 = vsel %vm1269, %v3399, %v3401
  %v3403 = vrot.slane %v773, 2
  %v3404 = vrot.slane %v631, 2
  %v3405 = vsel %vm1269, %v3403, %v3404
  %v3406 = vrot.slane %v709, 2
  %v3407 = vsel %vm1269, %v3404, %v3406
  %v3408 = vrot.slane %v774, 2
  %v3409 = vrot.slane %v633, 2
  %v3410 = vsel %vm1269, %v3408, %v3409
  %v3411 = vrot.slane %v710, 2
  %v3412 = vsel %vm1269, %v3409, %v3411
  %v3413 = vrot.slane %v775, 2
  %v3414 = vrot.slane %v635, 2
  %v3415 = vsel %vm1269, %v3413, %v3414
  %v3416 = vrot.slane %v711, 2
  %v3417 = vsel %vm1269, %v3414, %v3416
  %v3418 = vrot.slane %v776, 2
  %v3419 = vrot.slane %v637, 2
  %v3420 = vsel %vm1269, %v3418, %v3419
  %v3421 = vrot.slane %v712, 2
  %v3422 = vsel %vm1269, %v3419, %v3421
  %v3423 = vrot.slane %v777, 2
  %v3424 = vrot.slane %v639, 2
  %v3425 = vsel %vm1269, %v3423, %v3424
  %v3426 = vrot.slane %v713, 2
  %v3427 = vsel %vm1269, %v3424, %v3426
  %v3428 = vrot.slane %v778, 2
  %v3429 = vrot.slane %v641, 2
  %v3430 = vsel %vm1269, %v3428, %v3429
  %v3431 = vrot.slane %v714, 2
  %v3432 = vsel %vm1269, %v3429, %v3431
  %v3433 = vrot.slane %v779, 2
  %v3434 = vrot.slane %v643, 2
  %v3435 = vsel %vm1269, %v3433, %v3434
  %v3436 = vrot.slane %v715, 2
  %v3437 = vsel %vm1269, %v3434, %v3436
  %v3438 = vrot.slane %v780, 2
  %v3439 = vrot.slane %v645, 2
  %v3440 = vsel %vm1269, %v3438, %v3439
  %v3441 = vrot.slane %v716, 2
  %v3442 = vsel %vm1269, %v3439, %v3441
  %v3443 = vrot.slane %v781, 2
  %v3444 = vrot.slane %v647, 2
  %v3445 = vsel %vm1269, %v3443, %v3444
  %v3446 = vrot.slane %v717, 2
  %v3447 = vsel %vm1269, %v3444, %v3446
  %v3448 = vrot.slane %v782, 2
  %v3449 = vrot.slane %v649, 2
  %v3450 = vsel %vm1269, %v3448, %v3449
  %v3451 = vrot.slane %v718, 2
  %v3452 = vsel %vm1269, %v3449, %v3451
  %v3453 = vrot.slane %v783, 2
  %v3454 = vrot.slane %v651, 2
  %v3455 = vsel %vm1269, %v3453, %v3454
  %v3456 = vrot.slane %v719, 2
  %v3457 = vsel %vm1269, %v3454, %v3456
  %v3458 = vrot.slane %v784, 2
  %v3459 = vrot.slane %v653, 2
  %v3460 = vsel %vm1269, %v3458, %v3459
  %v3461 = vrot.slane %v720, 2
  %v3462 = vsel %vm1269, %v3459, %v3461
  %v3463 = vrot.slane %v785, 2
  %v3464 = vrot.slane %v655, 2
  %v3465 = vsel %vm1269, %v3463, %v3464
  %v3466 = vrot.slane %v721, 2
  %v3467 = vsel %vm1269, %v3464, %v3466
  %v3468 = vrot.slane %v786, 2
  %v3469 = vrot.slane %v657, 2
  %v3470 = vsel %vm1269, %v3468, %v3469
  %v3471 = vrot.slane %v722, 2
  %v3472 = vsel %vm1269, %v3469, %v3471
  %v3473 = vrot.slane %v787, 2
  %v3474 = vrot.slane %v659, 2
  %v3475 = vsel %vm1269, %v3473, %v3474
  %v3476 = vrot.slane %v723, 2
  %v3477 = vsel %vm1269, %v3474, %v3476
  %3478 = vrot.lane.b32.xlu0 %v3320, 24
  %v3479 = vpop.permute.xlu0 %3478
  %3480 = vrot.lane.b32.xlu0 %v3322, 24
  %v3481 = vpop.permute.xlu0 %3480
  %3482 = vrot.lane.b32.xlu0 %v3325, 24
  %v3483 = vpop.permute.xlu0 %3482
  %3484 = vrot.lane.b32.xlu0 %v3327, 24
  %v3485 = vpop.permute.xlu0 %3484
  %3486 = vrot.lane.b32.xlu0 %v3330, 24
  %v3487 = vpop.permute.xlu0 %3486
  %3488 = vrot.lane.b32.xlu0 %v3332, 24
  %v3489 = vpop.permute.xlu0 %3488
  %3490 = vrot.lane.b32.xlu0 %v3335, 24
  %v3491 = vpop.permute.xlu0 %3490
  %3492 = vrot.lane.b32.xlu0 %v3337, 24
  %v3493 = vpop.permute.xlu0 %3492
  %3494 = vrot.lane.b32.xlu0 %v3340, 24
  %v3495 = vpop.permute.xlu0 %3494
  %3496 = vrot.lane.b32.xlu0 %v3342, 24
  %v3497 = vpop.permute.xlu0 %3496
  %3498 = vrot.lane.b32.xlu0 %v3345, 24
  %v3499 = vpop.permute.xlu0 %3498
  %3500 = vrot.lane.b32.xlu0 %v3347, 24
  %v3501 = vpop.permute.xlu0 %3500
  %3502 = vrot.lane.b32.xlu0 %v3350, 24
  %v3503 = vpop.permute.xlu0 %3502
  %3504 = vrot.lane.b32.xlu0 %v3352, 24
  %v3505 = vpop.permute.xlu0 %3504
  %3506 = vrot.lane.b32.xlu0 %v3355, 24
  %v3507 = vpop.permute.xlu0 %3506
  %3508 = vrot.lane.b32.xlu0 %v3357, 24
  %v3509 = vpop.permute.xlu0 %3508
  %3510 = vrot.lane.b32.xlu0 %v3360, 24
  %v3511 = vpop.permute.xlu0 %3510
  %3512 = vrot.lane.b32.xlu0 %v3362, 24
  %v3513 = vpop.permute.xlu0 %3512
  %3514 = vrot.lane.b32.xlu0 %v3365, 24
  %v3515 = vpop.permute.xlu0 %3514
  %3516 = vrot.lane.b32.xlu0 %v3367, 24
  %v3517 = vpop.permute.xlu0 %3516
  %3518 = vrot.lane.b32.xlu0 %v3370, 24
  %v3519 = vpop.permute.xlu0 %3518
  %3520 = vrot.lane.b32.xlu0 %v3372, 24
  %v3521 = vpop.permute.xlu0 %3520
  %3522 = vrot.lane.b32.xlu0 %v3375, 24
  %v3523 = vpop.permute.xlu0 %3522
  %3524 = vrot.lane.b32.xlu0 %v3377, 24
  %v3525 = vpop.permute.xlu0 %3524
  %3526 = vrot.lane.b32.xlu0 %v3380, 24
  %v3527 = vpop.permute.xlu0 %3526
  %3528 = vrot.lane.b32.xlu0 %v3382, 24
  %v3529 = vpop.permute.xlu0 %3528
  %3530 = vrot.lane.b32.xlu0 %v3385, 24
  %v3531 = vpop.permute.xlu0 %3530
  %3532 = vrot.lane.b32.xlu0 %v3387, 24
  %v3533 = vpop.permute.xlu0 %3532
  %3534 = vrot.lane.b32.xlu0 %v3390, 24
  %v3535 = vpop.permute.xlu0 %3534
  %3536 = vrot.lane.b32.xlu0 %v3392, 24
  %v3537 = vpop.permute.xlu0 %3536
  %3538 = vrot.lane.b32.xlu0 %v3395, 24
  %v3539 = vpop.permute.xlu0 %3538
  %3540 = vrot.lane.b32.xlu0 %v3397, 24
  %v3541 = vpop.permute.xlu0 %3540
  %3542 = vrot.lane.b32.xlu0 %v3400, 24
  %v3543 = vpop.permute.xlu0 %3542
  %3544 = vrot.lane.b32.xlu0 %v3402, 24
  %v3545 = vpop.permute.xlu0 %3544
  %3546 = vrot.lane.b32.xlu0 %v3405, 24
  %v3547 = vpop.permute.xlu0 %3546
  %3548 = vrot.lane.b32.xlu0 %v3407, 24
  %v3549 = vpop.permute.xlu0 %3548
  %3550 = vrot.lane.b32.xlu0 %v3410, 24
  %v3551 = vpop.permute.xlu0 %3550
  %3552 = vrot.lane.b32.xlu0 %v3412, 24
  %v3553 = vpop.permute.xlu0 %3552
  %3554 = vrot.lane.b32.xlu0 %v3415, 24
  %v3555 = vpop.permute.xlu0 %3554
  %3556 = vrot.lane.b32.xlu0 %v3417, 24
  %v3557 = vpop.permute.xlu0 %3556
  %3558 = vrot.lane.b32.xlu0 %v3420, 24
  %v3559 = vpop.permute.xlu0 %3558
  %3560 = vrot.lane.b32.xlu0 %v3422, 24
  %v3561 = vpop.permute.xlu0 %3560
  %3562 = vrot.lane.b32.xlu0 %v3425, 24
  %v3563 = vpop.permute.xlu0 %3562
  %3564 = vrot.lane.b32.xlu0 %v3427, 24
  %v3565 = vpop.permute.xlu0 %3564
  %3566 = vrot.lane.b32.xlu0 %v3430, 24
  %v3567 = vpop.permute.xlu0 %3566
  %3568 = vrot.lane.b32.xlu0 %v3432, 24
  %v3569 = vpop.permute.xlu0 %3568
  %3570 = vrot.lane.b32.xlu0 %v3435, 24
  %v3571 = vpop.permute.xlu0 %3570
  %3572 = vrot.lane.b32.xlu0 %v3437, 24
  %v3573 = vpop.permute.xlu0 %3572
  %3574 = vrot.lane.b32.xlu0 %v3440, 24
  %v3575 = vpop.permute.xlu0 %3574
  %3576 = vrot.lane.b32.xlu0 %v3442, 24
  %v3577 = vpop.permute.xlu0 %3576
  %3578 = vrot.lane.b32.xlu0 %v3445, 24
  %v3579 = vpop.permute.xlu0 %3578
  %3580 = vrot.lane.b32.xlu0 %v3447, 24
  %v3581 = vpop.permute.xlu0 %3580
  %3582 = vrot.lane.b32.xlu0 %v3450, 24
  %v3583 = vpop.permute.xlu0 %3582
  %3584 = vrot.lane.b32.xlu0 %v3452, 24
  %v3585 = vpop.permute.xlu0 %3584
  %3586 = vrot.lane.b32.xlu0 %v3455, 24
  %v3587 = vpop.permute.xlu0 %3586
  %3588 = vrot.lane.b32.xlu0 %v3457, 24
  %v3589 = vpop.permute.xlu0 %3588
  %3590 = vrot.lane.b32.xlu0 %v3460, 24
  %v3591 = vpop.permute.xlu0 %3590
  %3592 = vrot.lane.b32.xlu0 %v3462, 24
  %v3593 = vpop.permute.xlu0 %3592
  %3594 = vrot.lane.b32.xlu0 %v3465, 24
  %v3595 = vpop.permute.xlu0 %3594
  %3596 = vrot.lane.b32.xlu0 %v3467, 24
  %v3597 = vpop.permute.xlu0 %3596
  %3598 = vrot.lane.b32.xlu0 %v3470, 24
  %v3599 = vpop.permute.xlu0 %3598
  %3600 = vrot.lane.b32.xlu0 %v3472, 24
  %v3601 = vpop.permute.xlu0 %3600
  %3602 = vrot.lane.b32.xlu0 %v3475, 24
  %v3603 = vpop.permute.xlu0 %3602
  %3604 = vrot.lane.b32.xlu0 %v3477, 24
  %v3605 = vpop.permute.xlu0 %3604
  %vm3670 = vcmask 23552
  %v3671 = vsel %vm3670, %v82, %v1046
  %v3672 = vsel %vm3670, %v83, %v1048
  %v3673 = vsel %vm3670, %v84, %v1050
  %v3674 = vsel %vm3670, %v85, %v1052
  %v3675 = vsel %vm3670, %v86, %v1054
  %v3676 = vsel %vm3670, %v87, %v1056
  %v3677 = vsel %vm3670, %v88, %v1058
  %v3678 = vsel %vm3670, %v89, %v1060
  %v3679 = vsel %vm3670, %v90, %v1062
  %v3680 = vsel %vm3670, %v91, %v1064
  %v3681 = vsel %vm3670, %v92, %v1066
  %v3682 = vsel %vm3670, %v93, %v1068
  %v3683 = vsel %vm3670, %v94, %v1070
  %v3684 = vsel %vm3670, %v95, %v1072
  %v3685 = vsel %vm3670, %v96, %v1074
  %v3686 = vsel %vm3670, %v97, %v1076
  %v3687 = vsel %vm3670, %v98, %v1078
  %v3688 = vsel %vm3670, %v99, %v1080
  %v3689 = vsel %vm3670, %v100, %v1082
  %v3690 = vsel %vm3670, %v101, %v1084
  %v3691 = vsel %vm3670, %v102, %v1086
  %v3692 = vsel %vm3670, %v103, %v1088
  %v3693 = vsel %vm3670, %v104, %v1090
  %v3694 = vsel %vm3670, %v105, %v1092
  %v3695 = vsel %vm3670, %v106, %v1094
  %v3696 = vsel %vm3670, %v107, %v1096
  %v3697 = vsel %vm3670, %v108, %v1098
  %v3698 = vsel %vm3670, %v109, %v1100
  %v3699 = vsel %vm3670, %v110, %v1102
  %v3700 = vsel %vm3670, %v111, %v1104
  %v3701 = vsel %vm3670, %v112, %v1106
  %v3702 = vsel %vm3670, %v113, %v1108
  %v3703 = vsel %vm3670, %v114, %v1110
  %v3704 = vsel %vm3670, %v115, %v1112
  %v3705 = vsel %vm3670, %v116, %v1114
  %v3706 = vsel %vm3670, %v117, %v1116
  %v3707 = vsel %vm3670, %v118, %v1118
  %v3708 = vsel %vm3670, %v119, %v1120
  %v3709 = vsel %vm3670, %v120, %v1122
  %v3710 = vsel %vm3670, %v121, %v1124
  %v3711 = vsel %vm3670, %v122, %v1126
  %v3712 = vsel %vm3670, %v123, %v1128
  %v3713 = vsel %vm3670, %v124, %v1130
  %v3714 = vsel %vm3670, %v125, %v1132
  %v3715 = vsel %vm3670, %v126, %v1134
  %v3716 = vsel %vm3670, %v127, %v1136
  %v3717 = vsel %vm3670, %v128, %v1138
  %v3718 = vsel %vm3670, %v129, %v1140
  %v3719 = vsel %vm3670, %v130, %v1142
  %v3720 = vsel %vm3670, %v131, %v1144
  %v3721 = vsel %vm3670, %v132, %v1146
  %v3722 = vsel %vm3670, %v133, %v1148
  %v3723 = vsel %vm3670, %v134, %v1150
  %v3724 = vsel %vm3670, %v135, %v1152
  %v3725 = vsel %vm3670, %v136, %v1154
  %v3726 = vsel %vm3670, %v137, %v1156
  %v3727 = vsel %vm3670, %v138, %v1158
  %v3728 = vsel %vm3670, %v139, %v1160
  %v3729 = vsel %vm3670, %v140, %v1162
  %v3730 = vsel %vm3670, %v141, %v1164
  %v3731 = vsel %vm3670, %v142, %v1166
  %v3732 = vsel %vm3670, %v143, %v1168
  %v3733 = vsel %vm3670, %v144, %v1170
  %v3734 = vsel %vm3670, %v145, %v1172
  %vm3735 = vcmask 48128
  %v3736 = vsel %vm3735, %v3671, %v1431
  %v3737 = vsel %vm3735, %v3672, %v1433
  %v3738 = vsel %vm3735, %v3673, %v1435
  %v3739 = vsel %vm3735, %v3674, %v1437
  %v3740 = vsel %vm3735, %v3675, %v1439
  %v3741 = vsel %vm3735, %v3676, %v1441
  %v3742 = vsel %vm3735, %v3677, %v1443
  %v3743 = vsel %vm3735, %v3678, %v1445
  %v3744 = vsel %vm3735, %v3679, %v1447
  %v3745 = vsel %vm3735, %v3680, %v1449
  %v3746 = vsel %vm3735, %v3681, %v1451
  %v3747 = vsel %vm3735, %v3682, %v1453
  %v3748 = vsel %vm3735, %v3683, %v1455
  %v3749 = vsel %vm3735, %v3684, %v1457
  %v3750 = vsel %vm3735, %v3685, %v1459
  %v3751 = vsel %vm3735, %v3686, %v1461
  %v3752 = vsel %vm3735, %v3687, %v1463
  %v3753 = vsel %vm3735, %v3688, %v1465
  %v3754 = vsel %vm3735, %v3689, %v1467
  %v3755 = vsel %vm3735, %v3690, %v1469
  %v3756 = vsel %vm3735, %v3691, %v1471
  %v3757 = vsel %vm3735, %v3692, %v1473
  %v3758 = vsel %vm3735, %v3693, %v1475
  %v3759 = vsel %vm3735, %v3694, %v1477
  %v3760 = vsel %vm3735, %v3695, %v1479
  %v3761 = vsel %vm3735, %v3696, %v1481
  %v3762 = vsel %vm3735, %v3697, %v1483
  %v3763 = vsel %vm3735, %v3698, %v1485
  %v3764 = vsel %vm3735, %v3699, %v1487
  %v3765 = vsel %vm3735, %v3700, %v1489
  %v3766 = vsel %vm3735, %v3701, %v1491
  %v3767 = vsel %vm3735, %v3702, %v1493
  %v3768 = vsel %vm3735, %v3703, %v1495
  %v3769 = vsel %vm3735, %v3704, %v1497
  %v3770 = vsel %vm3735, %v3705, %v1499
  %v3771 = vsel %vm3735, %v3706, %v1501
  %v3772 = vsel %vm3735, %v3707, %v1503
  %v3773 = vsel %vm3735, %v3708, %v1505
  %v3774 = vsel %vm3735, %v3709, %v1507
  %v3775 = vsel %vm3735, %v3710, %v1509
  %v3776 = vsel %vm3735, %v3711, %v1511
  %v3777 = vsel %vm3735, %v3712, %v1513
  %v3778 = vsel %vm3735, %v3713, %v1515
  %v3779 = vsel %vm3735, %v3714, %v1517
  %v3780 = vsel %vm3735, %v3715, %v1519
  %v3781 = vsel %vm3735, %v3716, %v1521
  %v3782 = vsel %vm3735, %v3717, %v1523
  %v3783 = vsel %vm3735, %v3718, %v1525
  %v3784 = vsel %vm3735, %v3719, %v1527
  %v3785 = vsel %vm3735, %v3720, %v1529
  %v3786 = vsel %vm3735, %v3721, %v1531
  %v3787 = vsel %vm3735, %v3722, %v1533
  %v3788 = vsel %vm3735, %v3723, %v1535
  %v3789 = vsel %vm3735, %v3724, %v1537
  %v3790 = vsel %vm3735, %v3725, %v1539
  %v3791 = vsel %vm3735, %v3726, %v1541
  %v3792 = vsel %vm3735, %v3727, %v1543
  %v3793 = vsel %vm3735, %v3728, %v1545
  %v3794 = vsel %vm3735, %v3729, %v1547
  %v3795 = vsel %vm3735, %v3730, %v1549
  %v3796 = vsel %vm3735, %v3731, %v1551
  %v3797 = vsel %vm3735, %v3732, %v1553
  %v3798 = vsel %vm3735, %v3733, %v1555
  %v3799 = vsel %vm3735, %v3734, %v1557
  %vm3800 = vcmask 72704
  %v3801 = vsel %vm3800, %v3736, %v1687
  %v3802 = vsel %vm3800, %v3737, %v1689
  %v3803 = vsel %vm3800, %v3738, %v1691
  %v3804 = vsel %vm3800, %v3739, %v1693
  %v3805 = vsel %vm3800, %v3740, %v1695
  %v3806 = vsel %vm3800, %v3741, %v1697
  %v3807 = vsel %vm3800, %v3742, %v1699
  %v3808 = vsel %vm3800, %v3743, %v1701
  %v3809 = vsel %vm3800, %v3744, %v1703
  %v3810 = vsel %vm3800, %v3745, %v1705
  %v3811 = vsel %vm3800, %v3746, %v1707
  %v3812 = vsel %vm3800, %v3747, %v1709
  %v3813 = vsel %vm3800, %v3748, %v1711
  %v3814 = vsel %vm3800, %v3749, %v1713
  %v3815 = vsel %vm3800, %v3750, %v1715
  %v3816 = vsel %vm3800, %v3751, %v1717
  %v3817 = vsel %vm3800, %v3752, %v1719
  %v3818 = vsel %vm3800, %v3753, %v1721
  %v3819 = vsel %vm3800, %v3754, %v1723
  %v3820 = vsel %vm3800, %v3755, %v1725
  %v3821 = vsel %vm3800, %v3756, %v1727
  %v3822 = vsel %vm3800, %v3757, %v1729
  %v3823 = vsel %vm3800, %v3758, %v1731
  %v3824 = vsel %vm3800, %v3759, %v1733
  %v3825 = vsel %vm3800, %v3760, %v1735
  %v3826 = vsel %vm3800, %v3761, %v1737
  %v3827 = vsel %vm3800, %v3762, %v1739
  %v3828 = vsel %vm3800, %v3763, %v1741
  %v3829 = vsel %vm3800, %v3764, %v1743
  %v3830 = vsel %vm3800, %v3765, %v1745
  %v3831 = vsel %vm3800, %v3766, %v1747
  %v3832 = vsel %vm3800, %v3767, %v1749
  %v3833 = vsel %vm3800, %v3768, %v1751
  %v3834 = vsel %vm3800, %v3769, %v1753
  %v3835 = vsel %vm3800, %v3770, %v1755
  %v3836 = vsel %vm3800, %v3771, %v1757
  %v3837 = vsel %vm3800, %v3772, %v1759
  %v3838 = vsel %vm3800, %v3773, %v1761
  %v3839 = vsel %vm3800, %v3774, %v1763
  %v3840 = vsel %vm3800, %v3775, %v1765
  %v3841 = vsel %vm3800, %v3776, %v1767
  %v3842 = vsel %vm3800, %v3777, %v1769
  %v3843 = vsel %vm3800, %v3778, %v1771
  %v3844 = vsel %vm3800, %v3779, %v1773
  %v3845 = vsel %vm3800, %v3780, %v1775
  %v3846 = vsel %vm3800, %v3781, %v1777
  %v3847 = vsel %vm3800, %v3782, %v1779
  %v3848 = vsel %vm3800, %v3783, %v1781
  %v3849 = vsel %vm3800, %v3784, %v1783
  %v3850 = vsel %vm3800, %v3785, %v1785
  %v3851 = vsel %vm3800, %v3786, %v1787
  %v3852 = vsel %vm3800, %v3787, %v1789
  %v3853 = vsel %vm3800, %v3788, %v1791
  %v3854 = vsel %vm3800, %v3789, %v1793
  %v3855 = vsel %vm3800, %v3790, %v1795
  %v3856 = vsel %vm3800, %v3791, %v1797
  %v3857 = vsel %vm3800, %v3792, %v1799
  %v3858 = vsel %vm3800, %v3793, %v1801
  %v3859 = vsel %vm3800, %v3794, %v1803
  %v3860 = vsel %vm3800, %v3795, %v1805
  %v3861 = vsel %vm3800, %v3796, %v1807
  %v3862 = vsel %vm3800, %v3797, %v1809
  %v3863 = vsel %vm3800, %v3798, %v1811
  %v3864 = vsel %vm3800, %v3799, %v1813
  %vm3865 = vcmask 97280
  %v3866 = vsel %vm3865, %v3801, %v2071
  %v3867 = vsel %vm3865, %v3802, %v2073
  %v3868 = vsel %vm3865, %v3803, %v2075
  %v3869 = vsel %vm3865, %v3804, %v2077
  %v3870 = vsel %vm3865, %v3805, %v2079
  %v3871 = vsel %vm3865, %v3806, %v2081
  %v3872 = vsel %vm3865, %v3807, %v2083
  %v3873 = vsel %vm3865, %v3808, %v2085
  %v3874 = vsel %vm3865, %v3809, %v2087
  %v3875 = vsel %vm3865, %v3810, %v2089
  %v3876 = vsel %vm3865, %v3811, %v2091
  %v3877 = vsel %vm3865, %v3812, %v2093
  %v3878 = vsel %vm3865, %v3813, %v2095
  %v3879 = vsel %vm3865, %v3814, %v2097
  %v3880 = vsel %vm3865, %v3815, %v2099
  %v3881 = vsel %vm3865, %v3816, %v2101
  %v3882 = vsel %vm3865, %v3817, %v2103
  %v3883 = vsel %vm3865, %v3818, %v2105
  %v3884 = vsel %vm3865, %v3819, %v2107
  %v3885 = vsel %vm3865, %v3820, %v2109
  %v3886 = vsel %vm3865, %v3821, %v2111
  %v3887 = vsel %vm3865, %v3822, %v2113
  %v3888 = vsel %vm3865, %v3823, %v2115
  %v3889 = vsel %vm3865, %v3824, %v2117
  %v3890 = vsel %vm3865, %v3825, %v2119
  %v3891 = vsel %vm3865, %v3826, %v2121
  %v3892 = vsel %vm3865, %v3827, %v2123
  %v3893 = vsel %vm3865, %v3828, %v2125
  %v3894 = vsel %vm3865, %v3829, %v2127
  %v3895 = vsel %vm3865, %v3830, %v2129
  %v3896 = vsel %vm3865, %v3831, %v2131
  %v3897 = vsel %vm3865, %v3832, %v2133
  %v3898 = vsel %vm3865, %v3833, %v2135
  %v3899 = vsel %vm3865, %v3834, %v2137
  %v3900 = vsel %vm3865, %v3835, %v2139
  %v3901 = vsel %vm3865, %v3836, %v2141
  %v3902 = vsel %vm3865, %v3837, %v2143
  %v3903 = vsel %vm3865, %v3838, %v2145
  %v3904 = vsel %vm3865, %v3839, %v2147
  %v3905 = vsel %vm3865, %v3840, %v2149
  %v3906 = vsel %vm3865, %v3841, %v2151
  %v3907 = vsel %vm3865, %v3842, %v2153
  %v3908 = vsel %vm3865, %v3843, %v2155
  %v3909 = vsel %vm3865, %v3844, %v2157
  %v3910 = vsel %vm3865, %v3845, %v2159
  %v3911 = vsel %vm3865, %v3846, %v2161
  %v3912 = vsel %vm3865, %v3847, %v2163
  %v3913 = vsel %vm3865, %v3848, %v2165
  %v3914 = vsel %vm3865, %v3849, %v2167
  %v3915 = vsel %vm3865, %v3850, %v2169
  %v3916 = vsel %vm3865, %v3851, %v2171
  %v3917 = vsel %vm3865, %v3852, %v2173
  %v3918 = vsel %vm3865, %v3853, %v2175
  %v3919 = vsel %vm3865, %v3854, %v2177
  %v3920 = vsel %vm3865, %v3855, %v2179
  %v3921 = vsel %vm3865, %v3856, %v2181
  %v3922 = vsel %vm3865, %v3857, %v2183
  %v3923 = vsel %vm3865, %v3858, %v2185
  %v3924 = vsel %vm3865, %v3859, %v2187
  %v3925 = vsel %vm3865, %v3860, %v2189
  %v3926 = vsel %vm3865, %v3861, %v2191
  %v3927 = vsel %vm3865, %v3862, %v2193
  %v3928 = vsel %vm3865, %v3863, %v2195
  %v3929 = vsel %vm3865, %v3864, %v2197
  %vm3930 = vcmask 121856
  %v3931 = vsel %vm3930, %v3866, %v2455
  %v3932 = vsel %vm3930, %v3867, %v2457
  %v3933 = vsel %vm3930, %v3868, %v2459
  %v3934 = vsel %vm3930, %v3869, %v2461
  %v3935 = vsel %vm3930, %v3870, %v2463
  %v3936 = vsel %vm3930, %v3871, %v2465
  %v3937 = vsel %vm3930, %v3872, %v2467
  %v3938 = vsel %vm3930, %v3873, %v2469
  %v3939 = vsel %vm3930, %v3874, %v2471
  %v3940 = vsel %vm3930, %v3875, %v2473
  %v3941 = vsel %vm3930, %v3876, %v2475
  %v3942 = vsel %vm3930, %v3877, %v2477
  %v3943 = vsel %vm3930, %v3878, %v2479
  %v3944 = vsel %vm3930, %v3879, %v2481
  %v3945 = vsel %vm3930, %v3880, %v2483
  %v3946 = vsel %vm3930, %v3881, %v2485
  %v3947 = vsel %vm3930, %v3882, %v2487
  %v3948 = vsel %vm3930, %v3883, %v2489
  %v3949 = vsel %vm3930, %v3884, %v2491
  %v3950 = vsel %vm3930, %v3885, %v2493
  %v3951 = vsel %vm3930, %v3886, %v2495
  %v3952 = vsel %vm3930, %v3887, %v2497
  %v3953 = vsel %vm3930, %v3888, %v2499
  %v3954 = vsel %vm3930, %v3889, %v2501
  %v3955 = vsel %vm3930, %v3890, %v2503
  %v3956 = vsel %vm3930, %v3891, %v2505
  %v3957 = vsel %vm3930, %v3892, %v2507
  %v3958 = vsel %vm3930, %v3893, %v2509
  %v3959 = vsel %vm3930, %v3894, %v2511
  %v3960 = vsel %vm3930, %v3895, %v2513
  %v3961 = vsel %vm3930, %v3896, %v2515
  %v3962 = vsel %vm3930, %v3897, %v2517
  %v3963 = vsel %vm3930, %v3898, %v2519
  %v3964 = vsel %vm3930, %v3899, %v2521
  %v3965 = vsel %vm3930, %v3900, %v2523
  %v3966 = vsel %vm3930, %v3901, %v2525
  %v3967 = vsel %vm3930, %v3902, %v2527
  %v3968 = vsel %vm3930, %v3903, %v2529
  %v3969 = vsel %vm3930, %v3904, %v2531
  %v3970 = vsel %vm3930, %v3905, %v2533
  %v3971 = vsel %vm3930, %v3906, %v2535
  %v3972 = vsel %vm3930, %v3907, %v2537
  %v3973 = vsel %vm3930, %v3908, %v2539
  %v3974 = vsel %vm3930, %v3909, %v2541
  %v3975 = vsel %vm3930, %v3910, %v2543
  %v3976 = vsel %vm3930, %v3911, %v2545
  %v3977 = vsel %vm3930, %v3912, %v2547
  %v3978 = vsel %vm3930, %v3913, %v2549
  %v3979 = vsel %vm3930, %v3914, %v2551
  %v3980 = vsel %vm3930, %v3915, %v2553
  %v3981 = vsel %vm3930, %v3916, %v2555
  %v3982 = vsel %vm3930, %v3917, %v2557
  %v3983 = vsel %vm3930, %v3918, %v2559
  %v3984 = vsel %vm3930, %v3919, %v2561
  %v3985 = vsel %vm3930, %v3920, %v2563
  %v3986 = vsel %vm3930, %v3921, %v2565
  %v3987 = vsel %vm3930, %v3922, %v2567
  %v3988 = vsel %vm3930, %v3923, %v2569
  %v3989 = vsel %vm3930, %v3924, %v2571
  %v3990 = vsel %vm3930, %v3925, %v2573
  %v3991 = vsel %vm3930, %v3926, %v2575
  %v3992 = vsel %vm3930, %v3927, %v2577
  %v3993 = vsel %vm3930, %v3928, %v2579
  %v3994 = vsel %vm3930, %v3929, %v2581
  %vm3995 = vcmask 146432
  %v3996 = vsel %vm3995, %v3931, %v2711
  %v3997 = vsel %vm3995, %v3932, %v2713
  %v3998 = vsel %vm3995, %v3933, %v2715
  %v3999 = vsel %vm3995, %v3934, %v2717
  %v4000 = vsel %vm3995, %v3935, %v2719
  %v4001 = vsel %vm3995, %v3936, %v2721
  %v4002 = vsel %vm3995, %v3937, %v2723
  %v4003 = vsel %vm3995, %v3938, %v2725
  %v4004 = vsel %vm3995, %v3939, %v2727
  %v4005 = vsel %vm3995, %v3940, %v2729
  %v4006 = vsel %vm3995, %v3941, %v2731
  %v4007 = vsel %vm3995, %v3942, %v2733
  %v4008 = vsel %vm3995, %v3943, %v2735
  %v4009 = vsel %vm3995, %v3944, %v2737
  %v4010 = vsel %vm3995, %v3945, %v2739
  %v4011 = vsel %vm3995, %v3946, %v2741
  %v4012 = vsel %vm3995, %v3947, %v2743
  %v4013 = vsel %vm3995, %v3948, %v2745
  %v4014 = vsel %vm3995, %v3949, %v2747
  %v4015 = vsel %vm3995, %v3950, %v2749
  %v4016 = vsel %vm3995, %v3951, %v2751
  %v4017 = vsel %vm3995, %v3952, %v2753
  %v4018 = vsel %vm3995, %v3953, %v2755
  %v4019 = vsel %vm3995, %v3954, %v2757
  %v4020 = vsel %vm3995, %v3955, %v2759
  %v4021 = vsel %vm3995, %v3956, %v2761
  %v4022 = vsel %vm3995, %v3957, %v2763
  %v4023 = vsel %vm3995, %v3958, %v2765
  %v4024 = vsel %vm3995, %v3959, %v2767
  %v4025 = vsel %vm3995, %v3960, %v2769
  %v4026 = vsel %vm3995, %v3961, %v2771
  %v4027 = vsel %vm3995, %v3962, %v2773
  %v4028 = vsel %vm3995, %v3963, %v2775
  %v4029 = vsel %vm3995, %v3964, %v2777
  %v4030 = vsel %vm3995, %v3965, %v2779
  %v4031 = vsel %vm3995, %v3966, %v2781
  %v4032 = vsel %vm3995, %v3967, %v2783
  %v4033 = vsel %vm3995, %v3968, %v2785
  %v4034 = vsel %vm3995, %v3969, %v2787
  %v4035 = vsel %vm3995, %v3970, %v2789
  %v4036 = vsel %vm3995, %v3971, %v2791
  %v4037 = vsel %vm3995, %v3972, %v2793
  %v4038 = vsel %vm3995, %v3973, %v2795
  %v4039 = vsel %vm3995, %v3974, %v2797
  %v4040 = vsel %vm3995, %v3975, %v2799
  %v4041 = vsel %vm3995, %v3976, %v2801
  %v4042 = vsel %vm3995, %v3977, %v2803
  %v4043 = vsel %vm3995, %v3978, %v2805
  %v4044 = vsel %vm3995, %v3979, %v2807
  %v4045 = vsel %vm3995, %v3980, %v2809
  %v4046 = vsel %vm3995, %v3981, %v2811
  %v4047 = vsel %vm3995, %v3982, %v2813
  %v4048 = vsel %vm3995, %v3983, %v2815
  %v4049 = vsel %vm3995, %v3984, %v2817
  %v4050 = vsel %vm3995, %v3985, %v2819
  %v4051 = vsel %vm3995, %v3986, %v2821
  %v4052 = vsel %vm3995, %v3987, %v2823
  %v4053 = vsel %vm3995, %v3988, %v2825
  %v4054 = vsel %vm3995, %v3989, %v2827
  %v4055 = vsel %vm3995, %v3990, %v2829
  %v4056 = vsel %vm3995, %v3991, %v2831
  %v4057 = vsel %vm3995, %v3992, %v2833
  %v4058 = vsel %vm3995, %v3993, %v2835
  %v4059 = vsel %vm3995, %v3994, %v2837
  %vm4060 = vcmask 171008
  %v4061 = vsel %vm4060, %v3996, %v3095
  %v4062 = vsel %vm4060, %v3997, %v3097
  %v4063 = vsel %vm4060, %v3998, %v3099
  %v4064 = vsel %vm4060, %v3999, %v3101
  %v4065 = vsel %vm4060, %v4000, %v3103
  %v4066 = vsel %vm4060, %v4001, %v3105
  %v4067 = vsel %vm4060, %v4002, %v3107
  %v4068 = vsel %vm4060, %v4003, %v3109
  %v4069 = vsel %vm4060, %v4004, %v3111
  %v4070 = vsel %vm4060, %v4005, %v3113
  %v4071 = vsel %vm4060, %v4006, %v3115
  %v4072 = vsel %vm4060, %v4007, %v3117
  %v4073 = vsel %vm4060, %v4008, %v3119
  %v4074 = vsel %vm4060, %v4009, %v3121
  %v4075 = vsel %vm4060, %v4010, %v3123
  %v4076 = vsel %vm4060, %v4011, %v3125
  %v4077 = vsel %vm4060, %v4012, %v3127
  %v4078 = vsel %vm4060, %v4013, %v3129
  %v4079 = vsel %vm4060, %v4014, %v3131
  %v4080 = vsel %vm4060, %v4015, %v3133
  %v4081 = vsel %vm4060, %v4016, %v3135
  %v4082 = vsel %vm4060, %v4017, %v3137
  %v4083 = vsel %vm4060, %v4018, %v3139
  %v4084 = vsel %vm4060, %v4019, %v3141
  %v4085 = vsel %vm4060, %v4020, %v3143
  %v4086 = vsel %vm4060, %v4021, %v3145
  %v4087 = vsel %vm4060, %v4022, %v3147
  %v4088 = vsel %vm4060, %v4023, %v3149
  %v4089 = vsel %vm4060, %v4024, %v3151
  %v4090 = vsel %vm4060, %v4025, %v3153
  %v4091 = vsel %vm4060, %v4026, %v3155
  %v4092 = vsel %vm4060, %v4027, %v3157
  %v4093 = vsel %vm4060, %v4028, %v3159
  %v4094 = vsel %vm4060, %v4029, %v3161
  %v4095 = vsel %vm4060, %v4030, %v3163
  %v4096 = vsel %vm4060, %v4031, %v3165
  %v4097 = vsel %vm4060, %v4032, %v3167
  %v4098 = vsel %vm4060, %v4033, %v3169
  %v4099 = vsel %vm4060, %v4034, %v3171
  %v4100 = vsel %vm4060, %v4035, %v3173
  %v4101 = vsel %vm4060, %v4036, %v3175
  %v4102 = vsel %vm4060, %v4037, %v3177
  %v4103 = vsel %vm4060, %v4038, %v3179
  %v4104 = vsel %vm4060, %v4039, %v3181
  %v4105 = vsel %vm4060, %v4040, %v3183
  %v4106 = vsel %vm4060, %v4041, %v3185
  %v4107 = vsel %vm4060, %v4042, %v3187
  %v4108 = vsel %vm4060, %v4043, %v3189
  %v4109 = vsel %vm4060, %v4044, %v3191
  %v4110 = vsel %vm4060, %v4045, %v3193
  %v4111 = vsel %vm4060, %v4046, %v3195
  %v4112 = vsel %vm4060, %v4047, %v3197
  %v4113 = vsel %vm4060, %v4048, %v3199
  %v4114 = vsel %vm4060, %v4049, %v3201
  %v4115 = vsel %vm4060, %v4050, %v3203
  %v4116 = vsel %vm4060, %v4051, %v3205
  %v4117 = vsel %vm4060, %v4052, %v3207
  %v4118 = vsel %vm4060, %v4053, %v3209
  %v4119 = vsel %vm4060, %v4054, %v3211
  %v4120 = vsel %vm4060, %v4055, %v3213
  %v4121 = vsel %vm4060, %v4056, %v3215
  %v4122 = vsel %vm4060, %v4057, %v3217
  %v4123 = vsel %vm4060, %v4058, %v3219
  %v4124 = vsel %vm4060, %v4059, %v3221
  %vm4125 = vcmask 195584
  %v4126 = vsel %vm4125, %v4061, %v3479
  %v4127 = vsel %vm4125, %v4062, %v3481
  %v4128 = vsel %vm4125, %v4063, %v3483
  %v4129 = vsel %vm4125, %v4064, %v3485
  %v4130 = vsel %vm4125, %v4065, %v3487
  %v4131 = vsel %vm4125, %v4066, %v3489
  %v4132 = vsel %vm4125, %v4067, %v3491
  %v4133 = vsel %vm4125, %v4068, %v3493
  %v4134 = vsel %vm4125, %v4069, %v3495
  %v4135 = vsel %vm4125, %v4070, %v3497
  %v4136 = vsel %vm4125, %v4071, %v3499
  %v4137 = vsel %vm4125, %v4072, %v3501
  %v4138 = vsel %vm4125, %v4073, %v3503
  %v4139 = vsel %vm4125, %v4074, %v3505
  %v4140 = vsel %vm4125, %v4075, %v3507
  %v4141 = vsel %vm4125, %v4076, %v3509
  %v4142 = vsel %vm4125, %v4077, %v3511
  %v4143 = vsel %vm4125, %v4078, %v3513
  %v4144 = vsel %vm4125, %v4079, %v3515
  %v4145 = vsel %vm4125, %v4080, %v3517
  %v4146 = vsel %vm4125, %v4081, %v3519
  %v4147 = vsel %vm4125, %v4082, %v3521
  %v4148 = vsel %vm4125, %v4083, %v3523
  %v4149 = vsel %vm4125, %v4084, %v3525
  %v4150 = vsel %vm4125, %v4085, %v3527
  %v4151 = vsel %vm4125, %v4086, %v3529
  %v4152 = vsel %vm4125, %v4087, %v3531
  %v4153 = vsel %vm4125, %v4088, %v3533
  %v4154 = vsel %vm4125, %v4089, %v3535
  %v4155 = vsel %vm4125, %v4090, %v3537
  %v4156 = vsel %vm4125, %v4091, %v3539
  %v4157 = vsel %vm4125, %v4092, %v3541
  %v4158 = vsel %vm4125, %v4093, %v3543
  %v4159 = vsel %vm4125, %v4094, %v3545
  %v4160 = vsel %vm4125, %v4095, %v3547
  %v4161 = vsel %vm4125, %v4096, %v3549
  %v4162 = vsel %vm4125, %v4097, %v3551
  %v4163 = vsel %vm4125, %v4098, %v3553
  %v4164 = vsel %vm4125, %v4099, %v3555
  %v4165 = vsel %vm4125, %v4100, %v3557
  %v4166 = vsel %vm4125, %v4101, %v3559
  %v4167 = vsel %vm4125, %v4102, %v3561
  %v4168 = vsel %vm4125, %v4103, %v3563
  %v4169 = vsel %vm4125, %v4104, %v3565
  %v4170 = vsel %vm4125, %v4105, %v3567
  %v4171 = vsel %vm4125, %v4106, %v3569
  %v4172 = vsel %vm4125, %v4107, %v3571
  %v4173 = vsel %vm4125, %v4108, %v3573
  %v4174 = vsel %vm4125, %v4109, %v3575
  %v4175 = vsel %vm4125, %v4110, %v3577
  %v4176 = vsel %vm4125, %v4111, %v3579
  %v4177 = vsel %vm4125, %v4112, %v3581
  %v4178 = vsel %vm4125, %v4113, %v3583
  %v4179 = vsel %vm4125, %v4114, %v3585
  %v4180 = vsel %vm4125, %v4115, %v3587
  %v4181 = vsel %vm4125, %v4116, %v3589
  %v4182 = vsel %vm4125, %v4117, %v3591
  %v4183 = vsel %vm4125, %v4118, %v3593
  %v4184 = vsel %vm4125, %v4119, %v3595
  %v4185 = vsel %vm4125, %v4120, %v3597
  %v4186 = vsel %vm4125, %v4121, %v3599
  %v4187 = vsel %vm4125, %v4122, %v3601
  %v4188 = vsel %vm4125, %v4123, %v3603
  %v4189 = vsel %vm4125, %v4124, %v3605
  %v4190 = vpack.c.bf16 %v4127, %v4126
  %v4191 = vpack.c.bf16 %v4129, %v4128
  %v4192 = vpack.c.bf16 %v4131, %v4130
  %v4193 = vpack.c.bf16 %v4133, %v4132
  %v4194 = vpack.c.bf16 %v4135, %v4134
  %v4195 = vpack.c.bf16 %v4137, %v4136
  %v4196 = vpack.c.bf16 %v4139, %v4138
  %v4197 = vpack.c.bf16 %v4141, %v4140
  %v4198 = vpack.c.bf16 %v4143, %v4142
  %v4199 = vpack.c.bf16 %v4145, %v4144
  %v4200 = vpack.c.bf16 %v4147, %v4146
  %v4201 = vpack.c.bf16 %v4149, %v4148
  %v4202 = vpack.c.bf16 %v4151, %v4150
  %v4203 = vpack.c.bf16 %v4153, %v4152
  %v4204 = vpack.c.bf16 %v4155, %v4154
  %v4205 = vpack.c.bf16 %v4157, %v4156
  %v4206 = vpack.c.bf16 %v4159, %v4158
  %v4207 = vpack.c.bf16 %v4161, %v4160
  %v4208 = vpack.c.bf16 %v4163, %v4162
  %v4209 = vpack.c.bf16 %v4165, %v4164
  %v4210 = vpack.c.bf16 %v4167, %v4166
  %v4211 = vpack.c.bf16 %v4169, %v4168
  %v4212 = vpack.c.bf16 %v4171, %v4170
  %v4213 = vpack.c.bf16 %v4173, %v4172
  %v4214 = vpack.c.bf16 %v4175, %v4174
  %v4215 = vpack.c.bf16 %v4177, %v4176
  %v4216 = vpack.c.bf16 %v4179, %v4178
  %v4217 = vpack.c.bf16 %v4181, %v4180
  %v4218 = vpack.c.bf16 %v4183, %v4182
  %v4219 = vpack.c.bf16 %v4185, %v4184
  %v4220 = vpack.c.bf16 %v4187, %v4186
  %v4221 = vpack.c.bf16 %v4189, %v4188
  %v4222 = vld [vmem:[%s1] sm:$0xf]
  %v4223 = vld [vmem:[%s1 + $0x4] sm:$0xf]
  %v4224 = vld [vmem:[%s1 + $0x8] sm:$0xf]
  %v4225 = vld [vmem:[%s1 + $0xc] sm:$0x3]
  %v4230 = vunpack.c.l.b16 %v4222
  %v4231 = vunpack.c.l.b16 %v4223
  %v4232 = vunpack.c.l.b16 %v4224
  %v4233 = vunpack.c.l.b16 %v4225
  %v4234 = vpack.c.b16 %v4231, %v4230
  %v4235 = vpack.c.b16 %v4233, %v4232
  %vm4237 = vcmask 220160
  %v4239 = vsel %vm4237, %v4190, 0
  %v4242 = vsel %vm4237, %v4191, 0
  %v4245 = vsel %vm4237, %v4192, 0
  %v4248 = vsel %vm4237, %v4193, 0
  %v4251 = vsel %vm4237, %v4194, 0
  %v4254 = vsel %vm4237, %v4195, 0
  %v4257 = vsel %vm4237, %v4196, 0
  %v4260 = vsel %vm4237, %v4197, 0
  %v4263 = vsel %vm4237, %v4198, 0
  %v4266 = vsel %vm4237, %v4199, 0
  %v4269 = vsel %vm4237, %v4200, 0
  %v4272 = vsel %vm4237, %v4201, 0
  %v4275 = vsel %vm4237, %v4202, 0
  %v4278 = vsel %vm4237, %v4203, 0
  %v4281 = vsel %vm4237, %v4204, 0
  %v4284 = vsel %vm4237, %v4205, 0
  %v4287 = vsel %vm4237, %v4206, 0
  %v4290 = vsel %vm4237, %v4207, 0
  %v4293 = vsel %vm4237, %v4208, 0
  %v4296 = vsel %vm4237, %v4209, 0
  %v4299 = vsel %vm4237, %v4210, 0
  %v4302 = vsel %vm4237, %v4211, 0
  %v4305 = vsel %vm4237, %v4212, 0
  %v4308 = vsel %vm4237, %v4213, 0
  %v4311 = vsel %vm4237, %v4214, 0
  %v4314 = vsel %vm4237, %v4215, 0
  %v4317 = vsel %vm4237, %v4216, 0
  %v4320 = vsel %vm4237, %v4217, 0
  %v4323 = vsel %vm4237, %v4218, 0
  %v4326 = vsel %vm4237, %v4219, 0
  %v4329 = vsel %vm4237, %v4220, 0
  %v4332 = vsel %vm4237, %v4221, 0
  %vm4334 = vcmask 1044480
  %v4335 = vsel %vm4334, 4294967295, 65535
  %v4336 = vsel %vm1269, %v4335, 0
  %v4338 = vand.u32 %v4235, %v4336
  %4340 = vmatprep.subr.bf16.mxu0 0
  %4341 = vmatpush1.bf16.msra.mxu0 0
  %4342 = vmatprep.subr.bf16.mxu0 0
  %4343 = vmatpush1.bf16.msra.mxu0 0
  %4344 = vmatprep.subr.bf16.mxu0 0
  %4345 = vmatpush1.bf16.msra.mxu0 0
  %4346 = vmatprep.subr.bf16.mxu0 0
  %4347 = vmatpush1.bf16.msra.mxu0 0
  %4348 = vmatprep.subr.bf16.mxu0 0
  %4349 = vmatpush1.bf16.msra.mxu0 0
  %4350 = vmatprep.subr.bf16.mxu0 0
  %4351 = vmatpush1.bf16.msra.mxu0 0
  %4352 = vmatprep.subr.bf16.mxu0 0
  %4353 = vmatpush1.bf16.msra.mxu0 %v4338
  %4354 = vmatprep.subr.bf16.mxu0 0
  %4355 = vmatpush1.bf16.msra.mxu0 %v4234
  %4356 = vmatprep.subr.bf16.mxu0 0
  %4357 = vmatpush2.bf16.msra.mxu0 0
  %4358 = vmatprep.subr.bf16.mxu0 0
  %4359 = vmatpush2.bf16.msra.mxu0 0
  %4360 = vmatprep.subr.bf16.mxu0 0
  %4361 = vmatpush2.bf16.msra.mxu0 0
  %4362 = vmatprep.subr.bf16.mxu0 0
  %4363 = vmatpush2.bf16.msra.mxu0 0
  %4364 = vmatprep.subr.bf16.mxu0 0
  %4365 = vmatpush2.bf16.msra.mxu0 0
  %4366 = vmatprep.subr.bf16.mxu0 0
  %4367 = vmatpush2.bf16.msra.mxu0 0
  %4368 = vmatprep.subr.bf16.mxu0 0
  %4369 = vmatpush2.bf16.msra.mxu0 0
  %4370 = vmatprep.subr.bf16.mxu0 0
  %4371 = vmatpush2.bf16.msra.mxu0 0
  %4372 = vmatprep.mubr.bf16.mxu0 0
  %4373 = vmatmul.mubr.bf16.gmra.mxu0 %v4239
  %v4374 = vpop.f32.mrf.mxu0
  %v4375 = vadd.f32 0.0, %v4374
  %v4376 = vpop.f32.mrf.mxu0
  %v4377 = vpop.f32.mrf.mxu0
  %v4378 = vadd.f32 0.0, %v4377
  %v4379 = vpop.f32.mrf.mxu0
  %4380 = vmatprep.mubr.bf16.mxu0 0
  %4381 = vmatmul.mubr.bf16.gmra.mxu0 %v4242
  %v4382 = vpop.f32.mrf.mxu0
  %v4383 = vadd.f32 0.0, %v4382
  %v4384 = vpop.f32.mrf.mxu0
  %v4385 = vpop.f32.mrf.mxu0
  %v4386 = vadd.f32 0.0, %v4385
  %v4387 = vpop.f32.mrf.mxu0
  %4388 = vmatprep.mubr.bf16.mxu0 0
  %4389 = vmatmul.mubr.bf16.gmra.mxu0 %v4245
  %v4390 = vpop.f32.mrf.mxu0
  %v4391 = vadd.f32 0.0, %v4390
  %v4392 = vpop.f32.mrf.mxu0
  %v4393 = vpop.f32.mrf.mxu0
  %v4394 = vadd.f32 0.0, %v4393
  %v4395 = vpop.f32.mrf.mxu0
  %4396 = vmatprep.mubr.bf16.mxu0 0
  %4397 = vmatmul.mubr.bf16.gmra.mxu0 %v4248
  %v4398 = vpop.f32.mrf.mxu0
  %v4399 = vadd.f32 0.0, %v4398
  %v4400 = vpop.f32.mrf.mxu0
  %v4401 = vpop.f32.mrf.mxu0
  %v4402 = vadd.f32 0.0, %v4401
  %v4403 = vpop.f32.mrf.mxu0
  %4404 = vmatprep.mubr.bf16.mxu0 0
  %4405 = vmatmul.mubr.bf16.gmra.mxu0 %v4251
  %v4406 = vpop.f32.mrf.mxu0
  %v4407 = vadd.f32 0.0, %v4406
  %v4408 = vpop.f32.mrf.mxu0
  %v4409 = vpop.f32.mrf.mxu0
  %v4410 = vadd.f32 0.0, %v4409
  %v4411 = vpop.f32.mrf.mxu0
  %4412 = vmatprep.mubr.bf16.mxu0 0
  %4413 = vmatmul.mubr.bf16.gmra.mxu0 %v4254
  %v4414 = vpop.f32.mrf.mxu0
  %v4415 = vadd.f32 0.0, %v4414
  %v4416 = vpop.f32.mrf.mxu0
  %v4417 = vpop.f32.mrf.mxu0
  %v4418 = vadd.f32 0.0, %v4417
  %v4419 = vpop.f32.mrf.mxu0
  %4420 = vmatprep.mubr.bf16.mxu0 0
  %4421 = vmatmul.mubr.bf16.gmra.mxu0 %v4257
  %v4422 = vpop.f32.mrf.mxu0
  %v4423 = vadd.f32 0.0, %v4422
  %v4424 = vpop.f32.mrf.mxu0
  %v4425 = vpop.f32.mrf.mxu0
  %v4426 = vadd.f32 0.0, %v4425
  %v4427 = vpop.f32.mrf.mxu0
  %4428 = vmatprep.mubr.bf16.mxu0 0
  %4429 = vmatmul.mubr.bf16.gmra.mxu0 %v4260
  %v4430 = vpop.f32.mrf.mxu0
  %v4431 = vadd.f32 0.0, %v4430
  %v4432 = vpop.f32.mrf.mxu0
  %v4433 = vpop.f32.mrf.mxu0
  %v4434 = vadd.f32 0.0, %v4433
  %v4435 = vpop.f32.mrf.mxu0
  %4436 = vmatprep.mubr.bf16.mxu0 0
  %4437 = vmatmul.mubr.bf16.gmra.mxu0 %v4263
  %v4438 = vpop.f32.mrf.mxu0
  %v4439 = vadd.f32 0.0, %v4438
  %v4440 = vpop.f32.mrf.mxu0
  %v4441 = vpop.f32.mrf.mxu0
  %v4442 = vadd.f32 0.0, %v4441
  %v4443 = vpop.f32.mrf.mxu0
  %4444 = vmatprep.mubr.bf16.mxu0 0
  %4445 = vmatmul.mubr.bf16.gmra.mxu0 %v4266
  %v4446 = vpop.f32.mrf.mxu0
  %v4447 = vadd.f32 0.0, %v4446
  %v4448 = vpop.f32.mrf.mxu0
  %v4449 = vpop.f32.mrf.mxu0
  %v4450 = vadd.f32 0.0, %v4449
  %v4451 = vpop.f32.mrf.mxu0
  %4452 = vmatprep.mubr.bf16.mxu0 0
  %4453 = vmatmul.mubr.bf16.gmra.mxu0 %v4269
  %v4454 = vpop.f32.mrf.mxu0
  %v4455 = vadd.f32 0.0, %v4454
  %v4456 = vpop.f32.mrf.mxu0
  %v4457 = vpop.f32.mrf.mxu0
  %v4458 = vadd.f32 0.0, %v4457
  %v4459 = vpop.f32.mrf.mxu0
  %4460 = vmatprep.mubr.bf16.mxu0 0
  %4461 = vmatmul.mubr.bf16.gmra.mxu0 %v4272
  %v4462 = vpop.f32.mrf.mxu0
  %v4463 = vadd.f32 0.0, %v4462
  %v4464 = vpop.f32.mrf.mxu0
  %v4465 = vpop.f32.mrf.mxu0
  %v4466 = vadd.f32 0.0, %v4465
  %v4467 = vpop.f32.mrf.mxu0
  %4468 = vmatprep.mubr.bf16.mxu0 0
  %4469 = vmatmul.mubr.bf16.gmra.mxu0 %v4275
  %v4470 = vpop.f32.mrf.mxu0
  %v4471 = vadd.f32 0.0, %v4470
  %v4472 = vpop.f32.mrf.mxu0
  %v4473 = vpop.f32.mrf.mxu0
  %v4474 = vadd.f32 0.0, %v4473
  %v4475 = vpop.f32.mrf.mxu0
  %4476 = vmatprep.mubr.bf16.mxu0 0
  %4477 = vmatmul.mubr.bf16.gmra.mxu0 %v4278
  %v4478 = vpop.f32.mrf.mxu0
  %v4479 = vadd.f32 0.0, %v4478
  %v4480 = vpop.f32.mrf.mxu0
  %v4481 = vpop.f32.mrf.mxu0
  %v4482 = vadd.f32 0.0, %v4481
  %v4483 = vpop.f32.mrf.mxu0
  %4484 = vmatprep.mubr.bf16.mxu0 0
  %4485 = vmatmul.mubr.bf16.gmra.mxu0 %v4281
  %v4486 = vpop.f32.mrf.mxu0
  %v4487 = vadd.f32 0.0, %v4486
  %v4488 = vpop.f32.mrf.mxu0
  %v4489 = vpop.f32.mrf.mxu0
  %v4490 = vadd.f32 0.0, %v4489
  %v4491 = vpop.f32.mrf.mxu0
  %4492 = vmatprep.mubr.bf16.mxu0 0
  %4493 = vmatmul.mubr.bf16.gmra.mxu0 %v4284
  %v4494 = vpop.f32.mrf.mxu0
  %v4495 = vadd.f32 0.0, %v4494
  %v4496 = vpop.f32.mrf.mxu0
  %v4497 = vpop.f32.mrf.mxu0
  %v4498 = vadd.f32 0.0, %v4497
  %v4499 = vpop.f32.mrf.mxu0
  %4500 = vmatprep.mubr.bf16.mxu0 0
  %4501 = vmatmul.mubr.bf16.gmra.mxu0 %v4287
  %v4502 = vpop.f32.mrf.mxu0
  %v4503 = vadd.f32 0.0, %v4502
  %v4504 = vpop.f32.mrf.mxu0
  %v4505 = vpop.f32.mrf.mxu0
  %v4506 = vadd.f32 0.0, %v4505
  %v4507 = vpop.f32.mrf.mxu0
  %4508 = vmatprep.mubr.bf16.mxu0 0
  %4509 = vmatmul.mubr.bf16.gmra.mxu0 %v4290
  %v4510 = vpop.f32.mrf.mxu0
  %v4511 = vadd.f32 0.0, %v4510
  %v4512 = vpop.f32.mrf.mxu0
  %v4513 = vpop.f32.mrf.mxu0
  %v4514 = vadd.f32 0.0, %v4513
  %v4515 = vpop.f32.mrf.mxu0
  %4516 = vmatprep.mubr.bf16.mxu0 0
  %4517 = vmatmul.mubr.bf16.gmra.mxu0 %v4293
  %v4518 = vpop.f32.mrf.mxu0
  %v4519 = vadd.f32 0.0, %v4518
  %v4520 = vpop.f32.mrf.mxu0
  %v4521 = vpop.f32.mrf.mxu0
  %v4522 = vadd.f32 0.0, %v4521
  %v4523 = vpop.f32.mrf.mxu0
  %4524 = vmatprep.mubr.bf16.mxu0 0
  %4525 = vmatmul.mubr.bf16.gmra.mxu0 %v4296
  %v4526 = vpop.f32.mrf.mxu0
  %v4527 = vadd.f32 0.0, %v4526
  %v4528 = vpop.f32.mrf.mxu0
  %v4529 = vpop.f32.mrf.mxu0
  %v4530 = vadd.f32 0.0, %v4529
  %v4531 = vpop.f32.mrf.mxu0
  %4532 = vmatprep.mubr.bf16.mxu0 0
  %4533 = vmatmul.mubr.bf16.gmra.mxu0 %v4299
  %v4534 = vpop.f32.mrf.mxu0
  %v4535 = vadd.f32 0.0, %v4534
  %v4536 = vpop.f32.mrf.mxu0
  %v4537 = vpop.f32.mrf.mxu0
  %v4538 = vadd.f32 0.0, %v4537
  %v4539 = vpop.f32.mrf.mxu0
  %4540 = vmatprep.mubr.bf16.mxu0 0
  %4541 = vmatmul.mubr.bf16.gmra.mxu0 %v4302
  %v4542 = vpop.f32.mrf.mxu0
  %v4543 = vadd.f32 0.0, %v4542
  %v4544 = vpop.f32.mrf.mxu0
  %v4545 = vpop.f32.mrf.mxu0
  %v4546 = vadd.f32 0.0, %v4545
  %v4547 = vpop.f32.mrf.mxu0
  %4548 = vmatprep.mubr.bf16.mxu0 0
  %4549 = vmatmul.mubr.bf16.gmra.mxu0 %v4305
  %v4550 = vpop.f32.mrf.mxu0
  %v4551 = vadd.f32 0.0, %v4550
  %v4552 = vpop.f32.mrf.mxu0
  %v4553 = vpop.f32.mrf.mxu0
  %v4554 = vadd.f32 0.0, %v4553
  %v4555 = vpop.f32.mrf.mxu0
  %4556 = vmatprep.mubr.bf16.mxu0 0
  %4557 = vmatmul.mubr.bf16.gmra.mxu0 %v4308
  %v4558 = vpop.f32.mrf.mxu0
  %v4559 = vadd.f32 0.0, %v4558
  %v4560 = vpop.f32.mrf.mxu0
  %v4561 = vpop.f32.mrf.mxu0
  %v4562 = vadd.f32 0.0, %v4561
  %v4563 = vpop.f32.mrf.mxu0
  %4564 = vmatprep.mubr.bf16.mxu0 0
  %4565 = vmatmul.mubr.bf16.gmra.mxu0 %v4311
  %v4566 = vpop.f32.mrf.mxu0
  %v4567 = vadd.f32 0.0, %v4566
  %v4568 = vpop.f32.mrf.mxu0
  %v4569 = vpop.f32.mrf.mxu0
  %v4570 = vadd.f32 0.0, %v4569
  %v4571 = vpop.f32.mrf.mxu0
  %4572 = vmatprep.mubr.bf16.mxu0 0
  %4573 = vmatmul.mubr.bf16.gmra.mxu0 %v4314
  %v4574 = vpop.f32.mrf.mxu0
  %v4575 = vadd.f32 0.0, %v4574
  %v4576 = vpop.f32.mrf.mxu0
  %v4577 = vpop.f32.mrf.mxu0
  %v4578 = vadd.f32 0.0, %v4577
  %v4579 = vpop.f32.mrf.mxu0
  %4580 = vmatprep.mubr.bf16.mxu0 0
  %4581 = vmatmul.mubr.bf16.gmra.mxu0 %v4317
  %v4582 = vpop.f32.mrf.mxu0
  %v4583 = vadd.f32 0.0, %v4582
  %v4584 = vpop.f32.mrf.mxu0
  %v4585 = vpop.f32.mrf.mxu0
  %v4586 = vadd.f32 0.0, %v4585
  %v4587 = vpop.f32.mrf.mxu0
  %4588 = vmatprep.mubr.bf16.mxu0 0
  %4589 = vmatmul.mubr.bf16.gmra.mxu0 %v4320
  %v4590 = vpop.f32.mrf.mxu0
  %v4591 = vadd.f32 0.0, %v4590
  %v4592 = vpop.f32.mrf.mxu0
  %v4593 = vpop.f32.mrf.mxu0
  %v4594 = vadd.f32 0.0, %v4593
  %v4595 = vpop.f32.mrf.mxu0
  %4596 = vmatprep.mubr.bf16.mxu0 0
  %4597 = vmatmul.mubr.bf16.gmra.mxu0 %v4323
  %v4598 = vpop.f32.mrf.mxu0
  %v4599 = vadd.f32 0.0, %v4598
  %v4600 = vpop.f32.mrf.mxu0
  %v4601 = vpop.f32.mrf.mxu0
  %v4602 = vadd.f32 0.0, %v4601
  %v4603 = vpop.f32.mrf.mxu0
  %4604 = vmatprep.mubr.bf16.mxu0 0
  %4605 = vmatmul.mubr.bf16.gmra.mxu0 %v4326
  %v4606 = vpop.f32.mrf.mxu0
  %v4607 = vadd.f32 0.0, %v4606
  %v4608 = vpop.f32.mrf.mxu0
  %v4609 = vpop.f32.mrf.mxu0
  %v4610 = vadd.f32 0.0, %v4609
  %v4611 = vpop.f32.mrf.mxu0
  %4612 = vmatprep.mubr.bf16.mxu0 0
  %4613 = vmatmul.mubr.bf16.gmra.mxu0 %v4329
  %v4614 = vpop.f32.mrf.mxu0
  %v4615 = vadd.f32 0.0, %v4614
  %v4616 = vpop.f32.mrf.mxu0
  %v4617 = vpop.f32.mrf.mxu0
  %v4618 = vadd.f32 0.0, %v4617
  %v4619 = vpop.f32.mrf.mxu0
  %4620 = vmatprep.mubr.bf16.mxu0 0
  %4621 = vmatmul.mubr.bf16.gmra.mxu0 %v4332
  %v4622 = vpop.f32.mrf.mxu0
  %v4623 = vadd.f32 0.0, %v4622
  %v4624 = vpop.f32.mrf.mxu0
  %v4625 = vpop.f32.mrf.mxu0
  %v4626 = vadd.f32 0.0, %v4625
  %v4627 = vpop.f32.mrf.mxu0
  %4628 = vdwg.mxu0
  %v4629 = vld [vmem:[%s2] sm:$0x1]
  %v4631 = vlaneseq
  %v4632 = vshrl.u32 %v4631, 7
  %v4633 = vsub.s32 0, %v4632
  %v4634 = vrot.slane %v4629, %v4633
  %v4636 = vmul.f32 %v4375, %v4634
  %v4637 = vmul.f32 %v4378, %v4634
  %v4638 = vmul.f32 %v4383, %v4634
  %v4639 = vmul.f32 %v4386, %v4634
  %v4640 = vmul.f32 %v4391, %v4634
  %v4641 = vmul.f32 %v4394, %v4634
  %v4642 = vmul.f32 %v4399, %v4634
  %v4643 = vmul.f32 %v4402, %v4634
  %v4644 = vmul.f32 %v4407, %v4634
  %v4645 = vmul.f32 %v4410, %v4634
  %v4646 = vmul.f32 %v4415, %v4634
  %v4647 = vmul.f32 %v4418, %v4634
  %v4648 = vmul.f32 %v4423, %v4634
  %v4649 = vmul.f32 %v4426, %v4634
  %v4650 = vmul.f32 %v4431, %v4634
  %v4651 = vmul.f32 %v4434, %v4634
  %v4652 = vmul.f32 %v4439, %v4634
  %v4653 = vmul.f32 %v4442, %v4634
  %v4654 = vmul.f32 %v4447, %v4634
  %v4655 = vmul.f32 %v4450, %v4634
  %v4656 = vmul.f32 %v4455, %v4634
  %v4657 = vmul.f32 %v4458, %v4634
  %v4658 = vmul.f32 %v4463, %v4634
  %v4659 = vmul.f32 %v4466, %v4634
  %v4660 = vmul.f32 %v4471, %v4634
  %v4661 = vmul.f32 %v4474, %v4634
  %v4662 = vmul.f32 %v4479, %v4634
  %v4663 = vmul.f32 %v4482, %v4634
  %v4664 = vmul.f32 %v4487, %v4634
  %v4665 = vmul.f32 %v4490, %v4634
  %v4666 = vmul.f32 %v4495, %v4634
  %v4667 = vmul.f32 %v4498, %v4634
  %v4668 = vmul.f32 %v4503, %v4634
  %v4669 = vmul.f32 %v4506, %v4634
  %v4670 = vmul.f32 %v4511, %v4634
  %v4671 = vmul.f32 %v4514, %v4634
  %v4672 = vmul.f32 %v4519, %v4634
  %v4673 = vmul.f32 %v4522, %v4634
  %v4674 = vmul.f32 %v4527, %v4634
  %v4675 = vmul.f32 %v4530, %v4634
  %v4676 = vmul.f32 %v4535, %v4634
  %v4677 = vmul.f32 %v4538, %v4634
  %v4678 = vmul.f32 %v4543, %v4634
  %v4679 = vmul.f32 %v4546, %v4634
  %v4680 = vmul.f32 %v4551, %v4634
  %v4681 = vmul.f32 %v4554, %v4634
  %v4682 = vmul.f32 %v4559, %v4634
  %v4683 = vmul.f32 %v4562, %v4634
  %v4684 = vmul.f32 %v4567, %v4634
  %v4685 = vmul.f32 %v4570, %v4634
  %v4686 = vmul.f32 %v4575, %v4634
  %v4687 = vmul.f32 %v4578, %v4634
  %v4688 = vmul.f32 %v4583, %v4634
  %v4689 = vmul.f32 %v4586, %v4634
  %v4690 = vmul.f32 %v4591, %v4634
  %v4691 = vmul.f32 %v4594, %v4634
  %v4692 = vmul.f32 %v4599, %v4634
  %v4693 = vmul.f32 %v4602, %v4634
  %v4694 = vmul.f32 %v4607, %v4634
  %v4695 = vmul.f32 %v4610, %v4634
  %v4696 = vmul.f32 %v4615, %v4634
  %v4697 = vmul.f32 %v4618, %v4634
  %v4698 = vmul.f32 %v4623, %v4634
  %v4699 = vmul.f32 %v4626, %v4634
  %v4700 = vld [vmem:[%s3] sm:$0x1]
  %v4702 = vlaneseq
  %v4703 = vshrl.u32 %v4702, 7
  %v4704 = vsub.s32 0, %v4703
  %v4705 = vrot.slane %v4700, %v4704
  %v4707 = vadd.f32 %v4636, %v4705
  %v4708 = vadd.f32 %v4637, %v4705
  %v4709 = vadd.f32 %v4638, %v4705
  %v4710 = vadd.f32 %v4639, %v4705
  %v4711 = vadd.f32 %v4640, %v4705
  %v4712 = vadd.f32 %v4641, %v4705
  %v4713 = vadd.f32 %v4642, %v4705
  %v4714 = vadd.f32 %v4643, %v4705
  %v4715 = vadd.f32 %v4644, %v4705
  %v4716 = vadd.f32 %v4645, %v4705
  %v4717 = vadd.f32 %v4646, %v4705
  %v4718 = vadd.f32 %v4647, %v4705
  %v4719 = vadd.f32 %v4648, %v4705
  %v4720 = vadd.f32 %v4649, %v4705
  %v4721 = vadd.f32 %v4650, %v4705
  %v4722 = vadd.f32 %v4651, %v4705
  %v4723 = vadd.f32 %v4652, %v4705
  %v4724 = vadd.f32 %v4653, %v4705
  %v4725 = vadd.f32 %v4654, %v4705
  %v4726 = vadd.f32 %v4655, %v4705
  %v4727 = vadd.f32 %v4656, %v4705
  %v4728 = vadd.f32 %v4657, %v4705
  %v4729 = vadd.f32 %v4658, %v4705
  %v4730 = vadd.f32 %v4659, %v4705
  %v4731 = vadd.f32 %v4660, %v4705
  %v4732 = vadd.f32 %v4661, %v4705
  %v4733 = vadd.f32 %v4662, %v4705
  %v4734 = vadd.f32 %v4663, %v4705
  %v4735 = vadd.f32 %v4664, %v4705
  %v4736 = vadd.f32 %v4665, %v4705
  %v4737 = vadd.f32 %v4666, %v4705
  %v4738 = vadd.f32 %v4667, %v4705
  %v4739 = vadd.f32 %v4668, %v4705
  %v4740 = vadd.f32 %v4669, %v4705
  %v4741 = vadd.f32 %v4670, %v4705
  %v4742 = vadd.f32 %v4671, %v4705
  %v4743 = vadd.f32 %v4672, %v4705
  %v4744 = vadd.f32 %v4673, %v4705
  %v4745 = vadd.f32 %v4674, %v4705
  %v4746 = vadd.f32 %v4675, %v4705
  %v4747 = vadd.f32 %v4676, %v4705
  %v4748 = vadd.f32 %v4677, %v4705
  %v4749 = vadd.f32 %v4678, %v4705
  %v4750 = vadd.f32 %v4679, %v4705
  %v4751 = vadd.f32 %v4680, %v4705
  %v4752 = vadd.f32 %v4681, %v4705
  %v4753 = vadd.f32 %v4682, %v4705
  %v4754 = vadd.f32 %v4683, %v4705
  %v4755 = vadd.f32 %v4684, %v4705
  %v4756 = vadd.f32 %v4685, %v4705
  %v4757 = vadd.f32 %v4686, %v4705
  %v4758 = vadd.f32 %v4687, %v4705
  %v4759 = vadd.f32 %v4688, %v4705
  %v4760 = vadd.f32 %v4689, %v4705
  %v4761 = vadd.f32 %v4690, %v4705
  %v4762 = vadd.f32 %v4691, %v4705
  %v4763 = vadd.f32 %v4692, %v4705
  %v4764 = vadd.f32 %v4693, %v4705
  %v4765 = vadd.f32 %v4694, %v4705
  %v4766 = vadd.f32 %v4695, %v4705
  %v4767 = vadd.f32 %v4696, %v4705
  %v4768 = vadd.f32 %v4697, %v4705
  %v4769 = vadd.f32 %v4698, %v4705
  %v4770 = vadd.f32 %v4699, %v4705
  %v4771 = vmax.f32 %v4707, 0.0
  %v4772 = vmax.f32 %v4708, 0.0
  %v4773 = vmax.f32 %v4709, 0.0
  %v4774 = vmax.f32 %v4710, 0.0
  %v4775 = vmax.f32 %v4711, 0.0
  %v4776 = vmax.f32 %v4712, 0.0
  %v4777 = vmax.f32 %v4713, 0.0
  %v4778 = vmax.f32 %v4714, 0.0
  %v4779 = vmax.f32 %v4715, 0.0
  %v4780 = vmax.f32 %v4716, 0.0
  %v4781 = vmax.f32 %v4717, 0.0
  %v4782 = vmax.f32 %v4718, 0.0
  %v4783 = vmax.f32 %v4719, 0.0
  %v4784 = vmax.f32 %v4720, 0.0
  %v4785 = vmax.f32 %v4721, 0.0
  %v4786 = vmax.f32 %v4722, 0.0
  %v4787 = vmax.f32 %v4723, 0.0
  %v4788 = vmax.f32 %v4724, 0.0
  %v4789 = vmax.f32 %v4725, 0.0
  %v4790 = vmax.f32 %v4726, 0.0
  %v4791 = vmax.f32 %v4727, 0.0
  %v4792 = vmax.f32 %v4728, 0.0
  %v4793 = vmax.f32 %v4729, 0.0
  %v4794 = vmax.f32 %v4730, 0.0
  %v4795 = vmax.f32 %v4731, 0.0
  %v4796 = vmax.f32 %v4732, 0.0
  %v4797 = vmax.f32 %v4733, 0.0
  %v4798 = vmax.f32 %v4734, 0.0
  %v4799 = vmax.f32 %v4735, 0.0
  %v4800 = vmax.f32 %v4736, 0.0
  %v4801 = vmax.f32 %v4737, 0.0
  %v4802 = vmax.f32 %v4738, 0.0
  %v4803 = vmax.f32 %v4739, 0.0
  %v4804 = vmax.f32 %v4740, 0.0
  %v4805 = vmax.f32 %v4741, 0.0
  %v4806 = vmax.f32 %v4742, 0.0
  %v4807 = vmax.f32 %v4743, 0.0
  %v4808 = vmax.f32 %v4744, 0.0
  %v4809 = vmax.f32 %v4745, 0.0
  %v4810 = vmax.f32 %v4746, 0.0
  %v4811 = vmax.f32 %v4747, 0.0
  %v4812 = vmax.f32 %v4748, 0.0
  %v4813 = vmax.f32 %v4749, 0.0
  %v4814 = vmax.f32 %v4750, 0.0
  %v4815 = vmax.f32 %v4751, 0.0
  %v4816 = vmax.f32 %v4752, 0.0
  %v4817 = vmax.f32 %v4753, 0.0
  %v4818 = vmax.f32 %v4754, 0.0
  %v4819 = vmax.f32 %v4755, 0.0
  %v4820 = vmax.f32 %v4756, 0.0
  %v4821 = vmax.f32 %v4757, 0.0
  %v4822 = vmax.f32 %v4758, 0.0
  %v4823 = vmax.f32 %v4759, 0.0
  %v4824 = vmax.f32 %v4760, 0.0
  %v4825 = vmax.f32 %v4761, 0.0
  %v4826 = vmax.f32 %v4762, 0.0
  %v4827 = vmax.f32 %v4763, 0.0
  %v4828 = vmax.f32 %v4764, 0.0
  %v4829 = vmax.f32 %v4765, 0.0
  %v4830 = vmax.f32 %v4766, 0.0
  %v4831 = vmax.f32 %v4767, 0.0
  %v4832 = vmax.f32 %v4768, 0.0
  %v4833 = vmax.f32 %v4769, 0.0
  %v4834 = vmax.f32 %v4770, 0.0
  %v4835 = vmax.f32 %v4771, %v4773
  %v4836 = vmax.f32 %v4772, %v4774
  %v4837 = vmax.f32 %v4775, %v4777
  %v4838 = vmax.f32 %v4776, %v4778
  %v4839 = vmax.f32 %v4779, %v4781
  %v4840 = vmax.f32 %v4780, %v4782
  %v4841 = vmax.f32 %v4783, %v4785
  %v4842 = vmax.f32 %v4784, %v4786
  %v4843 = vmax.f32 %v4787, %v4789
  %v4844 = vmax.f32 %v4788, %v4790
  %v4845 = vmax.f32 %v4791, %v4793
  %v4846 = vmax.f32 %v4792, %v4794
  %v4847 = vmax.f32 %v4795, %v4797
  %v4848 = vmax.f32 %v4796, %v4798
  %v4849 = vmax.f32 %v4799, %v4801
  %v4850 = vmax.f32 %v4800, %v4802
  %v4851 = vmax.f32 %v4803, %v4805
  %v4852 = vmax.f32 %v4804, %v4806
  %v4853 = vmax.f32 %v4807, %v4809
  %v4854 = vmax.f32 %v4808, %v4810
  %v4855 = vmax.f32 %v4811, %v4813
  %v4856 = vmax.f32 %v4812, %v4814
  %v4857 = vmax.f32 %v4815, %v4817
  %v4858 = vmax.f32 %v4816, %v4818
  %v4859 = vmax.f32 %v4819, %v4821
  %v4860 = vmax.f32 %v4820, %v4822
  %v4861 = vmax.f32 %v4823, %v4825
  %v4862 = vmax.f32 %v4824, %v4826
  %v4863 = vmax.f32 %v4827, %v4829
  %v4864 = vmax.f32 %v4828, %v4830
  %v4865 = vmax.f32 %v4831, %v4833
  %v4866 = vmax.f32 %v4832, %v4834
  %vm4867 = vcmask 261120
  %4868 = vst.msk [vmem:[#allocation2] sm:$0xff] %vm4867, %v4835
  %4869 = vst.msk [vmem:[#allocation2 + $0x8] sm:$0xff] %vm4867, %v4836
  %4870 = vst.msk [vmem:[#allocation2 + $0x10] sm:$0xff] %vm4867, %v4837
  %4871 = vst.msk [vmem:[#allocation2 + $0x18] sm:$0xff] %vm4867, %v4838
  %4872 = vst.msk [vmem:[#allocation2 + $0x20] sm:$0xff] %vm4867, %v4839
  %4873 = vst.msk [vmem:[#allocation2 + $0x28] sm:$0xff] %vm4867, %v4840
  %4874 = vst.msk [vmem:[#allocation2 + $0x30] sm:$0xff] %vm4867, %v4841
  %4875 = vst.msk [vmem:[#allocation2 + $0x38] sm:$0xff] %vm4867, %v4842
  %4876 = vst.msk [vmem:[#allocation2 + $0x40] sm:$0xff] %vm4867, %v4843
  %4877 = vst.msk [vmem:[#allocation2 + $0x48] sm:$0xff] %vm4867, %v4844
  %4878 = vst.msk [vmem:[#allocation2 + $0x50] sm:$0xff] %vm4867, %v4845
  %4879 = vst.msk [vmem:[#allocation2 + $0x58] sm:$0xff] %vm4867, %v4846
  %4880 = vst.msk [vmem:[#allocation2 + $0x60] sm:$0xff] %vm4867, %v4847
  %4881 = vst.msk [vmem:[#allocation2 + $0x68] sm:$0xff] %vm4867, %v4848
  %4882 = vst.msk [vmem:[#allocation2 + $0x70] sm:$0xff] %vm4867, %v4849
  %4883 = vst.msk [vmem:[#allocation2 + $0x78] sm:$0xff] %vm4867, %v4850
  %4884 = vst.msk [vmem:[#allocation2 + $0x80] sm:$0xff] %vm4867, %v4851
  %4885 = vst.msk [vmem:[#allocation2 + $0x88] sm:$0xff] %vm4867, %v4852
  %4886 = vst.msk [vmem:[#allocation2 + $0x90] sm:$0xff] %vm4867, %v4853
  %4887 = vst.msk [vmem:[#allocation2 + $0x98] sm:$0xff] %vm4867, %v4854
  %4888 = vst.msk [vmem:[#allocation2 + $0xa0] sm:$0xff] %vm4867, %v4855
  %4889 = vst.msk [vmem:[#allocation2 + $0xa8] sm:$0xff] %vm4867, %v4856
  %4890 = vst.msk [vmem:[#allocation2 + $0xb0] sm:$0xff] %vm4867, %v4857
  %4891 = vst.msk [vmem:[#allocation2 + $0xb8] sm:$0xff] %vm4867, %v4858
  %4892 = vst.msk [vmem:[#allocation2 + $0xc0] sm:$0xff] %vm4867, %v4859
  %4893 = vst.msk [vmem:[#allocation2 + $0xc8] sm:$0xff] %vm4867, %v4860
  %4894 = vst.msk [vmem:[#allocation2 + $0xd0] sm:$0xff] %vm4867, %v4861
  %4895 = vst.msk [vmem:[#allocation2 + $0xd8] sm:$0xff] %vm4867, %v4862
  %4896 = vst.msk [vmem:[#allocation2 + $0xe0] sm:$0xff] %vm4867, %v4863
  %4897 = vst.msk [vmem:[#allocation2 + $0xe8] sm:$0xff] %vm4867, %v4864
  %4898 = vst.msk [vmem:[#allocation2 + $0xf0] sm:$0xff] %vm4867, %v4865
  %4899 = vst.msk [vmem:[#allocation2 + $0xf8] sm:$0xff] %vm4867, %v4866
  %v4900 = vld [vmem:[#allocation2] ss:$2 sm:$0xff]
  %s4901 = scalar_lea.vmem [#allocation2], 16
  %v4902 = vld [vmem:[%s4901] ss:$2 sm:$0xff]
  %s4903 = scalar_lea.vmem [#allocation2], 32
  %v4904 = vld [vmem:[%s4903] ss:$2 sm:$0xff]
  %s4905 = scalar_lea.vmem [#allocation2], 48
  %v4906 = vld [vmem:[%s4905] ss:$2 sm:$0xff]
  %s4907 = scalar_lea.vmem [#allocation2], 64
  %v4908 = vld [vmem:[%s4907] ss:$2 sm:$0xff]
  %s4909 = scalar_lea.vmem [#allocation2], 80
  %v4910 = vld [vmem:[%s4909] ss:$2 sm:$0xff]
  %s4911 = scalar_lea.vmem [#allocation2], 96
  %v4912 = vld [vmem:[%s4911] ss:$2 sm:$0xff]
  %s4913 = scalar_lea.vmem [#allocation2], 112
  %v4914 = vld [vmem:[%s4913] ss:$2 sm:$0xff]
  %s4915 = scalar_lea.vmem [#allocation2], 128
  %v4916 = vld [vmem:[%s4915] ss:$2 sm:$0xff]
  %s4917 = scalar_lea.vmem [#allocation2], 144
  %v4918 = vld [vmem:[%s4917] ss:$2 sm:$0xff]
  %s4919 = scalar_lea.vmem [#allocation2], 160
  %v4920 = vld [vmem:[%s4919] ss:$2 sm:$0xff]
  %s4921 = scalar_lea.vmem [#allocation2], 176
  %v4922 = vld [vmem:[%s4921] ss:$2 sm:$0xff]
  %s4923 = scalar_lea.vmem [#allocation2], 192
  %v4924 = vld [vmem:[%s4923] ss:$2 sm:$0xff]
  %s4925 = scalar_lea.vmem [#allocation2], 208
  %v4926 = vld [vmem:[%s4925] ss:$2 sm:$0xff]
  %s4927 = scalar_lea.vmem [#allocation2], 224
  %v4928 = vld [vmem:[%s4927] ss:$2 sm:$0xff]
  %s4929 = scalar_lea.vmem [#allocation2], 240
  %v4930 = vld [vmem:[%s4929] ss:$2 sm:$0xff]
  %s4931 = scalar_lea.vmem [#allocation2], 1
  %v4932 = vld [vmem:[%s4931] ss:$2 sm:$0xff]
  %s4933 = scalar_lea.vmem [#allocation2], 17
  %v4934 = vld [vmem:[%s4933] ss:$2 sm:$0xff]
  %s4935 = scalar_lea.vmem [#allocation2], 33
  %v4936 = vld [vmem:[%s4935] ss:$2 sm:$0xff]
  %s4937 = scalar_lea.vmem [#allocation2], 49
  %v4938 = vld [vmem:[%s4937] ss:$2 sm:$0xff]
  %s4939 = scalar_lea.vmem [#allocation2], 65
  %v4940 = vld [vmem:[%s4939] ss:$2 sm:$0xff]
  %s4941 = scalar_lea.vmem [#allocation2], 81
  %v4942 = vld [vmem:[%s4941] ss:$2 sm:$0xff]
  %s4943 = scalar_lea.vmem [#allocation2], 97
  %v4944 = vld [vmem:[%s4943] ss:$2 sm:$0xff]
  %s4945 = scalar_lea.vmem [#allocation2], 113
  %v4946 = vld [vmem:[%s4945] ss:$2 sm:$0xff]
  %s4947 = scalar_lea.vmem [#allocation2], 129
  %v4948 = vld [vmem:[%s4947] ss:$2 sm:$0xff]
  %s4949 = scalar_lea.vmem [#allocation2], 145
  %v4950 = vld [vmem:[%s4949] ss:$2 sm:$0xff]
  %s4951 = scalar_lea.vmem [#allocation2], 161
  %v4952 = vld [vmem:[%s4951] ss:$2 sm:$0xff]
  %s4953 = scalar_lea.vmem [#allocation2], 177
  %v4954 = vld [vmem:[%s4953] ss:$2 sm:$0xff]
  %s4955 = scalar_lea.vmem [#allocation2], 193
  %v4956 = vld [vmem:[%s4955] ss:$2 sm:$0xff]
  %s4957 = scalar_lea.vmem [#allocation2], 209
  %v4958 = vld [vmem:[%s4957] ss:$2 sm:$0xff]
  %s4959 = scalar_lea.vmem [#allocation2], 225
  %v4960 = vld [vmem:[%s4959] ss:$2 sm:$0xff]
  %s4961 = scalar_lea.vmem [#allocation2], 241
  %v4962 = vld [vmem:[%s4961] ss:$2 sm:$0xff]
  %v4963 = vmax.f32 %v4900, %v4932
  %v4964 = vmax.f32 %v4902, %v4934
  %v4965 = vmax.f32 %v4904, %v4936
  %v4966 = vmax.f32 %v4906, %v4938
  %v4967 = vmax.f32 %v4908, %v4940
  %v4968 = vmax.f32 %v4910, %v4942
  %v4969 = vmax.f32 %v4912, %v4944
  %v4970 = vmax.f32 %v4914, %v4946
  %v4971 = vmax.f32 %v4916, %v4948
  %v4972 = vmax.f32 %v4918, %v4950
  %v4973 = vmax.f32 %v4920, %v4952
  %v4974 = vmax.f32 %v4922, %v4954
  %v4975 = vmax.f32 %v4924, %v4956
  %v4976 = vmax.f32 %v4926, %v4958
  %v4977 = vmax.f32 %v4928, %v4960
  %v4978 = vmax.f32 %v4930, %v4962
  %v4979 = vpack.c.bf16 %v4964, %v4963
  %v4980 = vpack.c.bf16 %v4966, %v4965
  %v4981 = vpack.c.bf16 %v4968, %v4967
  %v4982 = vpack.c.bf16 %v4970, %v4969
  %v4983 = vpack.c.bf16 %v4972, %v4971
  %v4984 = vpack.c.bf16 %v4974, %v4973
  %v4985 = vpack.c.bf16 %v4976, %v4975
  %v4986 = vpack.c.bf16 %v4978, %v4977
  %v4995 = vunpack.c.l.b16 %v4979
  %v4996 = vunpack.c.h.b16 %v4979
  %v4997 = vunpack.c.l.b16 %v4980
  %v4998 = vunpack.c.h.b16 %v4980
  %v4999 = vunpack.c.l.b16 %v4981
  %v5000 = vunpack.c.h.b16 %v4981
  %v5001 = vunpack.c.l.b16 %v4982
  %v5002 = vunpack.c.h.b16 %v4982
  %v5003 = vunpack.c.l.b16 %v4983
  %v5004 = vunpack.c.h.b16 %v4983
  %v5005 = vunpack.c.l.b16 %v4984
  %v5006 = vunpack.c.h.b16 %v4984
  %v5007 = vunpack.c.l.b16 %v4985
  %v5008 = vunpack.c.h.b16 %v4985
  %v5009 = vunpack.c.l.b16 %v4986
  %v5010 = vunpack.c.h.b16 %v4986
  %v5011 = vpack.c.b16 %v4995, %v4995
  %v5012 = vpack.c.b16 %v4996, %v4996
  %v5013 = vpack.c.b16 %v4997, %v4997
  %v5014 = vpack.c.b16 %v4998, %v4998
  %v5015 = vpack.c.b16 %v4999, %v4999
  %v5016 = vpack.c.b16 %v5000, %v5000
  %v5017 = vpack.c.b16 %v5001, %v5001
  %v5018 = vpack.c.b16 %v5002, %v5002
  %v5019 = vpack.c.b16 %v5003, %v5003
  %v5020 = vpack.c.b16 %v5004, %v5004
  %v5021 = vpack.c.b16 %v5005, %v5005
  %v5022 = vpack.c.b16 %v5006, %v5006
  %v5023 = vpack.c.b16 %v5007, %v5007
  %v5024 = vpack.c.b16 %v5008, %v5008
  %v5025 = vpack.c.b16 %v5009, %v5009
  %v5026 = vpack.c.b16 %v5010, %v5010
  %vm5043 = vcmask 257024
  %5044 = vst.msk [vmem:[%s4] sm:$0xf] %vm5043, %v5011
  %5045 = vst.msk [vmem:[%s4 + $0x4] sm:$0xf] %vm5043, %v5012
  %5046 = vst.msk [vmem:[%s4 + $0x8] sm:$0xf] %vm5043, %v5013
  %5047 = vst.msk [vmem:[%s4 + $0xc] sm:$0xf] %vm5043, %v5014
  %5048 = vst.msk [vmem:[%s4 + $0x10] sm:$0xf] %vm5043, %v5015
  %5049 = vst.msk [vmem:[%s4 + $0x14] sm:$0xf] %vm5043, %v5016
  %5050 = vst.msk [vmem:[%s4 + $0x18] sm:$0xf] %vm5043, %v5017
  %5051 = vst.msk [vmem:[%s4 + $0x1c] sm:$0xf] %vm5043, %v5018
  %5052 = vst.msk [vmem:[%s4 + $0x20] sm:$0xf] %vm5043, %v5019
  %5053 = vst.msk [vmem:[%s4 + $0x24] sm:$0xf] %vm5043, %v5020
  %5054 = vst.msk [vmem:[%s4 + $0x28] sm:$0xf] %vm5043, %v5021
  %5055 = vst.msk [vmem:[%s4 + $0x2c] sm:$0xf] %vm5043, %v5022
  %5056 = vst.msk [vmem:[%s4 + $0x30] sm:$0xf] %vm5043, %v5023
  %5057 = vst.msk [vmem:[%s4 + $0x34] sm:$0xf] %vm5043, %v5024
  %5058 = vst.msk [vmem:[%s4 + $0x38] sm:$0xf] %vm5043, %v5025
  %5059 = vst.msk [vmem:[%s4 + $0x3c] sm:$0xf] %vm5043, %v5026
  // Predicated region
  $region18: #{thermal_classifier_forward.3} parent=0 // pred_check
    _
  $region19: #{thermal_classifier_forward.3} parent=0 // pred_check_branch
    %5061 = sbr.rel (0) target = $region21
  $region20: #{thermal_classifier_forward.3} parent=0 // pred_region
    _
  $region21: #{thermal_classifier_forward.3} parent=0 // pred_fallthru
    _
  // Predicated region
  $region22: #{thermal_classifier_forward.3} parent=0 // pred_check
    _
  $region23: #{thermal_classifier_forward.3} parent=0 // pred_check_branch
    %5063 = sbr.rel (0) target = $region25
  $region24: #{thermal_classifier_forward.3} parent=0 // pred_region
    _
  $region25: #{thermal_classifier_forward.3} parent=0 // pred_fallthru
    _

</llo_original>
